<compile_context>
chip_gen: v6e
topology: v6e:2x2x1
jax: 0.10.0
libtpu: 0.0.40
codegen_flags: <defaults>
</compile_context>

<pallas_src>
import numpy as np
import jax
import jax.numpy as jnp
from jax import lax
from jax.experimental import pallas as pl
from jax.experimental.pallas import tpu as pltpu

_EPS = 1e-5


# ---------------------------------------------------------------------------
# Static layout helpers
# ---------------------------------------------------------------------------
def _pitch(h):
    """Power-of-two per-image row pitch >= h + 2 (halo-padded height), min 8."""
    p = 8
    while p < h + 2:
        p *= 2
    return p


# ---------------------------------------------------------------------------
# Host-side weight folding / banded-matrix construction
# ---------------------------------------------------------------------------
def _fold_conv_bn(w, bn):
    """Fold eval-mode BatchNorm into the conv: (wf[kh,kw,ci,co] f32, bias[co])."""
    gamma, beta, mean, var = bn
    scale = gamma / jnp.sqrt(var + _EPS)
    bias = beta - mean * scale
    wf = jnp.transpose(w, (2, 3, 1, 0)) * scale          # (3, 3, Cin, Cout)
    return wf, bias


def _band_stride1(wf, width):
    """3 banded matrices (W*Cin, W*Cout): one dense matmul per conv row-tap."""
    mats = []
    for kh in range(3):
        t = None
        for kw in range(3):
            s = np.eye(width, k=-(kw - 1), dtype=np.float32)   # s[wi,wo]=1 iff wi==wo+kw-1
            m = jnp.kron(jnp.asarray(s), wf[kh, kw])
            t = m if t is None else t + m
        mats.append(t)
    return jnp.stack(mats).astype(jnp.bfloat16)               # (3, W*Cin, W*Cout)


def _band_stride2(wf, w_in):
    """3 banded matrices (Win*Cin, (Win//2)*Cout) for a stride-2 conv row-tap."""
    w_out = w_in // 2
    mats = []
    for kh in range(3):
        t = None
        for kw in range(3):
            s = np.zeros((w_in, w_out), np.float32)
            for wo in range(w_out):
                wi = 2 * wo + kw - 1
                if 0 <= wi < w_in:
                    s[wi, wo] = 1.0
            m = jnp.kron(jnp.asarray(s), wf[kh, kw])
            t = m if t is None else t + m
        mats.append(t)
    return jnp.stack(mats).astype(jnp.bfloat16)


def _shortcut_matrix(w_in, cin):
    """Option-'A' shortcut (x[:, ::2, ::2] + channel zero-pad) as a 0/1 matmul."""
    w_out, cout, pad = w_in // 2, 2 * cin, cin // 2
    s = np.zeros((w_in, w_out), np.float32)
    s[2 * np.arange(w_out), np.arange(w_out)] = 1.0
    p = np.zeros((cin, cout), np.float32)
    p[np.arange(cin), np.arange(cin) + pad] = 1.0
    return jnp.asarray(np.kron(s, p), jnp.bfloat16)           # (Win*Cin, Wo*Cout)


def _row_select_matrix(nb, p_in, p_out, h_out):
    """G[n*p_out+ho, n*p_in+2*ho] = 1 : batched stride-2 row gather as a matmul."""
    g = np.zeros((nb * p_out - 2, nb * p_in - 2), np.float32)
    for n in range(nb):
        for ho in range(h_out):
            g[n * p_out + ho, n * p_in + 2 * ho] = 1.0
    return jnp.asarray(g, jnp.bfloat16)


def _pool_matrix(nb, pitch, h):
    """Q[n, n*pitch+h'] = 1/(h*h): batched global avg-pool (square maps) as matmul."""
    q = np.zeros((nb, nb * pitch - 2), np.float32)
    for n in range(nb):
        for ho in range(h):
            q[n, n * pitch + ho] = 1.0 / float(h * h)
    return jnp.asarray(q, jnp.float32)


def _bias_row(bias, width):
    """Per-channel bias replicated over the width -> (1, W*Cout) f32 row."""
    return jnp.tile(bias, (width,)).reshape(1, -1).astype(jnp.float32)


# ---------------------------------------------------------------------------
# Whole-network forward: one fused Pallas kernel
# ---------------------------------------------------------------------------
def resnet_forward(params, x_nchw):
    N, C0, H0, W0 = x_nchw.shape
    num_classes = params["linear_w"].shape[0]
    assert H0 == W0 and H0 % 4 == 0, "square input with H divisible by 4 expected"

    # ---- static network structure ----
    blocks = []
    in_planes, h = 16, H0
    for lname, planes, s0 in (("layer1", 16, 1), ("layer2", 32, 2), ("layer3", 64, 2)):
        for i, bp in enumerate(params[lname]):
            s = s0 if i == 0 else 1
            blocks.append(dict(p=bp, stride=s, cin=in_planes, h_in=h))
            h, in_planes = h // s, planes
    h_last = h

    # ---- batch tiling: Nb images share one grid step ----
    Nb = N if N <= 8 else 8
    Npad = ((N + Nb - 1) // Nb) * Nb
    LANES = W0 * 16                       # W*C is identical for every post-stem layer
    P0 = _pitch(H0)

    # ---- one-time input packing: NCHW -> halo-padded bf16 slab [Npad*P0, W0*C0]
    xh = jnp.transpose(x_nchw.astype(jnp.float32), (0, 2, 3, 1)).reshape(N, H0, W0 * C0)
    x_slab = jnp.pad(xh, ((0, Npad - N), (1, P0 - 1 - H0), (0, 0)))
    x_slab = x_slab.reshape(Npad * P0, W0 * C0).astype(jnp.bfloat16)

    # ---- VMEM-resident folded weights ----
    # TODO(synk): BatchNorm is folded in eval mode (running stats); training-mode
    # batch-statistic updates are not reproduced.
    w_arrays = []

    def add(a):
        w_arrays.append(a)
        return len(w_arrays) - 1

    wf0, b0 = _fold_conv_bn(params["conv1_w"], params["bn1"])
    stem_T = add(_band_stride1(wf0, W0))
    stem_b = add(_bias_row(b0, W0))

    plan = []
    for blk in blocks:
        s, cin, h_in = blk["stride"], blk["cin"], blk["h_in"]
        w_in = h_in
        h_out, w_out = h_in // s, w_in // s
        wf1, b1 = _fold_conv_bn(blk["p"]["conv1_w"], blk["p"]["bn1"])
        wf2, b2 = _fold_conv_bn(blk["p"]["conv2_w"], blk["p"]["bn2"])
        e = dict(stride=s, h_out=h_out, p_in=_pitch(h_in), p_out=_pitch(h_out),
                 b1=add(_bias_row(b1, w_out)),
                 T2=add(_band_stride1(wf2, w_out)),
                 b2=add(_bias_row(b2, w_out)))
        if s == 1:
            e["T1"] = add(_band_stride1(wf1, w_in))
        else:
            e["T1"] = add(_band_stride2(wf1, w_in))
            e["G"] = add(_row_select_matrix(Nb, e["p_in"], e["p_out"], h_out))
            e["S"] = add(_shortcut_matrix(w_in, cin))
        plan.append(e)

    P_last = _pitch(h_last)
    R_last = Nb * P_last - 2
    head_Q = add(_pool_matrix(Nb, P_last, h_last))
    head_P = add(jnp.tile(jnp.transpose(params["linear_w"]).astype(jnp.float32),
                          (h_last, 1)))                       # (W*C_last, num_classes)
    head_b = add(params["linear_b"].reshape(1, num_classes).astype(jnp.float32))
    n_w = len(w_arrays)

    # ---- the fused kernel ----
    def kernel(*refs):
        x_ref = refs[0]
        w = refs[1:1 + n_w]
        out_ref = refs[1 + n_w]
        sa, sb, sm = refs[2 + n_w:]
        f32, bf16 = jnp.float32, jnp.bfloat16

        def valid_rows(rows, pitch, height):
            r = lax.broadcasted_iota(jnp.int32, (rows, 1), 0) + 1
            in_img = jnp.bitwise_and(r, pitch - 1)            # row index within image
            return jnp.logical_and(in_img >= 1, in_img <= height)

        def conv3(load, t_idx):
            t = w[t_idx]
            acc = jnp.dot(load(0), t[0], preferred_element_type=f32)
            acc = acc + jnp.dot(load(1), t[1], preferred_element_type=f32)
            acc = acc + jnp.dot(load(2), t[2], preferred_element_type=f32)
            return acc

        def store_slab(dst, rows, vals):
            zero = jnp.zeros((1, vals.shape[1]), dst.dtype)
            dst[0:1, :] = zero                 # top guard of image 0
            dst[1:1 + rows, :] = vals          # data rows + masked-to-zero guard rows
            dst[1 + rows:2 + rows, :] = zero   # last row of the active range

        # ---------- stem: conv 3->16 + BN + ReLU ----------
        rows0 = Nb * P0 - 2
        acc = conv3(lambda j: x_ref[j:j + rows0, :], stem_T)
        act = jnp.maximum(acc + w[stem_b][...], 0.0)
        act = jnp.where(valid_rows(rows0, P0, H0), act, 0.0)
        store_slab(sa, rows0, act)

        # ---------- BasicBlocks ----------
        cur, nxt = sa, sb
        for e in plan:
            p_in, p_out, h_out = e["p_in"], e["p_out"], e["h_out"]
            r_out = Nb * p_out - 2
            mask = valid_rows(r_out, p_out, h_out)

            if e["stride"] == 1:
                acc1 = conv3(lambda j, s=cur, r=r_out: s[j:j + r, :].astype(bf16),
                             e["T1"])
                resid = cur[1:1 + r_out, :]                    # identity shortcut
            else:
                # stride-2: gather the needed input rows via the 0/1 matrix G
                k_in = Nb * p_in - 2
                g = w[e["G"]][...]
                a = [jnp.dot(g, cur[j:j + k_in, :].astype(bf16),
                             preferred_element_type=f32).astype(bf16)
                     for j in range(3)]
                t1 = w[e["T1"]]
                acc1 = jnp.dot(a[0], t1[0], preferred_element_type=f32)
                acc1 = acc1 + jnp.dot(a[1], t1[1], preferred_element_type=f32)
                acc1 = acc1 + jnp.dot(a[2], t1[2], preferred_element_type=f32)
                # option-'A' shortcut (x[:, ::2, ::2] + channel zero-pad) as a matmul
                resid = jnp.dot(a[1], w[e["S"]][...], preferred_element_type=f32)

            h1 = jnp.maximum(acc1 + w[e["b1"]][...], 0.0)
            h1 = jnp.where(mask, h1, 0.0)
            store_slab(sm, r_out, h1)

            acc2 = conv3(lambda j, r=r_out: sm[j:j + r, :].astype(bf16), e["T2"])
            out = jnp.maximum(acc2 + w[e["b2"]][...] + resid, 0.0)
            out = jnp.where(mask, out, 0.0)
            store_slab(nxt, r_out, out)
            cur, nxt = nxt, cur

        # ---------- head: global average pool + linear, fused ----------
        pooled = jnp.dot(w[head_Q][...], cur[1:1 + R_last, :],
                         preferred_element_type=f32)
        logits = jnp.dot(pooled, w[head_P][...], preferred_element_type=f32)
        out_ref[...] = logits + w[head_b][...]

    # ---- pallas_call plumbing ----
    def const_map(nd):
        return lambda n: (0,) * nd

    in_specs = [pl.BlockSpec((Nb * P0, W0 * C0), lambda n: (n, 0))]
    in_specs += [pl.BlockSpec(a.shape, const_map(a.ndim)) for a in w_arrays]

    logits = pl.pallas_call(
        kernel,
        out_shape=jax.ShapeDtypeStruct((Npad, num_classes), jnp.float32),
        grid=(Npad // Nb,),
        in_specs=in_specs,
        out_specs=pl.BlockSpec((Nb, num_classes), lambda n: (n, 0)),
        scratch_shapes=[pltpu.VMEM((Nb * P0, LANES), jnp.float32) for _ in range(3)],
        compiler_params=pltpu.CompilerParams(dimension_semantics=("parallel",)),
    )(x_slab, *w_arrays)
    return logits[:N]


# ---------------------------------------------------------------------------
# Pure-JAX/XLA reference (same quantization points as the kernel)
# ---------------------------------------------------------------------------
def resnet_reference(params, x_nchw):
    x = jnp.transpose(x_nchw, (0, 2, 3, 1)).astype(jnp.float32)

    def conv_bn(inp, wgt, bn, stride):
        wf, b = _fold_conv_bn(wgt, bn)
        y = lax.conv_general_dilated(
            inp.astype(jnp.bfloat16), wf.astype(jnp.bfloat16),
            window_strides=(stride, stride), padding=((1, 1), (1, 1)),
            dimension_numbers=("NHWC", "HWIO", "NHWC"),
            preferred_element_type=jnp.float32)
        return y + b

    out = jnp.maximum(conv_bn(x, params["conv1_w"], params["bn1"], 1), 0.0)
    for lname, planes, s0 in (("layer1", 16, 1), ("layer2", 32, 2), ("layer3", 64, 2)):
        for i, bp in enumerate(params[lname]):
            stride = s0 if i == 0 else 1
            h1 = jnp.maximum(conv_bn(out, bp["conv1_w"], bp["bn1"], stride), 0.0)
            y = conv_bn(h1, bp["conv2_w"], bp["bn2"], 1)
            if stride == 1:
                sc = out
            else:
                pad = planes // 4
                sc = out.astype(jnp.bfloat16).astype(jnp.float32)[:, ::2, ::2, :]
                sc = jnp.pad(sc, ((0, 0), (0, 0), (0, 0), (pad, pad)))
            out = jnp.maximum(y + sc, 0.0)
    pooled = jnp.mean(out, axis=(1, 2))
    return pooled @ jnp.transpose(params["linear_w"]) + params["linear_b"]


# ---------------------------------------------------------------------------
# Deterministic parameter construction (kaiming-normal conv/linear weights)
# ---------------------------------------------------------------------------
def init_params(key, num_blocks=(1, 1, 1), num_classes=10):
    keys = iter(jax.random.split(key, 256))

    def kaiming_conv(cout, cin):
        fan_in = cin * 9
        std = (2.0 / fan_in) ** 0.5
        return jax.random.normal(next(keys), (cout, cin, 3, 3), jnp.float32) * std

    def bn_params(c):
        gamma = 1.0 + 0.1 * jax.random.normal(next(keys), (c,), jnp.float32)
        beta = 0.1 * jax.random.normal(next(keys), (c,), jnp.float32)
        mean = 0.1 * jax.random.normal(next(keys), (c,), jnp.float32)
        var = 1.0 + 0.1 * jax.random.uniform(next(keys), (c,), jnp.float32)
        return (gamma, beta, mean, var)

    params = {"conv1_w": kaiming_conv(16, 3), "bn1": bn_params(16)}
    in_planes = 16
    for name, planes, nb in (("layer1", 16, num_blocks[0]),
                             ("layer2", 32, num_blocks[1]),
                             ("layer3", 64, num_blocks[2])):
        blks = []
        for _ in range(nb):
            blks.append({
                "conv1_w": kaiming_conv(planes, in_planes),
                "bn1": bn_params(planes),
                "conv2_w": kaiming_conv(planes, planes),
                "bn2": bn_params(planes),
            })
            in_planes = planes
        params[name] = blks
    params["linear_w"] = (
        jax.random.normal(next(keys), (num_classes, 64), jnp.float32)
        * (2.0 / 64.0) ** 0.5
    )
    params["linear_b"] = 0.1 * jax.random.normal(next(keys), (num_classes,), jnp.float32)
    return params


if __name__ == "__main__":
    key = jax.random.PRNGKey(0)
    pkey, xkey = jax.random.split(key)
    params = init_params(pkey, num_blocks=(1, 1, 1), num_classes=10)

    # CIFAR-like input (NCHW like PyTorch): batch=2, channels=3, spatial=16.
    x = jax.random.normal(xkey, (2, 3, 16, 16), jnp.float32)

    logits = jax.jit(resnet_forward)(params, x)
    jax.block_until_ready(logits)
    assert logits.shape == (2, 10) and logits.dtype == jnp.float32

    # Numerical check against a pure-JAX reference with matching bf16/f32 cast points.
    ref = jax.jit(resnet_reference)(params, x)
    err = float(jnp.max(jnp.abs(logits - ref)))
    assert err < 5e-2, f"kernel/reference mismatch: max abs err = {err}"
    print("KERNEL_OK")
</pallas_src>

<mosaic_0001>
module attributes {stable_mosaic.version = 11 : i64} {
  func.func @kernel(%arg0: i32, %arg1: memref<64x48xbf16, #tpu.memory_space<vmem>>, %arg2: memref<3x48x256xbf16, #tpu.memory_space<vmem>>, %arg3: memref<1x256xf32, #tpu.memory_space<vmem>>, %arg4: memref<1x256xf32, #tpu.memory_space<vmem>>, %arg5: memref<3x256x256xbf16, #tpu.memory_space<vmem>>, %arg6: memref<1x256xf32, #tpu.memory_space<vmem>>, %arg7: memref<3x256x256xbf16, #tpu.memory_space<vmem>>, %arg8: memref<1x256xf32, #tpu.memory_space<vmem>>, %arg9: memref<3x256x256xbf16, #tpu.memory_space<vmem>>, %arg10: memref<1x256xf32, #tpu.memory_space<vmem>>, %arg11: memref<3x256x256xbf16, #tpu.memory_space<vmem>>, %arg12: memref<30x62xbf16, #tpu.memory_space<vmem>>, %arg13: memref<256x256xbf16, #tpu.memory_space<vmem>>, %arg14: memref<1x256xf32, #tpu.memory_space<vmem>>, %arg15: memref<3x256x256xbf16, #tpu.memory_space<vmem>>, %arg16: memref<1x256xf32, #tpu.memory_space<vmem>>, %arg17: memref<3x256x256xbf16, #tpu.memory_space<vmem>>, %arg18: memref<14x30xbf16, #tpu.memory_space<vmem>>, %arg19: memref<256x256xbf16, #tpu.memory_space<vmem>>, %arg20: memref<2x14xf32, #tpu.memory_space<vmem>>, %arg21: memref<256x10xf32, #tpu.memory_space<vmem>>, %arg22: memref<1x10xf32, #tpu.memory_space<vmem>>, %arg23: memref<2x10xf32, #tpu.memory_space<vmem>>, %arg24: memref<64x256xf32, #tpu.memory_space<vmem>>, %arg25: memref<64x256xf32, #tpu.memory_space<vmem>>, %arg26: memref<64x256xf32, #tpu.memory_space<vmem>>) attributes {dimension_semantics = [#tpu.dimension_semantics<parallel>], iteration_bounds = array<i64: 1>, scalar_prefetch = 0 : i64, scratch_operands = 3 : i64, tpu.core_type = #tpu.core_type<tc>, window_params = [{transform_indices = @transform_0, window_bounds = array<i64: 64, 48>}, {pipeline_mode = #tpu.pipeline_mode<synchronous>, transform_indices = @transform_1, window_bounds = array<i64: 3, 48, 256>}, {pipeline_mode = #tpu.pipeline_mode<synchronous>, transform_indices = @transform_2, window_bounds = array<i64: 1, 256>}, {pipeline_mode = #tpu.pipeline_mode<synchronous>, transform_indices = @transform_3, window_bounds = array<i64: 1, 256>}, {pipeline_mode = #tpu.pipeline_mode<synchronous>, transform_indices = @transform_4, window_bounds = array<i64: 3, 256, 256>}, {pipeline_mode = #tpu.pipeline_mode<synchronous>, transform_indices = @transform_5, window_bounds = array<i64: 1, 256>}, {pipeline_mode = #tpu.pipeline_mode<synchronous>, transform_indices = @transform_6, window_bounds = array<i64: 3, 256, 256>}, {pipeline_mode = #tpu.pipeline_mode<synchronous>, transform_indices = @transform_7, window_bounds = array<i64: 1, 256>}, {pipeline_mode = #tpu.pipeline_mode<synchronous>, transform_indices = @transform_8, window_bounds = array<i64: 3, 256, 256>}, {pipeline_mode = #tpu.pipeline_mode<synchronous>, transform_indices = @transform_9, window_bounds = array<i64: 1, 256>}, {pipeline_mode = #tpu.pipeline_mode<synchronous>, transform_indices = @transform_10, window_bounds = array<i64: 3, 256, 256>}, {pipeline_mode = #tpu.pipeline_mode<synchronous>, transform_indices = @transform_11, window_bounds = array<i64: 30, 62>}, {pipeline_mode = #tpu.pipeline_mode<synchronous>, transform_indices = @transform_12, window_bounds = array<i64: 256, 256>}, {pipeline_mode = #tpu.pipeline_mode<synchronous>, transform_indices = @transform_13, window_bounds = array<i64: 1, 256>}, {pipeline_mode = #tpu.pipeline_mode<synchronous>, transform_indices = @transform_14, window_bounds = array<i64: 3, 256, 256>}, {pipeline_mode = #tpu.pipeline_mode<synchronous>, transform_indices = @transform_15, window_bounds = array<i64: 1, 256>}, {pipeline_mode = #tpu.pipeline_mode<synchronous>, transform_indices = @transform_16, window_bounds = array<i64: 3, 256, 256>}, {pipeline_mode = #tpu.pipeline_mode<synchronous>, transform_indices = @transform_17, window_bounds = array<i64: 14, 30>}, {pipeline_mode = #tpu.pipeline_mode<synchronous>, transform_indices = @transform_18, window_bounds = array<i64: 256, 256>}, {pipeline_mode = #tpu.pipeline_mode<synchronous>, transform_indices = @transform_19, window_bounds = array<i64: 2, 14>}, {pipeline_mode = #tpu.pipeline_mode<synchronous>, transform_indices = @transform_20, window_bounds = array<i64: 256, 10>}, {pipeline_mode = #tpu.pipeline_mode<synchronous>, transform_indices = @transform_21, window_bounds = array<i64: 1, 10>}, {transform_indices = @transform_22, window_bounds = array<i64: 2, 10>}]} {
    %c0 = arith.constant 0 : index
    %c0_0 = arith.constant 0 : index
    %0 = vector.load %arg1[%c0, %c0_0] : memref<64x48xbf16, #tpu.memory_space<vmem>>, vector<62x48xbf16>
    %c0_1 = arith.constant 0 : index
    %c0_2 = arith.constant 0 : index
    %c0_3 = arith.constant 0 : index
    %1 = vector.load %arg2[%c0_1, %c0_2, %c0_3] : memref<3x48x256xbf16, #tpu.memory_space<vmem>>, vector<1x48x256xbf16>
    %2 = vector.shape_cast %1 : vector<1x48x256xbf16> to vector<48x256xbf16>
    %cst = arith.constant dense<0.000000e+00> : vector<62x256xf32>
    %3 = tpu.matmul %0, %2, %cst {dimension_numbers = #tpu.dot_dimension_numbers<[1], [0], [0], [1], [0, 0, 1, 1], [], []>} : vector<62x48xbf16>, vector<48x256xbf16>, vector<62x256xf32> -> vector<62x256xf32>
    %c1 = arith.constant 1 : index
    %c0_4 = arith.constant 0 : index
    %4 = vector.load %arg1[%c1, %c0_4] : memref<64x48xbf16, #tpu.memory_space<vmem>>, vector<62x48xbf16>
    %c1_5 = arith.constant 1 : index
    %c0_6 = arith.constant 0 : index
    %c0_7 = arith.constant 0 : index
    %5 = vector.load %arg2[%c1_5, %c0_6, %c0_7] : memref<3x48x256xbf16, #tpu.memory_space<vmem>>, vector<1x48x256xbf16>
    %6 = vector.shape_cast %5 : vector<1x48x256xbf16> to vector<48x256xbf16>
    %cst_8 = arith.constant dense<0.000000e+00> : vector<62x256xf32>
    %7 = tpu.matmul %4, %6, %cst_8 {dimension_numbers = #tpu.dot_dimension_numbers<[1], [0], [0], [1], [0, 0, 1, 1], [], []>} : vector<62x48xbf16>, vector<48x256xbf16>, vector<62x256xf32> -> vector<62x256xf32>
    %8 = arith.addf %3, %7 : vector<62x256xf32>
    %c2 = arith.constant 2 : index
    %c0_9 = arith.constant 0 : index
    %9 = vector.load %arg1[%c2, %c0_9] : memref<64x48xbf16, #tpu.memory_space<vmem>>, vector<62x48xbf16>
    %c2_10 = arith.constant 2 : index
    %c0_11 = arith.constant 0 : index
    %c0_12 = arith.constant 0 : index
    %10 = vector.load %arg2[%c2_10, %c0_11, %c0_12] : memref<3x48x256xbf16, #tpu.memory_space<vmem>>, vector<1x48x256xbf16>
    %11 = vector.shape_cast %10 : vector<1x48x256xbf16> to vector<48x256xbf16>
    %cst_13 = arith.constant dense<0.000000e+00> : vector<62x256xf32>
    %12 = tpu.matmul %9, %11, %cst_13 {dimension_numbers = #tpu.dot_dimension_numbers<[1], [0], [0], [1], [0, 0, 1, 1], [], []>} : vector<62x48xbf16>, vector<48x256xbf16>, vector<62x256xf32> -> vector<62x256xf32>
    %13 = arith.addf %8, %12 : vector<62x256xf32>
    %c0_14 = arith.constant 0 : index
    %c0_15 = arith.constant 0 : index
    %14 = vector.load %arg3[%c0_14, %c0_15] : memref<1x256xf32, #tpu.memory_space<vmem>>, vector<1x256xf32>
    %15 = vector.broadcast %14 : vector<1x256xf32> to vector<62x256xf32>
    %16 = arith.addf %13, %15 : vector<62x256xf32>
    %cst_16 = arith.constant 0.000000e+00 : f32
    %17 = vector.broadcast %cst_16 : f32 to vector<62x256xf32>
    %18 = arith.maximumf %16, %17 : vector<62x256xf32>
    %19 = tpu.iota {dimensions = array<i32: 0>} : vector<62x1xi32>
    %c1_i32 = arith.constant 1 : i32
    %20 = vector.broadcast %c1_i32 : i32 to vector<62x1xi32>
    %21 = arith.addi %19, %20 : vector<62x1xi32>
    %c31_i32 = arith.constant 31 : i32
    %22 = vector.broadcast %c31_i32 : i32 to vector<62x1xi32>
    %23 = arith.andi %21, %22 : vector<62x1xi32>
    %c1_i32_17 = arith.constant 1 : i32
    %24 = vector.broadcast %c1_i32_17 : i32 to vector<62x1xi32>
    %25 = arith.cmpi sge, %23, %24 : vector<62x1xi32>
    %c16_i32 = arith.constant 16 : i32
    %26 = vector.broadcast %c16_i32 : i32 to vector<62x1xi32>
    %27 = arith.cmpi sle, %23, %26 : vector<62x1xi32>
    %28 = arith.andi %25, %27 : vector<62x1xi1>
    %cst_18 = arith.constant 0.000000e+00 : f32
    %29 = vector.shape_cast %28 : vector<62x1xi1> to vector<62x1xi1>
    %30 = vector.broadcast %29 : vector<62x1xi1> to vector<62x256xi1>
    %31 = vector.broadcast %cst_18 : f32 to vector<62x256xf32>
    %32 = arith.select %30, %18, %31 : vector<62x256xi1>, vector<62x256xf32>
    %cst_19 = arith.constant 0.000000e+00 : f32
    %33 = vector.broadcast %cst_19 : f32 to vector<1x256xf32>
    %c0_20 = arith.constant 0 : index
    %c0_21 = arith.constant 0 : index
    %34 = vector.load %arg24[%c0_20, %c0_21] : memref<64x256xf32, #tpu.memory_space<vmem>>, vector<1x256xf32>
    tpu.vector_store %arg24[%c0_20, %c0_21], %33 {strides = array<i32>} : memref<64x256xf32, #tpu.memory_space<vmem>>, vector<1x256xf32>,
    %c1_22 = arith.constant 1 : index
    %c0_23 = arith.constant 0 : index
    %35 = vector.load %arg24[%c1_22, %c0_23] : memref<64x256xf32, #tpu.memory_space<vmem>>, vector<62x256xf32>
    tpu.vector_store %arg24[%c1_22, %c0_23], %32 {strides = array<i32>} : memref<64x256xf32, #tpu.memory_space<vmem>>, vector<62x256xf32>,
    %c63 = arith.constant 63 : index
    %c0_24 = arith.constant 0 : index
    %36 = vector.load %arg24[%c63, %c0_24] : memref<64x256xf32, #tpu.memory_space<vmem>>, vector<1x256xf32>
    tpu.vector_store %arg24[%c63, %c0_24], %33 {strides = array<i32>} : memref<64x256xf32, #tpu.memory_space<vmem>>, vector<1x256xf32>,
    %37 = tpu.iota {dimensions = array<i32: 0>} : vector<62x1xi32>
    %c1_i32_25 = arith.constant 1 : i32
    %38 = vector.broadcast %c1_i32_25 : i32 to vector<62x1xi32>
    %39 = arith.addi %37, %38 : vector<62x1xi32>
    %c31_i32_26 = arith.constant 31 : i32
    %40 = vector.broadcast %c31_i32_26 : i32 to vector<62x1xi32>
    %41 = arith.andi %39, %40 : vector<62x1xi32>
    %c1_i32_27 = arith.constant 1 : i32
    %42 = vector.broadcast %c1_i32_27 : i32 to vector<62x1xi32>
    %43 = arith.cmpi sge, %41, %42 : vector<62x1xi32>
    %c16_i32_28 = arith.constant 16 : i32
    %44 = vector.broadcast %c16_i32_28 : i32 to vector<62x1xi32>
    %45 = arith.cmpi sle, %41, %44 : vector<62x1xi32>
    %46 = arith.andi %43, %45 : vector<62x1xi1>
    %c0_29 = arith.constant 0 : index
    %c0_30 = arith.constant 0 : index
    %47 = vector.load %arg24[%c0_29, %c0_30] : memref<64x256xf32, #tpu.memory_space<vmem>>, vector<62x256xf32>
    %48 = arith.truncf %47 : vector<62x256xf32> to vector<62x256xbf16>
    %c0_31 = arith.constant 0 : index
    %c0_32 = arith.constant 0 : index
    %c0_33 = arith.constant 0 : index
    %49 = vector.load %arg7[%c0_31, %c0_32, %c0_33] : memref<3x256x256xbf16, #tpu.memory_space<vmem>>, vector<1x256x256xbf16>
    %50 = vector.shape_cast %49 : vector<1x256x256xbf16> to vector<256x256xbf16>
    %cst_34 = arith.constant dense<0.000000e+00> : vector<62x256xf32>
    %51 = tpu.matmul %48, %50, %cst_34 {dimension_numbers = #tpu.dot_dimension_numbers<[1], [0], [0], [1], [0, 0, 1, 1], [], []>} : vector<62x256xbf16>, vector<256x256xbf16>, vector<62x256xf32> -> vector<62x256xf32>
    %c1_35 = arith.constant 1 : index
    %c0_36 = arith.constant 0 : index
    %52 = vector.load %arg24[%c1_35, %c0_36] : memref<64x256xf32, #tpu.memory_space<vmem>>, vector<62x256xf32>
    %53 = arith.truncf %52 : vector<62x256xf32> to vector<62x256xbf16>
    %c1_37 = arith.constant 1 : index
    %c0_38 = arith.constant 0 : index
    %c0_39 = arith.constant 0 : index
    %54 = vector.load %arg7[%c1_37, %c0_38, %c0_39] : memref<3x256x256xbf16, #tpu.memory_space<vmem>>, vector<1x256x256xbf16>
    %55 = vector.shape_cast %54 : vector<1x256x256xbf16> to vector<256x256xbf16>
    %cst_40 = arith.constant dense<0.000000e+00> : vector<62x256xf32>
    %56 = tpu.matmul %53, %55, %cst_40 {dimension_numbers = #tpu.dot_dimension_numbers<[1], [0], [0], [1], [0, 0, 1, 1], [], []>} : vector<62x256xbf16>, vector<256x256xbf16>, vector<62x256xf32> -> vector<62x256xf32>
    %57 = arith.addf %51, %56 : vector<62x256xf32>
    %c2_41 = arith.constant 2 : index
    %c0_42 = arith.constant 0 : index
    %58 = vector.load %arg24[%c2_41, %c0_42] : memref<64x256xf32, #tpu.memory_space<vmem>>, vector<62x256xf32>
    %59 = arith.truncf %58 : vector<62x256xf32> to vector<62x256xbf16>
    %c2_43 = arith.constant 2 : index
    %c0_44 = arith.constant 0 : index
    %c0_45 = arith.constant 0 : index
    %60 = vector.load %arg7[%c2_43, %c0_44, %c0_45] : memref<3x256x256xbf16, #tpu.memory_space<vmem>>, vector<1x256x256xbf16>
    %61 = vector.shape_cast %60 : vector<1x256x256xbf16> to vector<256x256xbf16>
    %cst_46 = arith.constant dense<0.000000e+00> : vector<62x256xf32>
    %62 = tpu.matmul %59, %61, %cst_46 {dimension_numbers = #tpu.dot_dimension_numbers<[1], [0], [0], [1], [0, 0, 1, 1], [], []>} : vector<62x256xbf16>, vector<256x256xbf16>, vector<62x256xf32> -> vector<62x256xf32>
    %63 = arith.addf %57, %62 : vector<62x256xf32>
    %c1_47 = arith.constant 1 : index
    %c0_48 = arith.constant 0 : index
    %64 = vector.load %arg24[%c1_47, %c0_48] : memref<64x256xf32, #tpu.memory_space<vmem>>, vector<62x256xf32>
    %c0_49 = arith.constant 0 : index
    %c0_50 = arith.constant 0 : index
    %65 = vector.load %arg4[%c0_49, %c0_50] : memref<1x256xf32, #tpu.memory_space<vmem>>, vector<1x256xf32>
    %66 = vector.broadcast %65 : vector<1x256xf32> to vector<62x256xf32>
    %67 = arith.addf %63, %66 : vector<62x256xf32>
    %cst_51 = arith.constant 0.000000e+00 : f32
    %68 = vector.broadcast %cst_51 : f32 to vector<62x256xf32>
    %69 = arith.maximumf %67, %68 : vector<62x256xf32>
    %cst_52 = arith.constant 0.000000e+00 : f32
    %70 = vector.shape_cast %46 : vector<62x1xi1> to vector<62x1xi1>
    %71 = vector.broadcast %70 : vector<62x1xi1> to vector<62x256xi1>
    %72 = vector.broadcast %cst_52 : f32 to vector<62x256xf32>
    %73 = arith.select %71, %69, %72 : vector<62x256xi1>, vector<62x256xf32>
    %cst_53 = arith.constant 0.000000e+00 : f32
    %74 = vector.broadcast %cst_53 : f32 to vector<1x256xf32>
    %c0_54 = arith.constant 0 : index
    %c0_55 = arith.constant 0 : index
    %75 = vector.load %arg26[%c0_54, %c0_55] : memref<64x256xf32, #tpu.memory_space<vmem>>, vector<1x256xf32>
    tpu.vector_store %arg26[%c0_54, %c0_55], %74 {strides = array<i32>} : memref<64x256xf32, #tpu.memory_space<vmem>>, vector<1x256xf32>,
    %c1_56 = arith.constant 1 : index
    %c0_57 = arith.constant 0 : index
    %76 = vector.load %arg26[%c1_56, %c0_57] : memref<64x256xf32, #tpu.memory_space<vmem>>, vector<62x256xf32>
    tpu.vector_store %arg26[%c1_56, %c0_57], %73 {strides = array<i32>} : memref<64x256xf32, #tpu.memory_space<vmem>>, vector<62x256xf32>,
    %c63_58 = arith.constant 63 : index
    %c0_59 = arith.constant 0 : index
    %77 = vector.load %arg26[%c63_58, %c0_59] : memref<64x256xf32, #tpu.memory_space<vmem>>, vector<1x256xf32>
    tpu.vector_store %arg26[%c63_58, %c0_59], %74 {strides = array<i32>} : memref<64x256xf32, #tpu.memory_space<vmem>>, vector<1x256xf32>,
    %c0_60 = arith.constant 0 : index
    %c0_61 = arith.constant 0 : index
    %78 = vector.load %arg26[%c0_60, %c0_61] : memref<64x256xf32, #tpu.memory_space<vmem>>, vector<62x256xf32>
    %79 = arith.truncf %78 : vector<62x256xf32> to vector<62x256xbf16>
    %c0_62 = arith.constant 0 : index
    %c0_63 = arith.constant 0 : index
    %c0_64 = arith.constant 0 : index
    %80 = vector.load %arg5[%c0_62, %c0_63, %c0_64] : memref<3x256x256xbf16, #tpu.memory_space<vmem>>, vector<1x256x256xbf16>
    %81 = vector.shape_cast %80 : vector<1x256x256xbf16> to vector<256x256xbf16>
    %cst_65 = arith.constant dense<0.000000e+00> : vector<62x256xf32>
    %82 = tpu.matmul %79, %81, %cst_65 {dimension_numbers = #tpu.dot_dimension_numbers<[1], [0], [0], [1], [0, 0, 1, 1], [], []>} : vector<62x256xbf16>, vector<256x256xbf16>, vector<62x256xf32> -> vector<62x256xf32>
    %c1_66 = arith.constant 1 : index
    %c0_67 = arith.constant 0 : index
    %83 = vector.load %arg26[%c1_66, %c0_67] : memref<64x256xf32, #tpu.memory_space<vmem>>, vector<62x256xf32>
    %84 = arith.truncf %83 : vector<62x256xf32> to vector<62x256xbf16>
    %c1_68 = arith.constant 1 : index
    %c0_69 = arith.constant 0 : index
    %c0_70 = arith.constant 0 : index
    %85 = vector.load %arg5[%c1_68, %c0_69, %c0_70] : memref<3x256x256xbf16, #tpu.memory_space<vmem>>, vector<1x256x256xbf16>
    %86 = vector.shape_cast %85 : vector<1x256x256xbf16> to vector<256x256xbf16>
    %cst_71 = arith.constant dense<0.000000e+00> : vector<62x256xf32>
    %87 = tpu.matmul %84, %86, %cst_71 {dimension_numbers = #tpu.dot_dimension_numbers<[1], [0], [0], [1], [0, 0, 1, 1], [], []>} : vector<62x256xbf16>, vector<256x256xbf16>, vector<62x256xf32> -> vector<62x256xf32>
    %88 = arith.addf %82, %87 : vector<62x256xf32>
    %c2_72 = arith.constant 2 : index
    %c0_73 = arith.constant 0 : index
    %89 = vector.load %arg26[%c2_72, %c0_73] : memref<64x256xf32, #tpu.memory_space<vmem>>, vector<62x256xf32>
    %90 = arith.truncf %89 : vector<62x256xf32> to vector<62x256xbf16>
    %c2_74 = arith.constant 2 : index
    %c0_75 = arith.constant 0 : index
    %c0_76 = arith.constant 0 : index
    %91 = vector.load %arg5[%c2_74, %c0_75, %c0_76] : memref<3x256x256xbf16, #tpu.memory_space<vmem>>, vector<1x256x256xbf16>
    %92 = vector.shape_cast %91 : vector<1x256x256xbf16> to vector<256x256xbf16>
    %cst_77 = arith.constant dense<0.000000e+00> : vector<62x256xf32>
    %93 = tpu.matmul %90, %92, %cst_77 {dimension_numbers = #tpu.dot_dimension_numbers<[1], [0], [0], [1], [0, 0, 1, 1], [], []>} : vector<62x256xbf16>, vector<256x256xbf16>, vector<62x256xf32> -> vector<62x256xf32>
    %94 = arith.addf %88, %93 : vector<62x256xf32>
    %c0_78 = arith.constant 0 : index
    %c0_79 = arith.constant 0 : index
    %95 = vector.load %arg6[%c0_78, %c0_79] : memref<1x256xf32, #tpu.memory_space<vmem>>, vector<1x256xf32>
    %96 = vector.broadcast %95 : vector<1x256xf32> to vector<62x256xf32>
    %97 = arith.addf %94, %96 : vector<62x256xf32>
    %98 = arith.addf %97, %64 : vector<62x256xf32>
    %cst_80 = arith.constant 0.000000e+00 : f32
    %99 = vector.broadcast %cst_80 : f32 to vector<62x256xf32>
    %100 = arith.maximumf %98, %99 : vector<62x256xf32>
    %cst_81 = arith.constant 0.000000e+00 : f32
    %101 = vector.shape_cast %46 : vector<62x1xi1> to vector<62x1xi1>
    %102 = vector.broadcast %101 : vector<62x1xi1> to vector<62x256xi1>
    %103 = vector.broadcast %cst_81 : f32 to vector<62x256xf32>
    %104 = arith.select %102, %100, %103 : vector<62x256xi1>, vector<62x256xf32>
    %cst_82 = arith.constant 0.000000e+00 : f32
    %105 = vector.broadcast %cst_82 : f32 to vector<1x256xf32>
    %c0_83 = arith.constant 0 : index
    %c0_84 = arith.constant 0 : index
    %106 = vector.load %arg25[%c0_83, %c0_84] : memref<64x256xf32, #tpu.memory_space<vmem>>, vector<1x256xf32>
    tpu.vector_store %arg25[%c0_83, %c0_84], %105 {strides = array<i32>} : memref<64x256xf32, #tpu.memory_space<vmem>>, vector<1x256xf32>,
    %c1_85 = arith.constant 1 : index
    %c0_86 = arith.constant 0 : index
    %107 = vector.load %arg25[%c1_85, %c0_86] : memref<64x256xf32, #tpu.memory_space<vmem>>, vector<62x256xf32>
    tpu.vector_store %arg25[%c1_85, %c0_86], %104 {strides = array<i32>} : memref<64x256xf32, #tpu.memory_space<vmem>>, vector<62x256xf32>,
    %c63_87 = arith.constant 63 : index
    %c0_88 = arith.constant 0 : index
    %108 = vector.load %arg25[%c63_87, %c0_88] : memref<64x256xf32, #tpu.memory_space<vmem>>, vector<1x256xf32>
    tpu.vector_store %arg25[%c63_87, %c0_88], %105 {strides = array<i32>} : memref<64x256xf32, #tpu.memory_space<vmem>>, vector<1x256xf32>,
    %109 = tpu.iota {dimensions = array<i32: 0>} : vector<30x1xi32>
    %c1_i32_89 = arith.constant 1 : i32
    %110 = vector.broadcast %c1_i32_89 : i32 to vector<30x1xi32>
    %111 = arith.addi %109, %110 : vector<30x1xi32>
    %c15_i32 = arith.constant 15 : i32
    %112 = vector.broadcast %c15_i32 : i32 to vector<30x1xi32>
    %113 = arith.andi %111, %112 : vector<30x1xi32>
    %c1_i32_90 = arith.constant 1 : i32
    %114 = vector.broadcast %c1_i32_90 : i32 to vector<30x1xi32>
    %115 = arith.cmpi sge, %113, %114 : vector<30x1xi32>
    %c8_i32 = arith.constant 8 : i32
    %116 = vector.broadcast %c8_i32 : i32 to vector<30x1xi32>
    %117 = arith.cmpi sle, %113, %116 : vector<30x1xi32>
    %118 = arith.andi %115, %117 : vector<30x1xi1>
    %c0_91 = arith.constant 0 : index
    %c0_92 = arith.constant 0 : index
    %119 = vector.load %arg12[%c0_91, %c0_92] : memref<30x62xbf16, #tpu.memory_space<vmem>>, vector<30x62xbf16>
    %c0_93 = arith.constant 0 : index
    %c0_94 = arith.constant 0 : index
    %120 = vector.load %arg25[%c0_93, %c0_94] : memref<64x256xf32, #tpu.memory_space<vmem>>, vector<62x256xf32>
    %121 = arith.truncf %120 : vector<62x256xf32> to vector<62x256xbf16>
    %cst_95 = arith.constant dense<0.000000e+00> : vector<30x256xf32>
    %122 = tpu.matmul %119, %121, %cst_95 {dimension_numbers = #tpu.dot_dimension_numbers<[1], [0], [0], [1], [0, 0, 1, 1], [], []>} : vector<30x62xbf16>, vector<62x256xbf16>, vector<30x256xf32> -> vector<30x256xf32>
    %123 = arith.truncf %122 : vector<30x256xf32> to vector<30x256xbf16>
    %c1_96 = arith.constant 1 : index
    %c0_97 = arith.constant 0 : index
    %124 = vector.load %arg25[%c1_96, %c0_97] : memref<64x256xf32, #tpu.memory_space<vmem>>, vector<62x256xf32>
    %125 = arith.truncf %124 : vector<62x256xf32> to vector<62x256xbf16>
    %cst_98 = arith.constant dense<0.000000e+00> : vector<30x256xf32>
    %126 = tpu.matmul %119, %125, %cst_98 {dimension_numbers = #tpu.dot_dimension_numbers<[1], [0], [0], [1], [0, 0, 1, 1], [], []>} : vector<30x62xbf16>, vector<62x256xbf16>, vector<30x256xf32> -> vector<30x256xf32>
    %127 = arith.truncf %126 : vector<30x256xf32> to vector<30x256xbf16>
    %c2_99 = arith.constant 2 : index
    %c0_100 = arith.constant 0 : index
    %128 = vector.load %arg25[%c2_99, %c0_100] : memref<64x256xf32, #tpu.memory_space<vmem>>, vector<62x256xf32>
    %129 = arith.truncf %128 : vector<62x256xf32> to vector<62x256xbf16>
    %cst_101 = arith.constant dense<0.000000e+00> : vector<30x256xf32>
    %130 = tpu.matmul %119, %129, %cst_101 {dimension_numbers = #tpu.dot_dimension_numbers<[1], [0], [0], [1], [0, 0, 1, 1], [], []>} : vector<30x62xbf16>, vector<62x256xbf16>, vector<30x256xf32> -> vector<30x256xf32>
    %131 = arith.truncf %130 : vector<30x256xf32> to vector<30x256xbf16>
    %c0_102 = arith.constant 0 : index
    %c0_103 = arith.constant 0 : index
    %c0_104 = arith.constant 0 : index
    %132 = vector.load %arg11[%c0_102, %c0_103, %c0_104] : memref<3x256x256xbf16, #tpu.memory_space<vmem>>, vector<1x256x256xbf16>
    %133 = vector.shape_cast %132 : vector<1x256x256xbf16> to vector<256x256xbf16>
    %cst_105 = arith.constant dense<0.000000e+00> : vector<30x256xf32>
    %134 = tpu.matmul %123, %133, %cst_105 {dimension_numbers = #tpu.dot_dimension_numbers<[1], [0], [0], [1], [0, 0, 1, 1], [], []>} : vector<30x256xbf16>, vector<256x256xbf16>, vector<30x256xf32> -> vector<30x256xf32>
    %c1_106 = arith.constant 1 : index
    %c0_107 = arith.constant 0 : index
    %c0_108 = arith.constant 0 : index
    %135 = vector.load %arg11[%c1_106, %c0_107, %c0_108] : memref<3x256x256xbf16, #tpu.memory_space<vmem>>, vector<1x256x256xbf16>
    %136 = vector.shape_cast %135 : vector<1x256x256xbf16> to vector<256x256xbf16>
    %cst_109 = arith.constant dense<0.000000e+00> : vector<30x256xf32>
    %137 = tpu.matmul %127, %136, %cst_109 {dimension_numbers = #tpu.dot_dimension_numbers<[1], [0], [0], [1], [0, 0, 1, 1], [], []>} : vector<30x256xbf16>, vector<256x256xbf16>, vector<30x256xf32> -> vector<30x256xf32>
    %138 = arith.addf %134, %137 : vector<30x256xf32>
    %c2_110 = arith.constant 2 : index
    %c0_111 = arith.constant 0 : index
    %c0_112 = arith.constant 0 : index
    %139 = vector.load %arg11[%c2_110, %c0_111, %c0_112] : memref<3x256x256xbf16, #tpu.memory_space<vmem>>, vector<1x256x256xbf16>
    %140 = vector.shape_cast %139 : vector<1x256x256xbf16> to vector<256x256xbf16>
    %cst_113 = arith.constant dense<0.000000e+00> : vector<30x256xf32>
    %141 = tpu.matmul %131, %140, %cst_113 {dimension_numbers = #tpu.dot_dimension_numbers<[1], [0], [0], [1], [0, 0, 1, 1], [], []>} : vector<30x256xbf16>, vector<256x256xbf16>, vector<30x256xf32> -> vector<30x256xf32>
    %142 = arith.addf %138, %141 : vector<30x256xf32>
    %c0_114 = arith.constant 0 : index
    %c0_115 = arith.constant 0 : index
    %143 = vector.load %arg13[%c0_114, %c0_115] : memref<256x256xbf16, #tpu.memory_space<vmem>>, vector<256x256xbf16>
    %cst_116 = arith.constant dense<0.000000e+00> : vector<30x256xf32>
    %144 = tpu.matmul %127, %143, %cst_116 {dimension_numbers = #tpu.dot_dimension_numbers<[1], [0], [0], [1], [0, 0, 1, 1], [], []>} : vector<30x256xbf16>, vector<256x256xbf16>, vector<30x256xf32> -> vector<30x256xf32>
    %c0_117 = arith.constant 0 : index
    %c0_118 = arith.constant 0 : index
    %145 = vector.load %arg8[%c0_117, %c0_118] : memref<1x256xf32, #tpu.memory_space<vmem>>, vector<1x256xf32>
    %146 = vector.broadcast %145 : vector<1x256xf32> to vector<30x256xf32>
    %147 = arith.addf %142, %146 : vector<30x256xf32>
    %cst_119 = arith.constant 0.000000e+00 : f32
    %148 = vector.broadcast %cst_119 : f32 to vector<30x256xf32>
    %149 = arith.maximumf %147, %148 : vector<30x256xf32>
    %cst_120 = arith.constant 0.000000e+00 : f32
    %150 = vector.shape_cast %118 : vector<30x1xi1> to vector<30x1xi1>
    %151 = vector.broadcast %150 : vector<30x1xi1> to vector<30x256xi1>
    %152 = vector.broadcast %cst_120 : f32 to vector<30x256xf32>
    %153 = arith.select %151, %149, %152 : vector<30x256xi1>, vector<30x256xf32>
    %cst_121 = arith.constant 0.000000e+00 : f32
    %154 = vector.broadcast %cst_121 : f32 to vector<1x256xf32>
    %c0_122 = arith.constant 0 : index
    %c0_123 = arith.constant 0 : index
    %155 = vector.load %arg26[%c0_122, %c0_123] : memref<64x256xf32, #tpu.memory_space<vmem>>, vector<1x256xf32>
    tpu.vector_store %arg26[%c0_122, %c0_123], %154 {strides = array<i32>} : memref<64x256xf32, #tpu.memory_space<vmem>>, vector<1x256xf32>,
    %c1_124 = arith.constant 1 : index
    %c0_125 = arith.constant 0 : index
    %156 = vector.load %arg26[%c1_124, %c0_125] : memref<64x256xf32, #tpu.memory_space<vmem>>, vector<30x256xf32>
    tpu.vector_store %arg26[%c1_124, %c0_125], %153 {strides = array<i32>} : memref<64x256xf32, #tpu.memory_space<vmem>>, vector<30x256xf32>,
    %c31 = arith.constant 31 : index
    %c0_126 = arith.constant 0 : index
    %157 = vector.load %arg26[%c31, %c0_126] : memref<64x256xf32, #tpu.memory_space<vmem>>, vector<1x256xf32>
    tpu.vector_store %arg26[%c31, %c0_126], %154 {strides = array<i32>} : memref<64x256xf32, #tpu.memory_space<vmem>>, vector<1x256xf32>,
    %c0_127 = arith.constant 0 : index
    %c0_128 = arith.constant 0 : index
    %158 = vector.load %arg26[%c0_127, %c0_128] : memref<64x256xf32, #tpu.memory_space<vmem>>, vector<30x256xf32>
    %159 = arith.truncf %158 : vector<30x256xf32> to vector<30x256xbf16>
    %c0_129 = arith.constant 0 : index
    %c0_130 = arith.constant 0 : index
    %c0_131 = arith.constant 0 : index
    %160 = vector.load %arg9[%c0_129, %c0_130, %c0_131] : memref<3x256x256xbf16, #tpu.memory_space<vmem>>, vector<1x256x256xbf16>
    %161 = vector.shape_cast %160 : vector<1x256x256xbf16> to vector<256x256xbf16>
    %cst_132 = arith.constant dense<0.000000e+00> : vector<30x256xf32>
    %162 = tpu.matmul %159, %161, %cst_132 {dimension_numbers = #tpu.dot_dimension_numbers<[1], [0], [0], [1], [0, 0, 1, 1], [], []>} : vector<30x256xbf16>, vector<256x256xbf16>, vector<30x256xf32> -> vector<30x256xf32>
    %c1_133 = arith.constant 1 : index
    %c0_134 = arith.constant 0 : index
    %163 = vector.load %arg26[%c1_133, %c0_134] : memref<64x256xf32, #tpu.memory_space<vmem>>, vector<30x256xf32>
    %164 = arith.truncf %163 : vector<30x256xf32> to vector<30x256xbf16>
    %c1_135 = arith.constant 1 : index
    %c0_136 = arith.constant 0 : index
    %c0_137 = arith.constant 0 : index
    %165 = vector.load %arg9[%c1_135, %c0_136, %c0_137] : memref<3x256x256xbf16, #tpu.memory_space<vmem>>, vector<1x256x256xbf16>
    %166 = vector.shape_cast %165 : vector<1x256x256xbf16> to vector<256x256xbf16>
    %cst_138 = arith.constant dense<0.000000e+00> : vector<30x256xf32>
    %167 = tpu.matmul %164, %166, %cst_138 {dimension_numbers = #tpu.dot_dimension_numbers<[1], [0], [0], [1], [0, 0, 1, 1], [], []>} : vector<30x256xbf16>, vector<256x256xbf16>, vector<30x256xf32> -> vector<30x256xf32>
    %168 = arith.addf %162, %167 : vector<30x256xf32>
    %c2_139 = arith.constant 2 : index
    %c0_140 = arith.constant 0 : index
    %169 = vector.load %arg26[%c2_139, %c0_140] : memref<64x256xf32, #tpu.memory_space<vmem>>, vector<30x256xf32>
    %170 = arith.truncf %169 : vector<30x256xf32> to vector<30x256xbf16>
    %c2_141 = arith.constant 2 : index
    %c0_142 = arith.constant 0 : index
    %c0_143 = arith.constant 0 : index
    %171 = vector.load %arg9[%c2_141, %c0_142, %c0_143] : memref<3x256x256xbf16, #tpu.memory_space<vmem>>, vector<1x256x256xbf16>
    %172 = vector.shape_cast %171 : vector<1x256x256xbf16> to vector<256x256xbf16>
    %cst_144 = arith.constant dense<0.000000e+00> : vector<30x256xf32>
    %173 = tpu.matmul %170, %172, %cst_144 {dimension_numbers = #tpu.dot_dimension_numbers<[1], [0], [0], [1], [0, 0, 1, 1], [], []>} : vector<30x256xbf16>, vector<256x256xbf16>, vector<30x256xf32> -> vector<30x256xf32>
    %174 = arith.addf %168, %173 : vector<30x256xf32>
    %c0_145 = arith.constant 0 : index
    %c0_146 = arith.constant 0 : index
    %175 = vector.load %arg10[%c0_145, %c0_146] : memref<1x256xf32, #tpu.memory_space<vmem>>, vector<1x256xf32>
    %176 = vector.broadcast %175 : vector<1x256xf32> to vector<30x256xf32>
    %177 = arith.addf %174, %176 : vector<30x256xf32>
    %178 = arith.addf %177, %144 : vector<30x256xf32>
    %cst_147 = arith.constant 0.000000e+00 : f32
    %179 = vector.broadcast %cst_147 : f32 to vector<30x256xf32>
    %180 = arith.maximumf %178, %179 : vector<30x256xf32>
    %cst_148 = arith.constant 0.000000e+00 : f32
    %181 = vector.shape_cast %118 : vector<30x1xi1> to vector<30x1xi1>
    %182 = vector.broadcast %181 : vector<30x1xi1> to vector<30x256xi1>
    %183 = vector.broadcast %cst_148 : f32 to vector<30x256xf32>
    %184 = arith.select %182, %180, %183 : vector<30x256xi1>, vector<30x256xf32>
    %cst_149 = arith.constant 0.000000e+00 : f32
    %185 = vector.broadcast %cst_149 : f32 to vector<1x256xf32>
    %c0_150 = arith.constant 0 : index
    %c0_151 = arith.constant 0 : index
    %186 = vector.load %arg24[%c0_150, %c0_151] : memref<64x256xf32, #tpu.memory_space<vmem>>, vector<1x256xf32>
    tpu.vector_store %arg24[%c0_150, %c0_151], %185 {strides = array<i32>} : memref<64x256xf32, #tpu.memory_space<vmem>>, vector<1x256xf32>,
    %c1_152 = arith.constant 1 : index
    %c0_153 = arith.constant 0 : index
    %187 = vector.load %arg24[%c1_152, %c0_153] : memref<64x256xf32, #tpu.memory_space<vmem>>, vector<30x256xf32>
    tpu.vector_store %arg24[%c1_152, %c0_153], %184 {strides = array<i32>} : memref<64x256xf32, #tpu.memory_space<vmem>>, vector<30x256xf32>,
    %c31_154 = arith.constant 31 : index
    %c0_155 = arith.constant 0 : index
    %188 = vector.load %arg24[%c31_154, %c0_155] : memref<64x256xf32, #tpu.memory_space<vmem>>, vector<1x256xf32>
    tpu.vector_store %arg24[%c31_154, %c0_155], %185 {strides = array<i32>} : memref<64x256xf32, #tpu.memory_space<vmem>>, vector<1x256xf32>,
    %189 = tpu.iota {dimensions = array<i32: 0>} : vector<14x1xi32>
    %c1_i32_156 = arith.constant 1 : i32
    %190 = vector.broadcast %c1_i32_156 : i32 to vector<14x1xi32>
    %191 = arith.addi %189, %190 : vector<14x1xi32>
    %c7_i32 = arith.constant 7 : i32
    %192 = vector.broadcast %c7_i32 : i32 to vector<14x1xi32>
    %193 = arith.andi %191, %192 : vector<14x1xi32>
    %c1_i32_157 = arith.constant 1 : i32
    %194 = vector.broadcast %c1_i32_157 : i32 to vector<14x1xi32>
    %195 = arith.cmpi sge, %193, %194 : vector<14x1xi32>
    %c4_i32 = arith.constant 4 : i32
    %196 = vector.broadcast %c4_i32 : i32 to vector<14x1xi32>
    %197 = arith.cmpi sle, %193, %196 : vector<14x1xi32>
    %198 = arith.andi %195, %197 : vector<14x1xi1>
    %c0_158 = arith.constant 0 : index
    %c0_159 = arith.constant 0 : index
    %199 = vector.load %arg18[%c0_158, %c0_159] : memref<14x30xbf16, #tpu.memory_space<vmem>>, vector<14x30xbf16>
    %c0_160 = arith.constant 0 : index
    %c0_161 = arith.constant 0 : index
    %200 = vector.load %arg24[%c0_160, %c0_161] : memref<64x256xf32, #tpu.memory_space<vmem>>, vector<30x256xf32>
    %201 = arith.truncf %200 : vector<30x256xf32> to vector<30x256xbf16>
    %cst_162 = arith.constant dense<0.000000e+00> : vector<14x256xf32>
    %202 = tpu.matmul %199, %201, %cst_162 {dimension_numbers = #tpu.dot_dimension_numbers<[1], [0], [0], [1], [0, 0, 1, 1], [], []>} : vector<14x30xbf16>, vector<30x256xbf16>, vector<14x256xf32> -> vector<14x256xf32>
    %203 = arith.truncf %202 : vector<14x256xf32> to vector<14x256xbf16>
    %c1_163 = arith.constant 1 : index
    %c0_164 = arith.constant 0 : index
    %204 = vector.load %arg24[%c1_163, %c0_164] : memref<64x256xf32, #tpu.memory_space<vmem>>, vector<30x256xf32>
    %205 = arith.truncf %204 : vector<30x256xf32> to vector<30x256xbf16>
    %cst_165 = arith.constant dense<0.000000e+00> : vector<14x256xf32>
    %206 = tpu.matmul %199, %205, %cst_165 {dimension_numbers = #tpu.dot_dimension_numbers<[1], [0], [0], [1], [0, 0, 1, 1], [], []>} : vector<14x30xbf16>, vector<30x256xbf16>, vector<14x256xf32> -> vector<14x256xf32>
    %207 = arith.truncf %206 : vector<14x256xf32> to vector<14x256xbf16>
    %c2_166 = arith.constant 2 : index
    %c0_167 = arith.constant 0 : index
    %208 = vector.load %arg24[%c2_166, %c0_167] : memref<64x256xf32, #tpu.memory_space<vmem>>, vector<30x256xf32>
    %209 = arith.truncf %208 : vector<30x256xf32> to vector<30x256xbf16>
    %cst_168 = arith.constant dense<0.000000e+00> : vector<14x256xf32>
    %210 = tpu.matmul %199, %209, %cst_168 {dimension_numbers = #tpu.dot_dimension_numbers<[1], [0], [0], [1], [0, 0, 1, 1], [], []>} : vector<14x30xbf16>, vector<30x256xbf16>, vector<14x256xf32> -> vector<14x256xf32>
    %211 = arith.truncf %210 : vector<14x256xf32> to vector<14x256xbf16>
    %c0_169 = arith.constant 0 : index
    %c0_170 = arith.constant 0 : index
    %c0_171 = arith.constant 0 : index
    %212 = vector.load %arg17[%c0_169, %c0_170, %c0_171] : memref<3x256x256xbf16, #tpu.memory_space<vmem>>, vector<1x256x256xbf16>
    %213 = vector.shape_cast %212 : vector<1x256x256xbf16> to vector<256x256xbf16>
    %cst_172 = arith.constant dense<0.000000e+00> : vector<14x256xf32>
    %214 = tpu.matmul %203, %213, %cst_172 {dimension_numbers = #tpu.dot_dimension_numbers<[1], [0], [0], [1], [0, 0, 1, 1], [], []>} : vector<14x256xbf16>, vector<256x256xbf16>, vector<14x256xf32> -> vector<14x256xf32>
    %c1_173 = arith.constant 1 : index
    %c0_174 = arith.constant 0 : index
    %c0_175 = arith.constant 0 : index
    %215 = vector.load %arg17[%c1_173, %c0_174, %c0_175] : memref<3x256x256xbf16, #tpu.memory_space<vmem>>, vector<1x256x256xbf16>
    %216 = vector.shape_cast %215 : vector<1x256x256xbf16> to vector<256x256xbf16>
    %cst_176 = arith.constant dense<0.000000e+00> : vector<14x256xf32>
    %217 = tpu.matmul %207, %216, %cst_176 {dimension_numbers = #tpu.dot_dimension_numbers<[1], [0], [0], [1], [0, 0, 1, 1], [], []>} : vector<14x256xbf16>, vector<256x256xbf16>, vector<14x256xf32> -> vector<14x256xf32>
    %218 = arith.addf %214, %217 : vector<14x256xf32>
    %c2_177 = arith.constant 2 : index
    %c0_178 = arith.constant 0 : index
    %c0_179 = arith.constant 0 : index
    %219 = vector.load %arg17[%c2_177, %c0_178, %c0_179] : memref<3x256x256xbf16, #tpu.memory_space<vmem>>, vector<1x256x256xbf16>
    %220 = vector.shape_cast %219 : vector<1x256x256xbf16> to vector<256x256xbf16>
    %cst_180 = arith.constant dense<0.000000e+00> : vector<14x256xf32>
    %221 = tpu.matmul %211, %220, %cst_180 {dimension_numbers = #tpu.dot_dimension_numbers<[1], [0], [0], [1], [0, 0, 1, 1], [], []>} : vector<14x256xbf16>, vector<256x256xbf16>, vector<14x256xf32> -> vector<14x256xf32>
    %222 = arith.addf %218, %221 : vector<14x256xf32>
    %c0_181 = arith.constant 0 : index
    %c0_182 = arith.constant 0 : index
    %223 = vector.load %arg19[%c0_181, %c0_182] : memref<256x256xbf16, #tpu.memory_space<vmem>>, vector<256x256xbf16>
    %cst_183 = arith.constant dense<0.000000e+00> : vector<14x256xf32>
    %224 = tpu.matmul %207, %223, %cst_183 {dimension_numbers = #tpu.dot_dimension_numbers<[1], [0], [0], [1], [0, 0, 1, 1], [], []>} : vector<14x256xbf16>, vector<256x256xbf16>, vector<14x256xf32> -> vector<14x256xf32>
    %c0_184 = arith.constant 0 : index
    %c0_185 = arith.constant 0 : index
    %225 = vector.load %arg14[%c0_184, %c0_185] : memref<1x256xf32, #tpu.memory_space<vmem>>, vector<1x256xf32>
    %226 = vector.broadcast %225 : vector<1x256xf32> to vector<14x256xf32>
    %227 = arith.addf %222, %226 : vector<14x256xf32>
    %cst_186 = arith.constant 0.000000e+00 : f32
    %228 = vector.broadcast %cst_186 : f32 to vector<14x256xf32>
    %229 = arith.maximumf %227, %228 : vector<14x256xf32>
    %cst_187 = arith.constant 0.000000e+00 : f32
    %230 = vector.shape_cast %198 : vector<14x1xi1> to vector<14x1xi1>
    %231 = vector.broadcast %230 : vector<14x1xi1> to vector<14x256xi1>
    %232 = vector.broadcast %cst_187 : f32 to vector<14x256xf32>
    %233 = arith.select %231, %229, %232 : vector<14x256xi1>, vector<14x256xf32>
    %cst_188 = arith.constant 0.000000e+00 : f32
    %234 = vector.broadcast %cst_188 : f32 to vector<1x256xf32>
    %c0_189 = arith.constant 0 : index
    %c0_190 = arith.constant 0 : index
    %235 = vector.load %arg26[%c0_189, %c0_190] : memref<64x256xf32, #tpu.memory_space<vmem>>, vector<1x256xf32>
    tpu.vector_store %arg26[%c0_189, %c0_190], %234 {strides = array<i32>} : memref<64x256xf32, #tpu.memory_space<vmem>>, vector<1x256xf32>,
    %c1_191 = arith.constant 1 : index
    %c0_192 = arith.constant 0 : index
    %236 = vector.load %arg26[%c1_191, %c0_192] : memref<64x256xf32, #tpu.memory_space<vmem>>, vector<14x256xf32>
    tpu.vector_store %arg26[%c1_191, %c0_192], %233 {strides = array<i32>} : memref<64x256xf32, #tpu.memory_space<vmem>>, vector<14x256xf32>,
    %c15 = arith.constant 15 : index
    %c0_193 = arith.constant 0 : index
    %237 = vector.load %arg26[%c15, %c0_193] : memref<64x256xf32, #tpu.memory_space<vmem>>, vector<1x256xf32>
    tpu.vector_store %arg26[%c15, %c0_193], %234 {strides = array<i32>} : memref<64x256xf32, #tpu.memory_space<vmem>>, vector<1x256xf32>,
    %c0_194 = arith.constant 0 : index
    %c0_195 = arith.constant 0 : index
    %238 = vector.load %arg26[%c0_194, %c0_195] : memref<64x256xf32, #tpu.memory_space<vmem>>, vector<14x256xf32>
    %239 = arith.truncf %238 : vector<14x256xf32> to vector<14x256xbf16>
    %c0_196 = arith.constant 0 : index
    %c0_197 = arith.constant 0 : index
    %c0_198 = arith.constant 0 : index
    %240 = vector.load %arg15[%c0_196, %c0_197, %c0_198] : memref<3x256x256xbf16, #tpu.memory_space<vmem>>, vector<1x256x256xbf16>
    %241 = vector.shape_cast %240 : vector<1x256x256xbf16> to vector<256x256xbf16>
    %cst_199 = arith.constant dense<0.000000e+00> : vector<14x256xf32>
    %242 = tpu.matmul %239, %241, %cst_199 {dimension_numbers = #tpu.dot_dimension_numbers<[1], [0], [0], [1], [0, 0, 1, 1], [], []>} : vector<14x256xbf16>, vector<256x256xbf16>, vector<14x256xf32> -> vector<14x256xf32>
    %c1_200 = arith.constant 1 : index
    %c0_201 = arith.constant 0 : index
    %243 = vector.load %arg26[%c1_200, %c0_201] : memref<64x256xf32, #tpu.memory_space<vmem>>, vector<14x256xf32>
    %244 = arith.truncf %243 : vector<14x256xf32> to vector<14x256xbf16>
    %c1_202 = arith.constant 1 : index
    %c0_203 = arith.constant 0 : index
    %c0_204 = arith.constant 0 : index
    %245 = vector.load %arg15[%c1_202, %c0_203, %c0_204] : memref<3x256x256xbf16, #tpu.memory_space<vmem>>, vector<1x256x256xbf16>
    %246 = vector.shape_cast %245 : vector<1x256x256xbf16> to vector<256x256xbf16>
    %cst_205 = arith.constant dense<0.000000e+00> : vector<14x256xf32>
    %247 = tpu.matmul %244, %246, %cst_205 {dimension_numbers = #tpu.dot_dimension_numbers<[1], [0], [0], [1], [0, 0, 1, 1], [], []>} : vector<14x256xbf16>, vector<256x256xbf16>, vector<14x256xf32> -> vector<14x256xf32>
    %248 = arith.addf %242, %247 : vector<14x256xf32>
    %c2_206 = arith.constant 2 : index
    %c0_207 = arith.constant 0 : index
    %249 = vector.load %arg26[%c2_206, %c0_207] : memref<64x256xf32, #tpu.memory_space<vmem>>, vector<14x256xf32>
    %250 = arith.truncf %249 : vector<14x256xf32> to vector<14x256xbf16>
    %c2_208 = arith.constant 2 : index
    %c0_209 = arith.constant 0 : index
    %c0_210 = arith.constant 0 : index
    %251 = vector.load %arg15[%c2_208, %c0_209, %c0_210] : memref<3x256x256xbf16, #tpu.memory_space<vmem>>, vector<1x256x256xbf16>
    %252 = vector.shape_cast %251 : vector<1x256x256xbf16> to vector<256x256xbf16>
    %cst_211 = arith.constant dense<0.000000e+00> : vector<14x256xf32>
    %253 = tpu.matmul %250, %252, %cst_211 {dimension_numbers = #tpu.dot_dimension_numbers<[1], [0], [0], [1], [0, 0, 1, 1], [], []>} : vector<14x256xbf16>, vector<256x256xbf16>, vector<14x256xf32> -> vector<14x256xf32>
    %254 = arith.addf %248, %253 : vector<14x256xf32>
    %c0_212 = arith.constant 0 : index
    %c0_213 = arith.constant 0 : index
    %255 = vector.load %arg16[%c0_212, %c0_213] : memref<1x256xf32, #tpu.memory_space<vmem>>, vector<1x256xf32>
    %256 = vector.broadcast %255 : vector<1x256xf32> to vector<14x256xf32>
    %257 = arith.addf %254, %256 : vector<14x256xf32>
    %258 = arith.addf %257, %224 : vector<14x256xf32>
    %cst_214 = arith.constant 0.000000e+00 : f32
    %259 = vector.broadcast %cst_214 : f32 to vector<14x256xf32>
    %260 = arith.maximumf %258, %259 : vector<14x256xf32>
    %cst_215 = arith.constant 0.000000e+00 : f32
    %261 = vector.shape_cast %198 : vector<14x1xi1> to vector<14x1xi1>
    %262 = vector.broadcast %261 : vector<14x1xi1> to vector<14x256xi1>
    %263 = vector.broadcast %cst_215 : f32 to vector<14x256xf32>
    %264 = arith.select %262, %260, %263 : vector<14x256xi1>, vector<14x256xf32>
    %cst_216 = arith.constant 0.000000e+00 : f32
    %265 = vector.broadcast %cst_216 : f32 to vector<1x256xf32>
    %c0_217 = arith.constant 0 : index
    %c0_218 = arith.constant 0 : index
    %266 = vector.load %arg25[%c0_217, %c0_218] : memref<64x256xf32, #tpu.memory_space<vmem>>, vector<1x256xf32>
    tpu.vector_store %arg25[%c0_217, %c0_218], %265 {strides = array<i32>} : memref<64x256xf32, #tpu.memory_space<vmem>>, vector<1x256xf32>,
    %c1_219 = arith.constant 1 : index
    %c0_220 = arith.constant 0 : index
    %267 = vector.load %arg25[%c1_219, %c0_220] : memref<64x256xf32, #tpu.memory_space<vmem>>, vector<14x256xf32>
    tpu.vector_store %arg25[%c1_219, %c0_220], %264 {strides = array<i32>} : memref<64x256xf32, #tpu.memory_space<vmem>>, vector<14x256xf32>,
    %c15_221 = arith.constant 15 : index
    %c0_222 = arith.constant 0 : index
    %268 = vector.load %arg25[%c15_221, %c0_222] : memref<64x256xf32, #tpu.memory_space<vmem>>, vector<1x256xf32>
    tpu.vector_store %arg25[%c15_221, %c0_222], %265 {strides = array<i32>} : memref<64x256xf32, #tpu.memory_space<vmem>>, vector<1x256xf32>,
    %c0_223 = arith.constant 0 : index
    %c0_224 = arith.constant 0 : index
    %269 = vector.load %arg20[%c0_223, %c0_224] : memref<2x14xf32, #tpu.memory_space<vmem>>, vector<2x14xf32>
    %c1_225 = arith.constant 1 : index
    %c0_226 = arith.constant 0 : index
    %270 = vector.load %arg25[%c1_225, %c0_226] : memref<64x256xf32, #tpu.memory_space<vmem>>, vector<14x256xf32>
    %cst_227 = arith.constant dense<0.000000e+00> : vector<2x256xf32>
    %271 = tpu.matmul %269, %270, %cst_227 {dimension_numbers = #tpu.dot_dimension_numbers<[1], [0], [0], [1], [0, 0, 1, 1], [], []>} : vector<2x14xf32>, vector<14x256xf32>, vector<2x256xf32> -> vector<2x256xf32>
    %c0_228 = arith.constant 0 : index
    %c0_229 = arith.constant 0 : index
    %272 = vector.load %arg21[%c0_228, %c0_229] : memref<256x10xf32, #tpu.memory_space<vmem>>, vector<256x10xf32>
    %cst_230 = arith.constant dense<0.000000e+00> : vector<2x10xf32>
    %273 = tpu.matmul %271, %272, %cst_230 {dimension_numbers = #tpu.dot_dimension_numbers<[1], [0], [0], [1], [0, 0, 1, 1], [], []>} : vector<2x256xf32>, vector<256x10xf32>, vector<2x10xf32> -> vector<2x10xf32>
    %c0_231 = arith.constant 0 : index
    %c0_232 = arith.constant 0 : index
    %274 = vector.load %arg22[%c0_231, %c0_232] : memref<1x10xf32, #tpu.memory_space<vmem>>, vector<1x10xf32>
    %275 = vector.broadcast %274 : vector<1x10xf32> to vector<2x10xf32>
    %276 = arith.addf %273, %275 : vector<2x10xf32>
    %c0_233 = arith.constant 0 : index
    %c0_234 = arith.constant 0 : index
    %277 = vector.load %arg23[%c0_233, %c0_234] : memref<2x10xf32, #tpu.memory_space<vmem>>, vector<2x10xf32>
    tpu.vector_store %arg23[%c0_233, %c0_234], %276 {strides = array<i32>} : memref<2x10xf32, #tpu.memory_space<vmem>>, vector<2x10xf32>,
    return
  }
  func.func @transform_0(%arg0: i32) -> (i32, i32) {
    %c0_i32 = arith.constant 0 : i32
    %c0_i32_0 = arith.constant 0 : i32
    return %arg0, %c0_i32 : i32, i32
  }
  func.func @transform_1(%arg0: i32) -> (i32, i32, i32) {
    %c0_i32 = arith.constant 0 : i32
    %c0_i32_0 = arith.constant 0 : i32
    %c0_i32_1 = arith.constant 0 : i32
    %c0_i32_2 = arith.constant 0 : i32
    return %c0_i32, %c0_i32_0, %c0_i32_1 : i32, i32, i32
  }
  func.func @transform_2(%arg0: i32) -> (i32, i32) {
    %c0_i32 = arith.constant 0 : i32
    %c0_i32_0 = arith.constant 0 : i32
    %c0_i32_1 = arith.constant 0 : i32
    return %c0_i32, %c0_i32_0 : i32, i32
  }
  func.func @transform_3(%arg0: i32) -> (i32, i32) {
    %c0_i32 = arith.constant 0 : i32
    %c0_i32_0 = arith.constant 0 : i32
    %c0_i32_1 = arith.constant 0 : i32
    return %c0_i32, %c0_i32_0 : i32, i32
  }
  func.func @transform_4(%arg0: i32) -> (i32, i32, i32) {
    %c0_i32 = arith.constant 0 : i32
    %c0_i32_0 = arith.constant 0 : i32
    %c0_i32_1 = arith.constant 0 : i32
    %c0_i32_2 = arith.constant 0 : i32
    return %c0_i32, %c0_i32_0, %c0_i32_1 : i32, i32, i32
  }
  func.func @transform_5(%arg0: i32) -> (i32, i32) {
    %c0_i32 = arith.constant 0 : i32
    %c0_i32_0 = arith.constant 0 : i32
    %c0_i32_1 = arith.constant 0 : i32
    return %c0_i32, %c0_i32_0 : i32, i32
  }
  func.func @transform_6(%arg0: i32) -> (i32, i32, i32) {
    %c0_i32 = arith.constant 0 : i32
    %c0_i32_0 = arith.constant 0 : i32
    %c0_i32_1 = arith.constant 0 : i32
    %c0_i32_2 = arith.constant 0 : i32
    return %c0_i32, %c0_i32_0, %c0_i32_1 : i32, i32, i32
  }
  func.func @transform_7(%arg0: i32) -> (i32, i32) {
    %c0_i32 = arith.constant 0 : i32
    %c0_i32_0 = arith.constant 0 : i32
    %c0_i32_1 = arith.constant 0 : i32
    return %c0_i32, %c0_i32_0 : i32, i32
  }
  func.func @transform_8(%arg0: i32) -> (i32, i32, i32) {
    %c0_i32 = arith.constant 0 : i32
    %c0_i32_0 = arith.constant 0 : i32
    %c0_i32_1 = arith.constant 0 : i32
    %c0_i32_2 = arith.constant 0 : i32
    return %c0_i32, %c0_i32_0, %c0_i32_1 : i32, i32, i32
  }
  func.func @transform_9(%arg0: i32) -> (i32, i32) {
    %c0_i32 = arith.constant 0 : i32
    %c0_i32_0 = arith.constant 0 : i32
    %c0_i32_1 = arith.constant 0 : i32
    return %c0_i32, %c0_i32_0 : i32, i32
  }
  func.func @transform_10(%arg0: i32) -> (i32, i32, i32) {
    %c0_i32 = arith.constant 0 : i32
    %c0_i32_0 = arith.constant 0 : i32
    %c0_i32_1 = arith.constant 0 : i32
    %c0_i32_2 = arith.constant 0 : i32
    return %c0_i32, %c0_i32_0, %c0_i32_1 : i32, i32, i32
  }
  func.func @transform_11(%arg0: i32) -> (i32, i32) {
    %c0_i32 = arith.constant 0 : i32
    %c0_i32_0 = arith.constant 0 : i32
    %c0_i32_1 = arith.constant 0 : i32
    return %c0_i32, %c0_i32_0 : i32, i32
  }
  func.func @transform_12(%arg0: i32) -> (i32, i32) {
    %c0_i32 = arith.constant 0 : i32
    %c0_i32_0 = arith.constant 0 : i32
    %c0_i32_1 = arith.constant 0 : i32
    return %c0_i32, %c0_i32_0 : i32, i32
  }
  func.func @transform_13(%arg0: i32) -> (i32, i32) {
    %c0_i32 = arith.constant 0 : i32
    %c0_i32_0 = arith.constant 0 : i32
    %c0_i32_1 = arith.constant 0 : i32
    return %c0_i32, %c0_i32_0 : i32, i32
  }
  func.func @transform_14(%arg0: i32) -> (i32, i32, i32) {
    %c0_i32 = arith.constant 0 : i32
    %c0_i32_0 = arith.constant 0 : i32
    %c0_i32_1 = arith.constant 0 : i32
    %c0_i32_2 = arith.constant 0 : i32
    return %c0_i32, %c0_i32_0, %c0_i32_1 : i32, i32, i32
  }
  func.func @transform_15(%arg0: i32) -> (i32, i32) {
    %c0_i32 = arith.constant 0 : i32
    %c0_i32_0 = arith.constant 0 : i32
    %c0_i32_1 = arith.constant 0 : i32
    return %c0_i32, %c0_i32_0 : i32, i32
  }
  func.func @transform_16(%arg0: i32) -> (i32, i32, i32) {
    %c0_i32 = arith.constant 0 : i32
    %c0_i32_0 = arith.constant 0 : i32
    %c0_i32_1 = arith.constant 0 : i32
    %c0_i32_2 = arith.constant 0 : i32
    return %c0_i32, %c0_i32_0, %c0_i32_1 : i32, i32, i32
  }
  func.func @transform_17(%arg0: i32) -> (i32, i32) {
    %c0_i32 = arith.constant 0 : i32
    %c0_i32_0 = arith.constant 0 : i32
    %c0_i32_1 = arith.constant 0 : i32
    return %c0_i32, %c0_i32_0 : i32, i32
  }
  func.func @transform_18(%arg0: i32) -> (i32, i32) {
    %c0_i32 = arith.constant 0 : i32
    %c0_i32_0 = arith.constant 0 : i32
    %c0_i32_1 = arith.constant 0 : i32
    return %c0_i32, %c0_i32_0 : i32, i32
  }
  func.func @transform_19(%arg0: i32) -> (i32, i32) {
    %c0_i32 = arith.constant 0 : i32
    %c0_i32_0 = arith.constant 0 : i32
    %c0_i32_1 = arith.constant 0 : i32
    return %c0_i32, %c0_i32_0 : i32, i32
  }
  func.func @transform_20(%arg0: i32) -> (i32, i32) {
    %c0_i32 = arith.constant 0 : i32
    %c0_i32_0 = arith.constant 0 : i32
    %c0_i32_1 = arith.constant 0 : i32
    return %c0_i32, %c0_i32_0 : i32, i32
  }
  func.func @transform_21(%arg0: i32) -> (i32, i32) {
    %c0_i32 = arith.constant 0 : i32
    %c0_i32_0 = arith.constant 0 : i32
    %c0_i32_1 = arith.constant 0 : i32
    return %c0_i32, %c0_i32_0 : i32, i32
  }
  func.func @transform_22(%arg0: i32) -> (i32, i32) {
    %c0_i32 = arith.constant 0 : i32
    %c0_i32_0 = arith.constant 0 : i32
    return %arg0, %c0_i32 : i32, i32
  }
}

</mosaic_0001>

<llo_original>
// kernel: tile.43
$region0: #{tile.43}
  #allocation0 [shape = 's32[1]{0}', space=sflag, size = 0x4, scoped, tag = 'scoped memory for tile.43']
  %s0 = inlined_call_operand.vmem [shape: f32[16], index: 0, kind: input, shape index: {}]
  %s1 = inlined_call_operand.vmem [shape: f32[16,16], index: 1, kind: output, shape index: {}]
  // Predicated region
  $region2: #{tile.43} parent=0 // pred_check
    _
  $region3: #{tile.43} parent=0 // pred_check_branch
    %3 = sbr.rel (0) target = $region5
  $region4: #{tile.43} parent=0 // pred_region
    _
  $region5: #{tile.43} parent=0 // pred_fallthru
    _
  %v4 = vld [vmem:[%s0] ss:$0 sm:$0xff]
  %5 = vst [vmem:[%s1] sm:$0xff] %v4
  %s6 = scalar_lea.vmem %s1, 8
  %7 = vst [vmem:[%s6] sm:$0xff] %v4

// kernel: tile.44
$region0: #{tile.44}
  %s0 = inlined_call_operand.vmem [shape: f32[16,16], index: 0, kind: input, shape index: {}]
  %s1 = inlined_call_operand.vmem [shape: f32[1,256], index: 1, kind: output, shape index: {}]
  $region1: #{tile.44} parent=0
    #allocation0 [shape = 'u8[8192]{0}', space=vmem, size = 0x2000, scoped, tag = 'scoped mem for output reshape']
    %s2 = smov 3
    %v3 = vld [vmem:[%s0] ss:$8 sm:%s2]
    %vm4 = vcmask 130048
    %5 = vst.msk [vmem:[#allocation0] ss:$8 sm:$0x3] %vm4, %v3
    %s6 = scalar_lea.vmem %s0, 7
    %s7 = smov 3
    %v8 = vld [vmem:[%s6] ss:$8 sm:%s7]
    %9 = vrot.lane.b32.xlu0 %v8, 112
    %v10 = vpop.permute.xlu0 %9
    %vm11 = vcmask 1048448
    %12 = vst.msk [vmem:[#allocation0] ss:$8 sm:$0x3] %vm11, %v10
    %s13 = scalar_lea.vmem %s0, 6
    %s14 = smov 3
    %v15 = vld [vmem:[%s13] ss:$8 sm:%s14]
    %16 = vrot.lane.b32.xlu0 %v15, 96
    %v17 = vpop.permute.xlu0 %16
    %vm18 = vcmask 917248
    %19 = vst.msk [vmem:[#allocation0] ss:$8 sm:$0x3] %vm18, %v17
    %s20 = scalar_lea.vmem %s0, 5
    %s21 = smov 3
    %v22 = vld [vmem:[%s20] ss:$8 sm:%s21]
    %23 = vrot.lane.b32.xlu0 %v22, 80
    %v24 = vpop.permute.xlu0 %23
    %vm25 = vcmask 786048
    %26 = vst.msk [vmem:[#allocation0] ss:$8 sm:$0x3] %vm25, %v24
    %s27 = scalar_lea.vmem %s0, 4
    %s28 = smov 3
    %v29 = vld [vmem:[%s27] ss:$8 sm:%s28]
    %30 = vrot.lane.b32.xlu0 %v29, 64
    %v31 = vpop.permute.xlu0 %30
    %vm32 = vcmask 654848
    %33 = vst.msk [vmem:[#allocation0] ss:$8 sm:$0x3] %vm32, %v31
    %s34 = scalar_lea.vmem %s0, 3
    %s35 = smov 3
    %v36 = vld [vmem:[%s34] ss:$8 sm:%s35]
    %37 = vrot.lane.b32.xlu0 %v36, 48
    %v38 = vpop.permute.xlu0 %37
    %vm39 = vcmask 523648
    %40 = vst.msk [vmem:[#allocation0] ss:$8 sm:$0x3] %vm39, %v38
    %s41 = scalar_lea.vmem %s0, 2
    %s42 = smov 3
    %v43 = vld [vmem:[%s41] ss:$8 sm:%s42]
    %44 = vrot.lane.b32.xlu0 %v43, 32
    %v45 = vpop.permute.xlu0 %44
    %vm46 = vcmask 392448
    %47 = vst.msk [vmem:[#allocation0] ss:$8 sm:$0x3] %vm46, %v45
    %s48 = scalar_lea.vmem %s0, 1
    %s49 = smov 3
    %v50 = vld [vmem:[%s48] ss:$8 sm:%s49]
    %51 = vrot.lane.b32.xlu0 %v50, 16
    %v52 = vpop.permute.xlu0 %51
    %vm53 = vcmask 261248
    %54 = vst.msk [vmem:[#allocation0] ss:$8 sm:$0x3] %vm53, %v52
    %s56 = sshll.u32 1, 1
    %s57 = ssub.s32 %s56, 1
    %v59 = vld [vmem:[#allocation0] sm:%s57]
    %s60 = sshll.u32 1, 1
    %s61 = ssub.s32 %s60, 1
    %62 = vst [vmem:[%s1] sm:%s61] %v59
    %s63 = scalar_lea.vmem [#allocation0], 8
    %v64 = vld [vmem:[%s63] sm:%s57]
    %s65 = sshll.u32 1, 1
    %s66 = ssub.s32 %s65, 1
    %s67 = scalar_lea.vmem %s1, 1
    %68 = vst [vmem:[%s67] sm:%s66] %v64

// kernel: tile.58
$region0: #{tile.58}
  #allocation0 [shape = 's32[1]{0}', space=sflag, size = 0x4, scoped, tag = 'scoped memory for tile.58']
  %s0 = inlined_call_operand.vmem [shape: f32[32], index: 0, kind: input, shape index: {}]
  %s1 = inlined_call_operand.vmem [shape: f32[8,32], index: 1, kind: output, shape index: {}]
  // Predicated region
  $region2: #{tile.58} parent=0 // pred_check
    _
  $region3: #{tile.58} parent=0 // pred_check_branch
    %3 = sbr.rel (0) target = $region5
  $region4: #{tile.58} parent=0 // pred_region
    _
  $region5: #{tile.58} parent=0 // pred_fallthru
    _
  %v4 = vld [vmem:[%s0] ss:$0 sm:$0xff]
  %5 = vst [vmem:[%s1] sm:$0xff] %v4

// kernel: tile.59
$region0: #{tile.59}
  %s0 = inlined_call_operand.vmem [shape: f32[8,32], index: 0, kind: input, shape index: {}]
  %s1 = inlined_call_operand.vmem [shape: f32[1,256], index: 1, kind: output, shape index: {}]
  $region1: #{tile.59} parent=0
    #allocation0 [shape = 'u8[8192]{0}', space=vmem, size = 0x2000, scoped, tag = 'scoped mem for output reshape']
    %s2 = smov 3
    %v3 = vld [vmem:[%s0] ss:$4 sm:%s2]
    %vm4 = vcmask 261120
    %5 = vst.msk [vmem:[#allocation0] ss:$8 sm:$0x3] %vm4, %v3
    %s6 = scalar_lea.vmem %s0, 3
    %s7 = smov 3
    %v8 = vld [vmem:[%s6] ss:$4 sm:%s7]
    %9 = vrot.lane.b32.xlu0 %v8, 96
    %v10 = vpop.permute.xlu0 %9
    %vm11 = vcmask 1048320
    %12 = vst.msk [vmem:[#allocation0] ss:$8 sm:$0x3] %vm11, %v10
    %s13 = scalar_lea.vmem %s0, 2
    %s14 = smov 3
    %v15 = vld [vmem:[%s13] ss:$4 sm:%s14]
    %16 = vrot.lane.b32.xlu0 %v15, 64
    %v17 = vpop.permute.xlu0 %16
    %vm18 = vcmask 785920
    %19 = vst.msk [vmem:[#allocation0] ss:$8 sm:$0x3] %vm18, %v17
    %s20 = scalar_lea.vmem %s0, 1
    %s21 = smov 3
    %v22 = vld [vmem:[%s20] ss:$4 sm:%s21]
    %23 = vrot.lane.b32.xlu0 %v22, 32
    %v24 = vpop.permute.xlu0 %23
    %vm25 = vcmask 523520
    %26 = vst.msk [vmem:[#allocation0] ss:$8 sm:$0x3] %vm25, %v24
    %s28 = sshll.u32 1, 1
    %s29 = ssub.s32 %s28, 1
    %v31 = vld [vmem:[#allocation0] sm:%s29]
    %s32 = sshll.u32 1, 1
    %s33 = ssub.s32 %s32, 1
    %34 = vst [vmem:[%s1] sm:%s33] %v31
    %s35 = scalar_lea.vmem [#allocation0], 8
    %v36 = vld [vmem:[%s35] sm:%s29]
    %s37 = sshll.u32 1, 1
    %s38 = ssub.s32 %s37, 1
    %s39 = scalar_lea.vmem %s1, 1
    %40 = vst [vmem:[%s39] sm:%s38] %v36

// kernel: tile.68
$region0: #{tile.68}
  #allocation0 [shape = 's32[1]{0}', space=sflag, size = 0x4, scoped, tag = 'scoped memory for tile.68']
  %s0 = inlined_call_operand.vmem [shape: f32[64], index: 0, kind: input, shape index: {}]
  %s1 = inlined_call_operand.vmem [shape: f32[4,64], index: 1, kind: output, shape index: {}]
  // Predicated region
  $region2: #{tile.68} parent=0 // pred_check
    _
  $region3: #{tile.68} parent=0 // pred_check_branch
    %3 = sbr.rel (0) target = $region5
  $region4: #{tile.68} parent=0 // pred_region
    _
  $region5: #{tile.68} parent=0 // pred_fallthru
    _
  %v4 = vld [vmem:[%s0] ss:$0 sm:$0xff]
  %5 = vst [vmem:[%s1] sm:$0xf] %v4

// kernel: tile.69
$region0: #{tile.69}
  %s0 = inlined_call_operand.vmem [shape: f32[4,64], index: 0, kind: input, shape index: {}]
  %s1 = inlined_call_operand.vmem [shape: f32[1,256], index: 1, kind: output, shape index: {}]
  $region1: #{tile.69} parent=0
    #allocation0 [shape = 'u8[8192]{0}', space=vmem, size = 0x2000, scoped, tag = 'scoped mem for output reshape']
    #allocation1 [shape = 'u8[4096]{0}', space=vmem, size = 0x1000, scoped, tag = 'scoped mem for input reshape']
    %s3 = sshll.u32 1, 4
    %s4 = ssub.s32 %s3, 1
    %v5 = vld [vmem:[%s0] sm:%s4]
    %6 = vst [vmem:[#allocation1] sm:%s4] %v5
    %s7 = smov 3
    %v8 = vld [vmem:[#allocation1] ss:$2 sm:%s7]
    %vm9 = vcmask 523264
    %10 = vst.msk [vmem:[#allocation0] ss:$8 sm:$0x3] %vm9, %v8
    %s11 = scalar_lea.vmem [#allocation1], 1
    %s12 = smov 3
    %v13 = vld [vmem:[%s11] ss:$2 sm:%s12]
    %14 = vrot.lane.b32.xlu0 %v13, 64
    %v15 = vpop.permute.xlu0 %14
    %vm16 = vcmask 1048064
    %17 = vst.msk [vmem:[#allocation0] ss:$8 sm:$0x3] %vm16, %v15
    %s19 = sshll.u32 1, 1
    %s20 = ssub.s32 %s19, 1
    %v22 = vld [vmem:[#allocation0] sm:%s20]
    %s23 = sshll.u32 1, 1
    %s24 = ssub.s32 %s23, 1
    %25 = vst [vmem:[%s1] sm:%s24] %v22
    %s26 = scalar_lea.vmem [#allocation0], 8
    %v27 = vld [vmem:[%s26] sm:%s20]
    %s28 = sshll.u32 1, 1
    %s29 = ssub.s32 %s28, 1
    %s30 = scalar_lea.vmem %s1, 1
    %31 = vst [vmem:[%s30] sm:%s29] %v27

// kernel: resnet_forward.1
$region0: #{resnet_forward.1}
  #allocation0 [shape = 'u32[]', space=smem, size = 0x4, offset = 0x4, fixed_abs, tag = 'smem constant byte address 0x4 - core index']
  #allocation1 [shape = 'u32[144,128]{1,0:T(1,128)}', space=vmem, size = 0x12000, scoped, tag = 'internal scratch']
  #allocation2 [shape = 'f32[64,256]{1,0:T(8,128)}', space=vmem, size = 0x10000, scoped, tag = 'scratch operand']
  #allocation3 [shape = 'f32[64,256]{1,0:T(8,128)}', space=vmem, size = 0x10000, scoped, tag = 'scratch operand']
  #allocation4 [shape = 'f32[64,256]{1,0:T(8,128)}', space=vmem, size = 0x10000, scoped, tag = 'scratch operand']
  %s0 = inlined_call_operand.vmem [shape: bf16[64,48], index: 0, kind: input, shape index: {}]
  %s1 = inlined_call_operand.vmem [shape: bf16[3,48,256], index: 1, kind: input, shape index: {}]
  %s2 = inlined_call_operand.vmem [shape: f32[1,256], index: 2, kind: input, shape index: {}]
  %s3 = inlined_call_operand.vmem [shape: f32[1,256], index: 3, kind: input, shape index: {}]
  %s4 = inlined_call_operand.vmem [shape: bf16[3,256,256], index: 4, kind: input, shape index: {}]
  %s5 = inlined_call_operand.vmem [shape: f32[1,256], index: 5, kind: input, shape index: {}]
  %s6 = inlined_call_operand.vmem [shape: bf16[3,256,256], index: 6, kind: input, shape index: {}]
  %s7 = inlined_call_operand.vmem [shape: f32[1,256], index: 7, kind: input, shape index: {}]
  %s8 = inlined_call_operand.vmem [shape: bf16[3,256,256], index: 8, kind: input, shape index: {}]
  %s9 = inlined_call_operand.vmem [shape: f32[1,256], index: 9, kind: input, shape index: {}]
  %s10 = inlined_call_operand.vmem [shape: bf16[3,256,256], index: 10, kind: input, shape index: {}]
  %s11 = inlined_call_operand.vmem [shape: bf16[30,62], index: 11, kind: input, shape index: {}]
  %s12 = inlined_call_operand.vmem [shape: bf16[256,256], index: 12, kind: input, shape index: {}]
  %s13 = inlined_call_operand.vmem [shape: f32[1,256], index: 13, kind: input, shape index: {}]
  %s14 = inlined_call_operand.vmem [shape: bf16[3,256,256], index: 14, kind: input, shape index: {}]
  %s15 = inlined_call_operand.vmem [shape: f32[1,256], index: 15, kind: input, shape index: {}]
  %s16 = inlined_call_operand.vmem [shape: bf16[3,256,256], index: 16, kind: input, shape index: {}]
  %s17 = inlined_call_operand.vmem [shape: bf16[14,30], index: 17, kind: input, shape index: {}]
  %s18 = inlined_call_operand.vmem [shape: bf16[256,256], index: 18, kind: input, shape index: {}]
  %s19 = inlined_call_operand.vmem [shape: f32[2,14], index: 19, kind: input, shape index: {}]
  %s20 = inlined_call_operand.vmem [shape: f32[256,10], index: 20, kind: input, shape index: {}]
  %s21 = inlined_call_operand.vmem [shape: f32[1,10], index: 21, kind: input, shape index: {}]
  %s22 = inlined_call_operand.hbm [shape: f32[2,10], index: 22, kind: output, shape index: {}]
  %s23 = sld [smem:[#allocation0]]
  $region98: #{resnet_forward.1} parent=0
    _
  %s25 = ssub.s32 1, %s23
  %s26 = scalar_select 0, %s25, %s23
  $region1: #{resnet_forward.1} parent=0
    #allocation5 [shape = 'u8[1024]{0}', space=vmem, size = 0x400, scoped, tag = 'output window, operand 0, single buffered']
    #allocation6 [shape = 's32[1]{0}', space=sflag, size = 0x4, scoped, tag = 'scoped memory for resnet_forward.1']
    %27 = vsyncpa [#allocation6], 0
    // Predicated region
    $region2: #{resnet_forward.1} parent=1 // pred_check
      _
    $region3: #{resnet_forward.1} parent=1 // pred_check_branch
      %29 = sbr.rel (0) target = $region5
    $region4: #{resnet_forward.1} parent=1 // pred_region
      _
    $region5: #{resnet_forward.1} parent=1 // pred_fallthru
      _
    // Predicated region
    $region6: #{resnet_forward.1} parent=1 // pred_check
      _
    $region7: #{resnet_forward.1} parent=1 // pred_check_branch
      %31 = sbr.rel (0) target = $region9
    $region8: #{resnet_forward.1} parent=1 // pred_region
      _
    $region9: #{resnet_forward.1} parent=1 // pred_fallthru
      _
    // Predicated region
    $region10: #{resnet_forward.1} parent=1 // pred_check
      _
    $region11: #{resnet_forward.1} parent=1 // pred_check_branch
      %33 = sbr.rel (0) target = $region13
    $region12: #{resnet_forward.1} parent=1 // pred_region
      _
    $region13: #{resnet_forward.1} parent=1 // pred_fallthru
      _
    // Predicated region
    $region14: #{resnet_forward.1} parent=1 // pred_check
      _
    $region15: #{resnet_forward.1} parent=1 // pred_check_branch
      %35 = sbr.rel (0) target = $region17
    $region16: #{resnet_forward.1} parent=1 // pred_region
      _
    $region17: #{resnet_forward.1} parent=1 // pred_fallthru
      _
    // Predicated region
    $region18: #{resnet_forward.1} parent=1 // pred_check
      _
    $region19: #{resnet_forward.1} parent=1 // pred_check_branch
      %37 = sbr.rel (0) target = $region21
    $region20: #{resnet_forward.1} parent=1 // pred_region
      _
    $region21: #{resnet_forward.1} parent=1 // pred_fallthru
      _
    // Predicated region
    $region22: #{resnet_forward.1} parent=1 // pred_check
      _
    $region23: #{resnet_forward.1} parent=1 // pred_check_branch
      %39 = sbr.rel (0) target = $region25
    $region24: #{resnet_forward.1} parent=1 // pred_region
      _
    $region25: #{resnet_forward.1} parent=1 // pred_fallthru
      _
    // Predicated region
    $region26: #{resnet_forward.1} parent=1 // pred_check
      _
    $region27: #{resnet_forward.1} parent=1 // pred_check_branch
      %41 = sbr.rel (0) target = $region29
    $region28: #{resnet_forward.1} parent=1 // pred_region
      _
    $region29: #{resnet_forward.1} parent=1 // pred_fallthru
      _
    // Predicated region
    $region30: #{resnet_forward.1} parent=1 // pred_check
      _
    $region31: #{resnet_forward.1} parent=1 // pred_check_branch
      %43 = sbr.rel (0) target = $region33
    $region32: #{resnet_forward.1} parent=1 // pred_region
      _
    $region33: #{resnet_forward.1} parent=1 // pred_fallthru
      _
    // Predicated region
    $region34: #{resnet_forward.1} parent=1 // pred_check
      _
    $region35: #{resnet_forward.1} parent=1 // pred_check_branch
      %45 = sbr.rel (0) target = $region37
    $region36: #{resnet_forward.1} parent=1 // pred_region
      _
    $region37: #{resnet_forward.1} parent=1 // pred_fallthru
      _
    // Predicated region
    $region38: #{resnet_forward.1} parent=1 // pred_check
      _
    $region39: #{resnet_forward.1} parent=1 // pred_check_branch
      %47 = sbr.rel (0) target = $region41
    $region40: #{resnet_forward.1} parent=1 // pred_region
      _
    $region41: #{resnet_forward.1} parent=1 // pred_fallthru
      _
    // Predicated region
    $region42: #{resnet_forward.1} parent=1 // pred_check
      _
    $region43: #{resnet_forward.1} parent=1 // pred_check_branch
      %49 = sbr.rel (0) target = $region45
    $region44: #{resnet_forward.1} parent=1 // pred_region
      _
    $region45: #{resnet_forward.1} parent=1 // pred_fallthru
      _
    // Predicated region
    $region46: #{resnet_forward.1} parent=1 // pred_check
      _
    $region47: #{resnet_forward.1} parent=1 // pred_check_branch
      %51 = sbr.rel (0) target = $region49
    $region48: #{resnet_forward.1} parent=1 // pred_region
      _
    $region49: #{resnet_forward.1} parent=1 // pred_fallthru
      _
    // Predicated region
    $region50: #{resnet_forward.1} parent=1 // pred_check
      _
    $region51: #{resnet_forward.1} parent=1 // pred_check_branch
      %53 = sbr.rel (0) target = $region53
    $region52: #{resnet_forward.1} parent=1 // pred_region
      _
    $region53: #{resnet_forward.1} parent=1 // pred_fallthru
      _
    // Predicated region
    $region54: #{resnet_forward.1} parent=1 // pred_check
      _
    $region55: #{resnet_forward.1} parent=1 // pred_check_branch
      %55 = sbr.rel (0) target = $region57
    $region56: #{resnet_forward.1} parent=1 // pred_region
      _
    $region57: #{resnet_forward.1} parent=1 // pred_fallthru
      _
    // Predicated region
    $region58: #{resnet_forward.1} parent=1 // pred_check
      _
    $region59: #{resnet_forward.1} parent=1 // pred_check_branch
      %57 = sbr.rel (0) target = $region61
    $region60: #{resnet_forward.1} parent=1 // pred_region
      _
    $region61: #{resnet_forward.1} parent=1 // pred_fallthru
      _
    // Predicated region
    $region62: #{resnet_forward.1} parent=1 // pred_check
      _
    $region63: #{resnet_forward.1} parent=1 // pred_check_branch
      %59 = sbr.rel (0) target = $region65
    $region64: #{resnet_forward.1} parent=1 // pred_region
      _
    $region65: #{resnet_forward.1} parent=1 // pred_fallthru
      _
    // Predicated region
    $region66: #{resnet_forward.1} parent=1 // pred_check
      _
    $region67: #{resnet_forward.1} parent=1 // pred_check_branch
      %61 = sbr.rel (0) target = $region69
    $region68: #{resnet_forward.1} parent=1 // pred_region
      _
    $region69: #{resnet_forward.1} parent=1 // pred_fallthru
      _
    // Predicated region
    $region70: #{resnet_forward.1} parent=1 // pred_check
      _
    $region71: #{resnet_forward.1} parent=1 // pred_check_branch
      %63 = sbr.rel (0) target = $region73
    $region72: #{resnet_forward.1} parent=1 // pred_region
      _
    $region73: #{resnet_forward.1} parent=1 // pred_fallthru
      _
    // Predicated region
    $region74: #{resnet_forward.1} parent=1 // pred_check
      _
    $region75: #{resnet_forward.1} parent=1 // pred_check_branch
      %65 = sbr.rel (0) target = $region77
    $region76: #{resnet_forward.1} parent=1 // pred_region
      _
    $region77: #{resnet_forward.1} parent=1 // pred_fallthru
      _
    // Predicated region
    $region78: #{resnet_forward.1} parent=1 // pred_check
      _
    $region79: #{resnet_forward.1} parent=1 // pred_check_branch
      %67 = sbr.rel (0) target = $region81
    $region80: #{resnet_forward.1} parent=1 // pred_region
      _
    $region81: #{resnet_forward.1} parent=1 // pred_fallthru
      _
    // Predicated region
    $region82: #{resnet_forward.1} parent=1 // pred_check
      _
    $region83: #{resnet_forward.1} parent=1 // pred_check_branch
      %69 = sbr.rel (0) target = $region85
    $region84: #{resnet_forward.1} parent=1 // pred_region
      _
    $region85: #{resnet_forward.1} parent=1 // pred_fallthru
      _
    // Predicated region
    $region86: #{resnet_forward.1} parent=1 // pred_check
      _
    $region87: #{resnet_forward.1} parent=1 // pred_check_branch
      %71 = sbr.rel (0) target = $region89
    $region88: #{resnet_forward.1} parent=1 // pred_region
      _
    $region89: #{resnet_forward.1} parent=1 // pred_fallthru
      _
    %v73 = vld [vmem:[%s0] sm:$0xf]
    %v74 = vld [vmem:[%s0 + $0x4] sm:$0xf]
    %v75 = vld [vmem:[%s0 + $0x8] sm:$0xf]
    %v76 = vld [vmem:[%s0 + $0xc] sm:$0xf]
    %v77 = vld [vmem:[%s0 + $0x10] sm:$0xf]
    %v78 = vld [vmem:[%s0 + $0x14] sm:$0xf]
    %v79 = vld [vmem:[%s0 + $0x18] sm:$0xf]
    %v80 = vld [vmem:[%s0 + $0x1c] sm:$0x7]
    %v81 = vld [vmem:[%s1] sm:$0xff]
    %v82 = vld [vmem:[%s1 + $0x8] sm:$0xff]
    %v83 = vld [vmem:[%s1 + $0x10] sm:$0xff]
    %v84 = vld [vmem:[%s1 + $0x18] sm:$0xff]
    %v85 = vld [vmem:[%s1 + $0x20] sm:$0xff]
    %v86 = vld [vmem:[%s1 + $0x28] sm:$0xff]
    %v87 = vld [vmem:[%s0 + $0x1c] sm:$0xf]
    %s88 = scalar_lea.vmem %s1, 48
    %v89 = vld [vmem:[%s88] sm:$0xff]
    %v90 = vld [vmem:[%s88 + $0x8] sm:$0xff]
    %v91 = vld [vmem:[%s88 + $0x10] sm:$0xff]
    %v92 = vld [vmem:[%s88 + $0x18] sm:$0xff]
    %v93 = vld [vmem:[%s88 + $0x20] sm:$0xff]
    %v94 = vld [vmem:[%s88 + $0x28] sm:$0xff]
    %v103 = vunpack.c.l.b16 %v73
    %v104 = vunpack.c.l.b16 %v74
    %v105 = vunpack.c.l.b16 %v75
    %v106 = vunpack.c.l.b16 %v76
    %v107 = vunpack.c.l.b16 %v77
    %v108 = vunpack.c.l.b16 %v78
    %v109 = vunpack.c.l.b16 %v79
    %v110 = vunpack.c.l.b16 %v87
    %v111 = vpack.c.b16 %v104, %v103
    %v112 = vpack.c.b16 %v106, %v105
    %v113 = vpack.c.b16 %v108, %v107
    %v114 = vpack.c.b16 %v110, %v109
    %vm115 = vsmask.f32 7424
    %v117 = vshrl.u32 %v111, 16
    %v119 = vshll.u32 %v111, 16
    %v121 = vrot.slane %v119, 1
    %v122 = vor.u32 %v117, %v121
    %v124 = vshll.u32 %v112, 16
    %v126 = vrot.slane %v124, 1
    %v127 = vsel %vm115, %v122, %v126
    %v128 = vshrl.u32 %v112, 16
    %v130 = vor.u32 %v128, %v126
    %v132 = vshll.u32 %v113, 16
    %v134 = vrot.slane %v132, 1
    %v135 = vsel %vm115, %v130, %v134
    %v136 = vshrl.u32 %v113, 16
    %v138 = vor.u32 %v136, %v134
    %v140 = vshll.u32 %v114, 16
    %v142 = vrot.slane %v140, 1
    %v143 = vsel %vm115, %v138, %v142
    %v144 = vshrl.u32 %v114, 16
    %v146 = vor.u32 %v144, %v142
    %v153 = vunpack.c.l.b16 %v89
    %v154 = vunpack.c.h.b16 %v89
    %v155 = vunpack.c.l.b16 %v90
    %v156 = vunpack.c.h.b16 %v90
    %v157 = vunpack.c.l.b16 %v91
    %v158 = vunpack.c.h.b16 %v91
    %v159 = vunpack.c.l.b16 %v92
    %v160 = vunpack.c.h.b16 %v92
    %v161 = vunpack.c.l.b16 %v93
    %v162 = vunpack.c.h.b16 %v93
    %v163 = vunpack.c.l.b16 %v94
    %v164 = vunpack.c.h.b16 %v94
    %v165 = vpack.c.b16 %v155, %v153
    %v166 = vpack.c.b16 %v156, %v154
    %v167 = vpack.c.b16 %v159, %v157
    %v168 = vpack.c.b16 %v160, %v158
    %v169 = vpack.c.b16 %v163, %v161
    %v170 = vpack.c.b16 %v164, %v162
    %vm177 = vcmask 392192
    %v179 = vsel %vm177, %v127, 0
    %v182 = vsel %vm177, %v135, 0
    %v185 = vsel %vm177, %v143, 0
    %v188 = vsel %vm177, %v146, 0
    %190 = vmatprep.subr.bf16.mxu0 0
    %191 = vmatpush1.bf16.msra.mxu0 0
    %192 = vmatprep.subr.bf16.mxu0 0
    %193 = vmatpush1.bf16.msra.mxu0 0
    %194 = vmatprep.subr.bf16.mxu0 0
    %195 = vmatpush1.bf16.msra.mxu0 0
    %196 = vmatprep.subr.bf16.mxu0 0
    %197 = vmatpush1.bf16.msra.mxu0 0
    %198 = vmatprep.subr.bf16.mxu0 0
    %199 = vmatpush1.bf16.msra.mxu0 0
    %200 = vmatprep.subr.bf16.mxu0 %v170
    %201 = vmatpush1.bf16.msra.mxu0 %v169
    %202 = vmatprep.subr.bf16.mxu0 %v168
    %203 = vmatpush1.bf16.msra.mxu0 %v167
    %204 = vmatprep.subr.bf16.mxu0 %v166
    %205 = vmatpush1.bf16.msra.mxu0 %v165
    %206 = vmatprep.subr.bf16.mxu0 0
    %207 = vmatpush2.bf16.msra.mxu0 0
    %208 = vmatprep.subr.bf16.mxu0 0
    %209 = vmatpush2.bf16.msra.mxu0 0
    %210 = vmatprep.subr.bf16.mxu0 0
    %211 = vmatpush2.bf16.msra.mxu0 0
    %212 = vmatprep.subr.bf16.mxu0 0
    %213 = vmatpush2.bf16.msra.mxu0 0
    %214 = vmatprep.subr.bf16.mxu0 0
    %215 = vmatpush2.bf16.msra.mxu0 0
    %216 = vmatprep.subr.bf16.mxu0 0
    %217 = vmatpush2.bf16.msra.mxu0 0
    %218 = vmatprep.subr.bf16.mxu0 0
    %219 = vmatpush2.bf16.msra.mxu0 0
    %220 = vmatprep.subr.bf16.mxu0 0
    %221 = vmatpush2.bf16.msra.mxu0 0
    %222 = vmatprep.mubr.bf16.mxu0 0
    %223 = vmatmul.mubr.bf16.gmra.mxu0 %v179
    %v224 = vpop.f32.mrf.mxu0
    %v225 = vadd.f32 0.0, %v224
    %v226 = vpop.f32.mrf.mxu0
    %v227 = vadd.f32 0.0, %v226
    %v228 = vpop.f32.mrf.mxu0
    %v229 = vadd.f32 0.0, %v228
    %v230 = vpop.f32.mrf.mxu0
    %v231 = vadd.f32 0.0, %v230
    %232 = vmatprep.mubr.bf16.mxu0 0
    %233 = vmatmul.mubr.bf16.gmra.mxu0 %v182
    %v234 = vpop.f32.mrf.mxu0
    %v235 = vadd.f32 0.0, %v234
    %v236 = vpop.f32.mrf.mxu0
    %v237 = vadd.f32 0.0, %v236
    %v238 = vpop.f32.mrf.mxu0
    %v239 = vadd.f32 0.0, %v238
    %v240 = vpop.f32.mrf.mxu0
    %v241 = vadd.f32 0.0, %v240
    %242 = vmatprep.mubr.bf16.mxu0 0
    %243 = vmatmul.mubr.bf16.gmra.mxu0 %v185
    %v244 = vpop.f32.mrf.mxu0
    %v245 = vadd.f32 0.0, %v244
    %v246 = vpop.f32.mrf.mxu0
    %v247 = vadd.f32 0.0, %v246
    %v248 = vpop.f32.mrf.mxu0
    %v249 = vadd.f32 0.0, %v248
    %v250 = vpop.f32.mrf.mxu0
    %v251 = vadd.f32 0.0, %v250
    %252 = vmatprep.mubr.bf16.mxu0 0
    %253 = vmatmul.mubr.bf16.gmra.mxu0 %v188
    %v254 = vpop.f32.mrf.mxu0
    %v255 = vadd.f32 0.0, %v254
    %v256 = vpop.f32.mrf.mxu0
    %v257 = vadd.f32 0.0, %v256
    %v258 = vpop.f32.mrf.mxu0
    %v259 = vadd.f32 0.0, %v258
    %v260 = vpop.f32.mrf.mxu0
    %v261 = vadd.f32 0.0, %v260
    %262 = vdwg.mxu0
    %v264 = vunpack.c.l.b16 %v80
    %v265 = vpack.c.b16 %v264, %v109
    %v272 = vunpack.c.l.b16 %v81
    %v273 = vunpack.c.h.b16 %v81
    %v274 = vunpack.c.l.b16 %v82
    %v275 = vunpack.c.h.b16 %v82
    %v276 = vunpack.c.l.b16 %v83
    %v277 = vunpack.c.h.b16 %v83
    %v278 = vunpack.c.l.b16 %v84
    %v279 = vunpack.c.h.b16 %v84
    %v280 = vunpack.c.l.b16 %v85
    %v281 = vunpack.c.h.b16 %v85
    %v282 = vunpack.c.l.b16 %v86
    %v283 = vunpack.c.h.b16 %v86
    %v284 = vpack.c.b16 %v274, %v272
    %v285 = vpack.c.b16 %v275, %v273
    %v286 = vpack.c.b16 %v278, %v276
    %v287 = vpack.c.b16 %v279, %v277
    %v288 = vpack.c.b16 %v282, %v280
    %v289 = vpack.c.b16 %v283, %v281
    %v296 = vsel %vm177, %v111, 0
    %v298 = vsel %vm177, %v112, 0
    %v300 = vsel %vm177, %v113, 0
    %v303 = vsel %vm177, %v265, 0
    %305 = vmatprep.subr.bf16.mxu0 0
    %306 = vmatpush1.bf16.msra.mxu0 0
    %307 = vmatprep.subr.bf16.mxu0 0
    %308 = vmatpush1.bf16.msra.mxu0 0
    %309 = vmatprep.subr.bf16.mxu0 0
    %310 = vmatpush1.bf16.msra.mxu0 0
    %311 = vmatprep.subr.bf16.mxu0 0
    %312 = vmatpush1.bf16.msra.mxu0 0
    %313 = vmatprep.subr.bf16.mxu0 0
    %314 = vmatpush1.bf16.msra.mxu0 0
    %315 = vmatprep.subr.bf16.mxu0 %v289
    %316 = vmatpush1.bf16.msra.mxu0 %v288
    %317 = vmatprep.subr.bf16.mxu0 %v287
    %318 = vmatpush1.bf16.msra.mxu0 %v286
    %319 = vmatprep.subr.bf16.mxu0 %v285
    %320 = vmatpush1.bf16.msra.mxu0 %v284
    %321 = vmatprep.subr.bf16.mxu0 0
    %322 = vmatpush2.bf16.msra.mxu0 0
    %323 = vmatprep.subr.bf16.mxu0 0
    %324 = vmatpush2.bf16.msra.mxu0 0
    %325 = vmatprep.subr.bf16.mxu0 0
    %326 = vmatpush2.bf16.msra.mxu0 0
    %327 = vmatprep.subr.bf16.mxu0 0
    %328 = vmatpush2.bf16.msra.mxu0 0
    %329 = vmatprep.subr.bf16.mxu0 0
    %330 = vmatpush2.bf16.msra.mxu0 0
    %331 = vmatprep.subr.bf16.mxu0 0
    %332 = vmatpush2.bf16.msra.mxu0 0
    %333 = vmatprep.subr.bf16.mxu0 0
    %334 = vmatpush2.bf16.msra.mxu0 0
    %335 = vmatprep.subr.bf16.mxu0 0
    %336 = vmatpush2.bf16.msra.mxu0 0
    %337 = vmatprep.mubr.bf16.mxu0 0
    %338 = vmatmul.mubr.bf16.gmra.mxu0 %v296
    %v339 = vpop.f32.mrf.mxu0
    %v340 = vadd.f32 %v225, %v339
    %v341 = vpop.f32.mrf.mxu0
    %v342 = vadd.f32 %v227, %v341
    %v343 = vpop.f32.mrf.mxu0
    %v344 = vadd.f32 %v229, %v343
    %v345 = vpop.f32.mrf.mxu0
    %v346 = vadd.f32 %v231, %v345
    %347 = vmatprep.mubr.bf16.mxu0 0
    %348 = vmatmul.mubr.bf16.gmra.mxu0 %v298
    %v349 = vpop.f32.mrf.mxu0
    %v350 = vadd.f32 %v235, %v349
    %v351 = vpop.f32.mrf.mxu0
    %v352 = vadd.f32 %v237, %v351
    %v353 = vpop.f32.mrf.mxu0
    %v354 = vadd.f32 %v239, %v353
    %v355 = vpop.f32.mrf.mxu0
    %v356 = vadd.f32 %v241, %v355
    %357 = vmatprep.mubr.bf16.mxu0 0
    %358 = vmatmul.mubr.bf16.gmra.mxu0 %v300
    %v359 = vpop.f32.mrf.mxu0
    %v360 = vadd.f32 %v245, %v359
    %v361 = vpop.f32.mrf.mxu0
    %v362 = vadd.f32 %v247, %v361
    %v363 = vpop.f32.mrf.mxu0
    %v364 = vadd.f32 %v249, %v363
    %v365 = vpop.f32.mrf.mxu0
    %v366 = vadd.f32 %v251, %v365
    %367 = vmatprep.mubr.bf16.mxu0 0
    %368 = vmatmul.mubr.bf16.gmra.mxu0 %v303
    %v369 = vpop.f32.mrf.mxu0
    %v370 = vadd.f32 %v255, %v369
    %v371 = vpop.f32.mrf.mxu0
    %v372 = vadd.f32 %v257, %v371
    %v373 = vpop.f32.mrf.mxu0
    %v374 = vadd.f32 %v259, %v373
    %v375 = vpop.f32.mrf.mxu0
    %v376 = vadd.f32 %v261, %v375
    %377 = vdwg.mxu0
    %v378 = vld [vmem:[%s0] sm:$0xe]
    %s379 = scalar_lea.vmem %s1, 96
    %v380 = vld [vmem:[%s379] sm:$0xff]
    %v381 = vld [vmem:[%s379 + $0x8] sm:$0xff]
    %v382 = vld [vmem:[%s379 + $0x10] sm:$0xff]
    %v383 = vld [vmem:[%s379 + $0x18] sm:$0xff]
    %v384 = vld [vmem:[%s379 + $0x20] sm:$0xff]
    %v385 = vld [vmem:[%s379 + $0x28] sm:$0xff]
    %v387 = vunpack.c.l.b16 %v378
    %v388 = vpack.c.b16 %v104, %v387
    %vm389 = vcmask 1046528
    %v390 = vrot.slane %v388, 1
    %v391 = vrot.slane %v112, 1
    %v392 = vsel %vm389, %v390, %v391
    %v393 = vrot.slane %v113, 1
    %v394 = vsel %vm389, %v391, %v393
    %v395 = vrot.slane %v114, 1
    %v396 = vsel %vm389, %v393, %v395
    %v403 = vunpack.c.l.b16 %v380
    %v404 = vunpack.c.h.b16 %v380
    %v405 = vunpack.c.l.b16 %v381
    %v406 = vunpack.c.h.b16 %v381
    %v407 = vunpack.c.l.b16 %v382
    %v408 = vunpack.c.h.b16 %v382
    %v409 = vunpack.c.l.b16 %v383
    %v410 = vunpack.c.h.b16 %v383
    %v411 = vunpack.c.l.b16 %v384
    %v412 = vunpack.c.h.b16 %v384
    %v413 = vunpack.c.l.b16 %v385
    %v414 = vunpack.c.h.b16 %v385
    %v415 = vpack.c.b16 %v405, %v403
    %v416 = vpack.c.b16 %v406, %v404
    %v417 = vpack.c.b16 %v409, %v407
    %v418 = vpack.c.b16 %v410, %v408
    %v419 = vpack.c.b16 %v413, %v411
    %v420 = vpack.c.b16 %v414, %v412
    %v428 = vsel %vm177, %v392, 0
    %v431 = vsel %vm177, %v394, 0
    %v434 = vsel %vm177, %v396, 0
    %v437 = vsel %vm177, %v395, 0
    %439 = vmatprep.subr.bf16.mxu0 0
    %440 = vmatpush1.bf16.msra.mxu0 0
    %441 = vmatprep.subr.bf16.mxu0 0
    %442 = vmatpush1.bf16.msra.mxu0 0
    %443 = vmatprep.subr.bf16.mxu0 0
    %444 = vmatpush1.bf16.msra.mxu0 0
    %445 = vmatprep.subr.bf16.mxu0 0
    %446 = vmatpush1.bf16.msra.mxu0 0
    %447 = vmatprep.subr.bf16.mxu0 0
    %448 = vmatpush1.bf16.msra.mxu0 0
    %449 = vmatprep.subr.bf16.mxu0 %v420
    %450 = vmatpush1.bf16.msra.mxu0 %v419
    %451 = vmatprep.subr.bf16.mxu0 %v418
    %452 = vmatpush1.bf16.msra.mxu0 %v417
    %453 = vmatprep.subr.bf16.mxu0 %v416
    %454 = vmatpush1.bf16.msra.mxu0 %v415
    %455 = vmatprep.subr.bf16.mxu0 0
    %456 = vmatpush2.bf16.msra.mxu0 0
    %457 = vmatprep.subr.bf16.mxu0 0
    %458 = vmatpush2.bf16.msra.mxu0 0
    %459 = vmatprep.subr.bf16.mxu0 0
    %460 = vmatpush2.bf16.msra.mxu0 0
    %461 = vmatprep.subr.bf16.mxu0 0
    %462 = vmatpush2.bf16.msra.mxu0 0
    %463 = vmatprep.subr.bf16.mxu0 0
    %464 = vmatpush2.bf16.msra.mxu0 0
    %465 = vmatprep.subr.bf16.mxu0 0
    %466 = vmatpush2.bf16.msra.mxu0 0
    %467 = vmatprep.subr.bf16.mxu0 0
    %468 = vmatpush2.bf16.msra.mxu0 0
    %469 = vmatprep.subr.bf16.mxu0 0
    %470 = vmatpush2.bf16.msra.mxu0 0
    %471 = vmatprep.mubr.bf16.mxu0 0
    %472 = vmatmul.mubr.bf16.gmra.mxu0 %v428
    %v473 = vpop.f32.mrf.mxu0
    %v474 = vadd.f32 0.0, %v473
    %v475 = vpop.f32.mrf.mxu0
    %v476 = vadd.f32 0.0, %v475
    %v477 = vpop.f32.mrf.mxu0
    %v478 = vadd.f32 0.0, %v477
    %v479 = vpop.f32.mrf.mxu0
    %v480 = vadd.f32 0.0, %v479
    %481 = vmatprep.mubr.bf16.mxu0 0
    %482 = vmatmul.mubr.bf16.gmra.mxu0 %v431
    %v483 = vpop.f32.mrf.mxu0
    %v484 = vadd.f32 0.0, %v483
    %v485 = vpop.f32.mrf.mxu0
    %v486 = vadd.f32 0.0, %v485
    %v487 = vpop.f32.mrf.mxu0
    %v488 = vadd.f32 0.0, %v487
    %v489 = vpop.f32.mrf.mxu0
    %v490 = vadd.f32 0.0, %v489
    %491 = vmatprep.mubr.bf16.mxu0 0
    %492 = vmatmul.mubr.bf16.gmra.mxu0 %v434
    %v493 = vpop.f32.mrf.mxu0
    %v494 = vadd.f32 0.0, %v493
    %v495 = vpop.f32.mrf.mxu0
    %v496 = vadd.f32 0.0, %v495
    %v497 = vpop.f32.mrf.mxu0
    %v498 = vadd.f32 0.0, %v497
    %v499 = vpop.f32.mrf.mxu0
    %v500 = vadd.f32 0.0, %v499
    %501 = vmatprep.mubr.bf16.mxu0 0
    %502 = vmatmul.mubr.bf16.gmra.mxu0 %v437
    %v503 = vpop.f32.mrf.mxu0
    %v504 = vadd.f32 0.0, %v503
    %v505 = vpop.f32.mrf.mxu0
    %v506 = vadd.f32 0.0, %v505
    %v507 = vpop.f32.mrf.mxu0
    %v508 = vadd.f32 0.0, %v507
    %v509 = vpop.f32.mrf.mxu0
    %v510 = vadd.f32 0.0, %v509
    %511 = vdwg.mxu0
    %v512 = vadd.f32 %v340, %v474
    %v513 = vadd.f32 %v342, %v476
    %v514 = vadd.f32 %v344, %v478
    %v515 = vadd.f32 %v346, %v480
    %v516 = vadd.f32 %v350, %v484
    %v517 = vadd.f32 %v352, %v486
    %v518 = vadd.f32 %v354, %v488
    %v519 = vadd.f32 %v356, %v490
    %v520 = vadd.f32 %v360, %v494
    %v521 = vadd.f32 %v362, %v496
    %v522 = vadd.f32 %v364, %v498
    %v523 = vadd.f32 %v366, %v500
    %v524 = vadd.f32 %v370, %v504
    %v525 = vadd.f32 %v372, %v506
    %v526 = vadd.f32 %v374, %v508
    %v527 = vadd.f32 %v376, %v510
    %v528 = vld [vmem:[%s2] sm:$0x3]
    %v530 = vlaneseq
    %v531 = vshrl.u32 %v530, 7
    %v532 = vsub.s32 0, %v531
    %v533 = vrot.slane %v528, %v532
    %v534 = vlaneseq
    %v535 = vshrl.u32 %v534, 7
    %v536 = vsub.s32 1, %v535
    %v537 = vrot.slane %v528, %v536
    %v540 = vadd.f32 %v512, %v533
    %v541 = vadd.f32 %v513, %v537
    %v542 = vadd.f32 %v514, %v533
    %v543 = vadd.f32 %v515, %v537
    %v544 = vadd.f32 %v516, %v533
    %v545 = vadd.f32 %v517, %v537
    %v546 = vadd.f32 %v518, %v533
    %v547 = vadd.f32 %v519, %v537
    %v548 = vadd.f32 %v520, %v533
    %v549 = vadd.f32 %v521, %v537
    %v550 = vadd.f32 %v522, %v533
    %v551 = vadd.f32 %v523, %v537
    %v552 = vadd.f32 %v524, %v533
    %v553 = vadd.f32 %v525, %v537
    %v554 = vadd.f32 %v526, %v533
    %v555 = vadd.f32 %v527, %v537
    %v556 = vmax.f32 %v540, 0.0
    %v557 = vmax.f32 %v541, 0.0
    %v558 = vmax.f32 %v542, 0.0
    %v559 = vmax.f32 %v543, 0.0
    %v560 = vmax.f32 %v544, 0.0
    %v561 = vmax.f32 %v545, 0.0
    %v562 = vmax.f32 %v546, 0.0
    %v563 = vmax.f32 %v547, 0.0
    %v564 = vmax.f32 %v548, 0.0
    %v565 = vmax.f32 %v549, 0.0
    %v566 = vmax.f32 %v550, 0.0
    %v567 = vmax.f32 %v551, 0.0
    %v568 = vmax.f32 %v552, 0.0
    %v569 = vmax.f32 %v553, 0.0
    %v570 = vmax.f32 %v554, 0.0
    %v571 = vmax.f32 %v555, 0.0
    %v572 = vlaneseq
    %v573 = vshrl.u32 %v572, 7
    %v574 = vadd.s32 %v573, 8
    %v575 = vadd.s32 %v573, 16
    %v576 = vadd.s32 %v573, 24
    %v577 = vadd.s32 %v573, 32
    %v578 = vadd.s32 %v573, 40
    %v579 = vadd.s32 %v573, 48
    %v580 = vadd.s32 %v573, 56
    %v581 = vadd.s32 %v573, 1
    %v582 = vadd.s32 %v574, 1
    %v583 = vadd.s32 %v575, 1
    %v584 = vadd.s32 %v576, 1
    %v585 = vadd.s32 %v577, 1
    %v586 = vadd.s32 %v578, 1
    %v587 = vadd.s32 %v579, 1
    %v588 = vadd.s32 %v580, 1
    %v589 = vand.u32 %v581, 31
    %v590 = vand.u32 %v582, 31
    %v591 = vand.u32 %v583, 31
    %v592 = vand.u32 %v584, 31
    %v593 = vand.u32 %v585, 31
    %v594 = vand.u32 %v586, 31
    %v595 = vand.u32 %v587, 31
    %v596 = vand.u32 %v588, 31
    %vm597 = vcmp.ge.s32.totalorder %v589, 1
    %vm598 = vcmp.ge.s32.totalorder %v590, 1
    %vm599 = vcmp.ge.s32.totalorder %v591, 1
    %vm600 = vcmp.ge.s32.totalorder %v592, 1
    %vm601 = vcmp.ge.s32.totalorder %v593, 1
    %vm602 = vcmp.ge.s32.totalorder %v594, 1
    %vm603 = vcmp.ge.s32.totalorder %v595, 1
    %vm604 = vcmp.ge.s32.totalorder %v596, 1
    %vm605 = vcmp.le.s32.totalorder %v589, 16
    %vm606 = vcmp.le.s32.totalorder %v590, 16
    %vm607 = vcmp.le.s32.totalorder %v591, 16
    %vm608 = vcmp.le.s32.totalorder %v592, 16
    %vm609 = vcmp.le.s32.totalorder %v593, 16
    %vm610 = vcmp.le.s32.totalorder %v594, 16
    %vm611 = vcmp.le.s32.totalorder %v595, 16
    %vm612 = vcmp.le.s32.totalorder %v596, 16
    %vm613 = vmand %vm597, %vm605
    %vm614 = vmand %vm598, %vm606
    %vm615 = vmand %vm599, %vm607
    %vm616 = vmand %vm600, %vm608
    %vm617 = vmand %vm601, %vm609
    %vm618 = vmand %vm602, %vm610
    %vm619 = vmand %vm603, %vm611
    %vm620 = vmand %vm604, %vm612
    %v621 = vsel %vm613, 1, 0
    %v622 = vsel %vm614, 1, 0
    %v623 = vsel %vm615, 1, 0
    %v624 = vsel %vm616, 1, 0
    %v625 = vsel %vm617, 1, 0
    %v626 = vsel %vm618, 1, 0
    %v627 = vsel %vm619, 1, 0
    %v628 = vsel %vm620, 1, 0
    %vm629 = vcmp.eq.s32.totalorder %v621, 1
    %vm630 = vcmp.eq.s32.totalorder %v622, 1
    %vm631 = vcmp.eq.s32.totalorder %v623, 1
    %vm632 = vcmp.eq.s32.totalorder %v624, 1
    %vm633 = vcmp.eq.s32.totalorder %v625, 1
    %vm634 = vcmp.eq.s32.totalorder %v626, 1
    %vm635 = vcmp.eq.s32.totalorder %v627, 1
    %vm636 = vcmp.eq.s32.totalorder %v628, 1
    %v637 = vsel %vm629, %v556, 0.0
    %v638 = vsel %vm629, %v557, 0.0
    %v639 = vsel %vm630, %v558, 0.0
    %v640 = vsel %vm630, %v559, 0.0
    %v641 = vsel %vm631, %v560, 0.0
    %v642 = vsel %vm631, %v561, 0.0
    %v643 = vsel %vm632, %v562, 0.0
    %v644 = vsel %vm632, %v563, 0.0
    %v645 = vsel %vm633, %v564, 0.0
    %v646 = vsel %vm633, %v565, 0.0
    %v647 = vsel %vm634, %v566, 0.0
    %v648 = vsel %vm634, %v567, 0.0
    %v649 = vsel %vm635, %v568, 0.0
    %v650 = vsel %vm635, %v569, 0.0
    %v651 = vsel %vm636, %v570, 0.0
    %v652 = vsel %vm636, %v571, 0.0
    %v653 = vlaneseq
    %vm654 = vcmp.ge.s32.totalorder %v653, 0
    %vm655 = vcmp.lt.s32.totalorder %v653, 256
    %vm656 = vmand %vm654, %vm655
    %657 = vst.msk [vmem:[#allocation2] ss:$8 sm:$0x3] %vm656, 0.0
    %658 = vst.msk [vmem:[#allocation2] ss:$8 sm:$0x0] %vm656, 0.0
    %vm675 = vcmask 1040384
    %v676 = vrot.slane %v637, 7
    %v677 = vrot.slane %v638, 7
    %v678 = vrot.slane %v639, 7
    %v679 = vsel %vm675, %v676, %v678
    %v680 = vrot.slane %v640, 7
    %v681 = vsel %vm675, %v677, %v680
    %v682 = vrot.slane %v641, 7
    %v683 = vsel %vm675, %v678, %v682
    %v684 = vrot.slane %v642, 7
    %v685 = vsel %vm675, %v680, %v684
    %v686 = vrot.slane %v643, 7
    %v687 = vsel %vm675, %v682, %v686
    %v688 = vrot.slane %v644, 7
    %v689 = vsel %vm675, %v684, %v688
    %v690 = vrot.slane %v645, 7
    %v691 = vsel %vm675, %v686, %v690
    %v692 = vrot.slane %v646, 7
    %v693 = vsel %vm675, %v688, %v692
    %v694 = vrot.slane %v647, 7
    %v695 = vsel %vm675, %v690, %v694
    %v696 = vrot.slane %v648, 7
    %v697 = vsel %vm675, %v692, %v696
    %v698 = vrot.slane %v649, 7
    %v699 = vsel %vm675, %v694, %v698
    %v700 = vrot.slane %v650, 7
    %v701 = vsel %vm675, %v696, %v700
    %v702 = vrot.slane %v651, 7
    %v703 = vsel %vm675, %v698, %v702
    %v704 = vrot.slane %v652, 7
    %v705 = vsel %vm675, %v700, %v704
    %722 = vst [vmem:[#allocation2] sm:$0xfe] %v676
    %723 = vst [vmem:[#allocation2 + $0x8] sm:$0xfe] %v677
    %724 = vst [vmem:[#allocation2 + $0x10] sm:$0xff] %v679
    %725 = vst [vmem:[#allocation2 + $0x18] sm:$0xff] %v681
    %726 = vst [vmem:[#allocation2 + $0x20] sm:$0xff] %v683
    %727 = vst [vmem:[#allocation2 + $0x28] sm:$0xff] %v685
    %728 = vst [vmem:[#allocation2 + $0x30] sm:$0xff] %v687
    %729 = vst [vmem:[#allocation2 + $0x38] sm:$0xff] %v689
    %730 = vst [vmem:[#allocation2 + $0x40] sm:$0xff] %v691
    %731 = vst [vmem:[#allocation2 + $0x48] sm:$0xff] %v693
    %732 = vst [vmem:[#allocation2 + $0x50] sm:$0xff] %v695
    %733 = vst [vmem:[#allocation2 + $0x58] sm:$0xff] %v697
    %734 = vst [vmem:[#allocation2 + $0x60] sm:$0xff] %v699
    %735 = vst [vmem:[#allocation2 + $0x68] sm:$0xff] %v701
    %736 = vst [vmem:[#allocation2 + $0x70] sm:$0x7f] %v703
    %737 = vst [vmem:[#allocation2 + $0x78] sm:$0x7f] %v705
    %s738 = scalar_lea.vmem [#allocation2], 119
    %739 = vst.msk [vmem:[%s738] ss:$8 sm:$0x3] %vm656, 0.0
    %740 = vst.msk [vmem:[%s738] ss:$8 sm:$0x0] %vm656, 0.0
    %v741 = vld [vmem:[#allocation2] sm:$0xff]
    %v742 = vld [vmem:[#allocation2 + $0x8] sm:$0xff]
    %v743 = vld [vmem:[#allocation2 + $0x10] sm:$0xff]
    %v744 = vld [vmem:[#allocation2 + $0x18] sm:$0xff]
    %v745 = vld [vmem:[#allocation2 + $0x20] sm:$0xff]
    %v746 = vld [vmem:[#allocation2 + $0x28] sm:$0xff]
    %v747 = vld [vmem:[#allocation2 + $0x30] sm:$0xff]
    %v748 = vld [vmem:[#allocation2 + $0x38] sm:$0xff]
    %v749 = vld [vmem:[#allocation2 + $0x40] sm:$0xff]
    %v750 = vld [vmem:[#allocation2 + $0x48] sm:$0xff]
    %v751 = vld [vmem:[#allocation2 + $0x50] sm:$0xff]
    %v752 = vld [vmem:[#allocation2 + $0x58] sm:$0xff]
    %v753 = vld [vmem:[#allocation2 + $0x60] sm:$0xff]
    %v754 = vld [vmem:[#allocation2 + $0x68] sm:$0xff]
    %v755 = vld [vmem:[#allocation2 + $0x70] sm:$0x3f]
    %v756 = vld [vmem:[#allocation2 + $0x78] sm:$0x3f]
    %v757 = vpack.c.bf16 %v743, %v741
    %v758 = vpack.c.bf16 %v744, %v742
    %v759 = vpack.c.bf16 %v747, %v745
    %v760 = vpack.c.bf16 %v748, %v746
    %v761 = vpack.c.bf16 %v751, %v749
    %v762 = vpack.c.bf16 %v752, %v750
    %v763 = vpack.c.bf16 %v755, %v753
    %v764 = vpack.c.bf16 %v756, %v754
    %v765 = vld [vmem:[%s6] sm:$0xff]
    %v766 = vld [vmem:[%s6 + $0x8] sm:$0xff]
    %v767 = vld [vmem:[%s6 + $0x10] sm:$0xff]
    %v768 = vld [vmem:[%s6 + $0x18] sm:$0xff]
    %v769 = vld [vmem:[%s6 + $0x20] sm:$0xff]
    %v770 = vld [vmem:[%s6 + $0x28] sm:$0xff]
    %v771 = vld [vmem:[%s6 + $0x30] sm:$0xff]
    %v772 = vld [vmem:[%s6 + $0x38] sm:$0xff]
    %v773 = vld [vmem:[%s6 + $0x40] sm:$0xff]
    %v774 = vld [vmem:[%s6 + $0x48] sm:$0xff]
    %v775 = vld [vmem:[%s6 + $0x50] sm:$0xff]
    %v776 = vld [vmem:[%s6 + $0x58] sm:$0xff]
    %v777 = vld [vmem:[%s6 + $0x60] sm:$0xff]
    %v778 = vld [vmem:[%s6 + $0x68] sm:$0xff]
    %v779 = vld [vmem:[%s6 + $0x70] sm:$0xff]
    %v780 = vld [vmem:[%s6 + $0x78] sm:$0xff]
    %v781 = vld [vmem:[%s6 + $0x80] sm:$0xff]
    %v782 = vld [vmem:[%s6 + $0x88] sm:$0xff]
    %v783 = vld [vmem:[%s6 + $0x90] sm:$0xff]
    %v784 = vld [vmem:[%s6 + $0x98] sm:$0xff]
    %v785 = vld [vmem:[%s6 + $0xa0] sm:$0xff]
    %v786 = vld [vmem:[%s6 + $0xa8] sm:$0xff]
    %v787 = vld [vmem:[%s6 + $0xb0] sm:$0xff]
    %v788 = vld [vmem:[%s6 + $0xb8] sm:$0xff]
    %v789 = vld [vmem:[%s6 + $0xc0] sm:$0xff]
    %v790 = vld [vmem:[%s6 + $0xc8] sm:$0xff]
    %v791 = vld [vmem:[%s6 + $0xd0] sm:$0xff]
    %v792 = vld [vmem:[%s6 + $0xd8] sm:$0xff]
    %v793 = vld [vmem:[%s6 + $0xe0] sm:$0xff]
    %v794 = vld [vmem:[%s6 + $0xe8] sm:$0xff]
    %v795 = vld [vmem:[%s6 + $0xf0] sm:$0xff]
    %v796 = vld [vmem:[%s6 + $0xf8] sm:$0xff]
    %v797 = vld [vmem:[#allocation2] sm:$0xfe]
    %v798 = vld [vmem:[#allocation2 + $0x8] sm:$0xfe]
    %v799 = vld [vmem:[#allocation2 + $0x70] sm:$0x7f]
    %v800 = vld [vmem:[#allocation2 + $0x78] sm:$0x7f]
    %v801 = vpack.c.bf16 %v743, %v797
    %v802 = vpack.c.bf16 %v744, %v798
    %v803 = vpack.c.bf16 %v799, %v753
    %v804 = vpack.c.bf16 %v800, %v754
    %s805 = scalar_lea.vmem %s6, 256
    %v806 = vld [vmem:[%s805] sm:$0xff]
    %v807 = vld [vmem:[%s805 + $0x8] sm:$0xff]
    %v808 = vld [vmem:[%s805 + $0x10] sm:$0xff]
    %v809 = vld [vmem:[%s805 + $0x18] sm:$0xff]
    %v810 = vld [vmem:[%s805 + $0x20] sm:$0xff]
    %v811 = vld [vmem:[%s805 + $0x28] sm:$0xff]
    %v812 = vld [vmem:[%s805 + $0x30] sm:$0xff]
    %v813 = vld [vmem:[%s805 + $0x38] sm:$0xff]
    %v814 = vld [vmem:[%s805 + $0x40] sm:$0xff]
    %v815 = vld [vmem:[%s805 + $0x48] sm:$0xff]
    %v816 = vld [vmem:[%s805 + $0x50] sm:$0xff]
    %v817 = vld [vmem:[%s805 + $0x58] sm:$0xff]
    %v818 = vld [vmem:[%s805 + $0x60] sm:$0xff]
    %v819 = vld [vmem:[%s805 + $0x68] sm:$0xff]
    %v820 = vld [vmem:[%s805 + $0x70] sm:$0xff]
    %v821 = vld [vmem:[%s805 + $0x78] sm:$0xff]
    %v822 = vld [vmem:[%s805 + $0x80] sm:$0xff]
    %v823 = vld [vmem:[%s805 + $0x88] sm:$0xff]
    %v824 = vld [vmem:[%s805 + $0x90] sm:$0xff]
    %v825 = vld [vmem:[%s805 + $0x98] sm:$0xff]
    %v826 = vld [vmem:[%s805 + $0xa0] sm:$0xff]
    %v827 = vld [vmem:[%s805 + $0xa8] sm:$0xff]
    %v828 = vld [vmem:[%s805 + $0xb0] sm:$0xff]
    %v829 = vld [vmem:[%s805 + $0xb8] sm:$0xff]
    %v830 = vld [vmem:[%s805 + $0xc0] sm:$0xff]
    %v831 = vld [vmem:[%s805 + $0xc8] sm:$0xff]
    %v832 = vld [vmem:[%s805 + $0xd0] sm:$0xff]
    %v833 = vld [vmem:[%s805 + $0xd8] sm:$0xff]
    %v834 = vld [vmem:[%s805 + $0xe0] sm:$0xff]
    %v835 = vld [vmem:[%s805 + $0xe8] sm:$0xff]
    %v836 = vld [vmem:[%s805 + $0xf0] sm:$0xff]
    %v837 = vld [vmem:[%s805 + $0xf8] sm:$0xff]
    %v839 = vshrl.u32 %v801, 16
    %v841 = vshll.u32 %v801, 16
    %v843 = vrot.slane %v841, 1
    %v844 = vor.u32 %v839, %v843
    %v846 = vshll.u32 %v759, 16
    %v848 = vrot.slane %v846, 1
    %v849 = vsel %vm115, %v844, %v848
    %v851 = vshrl.u32 %v802, 16
    %v853 = vshll.u32 %v802, 16
    %v855 = vrot.slane %v853, 1
    %v856 = vor.u32 %v851, %v855
    %v858 = vshll.u32 %v760, 16
    %v860 = vrot.slane %v858, 1
    %v861 = vsel %vm115, %v856, %v860
    %v862 = vshrl.u32 %v759, 16
    %v864 = vor.u32 %v862, %v848
    %v866 = vshll.u32 %v761, 16
    %v868 = vrot.slane %v866, 1
    %v869 = vsel %vm115, %v864, %v868
    %v870 = vshrl.u32 %v760, 16
    %v872 = vor.u32 %v870, %v860
    %v874 = vshll.u32 %v762, 16
    %v876 = vrot.slane %v874, 1
    %v877 = vsel %vm115, %v872, %v876
    %v878 = vshrl.u32 %v761, 16
    %v880 = vor.u32 %v878, %v868
    %v882 = vshll.u32 %v803, 16
    %v884 = vrot.slane %v882, 1
    %v885 = vsel %vm115, %v880, %v884
    %v886 = vshrl.u32 %v762, 16
    %v888 = vor.u32 %v886, %v876
    %v890 = vshll.u32 %v804, 16
    %v892 = vrot.slane %v890, 1
    %v893 = vsel %vm115, %v888, %v892
    %v894 = vshrl.u32 %v803, 16
    %v896 = vor.u32 %v894, %v884
    %v897 = vshrl.u32 %v804, 16
    %v899 = vor.u32 %v897, %v892
    %v940 = vunpack.c.l.b16 %v806
    %v941 = vunpack.c.h.b16 %v806
    %v942 = vunpack.c.l.b16 %v807
    %v943 = vunpack.c.h.b16 %v807
    %v944 = vunpack.c.l.b16 %v808
    %v945 = vunpack.c.h.b16 %v808
    %v946 = vunpack.c.l.b16 %v809
    %v947 = vunpack.c.h.b16 %v809
    %v948 = vunpack.c.l.b16 %v810
    %v949 = vunpack.c.h.b16 %v810
    %v950 = vunpack.c.l.b16 %v811
    %v951 = vunpack.c.h.b16 %v811
    %v952 = vunpack.c.l.b16 %v812
    %v953 = vunpack.c.h.b16 %v812
    %v954 = vunpack.c.l.b16 %v813
    %v955 = vunpack.c.h.b16 %v813
    %v956 = vunpack.c.l.b16 %v814
    %v957 = vunpack.c.h.b16 %v814
    %v958 = vunpack.c.l.b16 %v815
    %v959 = vunpack.c.h.b16 %v815
    %v960 = vunpack.c.l.b16 %v816
    %v961 = vunpack.c.h.b16 %v816
    %v962 = vunpack.c.l.b16 %v817
    %v963 = vunpack.c.h.b16 %v817
    %v964 = vunpack.c.l.b16 %v818
    %v965 = vunpack.c.h.b16 %v818
    %v966 = vunpack.c.l.b16 %v819
    %v967 = vunpack.c.h.b16 %v819
    %v968 = vunpack.c.l.b16 %v820
    %v969 = vunpack.c.h.b16 %v820
    %v970 = vunpack.c.l.b16 %v821
    %v971 = vunpack.c.h.b16 %v821
    %v972 = vunpack.c.l.b16 %v822
    %v973 = vunpack.c.h.b16 %v822
    %v974 = vunpack.c.l.b16 %v823
    %v975 = vunpack.c.h.b16 %v823
    %v976 = vunpack.c.l.b16 %v824
    %v977 = vunpack.c.h.b16 %v824
    %v978 = vunpack.c.l.b16 %v825
    %v979 = vunpack.c.h.b16 %v825
    %v980 = vunpack.c.l.b16 %v826
    %v981 = vunpack.c.h.b16 %v826
    %v982 = vunpack.c.l.b16 %v827
    %v983 = vunpack.c.h.b16 %v827
    %v984 = vunpack.c.l.b16 %v828
    %v985 = vunpack.c.h.b16 %v828
    %v986 = vunpack.c.l.b16 %v829
    %v987 = vunpack.c.h.b16 %v829
    %v988 = vunpack.c.l.b16 %v830
    %v989 = vunpack.c.h.b16 %v830
    %v990 = vunpack.c.l.b16 %v831
    %v991 = vunpack.c.h.b16 %v831
    %v992 = vunpack.c.l.b16 %v832
    %v993 = vunpack.c.h.b16 %v832
    %v994 = vunpack.c.l.b16 %v833
    %v995 = vunpack.c.h.b16 %v833
    %v996 = vunpack.c.l.b16 %v834
    %v997 = vunpack.c.h.b16 %v834
    %v998 = vunpack.c.l.b16 %v835
    %v999 = vunpack.c.h.b16 %v835
    %v1000 = vunpack.c.l.b16 %v836
    %v1001 = vunpack.c.h.b16 %v836
    %v1002 = vunpack.c.l.b16 %v837
    %v1003 = vunpack.c.h.b16 %v837
    %v1004 = vpack.c.b16 %v942, %v940
    %v1005 = vpack.c.b16 %v943, %v941
    %v1006 = vpack.c.b16 %v946, %v944
    %v1007 = vpack.c.b16 %v947, %v945
    %v1008 = vpack.c.b16 %v950, %v948
    %v1009 = vpack.c.b16 %v951, %v949
    %v1010 = vpack.c.b16 %v954, %v952
    %v1011 = vpack.c.b16 %v955, %v953
    %v1012 = vpack.c.b16 %v958, %v956
    %v1013 = vpack.c.b16 %v959, %v957
    %v1014 = vpack.c.b16 %v962, %v960
    %v1015 = vpack.c.b16 %v963, %v961
    %v1016 = vpack.c.b16 %v966, %v964
    %v1017 = vpack.c.b16 %v967, %v965
    %v1018 = vpack.c.b16 %v970, %v968
    %v1019 = vpack.c.b16 %v971, %v969
    %v1020 = vpack.c.b16 %v974, %v972
    %v1021 = vpack.c.b16 %v975, %v973
    %v1022 = vpack.c.b16 %v978, %v976
    %v1023 = vpack.c.b16 %v979, %v977
    %v1024 = vpack.c.b16 %v982, %v980
    %v1025 = vpack.c.b16 %v983, %v981
    %v1026 = vpack.c.b16 %v986, %v984
    %v1027 = vpack.c.b16 %v987, %v985
    %v1028 = vpack.c.b16 %v990, %v988
    %v1029 = vpack.c.b16 %v991, %v989
    %v1030 = vpack.c.b16 %v994, %v992
    %v1031 = vpack.c.b16 %v995, %v993
    %v1032 = vpack.c.b16 %v998, %v996
    %v1033 = vpack.c.b16 %v999, %v997
    %v1034 = vpack.c.b16 %v1002, %v1000
    %v1035 = vpack.c.b16 %v1003, %v1001
    %1068 = vmatprep.subr.bf16.mxu0 %v1019
    %1069 = vmatpush1.bf16.msra.mxu0 %v1018
    %1070 = vmatprep.subr.bf16.mxu0 %v1017
    %1071 = vmatpush1.bf16.msra.mxu0 %v1016
    %1072 = vmatprep.subr.bf16.mxu0 %v1015
    %1073 = vmatpush1.bf16.msra.mxu0 %v1014
    %1074 = vmatprep.subr.bf16.mxu0 %v1013
    %1075 = vmatpush1.bf16.msra.mxu0 %v1012
    %1076 = vmatprep.subr.bf16.mxu0 %v1011
    %1077 = vmatpush1.bf16.msra.mxu0 %v1010
    %1078 = vmatprep.subr.bf16.mxu0 %v1009
    %1079 = vmatpush1.bf16.msra.mxu0 %v1008
    %1080 = vmatprep.subr.bf16.mxu0 %v1007
    %1081 = vmatpush1.bf16.msra.mxu0 %v1006
    %1082 = vmatprep.subr.bf16.mxu0 %v1005
    %1083 = vmatpush1.bf16.msra.mxu0 %v1004
    %1084 = vmatprep.subr.bf16.mxu0 %v1035
    %1085 = vmatpush2.bf16.msra.mxu0 %v1034
    %1086 = vmatprep.subr.bf16.mxu0 %v1033
    %1087 = vmatpush2.bf16.msra.mxu0 %v1032
    %1088 = vmatprep.subr.bf16.mxu0 %v1031
    %1089 = vmatpush2.bf16.msra.mxu0 %v1030
    %1090 = vmatprep.subr.bf16.mxu0 %v1029
    %1091 = vmatpush2.bf16.msra.mxu0 %v1028
    %1092 = vmatprep.subr.bf16.mxu0 %v1027
    %1093 = vmatpush2.bf16.msra.mxu0 %v1026
    %1094 = vmatprep.subr.bf16.mxu0 %v1025
    %1095 = vmatpush2.bf16.msra.mxu0 %v1024
    %1096 = vmatprep.subr.bf16.mxu0 %v1023
    %1097 = vmatpush2.bf16.msra.mxu0 %v1022
    %1098 = vmatprep.subr.bf16.mxu0 %v1021
    %1099 = vmatpush2.bf16.msra.mxu0 %v1020
    %1100 = vmatprep.mubr.bf16.mxu0 %v861
    %1101 = vmatmul.mubr.bf16.gmra.mxu0 %v849
    %v1102 = vpop.f32.mrf.mxu0
    %v1103 = vadd.f32 0.0, %v1102
    %v1104 = vpop.f32.mrf.mxu0
    %v1105 = vadd.f32 0.0, %v1104
    %v1106 = vpop.f32.mrf.mxu0
    %v1107 = vadd.f32 0.0, %v1106
    %v1108 = vpop.f32.mrf.mxu0
    %v1109 = vadd.f32 0.0, %v1108
    %1110 = vmatprep.mubr.bf16.mxu0 %v877
    %1111 = vmatmul.mubr.bf16.gmra.mxu0 %v869
    %v1112 = vpop.f32.mrf.mxu0
    %v1113 = vadd.f32 0.0, %v1112
    %v1114 = vpop.f32.mrf.mxu0
    %v1115 = vadd.f32 0.0, %v1114
    %v1116 = vpop.f32.mrf.mxu0
    %v1117 = vadd.f32 0.0, %v1116
    %v1118 = vpop.f32.mrf.mxu0
    %v1119 = vadd.f32 0.0, %v1118
    %1120 = vmatprep.mubr.bf16.mxu0 %v893
    %1121 = vmatmul.mubr.bf16.gmra.mxu0 %v885
    %v1122 = vpop.f32.mrf.mxu0
    %v1123 = vadd.f32 0.0, %v1122
    %v1124 = vpop.f32.mrf.mxu0
    %v1125 = vadd.f32 0.0, %v1124
    %v1126 = vpop.f32.mrf.mxu0
    %v1127 = vadd.f32 0.0, %v1126
    %v1128 = vpop.f32.mrf.mxu0
    %v1129 = vadd.f32 0.0, %v1128
    %1130 = vmatprep.mubr.bf16.mxu0 %v899
    %1131 = vmatmul.mubr.bf16.gmra.mxu0 %v896
    %v1132 = vpop.f32.mrf.mxu0
    %v1133 = vadd.f32 0.0, %v1132
    %v1134 = vpop.f32.mrf.mxu0
    %v1135 = vadd.f32 0.0, %v1134
    %v1136 = vpop.f32.mrf.mxu0
    %v1137 = vadd.f32 0.0, %v1136
    %v1138 = vpop.f32.mrf.mxu0
    %v1139 = vadd.f32 0.0, %v1138
    %1140 = vdwg.mxu0
    %v1173 = vunpack.c.l.b16 %v765
    %v1174 = vunpack.c.h.b16 %v765
    %v1175 = vunpack.c.l.b16 %v766
    %v1176 = vunpack.c.h.b16 %v766
    %v1177 = vunpack.c.l.b16 %v767
    %v1178 = vunpack.c.h.b16 %v767
    %v1179 = vunpack.c.l.b16 %v768
    %v1180 = vunpack.c.h.b16 %v768
    %v1181 = vunpack.c.l.b16 %v769
    %v1182 = vunpack.c.h.b16 %v769
    %v1183 = vunpack.c.l.b16 %v770
    %v1184 = vunpack.c.h.b16 %v770
    %v1185 = vunpack.c.l.b16 %v771
    %v1186 = vunpack.c.h.b16 %v771
    %v1187 = vunpack.c.l.b16 %v772
    %v1188 = vunpack.c.h.b16 %v772
    %v1189 = vunpack.c.l.b16 %v773
    %v1190 = vunpack.c.h.b16 %v773
    %v1191 = vunpack.c.l.b16 %v774
    %v1192 = vunpack.c.h.b16 %v774
    %v1193 = vunpack.c.l.b16 %v775
    %v1194 = vunpack.c.h.b16 %v775
    %v1195 = vunpack.c.l.b16 %v776
    %v1196 = vunpack.c.h.b16 %v776
    %v1197 = vunpack.c.l.b16 %v777
    %v1198 = vunpack.c.h.b16 %v777
    %v1199 = vunpack.c.l.b16 %v778
    %v1200 = vunpack.c.h.b16 %v778
    %v1201 = vunpack.c.l.b16 %v779
    %v1202 = vunpack.c.h.b16 %v779
    %v1203 = vunpack.c.l.b16 %v780
    %v1204 = vunpack.c.h.b16 %v780
    %v1205 = vunpack.c.l.b16 %v781
    %v1206 = vunpack.c.h.b16 %v781
    %v1207 = vunpack.c.l.b16 %v782
    %v1208 = vunpack.c.h.b16 %v782
    %v1209 = vunpack.c.l.b16 %v783
    %v1210 = vunpack.c.h.b16 %v783
    %v1211 = vunpack.c.l.b16 %v784
    %v1212 = vunpack.c.h.b16 %v784
    %v1213 = vunpack.c.l.b16 %v785
    %v1214 = vunpack.c.h.b16 %v785
    %v1215 = vunpack.c.l.b16 %v786
    %v1216 = vunpack.c.h.b16 %v786
    %v1217 = vunpack.c.l.b16 %v787
    %v1218 = vunpack.c.h.b16 %v787
    %v1219 = vunpack.c.l.b16 %v788
    %v1220 = vunpack.c.h.b16 %v788
    %v1221 = vunpack.c.l.b16 %v789
    %v1222 = vunpack.c.h.b16 %v789
    %v1223 = vunpack.c.l.b16 %v790
    %v1224 = vunpack.c.h.b16 %v790
    %v1225 = vunpack.c.l.b16 %v791
    %v1226 = vunpack.c.h.b16 %v791
    %v1227 = vunpack.c.l.b16 %v792
    %v1228 = vunpack.c.h.b16 %v792
    %v1229 = vunpack.c.l.b16 %v793
    %v1230 = vunpack.c.h.b16 %v793
    %v1231 = vunpack.c.l.b16 %v794
    %v1232 = vunpack.c.h.b16 %v794
    %v1233 = vunpack.c.l.b16 %v795
    %v1234 = vunpack.c.h.b16 %v795
    %v1235 = vunpack.c.l.b16 %v796
    %v1236 = vunpack.c.h.b16 %v796
    %v1237 = vpack.c.b16 %v1175, %v1173
    %v1238 = vpack.c.b16 %v1176, %v1174
    %v1239 = vpack.c.b16 %v1179, %v1177
    %v1240 = vpack.c.b16 %v1180, %v1178
    %v1241 = vpack.c.b16 %v1183, %v1181
    %v1242 = vpack.c.b16 %v1184, %v1182
    %v1243 = vpack.c.b16 %v1187, %v1185
    %v1244 = vpack.c.b16 %v1188, %v1186
    %v1245 = vpack.c.b16 %v1191, %v1189
    %v1246 = vpack.c.b16 %v1192, %v1190
    %v1247 = vpack.c.b16 %v1195, %v1193
    %v1248 = vpack.c.b16 %v1196, %v1194
    %v1249 = vpack.c.b16 %v1199, %v1197
    %v1250 = vpack.c.b16 %v1200, %v1198
    %v1251 = vpack.c.b16 %v1203, %v1201
    %v1252 = vpack.c.b16 %v1204, %v1202
    %v1253 = vpack.c.b16 %v1207, %v1205
    %v1254 = vpack.c.b16 %v1208, %v1206
    %v1255 = vpack.c.b16 %v1211, %v1209
    %v1256 = vpack.c.b16 %v1212, %v1210
    %v1257 = vpack.c.b16 %v1215, %v1213
    %v1258 = vpack.c.b16 %v1216, %v1214
    %v1259 = vpack.c.b16 %v1219, %v1217
    %v1260 = vpack.c.b16 %v1220, %v1218
    %v1261 = vpack.c.b16 %v1223, %v1221
    %v1262 = vpack.c.b16 %v1224, %v1222
    %v1263 = vpack.c.b16 %v1227, %v1225
    %v1264 = vpack.c.b16 %v1228, %v1226
    %v1265 = vpack.c.b16 %v1231, %v1229
    %v1266 = vpack.c.b16 %v1232, %v1230
    %v1267 = vpack.c.b16 %v1235, %v1233
    %v1268 = vpack.c.b16 %v1236, %v1234
    %1301 = vmatprep.subr.bf16.mxu0 %v1252
    %1302 = vmatpush1.bf16.msra.mxu0 %v1251
    %1303 = vmatprep.subr.bf16.mxu0 %v1250
    %1304 = vmatpush1.bf16.msra.mxu0 %v1249
    %1305 = vmatprep.subr.bf16.mxu0 %v1248
    %1306 = vmatpush1.bf16.msra.mxu0 %v1247
    %1307 = vmatprep.subr.bf16.mxu0 %v1246
    %1308 = vmatpush1.bf16.msra.mxu0 %v1245
    %1309 = vmatprep.subr.bf16.mxu0 %v1244
    %1310 = vmatpush1.bf16.msra.mxu0 %v1243
    %1311 = vmatprep.subr.bf16.mxu0 %v1242
    %1312 = vmatpush1.bf16.msra.mxu0 %v1241
    %1313 = vmatprep.subr.bf16.mxu0 %v1240
    %1314 = vmatpush1.bf16.msra.mxu0 %v1239
    %1315 = vmatprep.subr.bf16.mxu0 %v1238
    %1316 = vmatpush1.bf16.msra.mxu0 %v1237
    %1317 = vmatprep.subr.bf16.mxu0 %v1268
    %1318 = vmatpush2.bf16.msra.mxu0 %v1267
    %1319 = vmatprep.subr.bf16.mxu0 %v1266
    %1320 = vmatpush2.bf16.msra.mxu0 %v1265
    %1321 = vmatprep.subr.bf16.mxu0 %v1264
    %1322 = vmatpush2.bf16.msra.mxu0 %v1263
    %1323 = vmatprep.subr.bf16.mxu0 %v1262
    %1324 = vmatpush2.bf16.msra.mxu0 %v1261
    %1325 = vmatprep.subr.bf16.mxu0 %v1260
    %1326 = vmatpush2.bf16.msra.mxu0 %v1259
    %1327 = vmatprep.subr.bf16.mxu0 %v1258
    %1328 = vmatpush2.bf16.msra.mxu0 %v1257
    %1329 = vmatprep.subr.bf16.mxu0 %v1256
    %1330 = vmatpush2.bf16.msra.mxu0 %v1255
    %1331 = vmatprep.subr.bf16.mxu0 %v1254
    %1332 = vmatpush2.bf16.msra.mxu0 %v1253
    %1333 = vmatprep.mubr.bf16.mxu0 %v758
    %1334 = vmatmul.mubr.bf16.gmra.mxu0 %v757
    %v1335 = vpop.f32.mrf.mxu0
    %v1336 = vadd.f32 %v1103, %v1335
    %v1337 = vpop.f32.mrf.mxu0
    %v1338 = vadd.f32 %v1105, %v1337
    %v1339 = vpop.f32.mrf.mxu0
    %v1340 = vadd.f32 %v1107, %v1339
    %v1341 = vpop.f32.mrf.mxu0
    %v1342 = vadd.f32 %v1109, %v1341
    %1343 = vmatprep.mubr.bf16.mxu0 %v760
    %1344 = vmatmul.mubr.bf16.gmra.mxu0 %v759
    %v1345 = vpop.f32.mrf.mxu0
    %v1346 = vadd.f32 %v1113, %v1345
    %v1347 = vpop.f32.mrf.mxu0
    %v1348 = vadd.f32 %v1115, %v1347
    %v1349 = vpop.f32.mrf.mxu0
    %v1350 = vadd.f32 %v1117, %v1349
    %v1351 = vpop.f32.mrf.mxu0
    %v1352 = vadd.f32 %v1119, %v1351
    %1353 = vmatprep.mubr.bf16.mxu0 %v762
    %1354 = vmatmul.mubr.bf16.gmra.mxu0 %v761
    %v1355 = vpop.f32.mrf.mxu0
    %v1356 = vadd.f32 %v1123, %v1355
    %v1357 = vpop.f32.mrf.mxu0
    %v1358 = vadd.f32 %v1125, %v1357
    %v1359 = vpop.f32.mrf.mxu0
    %v1360 = vadd.f32 %v1127, %v1359
    %v1361 = vpop.f32.mrf.mxu0
    %v1362 = vadd.f32 %v1129, %v1361
    %1363 = vmatprep.mubr.bf16.mxu0 %v764
    %1364 = vmatmul.mubr.bf16.gmra.mxu0 %v763
    %v1365 = vpop.f32.mrf.mxu0
    %v1366 = vadd.f32 %v1133, %v1365
    %v1367 = vpop.f32.mrf.mxu0
    %v1368 = vadd.f32 %v1135, %v1367
    %v1369 = vpop.f32.mrf.mxu0
    %v1370 = vadd.f32 %v1137, %v1369
    %v1371 = vpop.f32.mrf.mxu0
    %v1372 = vadd.f32 %v1139, %v1371
    %1373 = vdwg.mxu0
    %v1374 = vld [vmem:[#allocation2] sm:$0xfc]
    %v1375 = vld [vmem:[#allocation2 + $0x8] sm:$0xfc]
    %v1376 = vld [vmem:[#allocation2 + $0x70] sm:$0xff]
    %v1377 = vld [vmem:[#allocation2 + $0x78] sm:$0xff]
    %v1378 = vpack.c.bf16 %v743, %v1374
    %v1379 = vpack.c.bf16 %v744, %v1375
    %v1380 = vpack.c.bf16 %v1376, %v753
    %v1381 = vpack.c.bf16 %v1377, %v754
    %s1382 = scalar_lea.vmem %s6, 512
    %v1383 = vld [vmem:[%s1382] sm:$0xff]
    %v1384 = vld [vmem:[%s1382 + $0x8] sm:$0xff]
    %v1385 = vld [vmem:[%s1382 + $0x10] sm:$0xff]
    %v1386 = vld [vmem:[%s1382 + $0x18] sm:$0xff]
    %v1387 = vld [vmem:[%s1382 + $0x20] sm:$0xff]
    %v1388 = vld [vmem:[%s1382 + $0x28] sm:$0xff]
    %v1389 = vld [vmem:[%s1382 + $0x30] sm:$0xff]
    %v1390 = vld [vmem:[%s1382 + $0x38] sm:$0xff]
    %v1391 = vld [vmem:[%s1382 + $0x40] sm:$0xff]
    %v1392 = vld [vmem:[%s1382 + $0x48] sm:$0xff]
    %v1393 = vld [vmem:[%s1382 + $0x50] sm:$0xff]
    %v1394 = vld [vmem:[%s1382 + $0x58] sm:$0xff]
    %v1395 = vld [vmem:[%s1382 + $0x60] sm:$0xff]
    %v1396 = vld [vmem:[%s1382 + $0x68] sm:$0xff]
    %v1397 = vld [vmem:[%s1382 + $0x70] sm:$0xff]
    %v1398 = vld [vmem:[%s1382 + $0x78] sm:$0xff]
    %v1399 = vld [vmem:[%s1382 + $0x80] sm:$0xff]
    %v1400 = vld [vmem:[%s1382 + $0x88] sm:$0xff]
    %v1401 = vld [vmem:[%s1382 + $0x90] sm:$0xff]
    %v1402 = vld [vmem:[%s1382 + $0x98] sm:$0xff]
    %v1403 = vld [vmem:[%s1382 + $0xa0] sm:$0xff]
    %v1404 = vld [vmem:[%s1382 + $0xa8] sm:$0xff]
    %v1405 = vld [vmem:[%s1382 + $0xb0] sm:$0xff]
    %v1406 = vld [vmem:[%s1382 + $0xb8] sm:$0xff]
    %v1407 = vld [vmem:[%s1382 + $0xc0] sm:$0xff]
    %v1408 = vld [vmem:[%s1382 + $0xc8] sm:$0xff]
    %v1409 = vld [vmem:[%s1382 + $0xd0] sm:$0xff]
    %v1410 = vld [vmem:[%s1382 + $0xd8] sm:$0xff]
    %v1411 = vld [vmem:[%s1382 + $0xe0] sm:$0xff]
    %v1412 = vld [vmem:[%s1382 + $0xe8] sm:$0xff]
    %v1413 = vld [vmem:[%s1382 + $0xf0] sm:$0xff]
    %v1414 = vld [vmem:[%s1382 + $0xf8] sm:$0xff]
    %v1423 = vrot.slane %v1378, 1
    %v1424 = vrot.slane %v759, 1
    %v1425 = vsel %vm389, %v1423, %v1424
    %v1426 = vrot.slane %v1379, 1
    %v1427 = vrot.slane %v760, 1
    %v1428 = vsel %vm389, %v1426, %v1427
    %v1429 = vrot.slane %v761, 1
    %v1430 = vsel %vm389, %v1424, %v1429
    %v1431 = vrot.slane %v762, 1
    %v1432 = vsel %vm389, %v1427, %v1431
    %v1433 = vrot.slane %v1380, 1
    %v1434 = vsel %vm389, %v1429, %v1433
    %v1435 = vrot.slane %v1381, 1
    %v1436 = vsel %vm389, %v1431, %v1435
    %v1477 = vunpack.c.l.b16 %v1383
    %v1478 = vunpack.c.h.b16 %v1383
    %v1479 = vunpack.c.l.b16 %v1384
    %v1480 = vunpack.c.h.b16 %v1384
    %v1481 = vunpack.c.l.b16 %v1385
    %v1482 = vunpack.c.h.b16 %v1385
    %v1483 = vunpack.c.l.b16 %v1386
    %v1484 = vunpack.c.h.b16 %v1386
    %v1485 = vunpack.c.l.b16 %v1387
    %v1486 = vunpack.c.h.b16 %v1387
    %v1487 = vunpack.c.l.b16 %v1388
    %v1488 = vunpack.c.h.b16 %v1388
    %v1489 = vunpack.c.l.b16 %v1389
    %v1490 = vunpack.c.h.b16 %v1389
    %v1491 = vunpack.c.l.b16 %v1390
    %v1492 = vunpack.c.h.b16 %v1390
    %v1493 = vunpack.c.l.b16 %v1391
    %v1494 = vunpack.c.h.b16 %v1391
    %v1495 = vunpack.c.l.b16 %v1392
    %v1496 = vunpack.c.h.b16 %v1392
    %v1497 = vunpack.c.l.b16 %v1393
    %v1498 = vunpack.c.h.b16 %v1393
    %v1499 = vunpack.c.l.b16 %v1394
    %v1500 = vunpack.c.h.b16 %v1394
    %v1501 = vunpack.c.l.b16 %v1395
    %v1502 = vunpack.c.h.b16 %v1395
    %v1503 = vunpack.c.l.b16 %v1396
    %v1504 = vunpack.c.h.b16 %v1396
    %v1505 = vunpack.c.l.b16 %v1397
    %v1506 = vunpack.c.h.b16 %v1397
    %v1507 = vunpack.c.l.b16 %v1398
    %v1508 = vunpack.c.h.b16 %v1398
    %v1509 = vunpack.c.l.b16 %v1399
    %v1510 = vunpack.c.h.b16 %v1399
    %v1511 = vunpack.c.l.b16 %v1400
    %v1512 = vunpack.c.h.b16 %v1400
    %v1513 = vunpack.c.l.b16 %v1401
    %v1514 = vunpack.c.h.b16 %v1401
    %v1515 = vunpack.c.l.b16 %v1402
    %v1516 = vunpack.c.h.b16 %v1402
    %v1517 = vunpack.c.l.b16 %v1403
    %v1518 = vunpack.c.h.b16 %v1403
    %v1519 = vunpack.c.l.b16 %v1404
    %v1520 = vunpack.c.h.b16 %v1404
    %v1521 = vunpack.c.l.b16 %v1405
    %v1522 = vunpack.c.h.b16 %v1405
    %v1523 = vunpack.c.l.b16 %v1406
    %v1524 = vunpack.c.h.b16 %v1406
    %v1525 = vunpack.c.l.b16 %v1407
    %v1526 = vunpack.c.h.b16 %v1407
    %v1527 = vunpack.c.l.b16 %v1408
    %v1528 = vunpack.c.h.b16 %v1408
    %v1529 = vunpack.c.l.b16 %v1409
    %v1530 = vunpack.c.h.b16 %v1409
    %v1531 = vunpack.c.l.b16 %v1410
    %v1532 = vunpack.c.h.b16 %v1410
    %v1533 = vunpack.c.l.b16 %v1411
    %v1534 = vunpack.c.h.b16 %v1411
    %v1535 = vunpack.c.l.b16 %v1412
    %v1536 = vunpack.c.h.b16 %v1412
    %v1537 = vunpack.c.l.b16 %v1413
    %v1538 = vunpack.c.h.b16 %v1413
    %v1539 = vunpack.c.l.b16 %v1414
    %v1540 = vunpack.c.h.b16 %v1414
    %v1541 = vpack.c.b16 %v1479, %v1477
    %v1542 = vpack.c.b16 %v1480, %v1478
    %v1543 = vpack.c.b16 %v1483, %v1481
    %v1544 = vpack.c.b16 %v1484, %v1482
    %v1545 = vpack.c.b16 %v1487, %v1485
    %v1546 = vpack.c.b16 %v1488, %v1486
    %v1547 = vpack.c.b16 %v1491, %v1489
    %v1548 = vpack.c.b16 %v1492, %v1490
    %v1549 = vpack.c.b16 %v1495, %v1493
    %v1550 = vpack.c.b16 %v1496, %v1494
    %v1551 = vpack.c.b16 %v1499, %v1497
    %v1552 = vpack.c.b16 %v1500, %v1498
    %v1553 = vpack.c.b16 %v1503, %v1501
    %v1554 = vpack.c.b16 %v1504, %v1502
    %v1555 = vpack.c.b16 %v1507, %v1505
    %v1556 = vpack.c.b16 %v1508, %v1506
    %v1557 = vpack.c.b16 %v1511, %v1509
    %v1558 = vpack.c.b16 %v1512, %v1510
    %v1559 = vpack.c.b16 %v1515, %v1513
    %v1560 = vpack.c.b16 %v1516, %v1514
    %v1561 = vpack.c.b16 %v1519, %v1517
    %v1562 = vpack.c.b16 %v1520, %v1518
    %v1563 = vpack.c.b16 %v1523, %v1521
    %v1564 = vpack.c.b16 %v1524, %v1522
    %v1565 = vpack.c.b16 %v1527, %v1525
    %v1566 = vpack.c.b16 %v1528, %v1526
    %v1567 = vpack.c.b16 %v1531, %v1529
    %v1568 = vpack.c.b16 %v1532, %v1530
    %v1569 = vpack.c.b16 %v1535, %v1533
    %v1570 = vpack.c.b16 %v1536, %v1534
    %v1571 = vpack.c.b16 %v1539, %v1537
    %v1572 = vpack.c.b16 %v1540, %v1538
    %1605 = vmatprep.subr.bf16.mxu0 %v1556
    %1606 = vmatpush1.bf16.msra.mxu0 %v1555
    %1607 = vmatprep.subr.bf16.mxu0 %v1554
    %1608 = vmatpush1.bf16.msra.mxu0 %v1553
    %1609 = vmatprep.subr.bf16.mxu0 %v1552
    %1610 = vmatpush1.bf16.msra.mxu0 %v1551
    %1611 = vmatprep.subr.bf16.mxu0 %v1550
    %1612 = vmatpush1.bf16.msra.mxu0 %v1549
    %1613 = vmatprep.subr.bf16.mxu0 %v1548
    %1614 = vmatpush1.bf16.msra.mxu0 %v1547
    %1615 = vmatprep.subr.bf16.mxu0 %v1546
    %1616 = vmatpush1.bf16.msra.mxu0 %v1545
    %1617 = vmatprep.subr.bf16.mxu0 %v1544
    %1618 = vmatpush1.bf16.msra.mxu0 %v1543
    %1619 = vmatprep.subr.bf16.mxu0 %v1542
    %1620 = vmatpush1.bf16.msra.mxu0 %v1541
    %1621 = vmatprep.subr.bf16.mxu0 %v1572
    %1622 = vmatpush2.bf16.msra.mxu0 %v1571
    %1623 = vmatprep.subr.bf16.mxu0 %v1570
    %1624 = vmatpush2.bf16.msra.mxu0 %v1569
    %1625 = vmatprep.subr.bf16.mxu0 %v1568
    %1626 = vmatpush2.bf16.msra.mxu0 %v1567
    %1627 = vmatprep.subr.bf16.mxu0 %v1566
    %1628 = vmatpush2.bf16.msra.mxu0 %v1565
    %1629 = vmatprep.subr.bf16.mxu0 %v1564
    %1630 = vmatpush2.bf16.msra.mxu0 %v1563
    %1631 = vmatprep.subr.bf16.mxu0 %v1562
    %1632 = vmatpush2.bf16.msra.mxu0 %v1561
    %1633 = vmatprep.subr.bf16.mxu0 %v1560
    %1634 = vmatpush2.bf16.msra.mxu0 %v1559
    %1635 = vmatprep.subr.bf16.mxu0 %v1558
    %1636 = vmatpush2.bf16.msra.mxu0 %v1557
    %1637 = vmatprep.mubr.bf16.mxu0 %v1428
    %1638 = vmatmul.mubr.bf16.gmra.mxu0 %v1425
    %v1639 = vpop.f32.mrf.mxu0
    %v1640 = vadd.f32 0.0, %v1639
    %v1641 = vpop.f32.mrf.mxu0
    %v1642 = vadd.f32 0.0, %v1641
    %v1643 = vpop.f32.mrf.mxu0
    %v1644 = vadd.f32 0.0, %v1643
    %v1645 = vpop.f32.mrf.mxu0
    %v1646 = vadd.f32 0.0, %v1645
    %1647 = vmatprep.mubr.bf16.mxu0 %v1432
    %1648 = vmatmul.mubr.bf16.gmra.mxu0 %v1430
    %v1649 = vpop.f32.mrf.mxu0
    %v1650 = vadd.f32 0.0, %v1649
    %v1651 = vpop.f32.mrf.mxu0
    %v1652 = vadd.f32 0.0, %v1651
    %v1653 = vpop.f32.mrf.mxu0
    %v1654 = vadd.f32 0.0, %v1653
    %v1655 = vpop.f32.mrf.mxu0
    %v1656 = vadd.f32 0.0, %v1655
    %1657 = vmatprep.mubr.bf16.mxu0 %v1436
    %1658 = vmatmul.mubr.bf16.gmra.mxu0 %v1434
    %v1659 = vpop.f32.mrf.mxu0
    %v1660 = vadd.f32 0.0, %v1659
    %v1661 = vpop.f32.mrf.mxu0
    %v1662 = vadd.f32 0.0, %v1661
    %v1663 = vpop.f32.mrf.mxu0
    %v1664 = vadd.f32 0.0, %v1663
    %v1665 = vpop.f32.mrf.mxu0
    %v1666 = vadd.f32 0.0, %v1665
    %1667 = vmatprep.mubr.bf16.mxu0 %v1435
    %1668 = vmatmul.mubr.bf16.gmra.mxu0 %v1433
    %v1669 = vpop.f32.mrf.mxu0
    %v1670 = vadd.f32 0.0, %v1669
    %v1671 = vpop.f32.mrf.mxu0
    %v1672 = vadd.f32 0.0, %v1671
    %v1673 = vpop.f32.mrf.mxu0
    %v1674 = vadd.f32 0.0, %v1673
    %v1675 = vpop.f32.mrf.mxu0
    %v1676 = vadd.f32 0.0, %v1675
    %1677 = vdwg.mxu0
    %v1678 = vadd.f32 %v1336, %v1640
    %v1679 = vadd.f32 %v1338, %v1642
    %v1680 = vadd.f32 %v1340, %v1644
    %v1681 = vadd.f32 %v1342, %v1646
    %v1682 = vadd.f32 %v1346, %v1650
    %v1683 = vadd.f32 %v1348, %v1652
    %v1684 = vadd.f32 %v1350, %v1654
    %v1685 = vadd.f32 %v1352, %v1656
    %v1686 = vadd.f32 %v1356, %v1660
    %v1687 = vadd.f32 %v1358, %v1662
    %v1688 = vadd.f32 %v1360, %v1664
    %v1689 = vadd.f32 %v1362, %v1666
    %v1690 = vadd.f32 %v1366, %v1670
    %v1691 = vadd.f32 %v1368, %v1672
    %v1692 = vadd.f32 %v1370, %v1674
    %v1693 = vadd.f32 %v1372, %v1676
    %v1694 = vld [vmem:[%s3] sm:$0x3]
    %v1696 = vlaneseq
    %v1697 = vshrl.u32 %v1696, 7
    %v1698 = vsub.s32 0, %v1697
    %v1699 = vrot.slane %v1694, %v1698
    %v1700 = vlaneseq
    %v1701 = vshrl.u32 %v1700, 7
    %v1702 = vsub.s32 1, %v1701
    %v1703 = vrot.slane %v1694, %v1702
    %v1706 = vadd.f32 %v1678, %v1699
    %v1707 = vadd.f32 %v1679, %v1703
    %v1708 = vadd.f32 %v1680, %v1699
    %v1709 = vadd.f32 %v1681, %v1703
    %v1710 = vadd.f32 %v1682, %v1699
    %v1711 = vadd.f32 %v1683, %v1703
    %v1712 = vadd.f32 %v1684, %v1699
    %v1713 = vadd.f32 %v1685, %v1703
    %v1714 = vadd.f32 %v1686, %v1699
    %v1715 = vadd.f32 %v1687, %v1703
    %v1716 = vadd.f32 %v1688, %v1699
    %v1717 = vadd.f32 %v1689, %v1703
    %v1718 = vadd.f32 %v1690, %v1699
    %v1719 = vadd.f32 %v1691, %v1703
    %v1720 = vadd.f32 %v1692, %v1699
    %v1721 = vadd.f32 %v1693, %v1703
    %v1722 = vmax.f32 %v1706, 0.0
    %v1723 = vmax.f32 %v1707, 0.0
    %v1724 = vmax.f32 %v1708, 0.0
    %v1725 = vmax.f32 %v1709, 0.0
    %v1726 = vmax.f32 %v1710, 0.0
    %v1727 = vmax.f32 %v1711, 0.0
    %v1728 = vmax.f32 %v1712, 0.0
    %v1729 = vmax.f32 %v1713, 0.0
    %v1730 = vmax.f32 %v1714, 0.0
    %v1731 = vmax.f32 %v1715, 0.0
    %v1732 = vmax.f32 %v1716, 0.0
    %v1733 = vmax.f32 %v1717, 0.0
    %v1734 = vmax.f32 %v1718, 0.0
    %v1735 = vmax.f32 %v1719, 0.0
    %v1736 = vmax.f32 %v1720, 0.0
    %v1737 = vmax.f32 %v1721, 0.0
    %v1738 = vsel %vm629, %v1722, 0.0
    %v1739 = vsel %vm629, %v1723, 0.0
    %v1740 = vsel %vm630, %v1724, 0.0
    %v1741 = vsel %vm630, %v1725, 0.0
    %v1742 = vsel %vm631, %v1726, 0.0
    %v1743 = vsel %vm631, %v1727, 0.0
    %v1744 = vsel %vm632, %v1728, 0.0
    %v1745 = vsel %vm632, %v1729, 0.0
    %v1746 = vsel %vm633, %v1730, 0.0
    %v1747 = vsel %vm633, %v1731, 0.0
    %v1748 = vsel %vm634, %v1732, 0.0
    %v1749 = vsel %vm634, %v1733, 0.0
    %v1750 = vsel %vm635, %v1734, 0.0
    %v1751 = vsel %vm635, %v1735, 0.0
    %v1752 = vsel %vm636, %v1736, 0.0
    %v1753 = vsel %vm636, %v1737, 0.0
    %1754 = vst.msk [vmem:[#allocation4] ss:$8 sm:$0x3] %vm656, 0.0
    %1755 = vst.msk [vmem:[#allocation4] ss:$8 sm:$0x0] %vm656, 0.0
    %v1772 = vrot.slane %v1738, 7
    %v1773 = vrot.slane %v1739, 7
    %v1774 = vrot.slane %v1740, 7
    %v1775 = vsel %vm675, %v1772, %v1774
    %v1776 = vrot.slane %v1741, 7
    %v1777 = vsel %vm675, %v1773, %v1776
    %v1778 = vrot.slane %v1742, 7
    %v1779 = vsel %vm675, %v1774, %v1778
    %v1780 = vrot.slane %v1743, 7
    %v1781 = vsel %vm675, %v1776, %v1780
    %v1782 = vrot.slane %v1744, 7
    %v1783 = vsel %vm675, %v1778, %v1782
    %v1784 = vrot.slane %v1745, 7
    %v1785 = vsel %vm675, %v1780, %v1784
    %v1786 = vrot.slane %v1746, 7
    %v1787 = vsel %vm675, %v1782, %v1786
    %v1788 = vrot.slane %v1747, 7
    %v1789 = vsel %vm675, %v1784, %v1788
    %v1790 = vrot.slane %v1748, 7
    %v1791 = vsel %vm675, %v1786, %v1790
    %v1792 = vrot.slane %v1749, 7
    %v1793 = vsel %vm675, %v1788, %v1792
    %v1794 = vrot.slane %v1750, 7
    %v1795 = vsel %vm675, %v1790, %v1794
    %v1796 = vrot.slane %v1751, 7
    %v1797 = vsel %vm675, %v1792, %v1796
    %v1798 = vrot.slane %v1752, 7
    %v1799 = vsel %vm675, %v1794, %v1798
    %v1800 = vrot.slane %v1753, 7
    %v1801 = vsel %vm675, %v1796, %v1800
    %1818 = vst [vmem:[#allocation4] sm:$0xfe] %v1772
    %1819 = vst [vmem:[#allocation4 + $0x8] sm:$0xfe] %v1773
    %1820 = vst [vmem:[#allocation4 + $0x10] sm:$0xff] %v1775
    %1821 = vst [vmem:[#allocation4 + $0x18] sm:$0xff] %v1777
    %1822 = vst [vmem:[#allocation4 + $0x20] sm:$0xff] %v1779
    %1823 = vst [vmem:[#allocation4 + $0x28] sm:$0xff] %v1781
    %1824 = vst [vmem:[#allocation4 + $0x30] sm:$0xff] %v1783
    %1825 = vst [vmem:[#allocation4 + $0x38] sm:$0xff] %v1785
    %1826 = vst [vmem:[#allocation4 + $0x40] sm:$0xff] %v1787
    %1827 = vst [vmem:[#allocation4 + $0x48] sm:$0xff] %v1789
    %1828 = vst [vmem:[#allocation4 + $0x50] sm:$0xff] %v1791
    %1829 = vst [vmem:[#allocation4 + $0x58] sm:$0xff] %v1793
    %1830 = vst [vmem:[#allocation4 + $0x60] sm:$0xff] %v1795
    %1831 = vst [vmem:[#allocation4 + $0x68] sm:$0xff] %v1797
    %1832 = vst [vmem:[#allocation4 + $0x70] sm:$0x7f] %v1799
    %1833 = vst [vmem:[#allocation4 + $0x78] sm:$0x7f] %v1801
    %s1834 = scalar_lea.vmem [#allocation4], 119
    %1835 = vst.msk [vmem:[%s1834] ss:$8 sm:$0x3] %vm656, 0.0
    %1836 = vst.msk [vmem:[%s1834] ss:$8 sm:$0x0] %vm656, 0.0
    %v1837 = vld [vmem:[#allocation4] sm:$0xff]
    %v1838 = vld [vmem:[#allocation4 + $0x8] sm:$0xff]
    %v1839 = vld [vmem:[#allocation4 + $0x10] sm:$0xff]
    %v1840 = vld [vmem:[#allocation4 + $0x18] sm:$0xff]
    %v1841 = vld [vmem:[#allocation4 + $0x20] sm:$0xff]
    %v1842 = vld [vmem:[#allocation4 + $0x28] sm:$0xff]
    %v1843 = vld [vmem:[#allocation4 + $0x30] sm:$0xff]
    %v1844 = vld [vmem:[#allocation4 + $0x38] sm:$0xff]
    %v1845 = vld [vmem:[#allocation4 + $0x40] sm:$0xff]
    %v1846 = vld [vmem:[#allocation4 + $0x48] sm:$0xff]
    %v1847 = vld [vmem:[#allocation4 + $0x50] sm:$0xff]
    %v1848 = vld [vmem:[#allocation4 + $0x58] sm:$0xff]
    %v1849 = vld [vmem:[#allocation4 + $0x60] sm:$0xff]
    %v1850 = vld [vmem:[#allocation4 + $0x68] sm:$0xff]
    %v1851 = vld [vmem:[#allocation4 + $0x70] sm:$0x3f]
    %v1852 = vld [vmem:[#allocation4 + $0x78] sm:$0x3f]
    %v1853 = vpack.c.bf16 %v1839, %v1837
    %v1854 = vpack.c.bf16 %v1840, %v1838
    %v1855 = vpack.c.bf16 %v1843, %v1841
    %v1856 = vpack.c.bf16 %v1844, %v1842
    %v1857 = vpack.c.bf16 %v1847, %v1845
    %v1858 = vpack.c.bf16 %v1848, %v1846
    %v1859 = vpack.c.bf16 %v1851, %v1849
    %v1860 = vpack.c.bf16 %v1852, %v1850
    %v1861 = vld [vmem:[%s4] sm:$0xff]
    %v1862 = vld [vmem:[%s4 + $0x8] sm:$0xff]
    %v1863 = vld [vmem:[%s4 + $0x10] sm:$0xff]
    %v1864 = vld [vmem:[%s4 + $0x18] sm:$0xff]
    %v1865 = vld [vmem:[%s4 + $0x20] sm:$0xff]
    %v1866 = vld [vmem:[%s4 + $0x28] sm:$0xff]
    %v1867 = vld [vmem:[%s4 + $0x30] sm:$0xff]
    %v1868 = vld [vmem:[%s4 + $0x38] sm:$0xff]
    %v1869 = vld [vmem:[%s4 + $0x40] sm:$0xff]
    %v1870 = vld [vmem:[%s4 + $0x48] sm:$0xff]
    %v1871 = vld [vmem:[%s4 + $0x50] sm:$0xff]
    %v1872 = vld [vmem:[%s4 + $0x58] sm:$0xff]
    %v1873 = vld [vmem:[%s4 + $0x60] sm:$0xff]
    %v1874 = vld [vmem:[%s4 + $0x68] sm:$0xff]
    %v1875 = vld [vmem:[%s4 + $0x70] sm:$0xff]
    %v1876 = vld [vmem:[%s4 + $0x78] sm:$0xff]
    %v1877 = vld [vmem:[%s4 + $0x80] sm:$0xff]
    %v1878 = vld [vmem:[%s4 + $0x88] sm:$0xff]
    %v1879 = vld [vmem:[%s4 + $0x90] sm:$0xff]
    %v1880 = vld [vmem:[%s4 + $0x98] sm:$0xff]
    %v1881 = vld [vmem:[%s4 + $0xa0] sm:$0xff]
    %v1882 = vld [vmem:[%s4 + $0xa8] sm:$0xff]
    %v1883 = vld [vmem:[%s4 + $0xb0] sm:$0xff]
    %v1884 = vld [vmem:[%s4 + $0xb8] sm:$0xff]
    %v1885 = vld [vmem:[%s4 + $0xc0] sm:$0xff]
    %v1886 = vld [vmem:[%s4 + $0xc8] sm:$0xff]
    %v1887 = vld [vmem:[%s4 + $0xd0] sm:$0xff]
    %v1888 = vld [vmem:[%s4 + $0xd8] sm:$0xff]
    %v1889 = vld [vmem:[%s4 + $0xe0] sm:$0xff]
    %v1890 = vld [vmem:[%s4 + $0xe8] sm:$0xff]
    %v1891 = vld [vmem:[%s4 + $0xf0] sm:$0xff]
    %v1892 = vld [vmem:[%s4 + $0xf8] sm:$0xff]
    %v1893 = vld [vmem:[#allocation4] sm:$0xfe]
    %v1894 = vld [vmem:[#allocation4 + $0x8] sm:$0xfe]
    %v1895 = vld [vmem:[#allocation4 + $0x70] sm:$0x7f]
    %v1896 = vld [vmem:[#allocation4 + $0x78] sm:$0x7f]
    %v1897 = vpack.c.bf16 %v1839, %v1893
    %v1898 = vpack.c.bf16 %v1840, %v1894
    %v1899 = vpack.c.bf16 %v1895, %v1849
    %v1900 = vpack.c.bf16 %v1896, %v1850
    %s1901 = scalar_lea.vmem %s4, 256
    %v1902 = vld [vmem:[%s1901] sm:$0xff]
    %v1903 = vld [vmem:[%s1901 + $0x8] sm:$0xff]
    %v1904 = vld [vmem:[%s1901 + $0x10] sm:$0xff]
    %v1905 = vld [vmem:[%s1901 + $0x18] sm:$0xff]
    %v1906 = vld [vmem:[%s1901 + $0x20] sm:$0xff]
    %v1907 = vld [vmem:[%s1901 + $0x28] sm:$0xff]
    %v1908 = vld [vmem:[%s1901 + $0x30] sm:$0xff]
    %v1909 = vld [vmem:[%s1901 + $0x38] sm:$0xff]
    %v1910 = vld [vmem:[%s1901 + $0x40] sm:$0xff]
    %v1911 = vld [vmem:[%s1901 + $0x48] sm:$0xff]
    %v1912 = vld [vmem:[%s1901 + $0x50] sm:$0xff]
    %v1913 = vld [vmem:[%s1901 + $0x58] sm:$0xff]
    %v1914 = vld [vmem:[%s1901 + $0x60] sm:$0xff]
    %v1915 = vld [vmem:[%s1901 + $0x68] sm:$0xff]
    %v1916 = vld [vmem:[%s1901 + $0x70] sm:$0xff]
    %v1917 = vld [vmem:[%s1901 + $0x78] sm:$0xff]
    %v1918 = vld [vmem:[%s1901 + $0x80] sm:$0xff]
    %v1919 = vld [vmem:[%s1901 + $0x88] sm:$0xff]
    %v1920 = vld [vmem:[%s1901 + $0x90] sm:$0xff]
    %v1921 = vld [vmem:[%s1901 + $0x98] sm:$0xff]
    %v1922 = vld [vmem:[%s1901 + $0xa0] sm:$0xff]
    %v1923 = vld [vmem:[%s1901 + $0xa8] sm:$0xff]
    %v1924 = vld [vmem:[%s1901 + $0xb0] sm:$0xff]
    %v1925 = vld [vmem:[%s1901 + $0xb8] sm:$0xff]
    %v1926 = vld [vmem:[%s1901 + $0xc0] sm:$0xff]
    %v1927 = vld [vmem:[%s1901 + $0xc8] sm:$0xff]
    %v1928 = vld [vmem:[%s1901 + $0xd0] sm:$0xff]
    %v1929 = vld [vmem:[%s1901 + $0xd8] sm:$0xff]
    %v1930 = vld [vmem:[%s1901 + $0xe0] sm:$0xff]
    %v1931 = vld [vmem:[%s1901 + $0xe8] sm:$0xff]
    %v1932 = vld [vmem:[%s1901 + $0xf0] sm:$0xff]
    %v1933 = vld [vmem:[%s1901 + $0xf8] sm:$0xff]
    %v1935 = vshrl.u32 %v1897, 16
    %v1937 = vshll.u32 %v1897, 16
    %v1939 = vrot.slane %v1937, 1
    %v1940 = vor.u32 %v1935, %v1939
    %v1942 = vshll.u32 %v1855, 16
    %v1944 = vrot.slane %v1942, 1
    %v1945 = vsel %vm115, %v1940, %v1944
    %v1947 = vshrl.u32 %v1898, 16
    %v1949 = vshll.u32 %v1898, 16
    %v1951 = vrot.slane %v1949, 1
    %v1952 = vor.u32 %v1947, %v1951
    %v1954 = vshll.u32 %v1856, 16
    %v1956 = vrot.slane %v1954, 1
    %v1957 = vsel %vm115, %v1952, %v1956
    %v1958 = vshrl.u32 %v1855, 16
    %v1960 = vor.u32 %v1958, %v1944
    %v1962 = vshll.u32 %v1857, 16
    %v1964 = vrot.slane %v1962, 1
    %v1965 = vsel %vm115, %v1960, %v1964
    %v1966 = vshrl.u32 %v1856, 16
    %v1968 = vor.u32 %v1966, %v1956
    %v1970 = vshll.u32 %v1858, 16
    %v1972 = vrot.slane %v1970, 1
    %v1973 = vsel %vm115, %v1968, %v1972
    %v1974 = vshrl.u32 %v1857, 16
    %v1976 = vor.u32 %v1974, %v1964
    %v1978 = vshll.u32 %v1899, 16
    %v1980 = vrot.slane %v1978, 1
    %v1981 = vsel %vm115, %v1976, %v1980
    %v1982 = vshrl.u32 %v1858, 16
    %v1984 = vor.u32 %v1982, %v1972
    %v1986 = vshll.u32 %v1900, 16
    %v1988 = vrot.slane %v1986, 1
    %v1989 = vsel %vm115, %v1984, %v1988
    %v1990 = vshrl.u32 %v1899, 16
    %v1992 = vor.u32 %v1990, %v1980
    %v1993 = vshrl.u32 %v1900, 16
    %v1995 = vor.u32 %v1993, %v1988
    %v2036 = vunpack.c.l.b16 %v1902
    %v2037 = vunpack.c.h.b16 %v1902
    %v2038 = vunpack.c.l.b16 %v1903
    %v2039 = vunpack.c.h.b16 %v1903
    %v2040 = vunpack.c.l.b16 %v1904
    %v2041 = vunpack.c.h.b16 %v1904
    %v2042 = vunpack.c.l.b16 %v1905
    %v2043 = vunpack.c.h.b16 %v1905
    %v2044 = vunpack.c.l.b16 %v1906
    %v2045 = vunpack.c.h.b16 %v1906
    %v2046 = vunpack.c.l.b16 %v1907
    %v2047 = vunpack.c.h.b16 %v1907
    %v2048 = vunpack.c.l.b16 %v1908
    %v2049 = vunpack.c.h.b16 %v1908
    %v2050 = vunpack.c.l.b16 %v1909
    %v2051 = vunpack.c.h.b16 %v1909
    %v2052 = vunpack.c.l.b16 %v1910
    %v2053 = vunpack.c.h.b16 %v1910
    %v2054 = vunpack.c.l.b16 %v1911
    %v2055 = vunpack.c.h.b16 %v1911
    %v2056 = vunpack.c.l.b16 %v1912
    %v2057 = vunpack.c.h.b16 %v1912
    %v2058 = vunpack.c.l.b16 %v1913
    %v2059 = vunpack.c.h.b16 %v1913
    %v2060 = vunpack.c.l.b16 %v1914
    %v2061 = vunpack.c.h.b16 %v1914
    %v2062 = vunpack.c.l.b16 %v1915
    %v2063 = vunpack.c.h.b16 %v1915
    %v2064 = vunpack.c.l.b16 %v1916
    %v2065 = vunpack.c.h.b16 %v1916
    %v2066 = vunpack.c.l.b16 %v1917
    %v2067 = vunpack.c.h.b16 %v1917
    %v2068 = vunpack.c.l.b16 %v1918
    %v2069 = vunpack.c.h.b16 %v1918
    %v2070 = vunpack.c.l.b16 %v1919
    %v2071 = vunpack.c.h.b16 %v1919
    %v2072 = vunpack.c.l.b16 %v1920
    %v2073 = vunpack.c.h.b16 %v1920
    %v2074 = vunpack.c.l.b16 %v1921
    %v2075 = vunpack.c.h.b16 %v1921
    %v2076 = vunpack.c.l.b16 %v1922
    %v2077 = vunpack.c.h.b16 %v1922
    %v2078 = vunpack.c.l.b16 %v1923
    %v2079 = vunpack.c.h.b16 %v1923
    %v2080 = vunpack.c.l.b16 %v1924
    %v2081 = vunpack.c.h.b16 %v1924
    %v2082 = vunpack.c.l.b16 %v1925
    %v2083 = vunpack.c.h.b16 %v1925
    %v2084 = vunpack.c.l.b16 %v1926
    %v2085 = vunpack.c.h.b16 %v1926
    %v2086 = vunpack.c.l.b16 %v1927
    %v2087 = vunpack.c.h.b16 %v1927
    %v2088 = vunpack.c.l.b16 %v1928
    %v2089 = vunpack.c.h.b16 %v1928
    %v2090 = vunpack.c.l.b16 %v1929
    %v2091 = vunpack.c.h.b16 %v1929
    %v2092 = vunpack.c.l.b16 %v1930
    %v2093 = vunpack.c.h.b16 %v1930
    %v2094 = vunpack.c.l.b16 %v1931
    %v2095 = vunpack.c.h.b16 %v1931
    %v2096 = vunpack.c.l.b16 %v1932
    %v2097 = vunpack.c.h.b16 %v1932
    %v2098 = vunpack.c.l.b16 %v1933
    %v2099 = vunpack.c.h.b16 %v1933
    %v2100 = vpack.c.b16 %v2038, %v2036
    %v2101 = vpack.c.b16 %v2039, %v2037
    %v2102 = vpack.c.b16 %v2042, %v2040
    %v2103 = vpack.c.b16 %v2043, %v2041
    %v2104 = vpack.c.b16 %v2046, %v2044
    %v2105 = vpack.c.b16 %v2047, %v2045
    %v2106 = vpack.c.b16 %v2050, %v2048
    %v2107 = vpack.c.b16 %v2051, %v2049
    %v2108 = vpack.c.b16 %v2054, %v2052
    %v2109 = vpack.c.b16 %v2055, %v2053
    %v2110 = vpack.c.b16 %v2058, %v2056
    %v2111 = vpack.c.b16 %v2059, %v2057
    %v2112 = vpack.c.b16 %v2062, %v2060
    %v2113 = vpack.c.b16 %v2063, %v2061
    %v2114 = vpack.c.b16 %v2066, %v2064
    %v2115 = vpack.c.b16 %v2067, %v2065
    %v2116 = vpack.c.b16 %v2070, %v2068
    %v2117 = vpack.c.b16 %v2071, %v2069
    %v2118 = vpack.c.b16 %v2074, %v2072
    %v2119 = vpack.c.b16 %v2075, %v2073
    %v2120 = vpack.c.b16 %v2078, %v2076
    %v2121 = vpack.c.b16 %v2079, %v2077
    %v2122 = vpack.c.b16 %v2082, %v2080
    %v2123 = vpack.c.b16 %v2083, %v2081
    %v2124 = vpack.c.b16 %v2086, %v2084
    %v2125 = vpack.c.b16 %v2087, %v2085
    %v2126 = vpack.c.b16 %v2090, %v2088
    %v2127 = vpack.c.b16 %v2091, %v2089
    %v2128 = vpack.c.b16 %v2094, %v2092
    %v2129 = vpack.c.b16 %v2095, %v2093
    %v2130 = vpack.c.b16 %v2098, %v2096
    %v2131 = vpack.c.b16 %v2099, %v2097
    %2164 = vmatprep.subr.bf16.mxu0 %v2115
    %2165 = vmatpush1.bf16.msra.mxu0 %v2114
    %2166 = vmatprep.subr.bf16.mxu0 %v2113
    %2167 = vmatpush1.bf16.msra.mxu0 %v2112
    %2168 = vmatprep.subr.bf16.mxu0 %v2111
    %2169 = vmatpush1.bf16.msra.mxu0 %v2110
    %2170 = vmatprep.subr.bf16.mxu0 %v2109
    %2171 = vmatpush1.bf16.msra.mxu0 %v2108
    %2172 = vmatprep.subr.bf16.mxu0 %v2107
    %2173 = vmatpush1.bf16.msra.mxu0 %v2106
    %2174 = vmatprep.subr.bf16.mxu0 %v2105
    %2175 = vmatpush1.bf16.msra.mxu0 %v2104
    %2176 = vmatprep.subr.bf16.mxu0 %v2103
    %2177 = vmatpush1.bf16.msra.mxu0 %v2102
    %2178 = vmatprep.subr.bf16.mxu0 %v2101
    %2179 = vmatpush1.bf16.msra.mxu0 %v2100
    %2180 = vmatprep.subr.bf16.mxu0 %v2131
    %2181 = vmatpush2.bf16.msra.mxu0 %v2130
    %2182 = vmatprep.subr.bf16.mxu0 %v2129
    %2183 = vmatpush2.bf16.msra.mxu0 %v2128
    %2184 = vmatprep.subr.bf16.mxu0 %v2127
    %2185 = vmatpush2.bf16.msra.mxu0 %v2126
    %2186 = vmatprep.subr.bf16.mxu0 %v2125
    %2187 = vmatpush2.bf16.msra.mxu0 %v2124
    %2188 = vmatprep.subr.bf16.mxu0 %v2123
    %2189 = vmatpush2.bf16.msra.mxu0 %v2122
    %2190 = vmatprep.subr.bf16.mxu0 %v2121
    %2191 = vmatpush2.bf16.msra.mxu0 %v2120
    %2192 = vmatprep.subr.bf16.mxu0 %v2119
    %2193 = vmatpush2.bf16.msra.mxu0 %v2118
    %2194 = vmatprep.subr.bf16.mxu0 %v2117
    %2195 = vmatpush2.bf16.msra.mxu0 %v2116
    %2196 = vmatprep.mubr.bf16.mxu0 %v1957
    %2197 = vmatmul.mubr.bf16.gmra.mxu0 %v1945
    %v2198 = vpop.f32.mrf.mxu0
    %v2199 = vadd.f32 0.0, %v2198
    %v2200 = vpop.f32.mrf.mxu0
    %v2201 = vadd.f32 0.0, %v2200
    %v2202 = vpop.f32.mrf.mxu0
    %v2203 = vadd.f32 0.0, %v2202
    %v2204 = vpop.f32.mrf.mxu0
    %v2205 = vadd.f32 0.0, %v2204
    %2206 = vmatprep.mubr.bf16.mxu0 %v1973
    %2207 = vmatmul.mubr.bf16.gmra.mxu0 %v1965
    %v2208 = vpop.f32.mrf.mxu0
    %v2209 = vadd.f32 0.0, %v2208
    %v2210 = vpop.f32.mrf.mxu0
    %v2211 = vadd.f32 0.0, %v2210
    %v2212 = vpop.f32.mrf.mxu0
    %v2213 = vadd.f32 0.0, %v2212
    %v2214 = vpop.f32.mrf.mxu0
    %v2215 = vadd.f32 0.0, %v2214
    %2216 = vmatprep.mubr.bf16.mxu0 %v1989
    %2217 = vmatmul.mubr.bf16.gmra.mxu0 %v1981
    %v2218 = vpop.f32.mrf.mxu0
    %v2219 = vadd.f32 0.0, %v2218
    %v2220 = vpop.f32.mrf.mxu0
    %v2221 = vadd.f32 0.0, %v2220
    %v2222 = vpop.f32.mrf.mxu0
    %v2223 = vadd.f32 0.0, %v2222
    %v2224 = vpop.f32.mrf.mxu0
    %v2225 = vadd.f32 0.0, %v2224
    %2226 = vmatprep.mubr.bf16.mxu0 %v1995
    %2227 = vmatmul.mubr.bf16.gmra.mxu0 %v1992
    %v2228 = vpop.f32.mrf.mxu0
    %v2229 = vadd.f32 0.0, %v2228
    %v2230 = vpop.f32.mrf.mxu0
    %v2231 = vadd.f32 0.0, %v2230
    %v2232 = vpop.f32.mrf.mxu0
    %v2233 = vadd.f32 0.0, %v2232
    %v2234 = vpop.f32.mrf.mxu0
    %v2235 = vadd.f32 0.0, %v2234
    %2236 = vdwg.mxu0
    %v2269 = vunpack.c.l.b16 %v1861
    %v2270 = vunpack.c.h.b16 %v1861
    %v2271 = vunpack.c.l.b16 %v1862
    %v2272 = vunpack.c.h.b16 %v1862
    %v2273 = vunpack.c.l.b16 %v1863
    %v2274 = vunpack.c.h.b16 %v1863
    %v2275 = vunpack.c.l.b16 %v1864
    %v2276 = vunpack.c.h.b16 %v1864
    %v2277 = vunpack.c.l.b16 %v1865
    %v2278 = vunpack.c.h.b16 %v1865
    %v2279 = vunpack.c.l.b16 %v1866
    %v2280 = vunpack.c.h.b16 %v1866
    %v2281 = vunpack.c.l.b16 %v1867
    %v2282 = vunpack.c.h.b16 %v1867
    %v2283 = vunpack.c.l.b16 %v1868
    %v2284 = vunpack.c.h.b16 %v1868
    %v2285 = vunpack.c.l.b16 %v1869
    %v2286 = vunpack.c.h.b16 %v1869
    %v2287 = vunpack.c.l.b16 %v1870
    %v2288 = vunpack.c.h.b16 %v1870
    %v2289 = vunpack.c.l.b16 %v1871
    %v2290 = vunpack.c.h.b16 %v1871
    %v2291 = vunpack.c.l.b16 %v1872
    %v2292 = vunpack.c.h.b16 %v1872
    %v2293 = vunpack.c.l.b16 %v1873
    %v2294 = vunpack.c.h.b16 %v1873
    %v2295 = vunpack.c.l.b16 %v1874
    %v2296 = vunpack.c.h.b16 %v1874
    %v2297 = vunpack.c.l.b16 %v1875
    %v2298 = vunpack.c.h.b16 %v1875
    %v2299 = vunpack.c.l.b16 %v1876
    %v2300 = vunpack.c.h.b16 %v1876
    %v2301 = vunpack.c.l.b16 %v1877
    %v2302 = vunpack.c.h.b16 %v1877
    %v2303 = vunpack.c.l.b16 %v1878
    %v2304 = vunpack.c.h.b16 %v1878
    %v2305 = vunpack.c.l.b16 %v1879
    %v2306 = vunpack.c.h.b16 %v1879
    %v2307 = vunpack.c.l.b16 %v1880
    %v2308 = vunpack.c.h.b16 %v1880
    %v2309 = vunpack.c.l.b16 %v1881
    %v2310 = vunpack.c.h.b16 %v1881
    %v2311 = vunpack.c.l.b16 %v1882
    %v2312 = vunpack.c.h.b16 %v1882
    %v2313 = vunpack.c.l.b16 %v1883
    %v2314 = vunpack.c.h.b16 %v1883
    %v2315 = vunpack.c.l.b16 %v1884
    %v2316 = vunpack.c.h.b16 %v1884
    %v2317 = vunpack.c.l.b16 %v1885
    %v2318 = vunpack.c.h.b16 %v1885
    %v2319 = vunpack.c.l.b16 %v1886
    %v2320 = vunpack.c.h.b16 %v1886
    %v2321 = vunpack.c.l.b16 %v1887
    %v2322 = vunpack.c.h.b16 %v1887
    %v2323 = vunpack.c.l.b16 %v1888
    %v2324 = vunpack.c.h.b16 %v1888
    %v2325 = vunpack.c.l.b16 %v1889
    %v2326 = vunpack.c.h.b16 %v1889
    %v2327 = vunpack.c.l.b16 %v1890
    %v2328 = vunpack.c.h.b16 %v1890
    %v2329 = vunpack.c.l.b16 %v1891
    %v2330 = vunpack.c.h.b16 %v1891
    %v2331 = vunpack.c.l.b16 %v1892
    %v2332 = vunpack.c.h.b16 %v1892
    %v2333 = vpack.c.b16 %v2271, %v2269
    %v2334 = vpack.c.b16 %v2272, %v2270
    %v2335 = vpack.c.b16 %v2275, %v2273
    %v2336 = vpack.c.b16 %v2276, %v2274
    %v2337 = vpack.c.b16 %v2279, %v2277
    %v2338 = vpack.c.b16 %v2280, %v2278
    %v2339 = vpack.c.b16 %v2283, %v2281
    %v2340 = vpack.c.b16 %v2284, %v2282
    %v2341 = vpack.c.b16 %v2287, %v2285
    %v2342 = vpack.c.b16 %v2288, %v2286
    %v2343 = vpack.c.b16 %v2291, %v2289
    %v2344 = vpack.c.b16 %v2292, %v2290
    %v2345 = vpack.c.b16 %v2295, %v2293
    %v2346 = vpack.c.b16 %v2296, %v2294
    %v2347 = vpack.c.b16 %v2299, %v2297
    %v2348 = vpack.c.b16 %v2300, %v2298
    %v2349 = vpack.c.b16 %v2303, %v2301
    %v2350 = vpack.c.b16 %v2304, %v2302
    %v2351 = vpack.c.b16 %v2307, %v2305
    %v2352 = vpack.c.b16 %v2308, %v2306
    %v2353 = vpack.c.b16 %v2311, %v2309
    %v2354 = vpack.c.b16 %v2312, %v2310
    %v2355 = vpack.c.b16 %v2315, %v2313
    %v2356 = vpack.c.b16 %v2316, %v2314
    %v2357 = vpack.c.b16 %v2319, %v2317
    %v2358 = vpack.c.b16 %v2320, %v2318
    %v2359 = vpack.c.b16 %v2323, %v2321
    %v2360 = vpack.c.b16 %v2324, %v2322
    %v2361 = vpack.c.b16 %v2327, %v2325
    %v2362 = vpack.c.b16 %v2328, %v2326
    %v2363 = vpack.c.b16 %v2331, %v2329
    %v2364 = vpack.c.b16 %v2332, %v2330
    %2397 = vmatprep.subr.bf16.mxu0 %v2348
    %2398 = vmatpush1.bf16.msra.mxu0 %v2347
    %2399 = vmatprep.subr.bf16.mxu0 %v2346
    %2400 = vmatpush1.bf16.msra.mxu0 %v2345
    %2401 = vmatprep.subr.bf16.mxu0 %v2344
    %2402 = vmatpush1.bf16.msra.mxu0 %v2343
    %2403 = vmatprep.subr.bf16.mxu0 %v2342
    %2404 = vmatpush1.bf16.msra.mxu0 %v2341
    %2405 = vmatprep.subr.bf16.mxu0 %v2340
    %2406 = vmatpush1.bf16.msra.mxu0 %v2339
    %2407 = vmatprep.subr.bf16.mxu0 %v2338
    %2408 = vmatpush1.bf16.msra.mxu0 %v2337
    %2409 = vmatprep.subr.bf16.mxu0 %v2336
    %2410 = vmatpush1.bf16.msra.mxu0 %v2335
    %2411 = vmatprep.subr.bf16.mxu0 %v2334
    %2412 = vmatpush1.bf16.msra.mxu0 %v2333
    %2413 = vmatprep.subr.bf16.mxu0 %v2364
    %2414 = vmatpush2.bf16.msra.mxu0 %v2363
    %2415 = vmatprep.subr.bf16.mxu0 %v2362
    %2416 = vmatpush2.bf16.msra.mxu0 %v2361
    %2417 = vmatprep.subr.bf16.mxu0 %v2360
    %2418 = vmatpush2.bf16.msra.mxu0 %v2359
    %2419 = vmatprep.subr.bf16.mxu0 %v2358
    %2420 = vmatpush2.bf16.msra.mxu0 %v2357
    %2421 = vmatprep.subr.bf16.mxu0 %v2356
    %2422 = vmatpush2.bf16.msra.mxu0 %v2355
    %2423 = vmatprep.subr.bf16.mxu0 %v2354
    %2424 = vmatpush2.bf16.msra.mxu0 %v2353
    %2425 = vmatprep.subr.bf16.mxu0 %v2352
    %2426 = vmatpush2.bf16.msra.mxu0 %v2351
    %2427 = vmatprep.subr.bf16.mxu0 %v2350
    %2428 = vmatpush2.bf16.msra.mxu0 %v2349
    %2429 = vmatprep.mubr.bf16.mxu0 %v1854
    %2430 = vmatmul.mubr.bf16.gmra.mxu0 %v1853
    %v2431 = vpop.f32.mrf.mxu0
    %v2432 = vadd.f32 %v2199, %v2431
    %v2433 = vpop.f32.mrf.mxu0
    %v2434 = vadd.f32 %v2201, %v2433
    %v2435 = vpop.f32.mrf.mxu0
    %v2436 = vadd.f32 %v2203, %v2435
    %v2437 = vpop.f32.mrf.mxu0
    %v2438 = vadd.f32 %v2205, %v2437
    %2439 = vmatprep.mubr.bf16.mxu0 %v1856
    %2440 = vmatmul.mubr.bf16.gmra.mxu0 %v1855
    %v2441 = vpop.f32.mrf.mxu0
    %v2442 = vadd.f32 %v2209, %v2441
    %v2443 = vpop.f32.mrf.mxu0
    %v2444 = vadd.f32 %v2211, %v2443
    %v2445 = vpop.f32.mrf.mxu0
    %v2446 = vadd.f32 %v2213, %v2445
    %v2447 = vpop.f32.mrf.mxu0
    %v2448 = vadd.f32 %v2215, %v2447
    %2449 = vmatprep.mubr.bf16.mxu0 %v1858
    %2450 = vmatmul.mubr.bf16.gmra.mxu0 %v1857
    %v2451 = vpop.f32.mrf.mxu0
    %v2452 = vadd.f32 %v2219, %v2451
    %v2453 = vpop.f32.mrf.mxu0
    %v2454 = vadd.f32 %v2221, %v2453
    %v2455 = vpop.f32.mrf.mxu0
    %v2456 = vadd.f32 %v2223, %v2455
    %v2457 = vpop.f32.mrf.mxu0
    %v2458 = vadd.f32 %v2225, %v2457
    %2459 = vmatprep.mubr.bf16.mxu0 %v1860
    %2460 = vmatmul.mubr.bf16.gmra.mxu0 %v1859
    %v2461 = vpop.f32.mrf.mxu0
    %v2462 = vadd.f32 %v2229, %v2461
    %v2463 = vpop.f32.mrf.mxu0
    %v2464 = vadd.f32 %v2231, %v2463
    %v2465 = vpop.f32.mrf.mxu0
    %v2466 = vadd.f32 %v2233, %v2465
    %v2467 = vpop.f32.mrf.mxu0
    %v2468 = vadd.f32 %v2235, %v2467
    %2469 = vdwg.mxu0
    %v2470 = vld [vmem:[#allocation4] sm:$0xfc]
    %v2471 = vld [vmem:[#allocation4 + $0x8] sm:$0xfc]
    %v2472 = vld [vmem:[#allocation4 + $0x70] sm:$0xff]
    %v2473 = vld [vmem:[#allocation4 + $0x78] sm:$0xff]
    %v2474 = vpack.c.bf16 %v1839, %v2470
    %v2475 = vpack.c.bf16 %v1840, %v2471
    %v2476 = vpack.c.bf16 %v2472, %v1849
    %v2477 = vpack.c.bf16 %v2473, %v1850
    %s2478 = scalar_lea.vmem %s4, 512
    %v2479 = vld [vmem:[%s2478] sm:$0xff]
    %v2480 = vld [vmem:[%s2478 + $0x8] sm:$0xff]
    %v2481 = vld [vmem:[%s2478 + $0x10] sm:$0xff]
    %v2482 = vld [vmem:[%s2478 + $0x18] sm:$0xff]
    %v2483 = vld [vmem:[%s2478 + $0x20] sm:$0xff]
    %v2484 = vld [vmem:[%s2478 + $0x28] sm:$0xff]
    %v2485 = vld [vmem:[%s2478 + $0x30] sm:$0xff]
    %v2486 = vld [vmem:[%s2478 + $0x38] sm:$0xff]
    %v2487 = vld [vmem:[%s2478 + $0x40] sm:$0xff]
    %v2488 = vld [vmem:[%s2478 + $0x48] sm:$0xff]
    %v2489 = vld [vmem:[%s2478 + $0x50] sm:$0xff]
    %v2490 = vld [vmem:[%s2478 + $0x58] sm:$0xff]
    %v2491 = vld [vmem:[%s2478 + $0x60] sm:$0xff]
    %v2492 = vld [vmem:[%s2478 + $0x68] sm:$0xff]
    %v2493 = vld [vmem:[%s2478 + $0x70] sm:$0xff]
    %v2494 = vld [vmem:[%s2478 + $0x78] sm:$0xff]
    %v2495 = vld [vmem:[%s2478 + $0x80] sm:$0xff]
    %v2496 = vld [vmem:[%s2478 + $0x88] sm:$0xff]
    %v2497 = vld [vmem:[%s2478 + $0x90] sm:$0xff]
    %v2498 = vld [vmem:[%s2478 + $0x98] sm:$0xff]
    %v2499 = vld [vmem:[%s2478 + $0xa0] sm:$0xff]
    %v2500 = vld [vmem:[%s2478 + $0xa8] sm:$0xff]
    %v2501 = vld [vmem:[%s2478 + $0xb0] sm:$0xff]
    %v2502 = vld [vmem:[%s2478 + $0xb8] sm:$0xff]
    %v2503 = vld [vmem:[%s2478 + $0xc0] sm:$0xff]
    %v2504 = vld [vmem:[%s2478 + $0xc8] sm:$0xff]
    %v2505 = vld [vmem:[%s2478 + $0xd0] sm:$0xff]
    %v2506 = vld [vmem:[%s2478 + $0xd8] sm:$0xff]
    %v2507 = vld [vmem:[%s2478 + $0xe0] sm:$0xff]
    %v2508 = vld [vmem:[%s2478 + $0xe8] sm:$0xff]
    %v2509 = vld [vmem:[%s2478 + $0xf0] sm:$0xff]
    %v2510 = vld [vmem:[%s2478 + $0xf8] sm:$0xff]
    %v2519 = vrot.slane %v2474, 1
    %v2520 = vrot.slane %v1855, 1
    %v2521 = vsel %vm389, %v2519, %v2520
    %v2522 = vrot.slane %v2475, 1
    %v2523 = vrot.slane %v1856, 1
    %v2524 = vsel %vm389, %v2522, %v2523
    %v2525 = vrot.slane %v1857, 1
    %v2526 = vsel %vm389, %v2520, %v2525
    %v2527 = vrot.slane %v1858, 1
    %v2528 = vsel %vm389, %v2523, %v2527
    %v2529 = vrot.slane %v2476, 1
    %v2530 = vsel %vm389, %v2525, %v2529
    %v2531 = vrot.slane %v2477, 1
    %v2532 = vsel %vm389, %v2527, %v2531
    %v2573 = vunpack.c.l.b16 %v2479
    %v2574 = vunpack.c.h.b16 %v2479
    %v2575 = vunpack.c.l.b16 %v2480
    %v2576 = vunpack.c.h.b16 %v2480
    %v2577 = vunpack.c.l.b16 %v2481
    %v2578 = vunpack.c.h.b16 %v2481
    %v2579 = vunpack.c.l.b16 %v2482
    %v2580 = vunpack.c.h.b16 %v2482
    %v2581 = vunpack.c.l.b16 %v2483
    %v2582 = vunpack.c.h.b16 %v2483
    %v2583 = vunpack.c.l.b16 %v2484
    %v2584 = vunpack.c.h.b16 %v2484
    %v2585 = vunpack.c.l.b16 %v2485
    %v2586 = vunpack.c.h.b16 %v2485
    %v2587 = vunpack.c.l.b16 %v2486
    %v2588 = vunpack.c.h.b16 %v2486
    %v2589 = vunpack.c.l.b16 %v2487
    %v2590 = vunpack.c.h.b16 %v2487
    %v2591 = vunpack.c.l.b16 %v2488
    %v2592 = vunpack.c.h.b16 %v2488
    %v2593 = vunpack.c.l.b16 %v2489
    %v2594 = vunpack.c.h.b16 %v2489
    %v2595 = vunpack.c.l.b16 %v2490
    %v2596 = vunpack.c.h.b16 %v2490
    %v2597 = vunpack.c.l.b16 %v2491
    %v2598 = vunpack.c.h.b16 %v2491
    %v2599 = vunpack.c.l.b16 %v2492
    %v2600 = vunpack.c.h.b16 %v2492
    %v2601 = vunpack.c.l.b16 %v2493
    %v2602 = vunpack.c.h.b16 %v2493
    %v2603 = vunpack.c.l.b16 %v2494
    %v2604 = vunpack.c.h.b16 %v2494
    %v2605 = vunpack.c.l.b16 %v2495
    %v2606 = vunpack.c.h.b16 %v2495
    %v2607 = vunpack.c.l.b16 %v2496
    %v2608 = vunpack.c.h.b16 %v2496
    %v2609 = vunpack.c.l.b16 %v2497
    %v2610 = vunpack.c.h.b16 %v2497
    %v2611 = vunpack.c.l.b16 %v2498
    %v2612 = vunpack.c.h.b16 %v2498
    %v2613 = vunpack.c.l.b16 %v2499
    %v2614 = vunpack.c.h.b16 %v2499
    %v2615 = vunpack.c.l.b16 %v2500
    %v2616 = vunpack.c.h.b16 %v2500
    %v2617 = vunpack.c.l.b16 %v2501
    %v2618 = vunpack.c.h.b16 %v2501
    %v2619 = vunpack.c.l.b16 %v2502
    %v2620 = vunpack.c.h.b16 %v2502
    %v2621 = vunpack.c.l.b16 %v2503
    %v2622 = vunpack.c.h.b16 %v2503
    %v2623 = vunpack.c.l.b16 %v2504
    %v2624 = vunpack.c.h.b16 %v2504
    %v2625 = vunpack.c.l.b16 %v2505
    %v2626 = vunpack.c.h.b16 %v2505
    %v2627 = vunpack.c.l.b16 %v2506
    %v2628 = vunpack.c.h.b16 %v2506
    %v2629 = vunpack.c.l.b16 %v2507
    %v2630 = vunpack.c.h.b16 %v2507
    %v2631 = vunpack.c.l.b16 %v2508
    %v2632 = vunpack.c.h.b16 %v2508
    %v2633 = vunpack.c.l.b16 %v2509
    %v2634 = vunpack.c.h.b16 %v2509
    %v2635 = vunpack.c.l.b16 %v2510
    %v2636 = vunpack.c.h.b16 %v2510
    %v2637 = vpack.c.b16 %v2575, %v2573
    %v2638 = vpack.c.b16 %v2576, %v2574
    %v2639 = vpack.c.b16 %v2579, %v2577
    %v2640 = vpack.c.b16 %v2580, %v2578
    %v2641 = vpack.c.b16 %v2583, %v2581
    %v2642 = vpack.c.b16 %v2584, %v2582
    %v2643 = vpack.c.b16 %v2587, %v2585
    %v2644 = vpack.c.b16 %v2588, %v2586
    %v2645 = vpack.c.b16 %v2591, %v2589
    %v2646 = vpack.c.b16 %v2592, %v2590
    %v2647 = vpack.c.b16 %v2595, %v2593
    %v2648 = vpack.c.b16 %v2596, %v2594
    %v2649 = vpack.c.b16 %v2599, %v2597
    %v2650 = vpack.c.b16 %v2600, %v2598
    %v2651 = vpack.c.b16 %v2603, %v2601
    %v2652 = vpack.c.b16 %v2604, %v2602
    %v2653 = vpack.c.b16 %v2607, %v2605
    %v2654 = vpack.c.b16 %v2608, %v2606
    %v2655 = vpack.c.b16 %v2611, %v2609
    %v2656 = vpack.c.b16 %v2612, %v2610
    %v2657 = vpack.c.b16 %v2615, %v2613
    %v2658 = vpack.c.b16 %v2616, %v2614
    %v2659 = vpack.c.b16 %v2619, %v2617
    %v2660 = vpack.c.b16 %v2620, %v2618
    %v2661 = vpack.c.b16 %v2623, %v2621
    %v2662 = vpack.c.b16 %v2624, %v2622
    %v2663 = vpack.c.b16 %v2627, %v2625
    %v2664 = vpack.c.b16 %v2628, %v2626
    %v2665 = vpack.c.b16 %v2631, %v2629
    %v2666 = vpack.c.b16 %v2632, %v2630
    %v2667 = vpack.c.b16 %v2635, %v2633
    %v2668 = vpack.c.b16 %v2636, %v2634
    %2701 = vmatprep.subr.bf16.mxu0 %v2652
    %2702 = vmatpush1.bf16.msra.mxu0 %v2651
    %2703 = vmatprep.subr.bf16.mxu0 %v2650
    %2704 = vmatpush1.bf16.msra.mxu0 %v2649
    %2705 = vmatprep.subr.bf16.mxu0 %v2648
    %2706 = vmatpush1.bf16.msra.mxu0 %v2647
    %2707 = vmatprep.subr.bf16.mxu0 %v2646
    %2708 = vmatpush1.bf16.msra.mxu0 %v2645
    %2709 = vmatprep.subr.bf16.mxu0 %v2644
    %2710 = vmatpush1.bf16.msra.mxu0 %v2643
    %2711 = vmatprep.subr.bf16.mxu0 %v2642
    %2712 = vmatpush1.bf16.msra.mxu0 %v2641
    %2713 = vmatprep.subr.bf16.mxu0 %v2640
    %2714 = vmatpush1.bf16.msra.mxu0 %v2639
    %2715 = vmatprep.subr.bf16.mxu0 %v2638
    %2716 = vmatpush1.bf16.msra.mxu0 %v2637
    %2717 = vmatprep.subr.bf16.mxu0 %v2668
    %2718 = vmatpush2.bf16.msra.mxu0 %v2667
    %2719 = vmatprep.subr.bf16.mxu0 %v2666
    %2720 = vmatpush2.bf16.msra.mxu0 %v2665
    %2721 = vmatprep.subr.bf16.mxu0 %v2664
    %2722 = vmatpush2.bf16.msra.mxu0 %v2663
    %2723 = vmatprep.subr.bf16.mxu0 %v2662
    %2724 = vmatpush2.bf16.msra.mxu0 %v2661
    %2725 = vmatprep.subr.bf16.mxu0 %v2660
    %2726 = vmatpush2.bf16.msra.mxu0 %v2659
    %2727 = vmatprep.subr.bf16.mxu0 %v2658
    %2728 = vmatpush2.bf16.msra.mxu0 %v2657
    %2729 = vmatprep.subr.bf16.mxu0 %v2656
    %2730 = vmatpush2.bf16.msra.mxu0 %v2655
    %2731 = vmatprep.subr.bf16.mxu0 %v2654
    %2732 = vmatpush2.bf16.msra.mxu0 %v2653
    %2733 = vmatprep.mubr.bf16.mxu0 %v2524
    %2734 = vmatmul.mubr.bf16.gmra.mxu0 %v2521
    %v2735 = vpop.f32.mrf.mxu0
    %v2736 = vadd.f32 0.0, %v2735
    %v2737 = vpop.f32.mrf.mxu0
    %v2738 = vadd.f32 0.0, %v2737
    %v2739 = vpop.f32.mrf.mxu0
    %v2740 = vadd.f32 0.0, %v2739
    %v2741 = vpop.f32.mrf.mxu0
    %v2742 = vadd.f32 0.0, %v2741
    %2743 = vmatprep.mubr.bf16.mxu0 %v2528
    %2744 = vmatmul.mubr.bf16.gmra.mxu0 %v2526
    %v2745 = vpop.f32.mrf.mxu0
    %v2746 = vadd.f32 0.0, %v2745
    %v2747 = vpop.f32.mrf.mxu0
    %v2748 = vadd.f32 0.0, %v2747
    %v2749 = vpop.f32.mrf.mxu0
    %v2750 = vadd.f32 0.0, %v2749
    %v2751 = vpop.f32.mrf.mxu0
    %v2752 = vadd.f32 0.0, %v2751
    %2753 = vmatprep.mubr.bf16.mxu0 %v2532
    %2754 = vmatmul.mubr.bf16.gmra.mxu0 %v2530
    %v2755 = vpop.f32.mrf.mxu0
    %v2756 = vadd.f32 0.0, %v2755
    %v2757 = vpop.f32.mrf.mxu0
    %v2758 = vadd.f32 0.0, %v2757
    %v2759 = vpop.f32.mrf.mxu0
    %v2760 = vadd.f32 0.0, %v2759
    %v2761 = vpop.f32.mrf.mxu0
    %v2762 = vadd.f32 0.0, %v2761
    %2763 = vmatprep.mubr.bf16.mxu0 %v2531
    %2764 = vmatmul.mubr.bf16.gmra.mxu0 %v2529
    %v2765 = vpop.f32.mrf.mxu0
    %v2766 = vadd.f32 0.0, %v2765
    %v2767 = vpop.f32.mrf.mxu0
    %v2768 = vadd.f32 0.0, %v2767
    %v2769 = vpop.f32.mrf.mxu0
    %v2770 = vadd.f32 0.0, %v2769
    %v2771 = vpop.f32.mrf.mxu0
    %v2772 = vadd.f32 0.0, %v2771
    %2773 = vdwg.mxu0
    %v2774 = vadd.f32 %v2432, %v2736
    %v2775 = vadd.f32 %v2434, %v2738
    %v2776 = vadd.f32 %v2436, %v2740
    %v2777 = vadd.f32 %v2438, %v2742
    %v2778 = vadd.f32 %v2442, %v2746
    %v2779 = vadd.f32 %v2444, %v2748
    %v2780 = vadd.f32 %v2446, %v2750
    %v2781 = vadd.f32 %v2448, %v2752
    %v2782 = vadd.f32 %v2452, %v2756
    %v2783 = vadd.f32 %v2454, %v2758
    %v2784 = vadd.f32 %v2456, %v2760
    %v2785 = vadd.f32 %v2458, %v2762
    %v2786 = vadd.f32 %v2462, %v2766
    %v2787 = vadd.f32 %v2464, %v2768
    %v2788 = vadd.f32 %v2466, %v2770
    %v2789 = vadd.f32 %v2468, %v2772
    %v2790 = vld [vmem:[%s5] sm:$0x3]
    %v2792 = vlaneseq
    %v2793 = vshrl.u32 %v2792, 7
    %v2794 = vsub.s32 0, %v2793
    %v2795 = vrot.slane %v2790, %v2794
    %v2796 = vlaneseq
    %v2797 = vshrl.u32 %v2796, 7
    %v2798 = vsub.s32 1, %v2797
    %v2799 = vrot.slane %v2790, %v2798
    %v2802 = vadd.f32 %v2774, %v2795
    %v2803 = vadd.f32 %v2775, %v2799
    %v2804 = vadd.f32 %v2776, %v2795
    %v2805 = vadd.f32 %v2777, %v2799
    %v2806 = vadd.f32 %v2778, %v2795
    %v2807 = vadd.f32 %v2779, %v2799
    %v2808 = vadd.f32 %v2780, %v2795
    %v2809 = vadd.f32 %v2781, %v2799
    %v2810 = vadd.f32 %v2782, %v2795
    %v2811 = vadd.f32 %v2783, %v2799
    %v2812 = vadd.f32 %v2784, %v2795
    %v2813 = vadd.f32 %v2785, %v2799
    %v2814 = vadd.f32 %v2786, %v2795
    %v2815 = vadd.f32 %v2787, %v2799
    %v2816 = vadd.f32 %v2788, %v2795
    %v2817 = vadd.f32 %v2789, %v2799
    %vm2834 = vcmask 1046528
    %v2835 = vrot.slane %v797, 1
    %v2836 = vrot.slane %v743, 1
    %v2837 = vsel %vm2834, %v2835, %v2836
    %v2838 = vrot.slane %v798, 1
    %v2839 = vrot.slane %v744, 1
    %v2840 = vsel %vm2834, %v2838, %v2839
    %v2841 = vrot.slane %v745, 1
    %v2842 = vsel %vm2834, %v2836, %v2841
    %v2843 = vrot.slane %v746, 1
    %v2844 = vsel %vm2834, %v2839, %v2843
    %v2845 = vrot.slane %v747, 1
    %v2846 = vsel %vm2834, %v2841, %v2845
    %v2847 = vrot.slane %v748, 1
    %v2848 = vsel %vm2834, %v2843, %v2847
    %v2849 = vrot.slane %v749, 1
    %v2850 = vsel %vm2834, %v2845, %v2849
    %v2851 = vrot.slane %v750, 1
    %v2852 = vsel %vm2834, %v2847, %v2851
    %v2853 = vrot.slane %v751, 1
    %v2854 = vsel %vm2834, %v2849, %v2853
    %v2855 = vrot.slane %v752, 1
    %v2856 = vsel %vm2834, %v2851, %v2855
    %v2857 = vrot.slane %v753, 1
    %v2858 = vsel %vm2834, %v2853, %v2857
    %v2859 = vrot.slane %v754, 1
    %v2860 = vsel %vm2834, %v2855, %v2859
    %v2861 = vrot.slane %v799, 1
    %v2862 = vsel %vm2834, %v2857, %v2861
    %v2863 = vrot.slane %v800, 1
    %v2864 = vsel %vm2834, %v2859, %v2863
    %v2881 = vadd.f32 %v2802, %v2837
    %v2882 = vadd.f32 %v2803, %v2840
    %v2883 = vadd.f32 %v2804, %v2842
    %v2884 = vadd.f32 %v2805, %v2844
    %v2885 = vadd.f32 %v2806, %v2846
    %v2886 = vadd.f32 %v2807, %v2848
    %v2887 = vadd.f32 %v2808, %v2850
    %v2888 = vadd.f32 %v2809, %v2852
    %v2889 = vadd.f32 %v2810, %v2854
    %v2890 = vadd.f32 %v2811, %v2856
    %v2891 = vadd.f32 %v2812, %v2858
    %v2892 = vadd.f32 %v2813, %v2860
    %v2893 = vadd.f32 %v2814, %v2862
    %v2894 = vadd.f32 %v2815, %v2864
    %v2895 = vadd.f32 %v2816, %v2861
    %v2896 = vadd.f32 %v2817, %v2863
    %v2897 = vmax.f32 %v2881, 0.0
    %v2898 = vmax.f32 %v2882, 0.0
    %v2899 = vmax.f32 %v2883, 0.0
    %v2900 = vmax.f32 %v2884, 0.0
    %v2901 = vmax.f32 %v2885, 0.0
    %v2902 = vmax.f32 %v2886, 0.0
    %v2903 = vmax.f32 %v2887, 0.0
    %v2904 = vmax.f32 %v2888, 0.0
    %v2905 = vmax.f32 %v2889, 0.0
    %v2906 = vmax.f32 %v2890, 0.0
    %v2907 = vmax.f32 %v2891, 0.0
    %v2908 = vmax.f32 %v2892, 0.0
    %v2909 = vmax.f32 %v2893, 0.0
    %v2910 = vmax.f32 %v2894, 0.0
    %v2911 = vmax.f32 %v2895, 0.0
    %v2912 = vmax.f32 %v2896, 0.0
    %v2913 = vsel %vm629, %v2897, 0.0
    %v2914 = vsel %vm629, %v2898, 0.0
    %v2915 = vsel %vm630, %v2899, 0.0
    %v2916 = vsel %vm630, %v2900, 0.0
    %v2917 = vsel %vm631, %v2901, 0.0
    %v2918 = vsel %vm631, %v2902, 0.0
    %v2919 = vsel %vm632, %v2903, 0.0
    %v2920 = vsel %vm632, %v2904, 0.0
    %v2921 = vsel %vm633, %v2905, 0.0
    %v2922 = vsel %vm633, %v2906, 0.0
    %v2923 = vsel %vm634, %v2907, 0.0
    %v2924 = vsel %vm634, %v2908, 0.0
    %v2925 = vsel %vm635, %v2909, 0.0
    %v2926 = vsel %vm635, %v2910, 0.0
    %v2927 = vsel %vm636, %v2911, 0.0
    %v2928 = vsel %vm636, %v2912, 0.0
    %2929 = vst.msk [vmem:[#allocation3] ss:$8 sm:$0x3] %vm656, 0.0
    %2930 = vst.msk [vmem:[#allocation3] ss:$8 sm:$0x0] %vm656, 0.0
    %v2947 = vrot.slane %v2913, 7
    %v2948 = vrot.slane %v2914, 7
    %v2949 = vrot.slane %v2915, 7
    %v2950 = vsel %vm675, %v2947, %v2949
    %v2951 = vrot.slane %v2916, 7
    %v2952 = vsel %vm675, %v2948, %v2951
    %v2953 = vrot.slane %v2917, 7
    %v2954 = vsel %vm675, %v2949, %v2953
    %v2955 = vrot.slane %v2918, 7
    %v2956 = vsel %vm675, %v2951, %v2955
    %v2957 = vrot.slane %v2919, 7
    %v2958 = vsel %vm675, %v2953, %v2957
    %v2959 = vrot.slane %v2920, 7
    %v2960 = vsel %vm675, %v2955, %v2959
    %v2961 = vrot.slane %v2921, 7
    %v2962 = vsel %vm675, %v2957, %v2961
    %v2963 = vrot.slane %v2922, 7
    %v2964 = vsel %vm675, %v2959, %v2963
    %v2965 = vrot.slane %v2923, 7
    %v2966 = vsel %vm675, %v2961, %v2965
    %v2967 = vrot.slane %v2924, 7
    %v2968 = vsel %vm675, %v2963, %v2967
    %v2969 = vrot.slane %v2925, 7
    %v2970 = vsel %vm675, %v2965, %v2969
    %v2971 = vrot.slane %v2926, 7
    %v2972 = vsel %vm675, %v2967, %v2971
    %v2973 = vrot.slane %v2927, 7
    %v2974 = vsel %vm675, %v2969, %v2973
    %v2975 = vrot.slane %v2928, 7
    %v2976 = vsel %vm675, %v2971, %v2975
    %2993 = vst [vmem:[#allocation3] sm:$0xfe] %v2947
    %2994 = vst [vmem:[#allocation3 + $0x8] sm:$0xfe] %v2948
    %2995 = vst [vmem:[#allocation3 + $0x10] sm:$0xff] %v2950
    %2996 = vst [vmem:[#allocation3 + $0x18] sm:$0xff] %v2952
    %2997 = vst [vmem:[#allocation3 + $0x20] sm:$0xff] %v2954
    %2998 = vst [vmem:[#allocation3 + $0x28] sm:$0xff] %v2956
    %2999 = vst [vmem:[#allocation3 + $0x30] sm:$0xff] %v2958
    %3000 = vst [vmem:[#allocation3 + $0x38] sm:$0xff] %v2960
    %3001 = vst [vmem:[#allocation3 + $0x40] sm:$0xff] %v2962
    %3002 = vst [vmem:[#allocation3 + $0x48] sm:$0xff] %v2964
    %3003 = vst [vmem:[#allocation3 + $0x50] sm:$0xff] %v2966
    %3004 = vst [vmem:[#allocation3 + $0x58] sm:$0xff] %v2968
    %3005 = vst [vmem:[#allocation3 + $0x60] sm:$0xff] %v2970
    %3006 = vst [vmem:[#allocation3 + $0x68] sm:$0xff] %v2972
    %3007 = vst [vmem:[#allocation3 + $0x70] sm:$0x7f] %v2974
    %3008 = vst [vmem:[#allocation3 + $0x78] sm:$0x7f] %v2976
    %s3009 = scalar_lea.vmem [#allocation3], 119
    %3010 = vst.msk [vmem:[%s3009] ss:$8 sm:$0x3] %vm656, 0.0
    %3011 = vst.msk [vmem:[%s3009] ss:$8 sm:$0x0] %vm656, 0.0
    %v3012 = vand.u32 %v581, 15
    %v3013 = vand.u32 %v582, 15
    %v3014 = vand.u32 %v583, 15
    %v3015 = vand.u32 %v584, 15
    %vm3016 = vcmp.ge.s32.totalorder %v3012, 1
    %vm3017 = vcmp.ge.s32.totalorder %v3013, 1
    %vm3018 = vcmp.ge.s32.totalorder %v3014, 1
    %vm3019 = vcmp.ge.s32.totalorder %v3015, 1
    %vm3020 = vcmp.le.s32.totalorder %v3012, 8
    %vm3021 = vcmp.le.s32.totalorder %v3013, 8
    %vm3022 = vcmp.le.s32.totalorder %v3014, 8
    %vm3023 = vcmp.le.s32.totalorder %v3015, 8
    %vm3024 = vmand %vm3016, %vm3020
    %vm3025 = vmand %vm3017, %vm3021
    %vm3026 = vmand %vm3018, %vm3022
    %vm3027 = vmand %vm3019, %vm3023
    %v3028 = vld [vmem:[%s11] sm:$0xf]
    %v3029 = vld [vmem:[%s11 + $0x4] sm:$0xf]
    %v3030 = vld [vmem:[%s11 + $0x8] sm:$0xf]
    %v3031 = vld [vmem:[%s11 + $0xc] sm:$0x7]
    %v3032 = vld [vmem:[#allocation3] sm:$0xff]
    %v3033 = vld [vmem:[#allocation3 + $0x8] sm:$0xff]
    %v3034 = vld [vmem:[#allocation3 + $0x10] sm:$0xff]
    %v3035 = vld [vmem:[#allocation3 + $0x18] sm:$0xff]
    %v3036 = vld [vmem:[#allocation3 + $0x20] sm:$0xff]
    %v3037 = vld [vmem:[#allocation3 + $0x28] sm:$0xff]
    %v3038 = vld [vmem:[#allocation3 + $0x30] sm:$0xff]
    %v3039 = vld [vmem:[#allocation3 + $0x38] sm:$0xff]
    %v3040 = vld [vmem:[#allocation3 + $0x40] sm:$0xff]
    %v3041 = vld [vmem:[#allocation3 + $0x48] sm:$0xff]
    %v3042 = vld [vmem:[#allocation3 + $0x50] sm:$0xff]
    %v3043 = vld [vmem:[#allocation3 + $0x58] sm:$0xff]
    %v3044 = vld [vmem:[#allocation3 + $0x60] sm:$0xff]
    %v3045 = vld [vmem:[#allocation3 + $0x68] sm:$0xff]
    %v3046 = vld [vmem:[#allocation3 + $0x70] sm:$0x3f]
    %v3047 = vld [vmem:[#allocation3 + $0x78] sm:$0x3f]
    %v3048 = vpack.c.bf16 %v3034, %v3032
    %v3049 = vpack.c.bf16 %v3035, %v3033
    %v3050 = vpack.c.bf16 %v3038, %v3036
    %v3051 = vpack.c.bf16 %v3039, %v3037
    %v3052 = vpack.c.bf16 %v3042, %v3040
    %v3053 = vpack.c.bf16 %v3043, %v3041
    %v3054 = vpack.c.bf16 %v3046, %v3044
    %v3055 = vpack.c.bf16 %v3047, %v3045
    %v3060 = vunpack.c.l.b16 %v3028
    %v3061 = vunpack.c.l.b16 %v3029
    %v3062 = vunpack.c.l.b16 %v3030
    %v3063 = vunpack.c.l.b16 %v3031
    %v3064 = vpack.c.b16 %v3061, %v3060
    %v3065 = vpack.c.b16 %v3063, %v3062
    %vm3066 = vcmask 506880
    %v3068 = vsel %vm3066, %v3064, 0
    %v3071 = vsel %vm3066, %v3065, 0
    %v3074 = vsel %vm2834, %v3054, 0
    %v3077 = vsel %vm2834, %v3055, 0
    %3079 = vmatprep.subr.bf16.mxu0 0
    %3080 = vmatpush1.bf16.msra.mxu0 0
    %3081 = vmatprep.subr.bf16.mxu0 0
    %3082 = vmatpush1.bf16.msra.mxu0 0
    %3083 = vmatprep.subr.bf16.mxu0 0
    %3084 = vmatpush1.bf16.msra.mxu0 0
    %3085 = vmatprep.subr.bf16.mxu0 0
    %3086 = vmatpush1.bf16.msra.mxu0 0
    %3087 = vmatprep.subr.bf16.mxu0 %v3077
    %3088 = vmatpush1.bf16.msra.mxu0 %v3074
    %3089 = vmatprep.subr.bf16.mxu0 %v3053
    %3090 = vmatpush1.bf16.msra.mxu0 %v3052
    %3091 = vmatprep.subr.bf16.mxu0 %v3051
    %3092 = vmatpush1.bf16.msra.mxu0 %v3050
    %3093 = vmatprep.subr.bf16.mxu0 %v3049
    %3094 = vmatpush1.bf16.msra.mxu0 %v3048
    %3095 = vmatprep.subr.bf16.mxu0 0
    %3096 = vmatpush2.bf16.msra.mxu0 0
    %3097 = vmatprep.subr.bf16.mxu0 0
    %3098 = vmatpush2.bf16.msra.mxu0 0
    %3099 = vmatprep.subr.bf16.mxu0 0
    %3100 = vmatpush2.bf16.msra.mxu0 0
    %3101 = vmatprep.subr.bf16.mxu0 0
    %3102 = vmatpush2.bf16.msra.mxu0 0
    %3103 = vmatprep.subr.bf16.mxu0 0
    %3104 = vmatpush2.bf16.msra.mxu0 0
    %3105 = vmatprep.subr.bf16.mxu0 0
    %3106 = vmatpush2.bf16.msra.mxu0 0
    %3107 = vmatprep.subr.bf16.mxu0 0
    %3108 = vmatpush2.bf16.msra.mxu0 0
    %3109 = vmatprep.subr.bf16.mxu0 0
    %3110 = vmatpush2.bf16.msra.mxu0 0
    %3111 = vmatprep.mubr.bf16.mxu0 0
    %3112 = vmatmul.mubr.bf16.gmra.mxu0 %v3068
    %v3113 = vpop.f32.mrf.mxu0
    %v3114 = vadd.f32 0.0, %v3113
    %v3115 = vpop.f32.mrf.mxu0
    %v3116 = vadd.f32 0.0, %v3115
    %v3117 = vpop.f32.mrf.mxu0
    %v3118 = vadd.f32 0.0, %v3117
    %v3119 = vpop.f32.mrf.mxu0
    %v3120 = vadd.f32 0.0, %v3119
    %3121 = vmatprep.mubr.bf16.mxu0 0
    %3122 = vmatmul.mubr.bf16.gmra.mxu0 %v3071
    %v3123 = vpop.f32.mrf.mxu0
    %v3124 = vadd.f32 0.0, %v3123
    %v3125 = vpop.f32.mrf.mxu0
    %v3126 = vadd.f32 0.0, %v3125
    %v3127 = vpop.f32.mrf.mxu0
    %v3128 = vadd.f32 0.0, %v3127
    %v3129 = vpop.f32.mrf.mxu0
    %v3130 = vadd.f32 0.0, %v3129
    %3131 = vdwg.mxu0
    %v3132 = vpack.c.bf16 %v3118, %v3114
    %v3133 = vpack.c.bf16 %v3120, %v3116
    %v3134 = vpack.c.bf16 %v3128, %v3124
    %v3135 = vpack.c.bf16 %v3130, %v3126
    %v3136 = vld [vmem:[#allocation3] sm:$0xfe]
    %v3137 = vld [vmem:[#allocation3 + $0x8] sm:$0xfe]
    %v3138 = vld [vmem:[#allocation3 + $0x70] sm:$0x7f]
    %v3139 = vld [vmem:[#allocation3 + $0x78] sm:$0x7f]
    %v3140 = vpack.c.bf16 %v3034, %v3136
    %v3141 = vpack.c.bf16 %v3035, %v3137
    %v3142 = vpack.c.bf16 %v3138, %v3044
    %v3143 = vpack.c.bf16 %v3139, %v3045
    %v3145 = vshrl.u32 %v3140, 16
    %v3147 = vshll.u32 %v3140, 16
    %v3149 = vrot.slane %v3147, 1
    %v3150 = vor.u32 %v3145, %v3149
    %v3152 = vshll.u32 %v3050, 16
    %v3154 = vrot.slane %v3152, 1
    %v3155 = vsel %vm115, %v3150, %v3154
    %v3157 = vshrl.u32 %v3141, 16
    %v3159 = vshll.u32 %v3141, 16
    %v3161 = vrot.slane %v3159, 1
    %v3162 = vor.u32 %v3157, %v3161
    %v3164 = vshll.u32 %v3051, 16
    %v3166 = vrot.slane %v3164, 1
    %v3167 = vsel %vm115, %v3162, %v3166
    %v3168 = vshrl.u32 %v3050, 16
    %v3170 = vor.u32 %v3168, %v3154
    %v3172 = vshll.u32 %v3052, 16
    %v3174 = vrot.slane %v3172, 1
    %v3175 = vsel %vm115, %v3170, %v3174
    %v3176 = vshrl.u32 %v3051, 16
    %v3178 = vor.u32 %v3176, %v3166
    %v3180 = vshll.u32 %v3053, 16
    %v3182 = vrot.slane %v3180, 1
    %v3183 = vsel %vm115, %v3178, %v3182
    %v3184 = vshrl.u32 %v3052, 16
    %v3186 = vor.u32 %v3184, %v3174
    %v3188 = vshll.u32 %v3142, 16
    %v3190 = vrot.slane %v3188, 1
    %v3191 = vsel %vm115, %v3186, %v3190
    %v3192 = vshrl.u32 %v3053, 16
    %v3194 = vor.u32 %v3192, %v3182
    %v3196 = vshll.u32 %v3143, 16
    %v3198 = vrot.slane %v3196, 1
    %v3199 = vsel %vm115, %v3194, %v3198
    %v3200 = vshrl.u32 %v3142, 16
    %v3202 = vor.u32 %v3200, %v3190
    %v3203 = vshrl.u32 %v3143, 16
    %v3205 = vor.u32 %v3203, %v3198
    %v3213 = vsel %vm2834, %v3202, 0
    %v3216 = vsel %vm2834, %v3205, 0
    %3218 = vmatprep.subr.bf16.mxu0 0
    %3219 = vmatpush1.bf16.msra.mxu0 0
    %3220 = vmatprep.subr.bf16.mxu0 0
    %3221 = vmatpush1.bf16.msra.mxu0 0
    %3222 = vmatprep.subr.bf16.mxu0 0
    %3223 = vmatpush1.bf16.msra.mxu0 0
    %3224 = vmatprep.subr.bf16.mxu0 0
    %3225 = vmatpush1.bf16.msra.mxu0 0
    %3226 = vmatprep.subr.bf16.mxu0 %v3216
    %3227 = vmatpush1.bf16.msra.mxu0 %v3213
    %3228 = vmatprep.subr.bf16.mxu0 %v3199
    %3229 = vmatpush1.bf16.msra.mxu0 %v3191
    %3230 = vmatprep.subr.bf16.mxu0 %v3183
    %3231 = vmatpush1.bf16.msra.mxu0 %v3175
    %3232 = vmatprep.subr.bf16.mxu0 %v3167
    %3233 = vmatpush1.bf16.msra.mxu0 %v3155
    %3234 = vmatprep.subr.bf16.mxu0 0
    %3235 = vmatpush2.bf16.msra.mxu0 0
    %3236 = vmatprep.subr.bf16.mxu0 0
    %3237 = vmatpush2.bf16.msra.mxu0 0
    %3238 = vmatprep.subr.bf16.mxu0 0
    %3239 = vmatpush2.bf16.msra.mxu0 0
    %3240 = vmatprep.subr.bf16.mxu0 0
    %3241 = vmatpush2.bf16.msra.mxu0 0
    %3242 = vmatprep.subr.bf16.mxu0 0
    %3243 = vmatpush2.bf16.msra.mxu0 0
    %3244 = vmatprep.subr.bf16.mxu0 0
    %3245 = vmatpush2.bf16.msra.mxu0 0
    %3246 = vmatprep.subr.bf16.mxu0 0
    %3247 = vmatpush2.bf16.msra.mxu0 0
    %3248 = vmatprep.subr.bf16.mxu0 0
    %3249 = vmatpush2.bf16.msra.mxu0 0
    %3250 = vmatprep.mubr.bf16.mxu0 0
    %3251 = vmatmul.mubr.bf16.gmra.mxu0 %v3068
    %v3252 = vpop.f32.mrf.mxu0
    %v3253 = vadd.f32 0.0, %v3252
    %v3254 = vpop.f32.mrf.mxu0
    %v3255 = vadd.f32 0.0, %v3254
    %v3256 = vpop.f32.mrf.mxu0
    %v3257 = vadd.f32 0.0, %v3256
    %v3258 = vpop.f32.mrf.mxu0
    %v3259 = vadd.f32 0.0, %v3258
    %3260 = vmatprep.mubr.bf16.mxu0 0
    %3261 = vmatmul.mubr.bf16.gmra.mxu0 %v3071
    %v3262 = vpop.f32.mrf.mxu0
    %v3263 = vadd.f32 0.0, %v3262
    %v3264 = vpop.f32.mrf.mxu0
    %v3265 = vadd.f32 0.0, %v3264
    %v3266 = vpop.f32.mrf.mxu0
    %v3267 = vadd.f32 0.0, %v3266
    %v3268 = vpop.f32.mrf.mxu0
    %v3269 = vadd.f32 0.0, %v3268
    %3270 = vdwg.mxu0
    %v3271 = vpack.c.bf16 %v3257, %v3253
    %v3272 = vpack.c.bf16 %v3259, %v3255
    %v3273 = vpack.c.bf16 %v3267, %v3263
    %v3274 = vpack.c.bf16 %v3269, %v3265
    %v3275 = vld [vmem:[#allocation3] sm:$0xfc]
    %v3276 = vld [vmem:[#allocation3 + $0x8] sm:$0xfc]
    %v3277 = vld [vmem:[#allocation3 + $0x70] sm:$0xff]
    %v3278 = vld [vmem:[#allocation3 + $0x78] sm:$0xff]
    %v3279 = vpack.c.bf16 %v3034, %v3275
    %v3280 = vpack.c.bf16 %v3035, %v3276
    %v3281 = vpack.c.bf16 %v3277, %v3044
    %v3282 = vpack.c.bf16 %v3278, %v3045
    %v3291 = vrot.slane %v3279, 1
    %v3292 = vrot.slane %v3050, 1
    %v3293 = vsel %vm389, %v3291, %v3292
    %v3294 = vrot.slane %v3280, 1
    %v3295 = vrot.slane %v3051, 1
    %v3296 = vsel %vm389, %v3294, %v3295
    %v3297 = vrot.slane %v3052, 1
    %v3298 = vsel %vm389, %v3292, %v3297
    %v3299 = vrot.slane %v3053, 1
    %v3300 = vsel %vm389, %v3295, %v3299
    %v3301 = vrot.slane %v3281, 1
    %v3302 = vsel %vm389, %v3297, %v3301
    %v3303 = vrot.slane %v3282, 1
    %v3304 = vsel %vm389, %v3299, %v3303
    %v3312 = vsel %vm2834, %v3301, 0
    %v3315 = vsel %vm2834, %v3303, 0
    %3317 = vmatprep.subr.bf16.mxu0 0
    %3318 = vmatpush1.bf16.msra.mxu0 0
    %3319 = vmatprep.subr.bf16.mxu0 0
    %3320 = vmatpush1.bf16.msra.mxu0 0
    %3321 = vmatprep.subr.bf16.mxu0 0
    %3322 = vmatpush1.bf16.msra.mxu0 0
    %3323 = vmatprep.subr.bf16.mxu0 0
    %3324 = vmatpush1.bf16.msra.mxu0 0
    %3325 = vmatprep.subr.bf16.mxu0 %v3315
    %3326 = vmatpush1.bf16.msra.mxu0 %v3312
    %3327 = vmatprep.subr.bf16.mxu0 %v3304
    %3328 = vmatpush1.bf16.msra.mxu0 %v3302
    %3329 = vmatprep.subr.bf16.mxu0 %v3300
    %3330 = vmatpush1.bf16.msra.mxu0 %v3298
    %3331 = vmatprep.subr.bf16.mxu0 %v3296
    %3332 = vmatpush1.bf16.msra.mxu0 %v3293
    %3333 = vmatprep.subr.bf16.mxu0 0
    %3334 = vmatpush2.bf16.msra.mxu0 0
    %3335 = vmatprep.subr.bf16.mxu0 0
    %3336 = vmatpush2.bf16.msra.mxu0 0
    %3337 = vmatprep.subr.bf16.mxu0 0
    %3338 = vmatpush2.bf16.msra.mxu0 0
    %3339 = vmatprep.subr.bf16.mxu0 0
    %3340 = vmatpush2.bf16.msra.mxu0 0
    %3341 = vmatprep.subr.bf16.mxu0 0
    %3342 = vmatpush2.bf16.msra.mxu0 0
    %3343 = vmatprep.subr.bf16.mxu0 0
    %3344 = vmatpush2.bf16.msra.mxu0 0
    %3345 = vmatprep.subr.bf16.mxu0 0
    %3346 = vmatpush2.bf16.msra.mxu0 0
    %3347 = vmatprep.subr.bf16.mxu0 0
    %3348 = vmatpush2.bf16.msra.mxu0 0
    %3349 = vmatprep.mubr.bf16.mxu0 0
    %3350 = vmatmul.mubr.bf16.gmra.mxu0 %v3068
    %v3351 = vpop.f32.mrf.mxu0
    %v3352 = vadd.f32 0.0, %v3351
    %v3353 = vpop.f32.mrf.mxu0
    %v3354 = vadd.f32 0.0, %v3353
    %v3355 = vpop.f32.mrf.mxu0
    %v3356 = vadd.f32 0.0, %v3355
    %v3357 = vpop.f32.mrf.mxu0
    %v3358 = vadd.f32 0.0, %v3357
    %3359 = vmatprep.mubr.bf16.mxu0 0
    %3360 = vmatmul.mubr.bf16.gmra.mxu0 %v3071
    %v3361 = vpop.f32.mrf.mxu0
    %v3362 = vadd.f32 0.0, %v3361
    %v3363 = vpop.f32.mrf.mxu0
    %v3364 = vadd.f32 0.0, %v3363
    %v3365 = vpop.f32.mrf.mxu0
    %v3366 = vadd.f32 0.0, %v3365
    %v3367 = vpop.f32.mrf.mxu0
    %v3368 = vadd.f32 0.0, %v3367
    %3369 = vdwg.mxu0
    %v3370 = vpack.c.bf16 %v3356, %v3352
    %v3371 = vpack.c.bf16 %v3358, %v3354
    %v3372 = vpack.c.bf16 %v3366, %v3362
    %v3373 = vpack.c.bf16 %v3368, %v3364
    %v3374 = vld [vmem:[%s10] sm:$0xff]
    %v3375 = vld [vmem:[%s10 + $0x8] sm:$0xff]
    %v3376 = vld [vmem:[%s10 + $0x10] sm:$0xff]
    %v3377 = vld [vmem:[%s10 + $0x18] sm:$0xff]
    %v3378 = vld [vmem:[%s10 + $0x20] sm:$0xff]
    %v3379 = vld [vmem:[%s10 + $0x28] sm:$0xff]
    %v3380 = vld [vmem:[%s10 + $0x30] sm:$0xff]
    %v3381 = vld [vmem:[%s10 + $0x38] sm:$0xff]
    %v3382 = vld [vmem:[%s10 + $0x40] sm:$0xff]
    %v3383 = vld [vmem:[%s10 + $0x48] sm:$0xff]
    %v3384 = vld [vmem:[%s10 + $0x50] sm:$0xff]
    %v3385 = vld [vmem:[%s10 + $0x58] sm:$0xff]
    %v3386 = vld [vmem:[%s10 + $0x60] sm:$0xff]
    %v3387 = vld [vmem:[%s10 + $0x68] sm:$0xff]
    %v3388 = vld [vmem:[%s10 + $0x70] sm:$0xff]
    %v3389 = vld [vmem:[%s10 + $0x78] sm:$0xff]
    %v3390 = vld [vmem:[%s10 + $0x80] sm:$0xff]
    %v3391 = vld [vmem:[%s10 + $0x88] sm:$0xff]
    %v3392 = vld [vmem:[%s10 + $0x90] sm:$0xff]
    %v3393 = vld [vmem:[%s10 + $0x98] sm:$0xff]
    %v3394 = vld [vmem:[%s10 + $0xa0] sm:$0xff]
    %v3395 = vld [vmem:[%s10 + $0xa8] sm:$0xff]
    %v3396 = vld [vmem:[%s10 + $0xb0] sm:$0xff]
    %v3397 = vld [vmem:[%s10 + $0xb8] sm:$0xff]
    %v3398 = vld [vmem:[%s10 + $0xc0] sm:$0xff]
    %v3399 = vld [vmem:[%s10 + $0xc8] sm:$0xff]
    %v3400 = vld [vmem:[%s10 + $0xd0] sm:$0xff]
    %v3401 = vld [vmem:[%s10 + $0xd8] sm:$0xff]
    %v3402 = vld [vmem:[%s10 + $0xe0] sm:$0xff]
    %v3403 = vld [vmem:[%s10 + $0xe8] sm:$0xff]
    %v3404 = vld [vmem:[%s10 + $0xf0] sm:$0xff]
    %v3405 = vld [vmem:[%s10 + $0xf8] sm:$0xff]
    %s3406 = scalar_lea.vmem %s10, 256
    %v3407 = vld [vmem:[%s3406] sm:$0xff]
    %v3408 = vld [vmem:[%s3406 + $0x8] sm:$0xff]
    %v3409 = vld [vmem:[%s3406 + $0x10] sm:$0xff]
    %v3410 = vld [vmem:[%s3406 + $0x18] sm:$0xff]
    %v3411 = vld [vmem:[%s3406 + $0x20] sm:$0xff]
    %v3412 = vld [vmem:[%s3406 + $0x28] sm:$0xff]
    %v3413 = vld [vmem:[%s3406 + $0x30] sm:$0xff]
    %v3414 = vld [vmem:[%s3406 + $0x38] sm:$0xff]
    %v3415 = vld [vmem:[%s3406 + $0x40] sm:$0xff]
    %v3416 = vld [vmem:[%s3406 + $0x48] sm:$0xff]
    %v3417 = vld [vmem:[%s3406 + $0x50] sm:$0xff]
    %v3418 = vld [vmem:[%s3406 + $0x58] sm:$0xff]
    %v3419 = vld [vmem:[%s3406 + $0x60] sm:$0xff]
    %v3420 = vld [vmem:[%s3406 + $0x68] sm:$0xff]
    %v3421 = vld [vmem:[%s3406 + $0x70] sm:$0xff]
    %v3422 = vld [vmem:[%s3406 + $0x78] sm:$0xff]
    %v3423 = vld [vmem:[%s3406 + $0x80] sm:$0xff]
    %v3424 = vld [vmem:[%s3406 + $0x88] sm:$0xff]
    %v3425 = vld [vmem:[%s3406 + $0x90] sm:$0xff]
    %v3426 = vld [vmem:[%s3406 + $0x98] sm:$0xff]
    %v3427 = vld [vmem:[%s3406 + $0xa0] sm:$0xff]
    %v3428 = vld [vmem:[%s3406 + $0xa8] sm:$0xff]
    %v3429 = vld [vmem:[%s3406 + $0xb0] sm:$0xff]
    %v3430 = vld [vmem:[%s3406 + $0xb8] sm:$0xff]
    %v3431 = vld [vmem:[%s3406 + $0xc0] sm:$0xff]
    %v3432 = vld [vmem:[%s3406 + $0xc8] sm:$0xff]
    %v3433 = vld [vmem:[%s3406 + $0xd0] sm:$0xff]
    %v3434 = vld [vmem:[%s3406 + $0xd8] sm:$0xff]
    %v3435 = vld [vmem:[%s3406 + $0xe0] sm:$0xff]
    %v3436 = vld [vmem:[%s3406 + $0xe8] sm:$0xff]
    %v3437 = vld [vmem:[%s3406 + $0xf0] sm:$0xff]
    %v3438 = vld [vmem:[%s3406 + $0xf8] sm:$0xff]
    %v3471 = vunpack.c.l.b16 %v3407
    %v3472 = vunpack.c.h.b16 %v3407
    %v3473 = vunpack.c.l.b16 %v3408
    %v3474 = vunpack.c.h.b16 %v3408
    %v3475 = vunpack.c.l.b16 %v3409
    %v3476 = vunpack.c.h.b16 %v3409
    %v3477 = vunpack.c.l.b16 %v3410
    %v3478 = vunpack.c.h.b16 %v3410
    %v3479 = vunpack.c.l.b16 %v3411
    %v3480 = vunpack.c.h.b16 %v3411
    %v3481 = vunpack.c.l.b16 %v3412
    %v3482 = vunpack.c.h.b16 %v3412
    %v3483 = vunpack.c.l.b16 %v3413
    %v3484 = vunpack.c.h.b16 %v3413
    %v3485 = vunpack.c.l.b16 %v3414
    %v3486 = vunpack.c.h.b16 %v3414
    %v3487 = vunpack.c.l.b16 %v3415
    %v3488 = vunpack.c.h.b16 %v3415
    %v3489 = vunpack.c.l.b16 %v3416
    %v3490 = vunpack.c.h.b16 %v3416
    %v3491 = vunpack.c.l.b16 %v3417
    %v3492 = vunpack.c.h.b16 %v3417
    %v3493 = vunpack.c.l.b16 %v3418
    %v3494 = vunpack.c.h.b16 %v3418
    %v3495 = vunpack.c.l.b16 %v3419
    %v3496 = vunpack.c.h.b16 %v3419
    %v3497 = vunpack.c.l.b16 %v3420
    %v3498 = vunpack.c.h.b16 %v3420
    %v3499 = vunpack.c.l.b16 %v3421
    %v3500 = vunpack.c.h.b16 %v3421
    %v3501 = vunpack.c.l.b16 %v3422
    %v3502 = vunpack.c.h.b16 %v3422
    %v3503 = vunpack.c.l.b16 %v3423
    %v3504 = vunpack.c.h.b16 %v3423
    %v3505 = vunpack.c.l.b16 %v3424
    %v3506 = vunpack.c.h.b16 %v3424
    %v3507 = vunpack.c.l.b16 %v3425
    %v3508 = vunpack.c.h.b16 %v3425
    %v3509 = vunpack.c.l.b16 %v3426
    %v3510 = vunpack.c.h.b16 %v3426
    %v3511 = vunpack.c.l.b16 %v3427
    %v3512 = vunpack.c.h.b16 %v3427
    %v3513 = vunpack.c.l.b16 %v3428
    %v3514 = vunpack.c.h.b16 %v3428
    %v3515 = vunpack.c.l.b16 %v3429
    %v3516 = vunpack.c.h.b16 %v3429
    %v3517 = vunpack.c.l.b16 %v3430
    %v3518 = vunpack.c.h.b16 %v3430
    %v3519 = vunpack.c.l.b16 %v3431
    %v3520 = vunpack.c.h.b16 %v3431
    %v3521 = vunpack.c.l.b16 %v3432
    %v3522 = vunpack.c.h.b16 %v3432
    %v3523 = vunpack.c.l.b16 %v3433
    %v3524 = vunpack.c.h.b16 %v3433
    %v3525 = vunpack.c.l.b16 %v3434
    %v3526 = vunpack.c.h.b16 %v3434
    %v3527 = vunpack.c.l.b16 %v3435
    %v3528 = vunpack.c.h.b16 %v3435
    %v3529 = vunpack.c.l.b16 %v3436
    %v3530 = vunpack.c.h.b16 %v3436
    %v3531 = vunpack.c.l.b16 %v3437
    %v3532 = vunpack.c.h.b16 %v3437
    %v3533 = vunpack.c.l.b16 %v3438
    %v3534 = vunpack.c.h.b16 %v3438
    %v3535 = vpack.c.b16 %v3473, %v3471
    %v3536 = vpack.c.b16 %v3474, %v3472
    %v3537 = vpack.c.b16 %v3477, %v3475
    %v3538 = vpack.c.b16 %v3478, %v3476
    %v3539 = vpack.c.b16 %v3481, %v3479
    %v3540 = vpack.c.b16 %v3482, %v3480
    %v3541 = vpack.c.b16 %v3485, %v3483
    %v3542 = vpack.c.b16 %v3486, %v3484
    %v3543 = vpack.c.b16 %v3489, %v3487
    %v3544 = vpack.c.b16 %v3490, %v3488
    %v3545 = vpack.c.b16 %v3493, %v3491
    %v3546 = vpack.c.b16 %v3494, %v3492
    %v3547 = vpack.c.b16 %v3497, %v3495
    %v3548 = vpack.c.b16 %v3498, %v3496
    %v3549 = vpack.c.b16 %v3501, %v3499
    %v3550 = vpack.c.b16 %v3502, %v3500
    %v3551 = vpack.c.b16 %v3505, %v3503
    %v3552 = vpack.c.b16 %v3506, %v3504
    %v3553 = vpack.c.b16 %v3509, %v3507
    %v3554 = vpack.c.b16 %v3510, %v3508
    %v3555 = vpack.c.b16 %v3513, %v3511
    %v3556 = vpack.c.b16 %v3514, %v3512
    %v3557 = vpack.c.b16 %v3517, %v3515
    %v3558 = vpack.c.b16 %v3518, %v3516
    %v3559 = vpack.c.b16 %v3521, %v3519
    %v3560 = vpack.c.b16 %v3522, %v3520
    %v3561 = vpack.c.b16 %v3525, %v3523
    %v3562 = vpack.c.b16 %v3526, %v3524
    %v3563 = vpack.c.b16 %v3529, %v3527
    %v3564 = vpack.c.b16 %v3530, %v3528
    %v3565 = vpack.c.b16 %v3533, %v3531
    %v3566 = vpack.c.b16 %v3534, %v3532
    %3599 = vmatprep.subr.bf16.mxu0 %v3550
    %3600 = vmatpush1.bf16.msra.mxu0 %v3549
    %3601 = vmatprep.subr.bf16.mxu0 %v3548
    %3602 = vmatpush1.bf16.msra.mxu0 %v3547
    %3603 = vmatprep.subr.bf16.mxu0 %v3546
    %3604 = vmatpush1.bf16.msra.mxu0 %v3545
    %3605 = vmatprep.subr.bf16.mxu0 %v3544
    %3606 = vmatpush1.bf16.msra.mxu0 %v3543
    %3607 = vmatprep.subr.bf16.mxu0 %v3542
    %3608 = vmatpush1.bf16.msra.mxu0 %v3541
    %3609 = vmatprep.subr.bf16.mxu0 %v3540
    %3610 = vmatpush1.bf16.msra.mxu0 %v3539
    %3611 = vmatprep.subr.bf16.mxu0 %v3538
    %3612 = vmatpush1.bf16.msra.mxu0 %v3537
    %3613 = vmatprep.subr.bf16.mxu0 %v3536
    %3614 = vmatpush1.bf16.msra.mxu0 %v3535
    %3615 = vmatprep.subr.bf16.mxu0 %v3566
    %3616 = vmatpush2.bf16.msra.mxu0 %v3565
    %3617 = vmatprep.subr.bf16.mxu0 %v3564
    %3618 = vmatpush2.bf16.msra.mxu0 %v3563
    %3619 = vmatprep.subr.bf16.mxu0 %v3562
    %3620 = vmatpush2.bf16.msra.mxu0 %v3561
    %3621 = vmatprep.subr.bf16.mxu0 %v3560
    %3622 = vmatpush2.bf16.msra.mxu0 %v3559
    %3623 = vmatprep.subr.bf16.mxu0 %v3558
    %3624 = vmatpush2.bf16.msra.mxu0 %v3557
    %3625 = vmatprep.subr.bf16.mxu0 %v3556
    %3626 = vmatpush2.bf16.msra.mxu0 %v3555
    %3627 = vmatprep.subr.bf16.mxu0 %v3554
    %3628 = vmatpush2.bf16.msra.mxu0 %v3553
    %3629 = vmatprep.subr.bf16.mxu0 %v3552
    %3630 = vmatpush2.bf16.msra.mxu0 %v3551
    %3631 = vmatprep.mubr.bf16.mxu0 %v3272
    %3632 = vmatmul.mubr.bf16.gmra.mxu0 %v3271
    %v3633 = vpop.f32.mrf.mxu0
    %v3634 = vadd.f32 0.0, %v3633
    %v3635 = vpop.f32.mrf.mxu0
    %v3636 = vadd.f32 0.0, %v3635
    %v3637 = vpop.f32.mrf.mxu0
    %v3638 = vadd.f32 0.0, %v3637
    %v3639 = vpop.f32.mrf.mxu0
    %v3640 = vadd.f32 0.0, %v3639
    %3641 = vmatprep.mubr.bf16.mxu0 %v3274
    %3642 = vmatmul.mubr.bf16.gmra.mxu0 %v3273
    %v3643 = vpop.f32.mrf.mxu0
    %v3644 = vadd.f32 0.0, %v3643
    %v3645 = vpop.f32.mrf.mxu0
    %v3646 = vadd.f32 0.0, %v3645
    %v3647 = vpop.f32.mrf.mxu0
    %v3648 = vadd.f32 0.0, %v3647
    %v3649 = vpop.f32.mrf.mxu0
    %v3650 = vadd.f32 0.0, %v3649
    %3651 = vdwg.mxu0
    %v3684 = vunpack.c.l.b16 %v3374
    %v3685 = vunpack.c.h.b16 %v3374
    %v3686 = vunpack.c.l.b16 %v3375
    %v3687 = vunpack.c.h.b16 %v3375
    %v3688 = vunpack.c.l.b16 %v3376
    %v3689 = vunpack.c.h.b16 %v3376
    %v3690 = vunpack.c.l.b16 %v3377
    %v3691 = vunpack.c.h.b16 %v3377
    %v3692 = vunpack.c.l.b16 %v3378
    %v3693 = vunpack.c.h.b16 %v3378
    %v3694 = vunpack.c.l.b16 %v3379
    %v3695 = vunpack.c.h.b16 %v3379
    %v3696 = vunpack.c.l.b16 %v3380
    %v3697 = vunpack.c.h.b16 %v3380
    %v3698 = vunpack.c.l.b16 %v3381
    %v3699 = vunpack.c.h.b16 %v3381
    %v3700 = vunpack.c.l.b16 %v3382
    %v3701 = vunpack.c.h.b16 %v3382
    %v3702 = vunpack.c.l.b16 %v3383
    %v3703 = vunpack.c.h.b16 %v3383
    %v3704 = vunpack.c.l.b16 %v3384
    %v3705 = vunpack.c.h.b16 %v3384
    %v3706 = vunpack.c.l.b16 %v3385
    %v3707 = vunpack.c.h.b16 %v3385
    %v3708 = vunpack.c.l.b16 %v3386
    %v3709 = vunpack.c.h.b16 %v3386
    %v3710 = vunpack.c.l.b16 %v3387
    %v3711 = vunpack.c.h.b16 %v3387
    %v3712 = vunpack.c.l.b16 %v3388
    %v3713 = vunpack.c.h.b16 %v3388
    %v3714 = vunpack.c.l.b16 %v3389
    %v3715 = vunpack.c.h.b16 %v3389
    %v3716 = vunpack.c.l.b16 %v3390
    %v3717 = vunpack.c.h.b16 %v3390
    %v3718 = vunpack.c.l.b16 %v3391
    %v3719 = vunpack.c.h.b16 %v3391
    %v3720 = vunpack.c.l.b16 %v3392
    %v3721 = vunpack.c.h.b16 %v3392
    %v3722 = vunpack.c.l.b16 %v3393
    %v3723 = vunpack.c.h.b16 %v3393
    %v3724 = vunpack.c.l.b16 %v3394
    %v3725 = vunpack.c.h.b16 %v3394
    %v3726 = vunpack.c.l.b16 %v3395
    %v3727 = vunpack.c.h.b16 %v3395
    %v3728 = vunpack.c.l.b16 %v3396
    %v3729 = vunpack.c.h.b16 %v3396
    %v3730 = vunpack.c.l.b16 %v3397
    %v3731 = vunpack.c.h.b16 %v3397
    %v3732 = vunpack.c.l.b16 %v3398
    %v3733 = vunpack.c.h.b16 %v3398
    %v3734 = vunpack.c.l.b16 %v3399
    %v3735 = vunpack.c.h.b16 %v3399
    %v3736 = vunpack.c.l.b16 %v3400
    %v3737 = vunpack.c.h.b16 %v3400
    %v3738 = vunpack.c.l.b16 %v3401
    %v3739 = vunpack.c.h.b16 %v3401
    %v3740 = vunpack.c.l.b16 %v3402
    %v3741 = vunpack.c.h.b16 %v3402
    %v3742 = vunpack.c.l.b16 %v3403
    %v3743 = vunpack.c.h.b16 %v3403
    %v3744 = vunpack.c.l.b16 %v3404
    %v3745 = vunpack.c.h.b16 %v3404
    %v3746 = vunpack.c.l.b16 %v3405
    %v3747 = vunpack.c.h.b16 %v3405
    %v3748 = vpack.c.b16 %v3686, %v3684
    %v3749 = vpack.c.b16 %v3687, %v3685
    %v3750 = vpack.c.b16 %v3690, %v3688
    %v3751 = vpack.c.b16 %v3691, %v3689
    %v3752 = vpack.c.b16 %v3694, %v3692
    %v3753 = vpack.c.b16 %v3695, %v3693
    %v3754 = vpack.c.b16 %v3698, %v3696
    %v3755 = vpack.c.b16 %v3699, %v3697
    %v3756 = vpack.c.b16 %v3702, %v3700
    %v3757 = vpack.c.b16 %v3703, %v3701
    %v3758 = vpack.c.b16 %v3706, %v3704
    %v3759 = vpack.c.b16 %v3707, %v3705
    %v3760 = vpack.c.b16 %v3710, %v3708
    %v3761 = vpack.c.b16 %v3711, %v3709
    %v3762 = vpack.c.b16 %v3714, %v3712
    %v3763 = vpack.c.b16 %v3715, %v3713
    %v3764 = vpack.c.b16 %v3718, %v3716
    %v3765 = vpack.c.b16 %v3719, %v3717
    %v3766 = vpack.c.b16 %v3722, %v3720
    %v3767 = vpack.c.b16 %v3723, %v3721
    %v3768 = vpack.c.b16 %v3726, %v3724
    %v3769 = vpack.c.b16 %v3727, %v3725
    %v3770 = vpack.c.b16 %v3730, %v3728
    %v3771 = vpack.c.b16 %v3731, %v3729
    %v3772 = vpack.c.b16 %v3734, %v3732
    %v3773 = vpack.c.b16 %v3735, %v3733
    %v3774 = vpack.c.b16 %v3738, %v3736
    %v3775 = vpack.c.b16 %v3739, %v3737
    %v3776 = vpack.c.b16 %v3742, %v3740
    %v3777 = vpack.c.b16 %v3743, %v3741
    %v3778 = vpack.c.b16 %v3746, %v3744
    %v3779 = vpack.c.b16 %v3747, %v3745
    %3812 = vmatprep.subr.bf16.mxu0 %v3763
    %3813 = vmatpush1.bf16.msra.mxu0 %v3762
    %3814 = vmatprep.subr.bf16.mxu0 %v3761
    %3815 = vmatpush1.bf16.msra.mxu0 %v3760
    %3816 = vmatprep.subr.bf16.mxu0 %v3759
    %3817 = vmatpush1.bf16.msra.mxu0 %v3758
    %3818 = vmatprep.subr.bf16.mxu0 %v3757
    %3819 = vmatpush1.bf16.msra.mxu0 %v3756
    %3820 = vmatprep.subr.bf16.mxu0 %v3755
    %3821 = vmatpush1.bf16.msra.mxu0 %v3754
    %3822 = vmatprep.subr.bf16.mxu0 %v3753
    %3823 = vmatpush1.bf16.msra.mxu0 %v3752
    %3824 = vmatprep.subr.bf16.mxu0 %v3751
    %3825 = vmatpush1.bf16.msra.mxu0 %v3750
    %3826 = vmatprep.subr.bf16.mxu0 %v3749
    %3827 = vmatpush1.bf16.msra.mxu0 %v3748
    %3828 = vmatprep.subr.bf16.mxu0 %v3779
    %3829 = vmatpush2.bf16.msra.mxu0 %v3778
    %3830 = vmatprep.subr.bf16.mxu0 %v3777
    %3831 = vmatpush2.bf16.msra.mxu0 %v3776
    %3832 = vmatprep.subr.bf16.mxu0 %v3775
    %3833 = vmatpush2.bf16.msra.mxu0 %v3774
    %3834 = vmatprep.subr.bf16.mxu0 %v3773
    %3835 = vmatpush2.bf16.msra.mxu0 %v3772
    %3836 = vmatprep.subr.bf16.mxu0 %v3771
    %3837 = vmatpush2.bf16.msra.mxu0 %v3770
    %3838 = vmatprep.subr.bf16.mxu0 %v3769
    %3839 = vmatpush2.bf16.msra.mxu0 %v3768
    %3840 = vmatprep.subr.bf16.mxu0 %v3767
    %3841 = vmatpush2.bf16.msra.mxu0 %v3766
    %3842 = vmatprep.subr.bf16.mxu0 %v3765
    %3843 = vmatpush2.bf16.msra.mxu0 %v3764
    %3844 = vmatprep.mubr.bf16.mxu0 %v3133
    %3845 = vmatmul.mubr.bf16.gmra.mxu0 %v3132
    %v3846 = vpop.f32.mrf.mxu0
    %v3847 = vadd.f32 %v3634, %v3846
    %v3848 = vpop.f32.mrf.mxu0
    %v3849 = vadd.f32 %v3636, %v3848
    %v3850 = vpop.f32.mrf.mxu0
    %v3851 = vadd.f32 %v3638, %v3850
    %v3852 = vpop.f32.mrf.mxu0
    %v3853 = vadd.f32 %v3640, %v3852
    %3854 = vmatprep.mubr.bf16.mxu0 %v3135
    %3855 = vmatmul.mubr.bf16.gmra.mxu0 %v3134
    %v3856 = vpop.f32.mrf.mxu0
    %v3857 = vadd.f32 %v3644, %v3856
    %v3858 = vpop.f32.mrf.mxu0
    %v3859 = vadd.f32 %v3646, %v3858
    %v3860 = vpop.f32.mrf.mxu0
    %v3861 = vadd.f32 %v3648, %v3860
    %v3862 = vpop.f32.mrf.mxu0
    %v3863 = vadd.f32 %v3650, %v3862
    %3864 = vdwg.mxu0
    %s3865 = scalar_lea.vmem %s10, 512
    %v3866 = vld [vmem:[%s3865] sm:$0xff]
    %v3867 = vld [vmem:[%s3865 + $0x8] sm:$0xff]
    %v3868 = vld [vmem:[%s3865 + $0x10] sm:$0xff]
    %v3869 = vld [vmem:[%s3865 + $0x18] sm:$0xff]
    %v3870 = vld [vmem:[%s3865 + $0x20] sm:$0xff]
    %v3871 = vld [vmem:[%s3865 + $0x28] sm:$0xff]
    %v3872 = vld [vmem:[%s3865 + $0x30] sm:$0xff]
    %v3873 = vld [vmem:[%s3865 + $0x38] sm:$0xff]
    %v3874 = vld [vmem:[%s3865 + $0x40] sm:$0xff]
    %v3875 = vld [vmem:[%s3865 + $0x48] sm:$0xff]
    %v3876 = vld [vmem:[%s3865 + $0x50] sm:$0xff]
    %v3877 = vld [vmem:[%s3865 + $0x58] sm:$0xff]
    %v3878 = vld [vmem:[%s3865 + $0x60] sm:$0xff]
    %v3879 = vld [vmem:[%s3865 + $0x68] sm:$0xff]
    %v3880 = vld [vmem:[%s3865 + $0x70] sm:$0xff]
    %v3881 = vld [vmem:[%s3865 + $0x78] sm:$0xff]
    %v3882 = vld [vmem:[%s3865 + $0x80] sm:$0xff]
    %v3883 = vld [vmem:[%s3865 + $0x88] sm:$0xff]
    %v3884 = vld [vmem:[%s3865 + $0x90] sm:$0xff]
    %v3885 = vld [vmem:[%s3865 + $0x98] sm:$0xff]
    %v3886 = vld [vmem:[%s3865 + $0xa0] sm:$0xff]
    %v3887 = vld [vmem:[%s3865 + $0xa8] sm:$0xff]
    %v3888 = vld [vmem:[%s3865 + $0xb0] sm:$0xff]
    %v3889 = vld [vmem:[%s3865 + $0xb8] sm:$0xff]
    %v3890 = vld [vmem:[%s3865 + $0xc0] sm:$0xff]
    %v3891 = vld [vmem:[%s3865 + $0xc8] sm:$0xff]
    %v3892 = vld [vmem:[%s3865 + $0xd0] sm:$0xff]
    %v3893 = vld [vmem:[%s3865 + $0xd8] sm:$0xff]
    %v3894 = vld [vmem:[%s3865 + $0xe0] sm:$0xff]
    %v3895 = vld [vmem:[%s3865 + $0xe8] sm:$0xff]
    %v3896 = vld [vmem:[%s3865 + $0xf0] sm:$0xff]
    %v3897 = vld [vmem:[%s3865 + $0xf8] sm:$0xff]
    %v3930 = vunpack.c.l.b16 %v3866
    %v3931 = vunpack.c.h.b16 %v3866
    %v3932 = vunpack.c.l.b16 %v3867
    %v3933 = vunpack.c.h.b16 %v3867
    %v3934 = vunpack.c.l.b16 %v3868
    %v3935 = vunpack.c.h.b16 %v3868
    %v3936 = vunpack.c.l.b16 %v3869
    %v3937 = vunpack.c.h.b16 %v3869
    %v3938 = vunpack.c.l.b16 %v3870
    %v3939 = vunpack.c.h.b16 %v3870
    %v3940 = vunpack.c.l.b16 %v3871
    %v3941 = vunpack.c.h.b16 %v3871
    %v3942 = vunpack.c.l.b16 %v3872
    %v3943 = vunpack.c.h.b16 %v3872
    %v3944 = vunpack.c.l.b16 %v3873
    %v3945 = vunpack.c.h.b16 %v3873
    %v3946 = vunpack.c.l.b16 %v3874
    %v3947 = vunpack.c.h.b16 %v3874
    %v3948 = vunpack.c.l.b16 %v3875
    %v3949 = vunpack.c.h.b16 %v3875
    %v3950 = vunpack.c.l.b16 %v3876
    %v3951 = vunpack.c.h.b16 %v3876
    %v3952 = vunpack.c.l.b16 %v3877
    %v3953 = vunpack.c.h.b16 %v3877
    %v3954 = vunpack.c.l.b16 %v3878
    %v3955 = vunpack.c.h.b16 %v3878
    %v3956 = vunpack.c.l.b16 %v3879
    %v3957 = vunpack.c.h.b16 %v3879
    %v3958 = vunpack.c.l.b16 %v3880
    %v3959 = vunpack.c.h.b16 %v3880
    %v3960 = vunpack.c.l.b16 %v3881
    %v3961 = vunpack.c.h.b16 %v3881
    %v3962 = vunpack.c.l.b16 %v3882
    %v3963 = vunpack.c.h.b16 %v3882
    %v3964 = vunpack.c.l.b16 %v3883
    %v3965 = vunpack.c.h.b16 %v3883
    %v3966 = vunpack.c.l.b16 %v3884
    %v3967 = vunpack.c.h.b16 %v3884
    %v3968 = vunpack.c.l.b16 %v3885
    %v3969 = vunpack.c.h.b16 %v3885
    %v3970 = vunpack.c.l.b16 %v3886
    %v3971 = vunpack.c.h.b16 %v3886
    %v3972 = vunpack.c.l.b16 %v3887
    %v3973 = vunpack.c.h.b16 %v3887
    %v3974 = vunpack.c.l.b16 %v3888
    %v3975 = vunpack.c.h.b16 %v3888
    %v3976 = vunpack.c.l.b16 %v3889
    %v3977 = vunpack.c.h.b16 %v3889
    %v3978 = vunpack.c.l.b16 %v3890
    %v3979 = vunpack.c.h.b16 %v3890
    %v3980 = vunpack.c.l.b16 %v3891
    %v3981 = vunpack.c.h.b16 %v3891
    %v3982 = vunpack.c.l.b16 %v3892
    %v3983 = vunpack.c.h.b16 %v3892
    %v3984 = vunpack.c.l.b16 %v3893
    %v3985 = vunpack.c.h.b16 %v3893
    %v3986 = vunpack.c.l.b16 %v3894
    %v3987 = vunpack.c.h.b16 %v3894
    %v3988 = vunpack.c.l.b16 %v3895
    %v3989 = vunpack.c.h.b16 %v3895
    %v3990 = vunpack.c.l.b16 %v3896
    %v3991 = vunpack.c.h.b16 %v3896
    %v3992 = vunpack.c.l.b16 %v3897
    %v3993 = vunpack.c.h.b16 %v3897
    %v3994 = vpack.c.b16 %v3932, %v3930
    %v3995 = vpack.c.b16 %v3933, %v3931
    %v3996 = vpack.c.b16 %v3936, %v3934
    %v3997 = vpack.c.b16 %v3937, %v3935
    %v3998 = vpack.c.b16 %v3940, %v3938
    %v3999 = vpack.c.b16 %v3941, %v3939
    %v4000 = vpack.c.b16 %v3944, %v3942
    %v4001 = vpack.c.b16 %v3945, %v3943
    %v4002 = vpack.c.b16 %v3948, %v3946
    %v4003 = vpack.c.b16 %v3949, %v3947
    %v4004 = vpack.c.b16 %v3952, %v3950
    %v4005 = vpack.c.b16 %v3953, %v3951
    %v4006 = vpack.c.b16 %v3956, %v3954
    %v4007 = vpack.c.b16 %v3957, %v3955
    %v4008 = vpack.c.b16 %v3960, %v3958
    %v4009 = vpack.c.b16 %v3961, %v3959
    %v4010 = vpack.c.b16 %v3964, %v3962
    %v4011 = vpack.c.b16 %v3965, %v3963
    %v4012 = vpack.c.b16 %v3968, %v3966
    %v4013 = vpack.c.b16 %v3969, %v3967
    %v4014 = vpack.c.b16 %v3972, %v3970
    %v4015 = vpack.c.b16 %v3973, %v3971
    %v4016 = vpack.c.b16 %v3976, %v3974
    %v4017 = vpack.c.b16 %v3977, %v3975
    %v4018 = vpack.c.b16 %v3980, %v3978
    %v4019 = vpack.c.b16 %v3981, %v3979
    %v4020 = vpack.c.b16 %v3984, %v3982
    %v4021 = vpack.c.b16 %v3985, %v3983
    %v4022 = vpack.c.b16 %v3988, %v3986
    %v4023 = vpack.c.b16 %v3989, %v3987
    %v4024 = vpack.c.b16 %v3992, %v3990
    %v4025 = vpack.c.b16 %v3993, %v3991
    %4058 = vmatprep.subr.bf16.mxu0 %v4009
    %4059 = vmatpush1.bf16.msra.mxu0 %v4008
    %4060 = vmatprep.subr.bf16.mxu0 %v4007
    %4061 = vmatpush1.bf16.msra.mxu0 %v4006
    %4062 = vmatprep.subr.bf16.mxu0 %v4005
    %4063 = vmatpush1.bf16.msra.mxu0 %v4004
    %4064 = vmatprep.subr.bf16.mxu0 %v4003
    %4065 = vmatpush1.bf16.msra.mxu0 %v4002
    %4066 = vmatprep.subr.bf16.mxu0 %v4001
    %4067 = vmatpush1.bf16.msra.mxu0 %v4000
    %4068 = vmatprep.subr.bf16.mxu0 %v3999
    %4069 = vmatpush1.bf16.msra.mxu0 %v3998
    %4070 = vmatprep.subr.bf16.mxu0 %v3997
    %4071 = vmatpush1.bf16.msra.mxu0 %v3996
    %4072 = vmatprep.subr.bf16.mxu0 %v3995
    %4073 = vmatpush1.bf16.msra.mxu0 %v3994
    %4074 = vmatprep.subr.bf16.mxu0 %v4025
    %4075 = vmatpush2.bf16.msra.mxu0 %v4024
    %4076 = vmatprep.subr.bf16.mxu0 %v4023
    %4077 = vmatpush2.bf16.msra.mxu0 %v4022
    %4078 = vmatprep.subr.bf16.mxu0 %v4021
    %4079 = vmatpush2.bf16.msra.mxu0 %v4020
    %4080 = vmatprep.subr.bf16.mxu0 %v4019
    %4081 = vmatpush2.bf16.msra.mxu0 %v4018
    %4082 = vmatprep.subr.bf16.mxu0 %v4017
    %4083 = vmatpush2.bf16.msra.mxu0 %v4016
    %4084 = vmatprep.subr.bf16.mxu0 %v4015
    %4085 = vmatpush2.bf16.msra.mxu0 %v4014
    %4086 = vmatprep.subr.bf16.mxu0 %v4013
    %4087 = vmatpush2.bf16.msra.mxu0 %v4012
    %4088 = vmatprep.subr.bf16.mxu0 %v4011
    %4089 = vmatpush2.bf16.msra.mxu0 %v4010
    %4090 = vmatprep.mubr.bf16.mxu0 %v3371
    %4091 = vmatmul.mubr.bf16.gmra.mxu0 %v3370
    %v4092 = vpop.f32.mrf.mxu0
    %v4093 = vadd.f32 0.0, %v4092
    %v4094 = vpop.f32.mrf.mxu0
    %v4095 = vadd.f32 0.0, %v4094
    %v4096 = vpop.f32.mrf.mxu0
    %v4097 = vadd.f32 0.0, %v4096
    %v4098 = vpop.f32.mrf.mxu0
    %v4099 = vadd.f32 0.0, %v4098
    %4100 = vmatprep.mubr.bf16.mxu0 %v3373
    %4101 = vmatmul.mubr.bf16.gmra.mxu0 %v3372
    %v4102 = vpop.f32.mrf.mxu0
    %v4103 = vadd.f32 0.0, %v4102
    %v4104 = vpop.f32.mrf.mxu0
    %v4105 = vadd.f32 0.0, %v4104
    %v4106 = vpop.f32.mrf.mxu0
    %v4107 = vadd.f32 0.0, %v4106
    %v4108 = vpop.f32.mrf.mxu0
    %v4109 = vadd.f32 0.0, %v4108
    %4110 = vdwg.mxu0
    %v4111 = vadd.f32 %v3847, %v4093
    %v4112 = vadd.f32 %v3849, %v4095
    %v4113 = vadd.f32 %v3851, %v4097
    %v4114 = vadd.f32 %v3853, %v4099
    %v4115 = vadd.f32 %v3857, %v4103
    %v4116 = vadd.f32 %v3859, %v4105
    %v4117 = vadd.f32 %v3861, %v4107
    %v4118 = vadd.f32 %v3863, %v4109
    %v4119 = vld [vmem:[%s12] sm:$0xff]
    %v4120 = vld [vmem:[%s12 + $0x8] sm:$0xff]
    %v4121 = vld [vmem:[%s12 + $0x10] sm:$0xff]
    %v4122 = vld [vmem:[%s12 + $0x18] sm:$0xff]
    %v4123 = vld [vmem:[%s12 + $0x20] sm:$0xff]
    %v4124 = vld [vmem:[%s12 + $0x28] sm:$0xff]
    %v4125 = vld [vmem:[%s12 + $0x30] sm:$0xff]
    %v4126 = vld [vmem:[%s12 + $0x38] sm:$0xff]
    %v4127 = vld [vmem:[%s12 + $0x40] sm:$0xff]
    %v4128 = vld [vmem:[%s12 + $0x48] sm:$0xff]
    %v4129 = vld [vmem:[%s12 + $0x50] sm:$0xff]
    %v4130 = vld [vmem:[%s12 + $0x58] sm:$0xff]
    %v4131 = vld [vmem:[%s12 + $0x60] sm:$0xff]
    %v4132 = vld [vmem:[%s12 + $0x68] sm:$0xff]
    %v4133 = vld [vmem:[%s12 + $0x70] sm:$0xff]
    %v4134 = vld [vmem:[%s12 + $0x78] sm:$0xff]
    %v4135 = vld [vmem:[%s12 + $0x80] sm:$0xff]
    %v4136 = vld [vmem:[%s12 + $0x88] sm:$0xff]
    %v4137 = vld [vmem:[%s12 + $0x90] sm:$0xff]
    %v4138 = vld [vmem:[%s12 + $0x98] sm:$0xff]
    %v4139 = vld [vmem:[%s12 + $0xa0] sm:$0xff]
    %v4140 = vld [vmem:[%s12 + $0xa8] sm:$0xff]
    %v4141 = vld [vmem:[%s12 + $0xb0] sm:$0xff]
    %v4142 = vld [vmem:[%s12 + $0xb8] sm:$0xff]
    %v4143 = vld [vmem:[%s12 + $0xc0] sm:$0xff]
    %v4144 = vld [vmem:[%s12 + $0xc8] sm:$0xff]
    %v4145 = vld [vmem:[%s12 + $0xd0] sm:$0xff]
    %v4146 = vld [vmem:[%s12 + $0xd8] sm:$0xff]
    %v4147 = vld [vmem:[%s12 + $0xe0] sm:$0xff]
    %v4148 = vld [vmem:[%s12 + $0xe8] sm:$0xff]
    %v4149 = vld [vmem:[%s12 + $0xf0] sm:$0xff]
    %v4150 = vld [vmem:[%s12 + $0xf8] sm:$0xff]
    %v4183 = vunpack.c.l.b16 %v4119
    %v4184 = vunpack.c.h.b16 %v4119
    %v4185 = vunpack.c.l.b16 %v4120
    %v4186 = vunpack.c.h.b16 %v4120
    %v4187 = vunpack.c.l.b16 %v4121
    %v4188 = vunpack.c.h.b16 %v4121
    %v4189 = vunpack.c.l.b16 %v4122
    %v4190 = vunpack.c.h.b16 %v4122
    %v4191 = vunpack.c.l.b16 %v4123
    %v4192 = vunpack.c.h.b16 %v4123
    %v4193 = vunpack.c.l.b16 %v4124
    %v4194 = vunpack.c.h.b16 %v4124
    %v4195 = vunpack.c.l.b16 %v4125
    %v4196 = vunpack.c.h.b16 %v4125
    %v4197 = vunpack.c.l.b16 %v4126
    %v4198 = vunpack.c.h.b16 %v4126
    %v4199 = vunpack.c.l.b16 %v4127
    %v4200 = vunpack.c.h.b16 %v4127
    %v4201 = vunpack.c.l.b16 %v4128
    %v4202 = vunpack.c.h.b16 %v4128
    %v4203 = vunpack.c.l.b16 %v4129
    %v4204 = vunpack.c.h.b16 %v4129
    %v4205 = vunpack.c.l.b16 %v4130
    %v4206 = vunpack.c.h.b16 %v4130
    %v4207 = vunpack.c.l.b16 %v4131
    %v4208 = vunpack.c.h.b16 %v4131
    %v4209 = vunpack.c.l.b16 %v4132
    %v4210 = vunpack.c.h.b16 %v4132
    %v4211 = vunpack.c.l.b16 %v4133
    %v4212 = vunpack.c.h.b16 %v4133
    %v4213 = vunpack.c.l.b16 %v4134
    %v4214 = vunpack.c.h.b16 %v4134
    %v4215 = vunpack.c.l.b16 %v4135
    %v4216 = vunpack.c.h.b16 %v4135
    %v4217 = vunpack.c.l.b16 %v4136
    %v4218 = vunpack.c.h.b16 %v4136
    %v4219 = vunpack.c.l.b16 %v4137
    %v4220 = vunpack.c.h.b16 %v4137
    %v4221 = vunpack.c.l.b16 %v4138
    %v4222 = vunpack.c.h.b16 %v4138
    %v4223 = vunpack.c.l.b16 %v4139
    %v4224 = vunpack.c.h.b16 %v4139
    %v4225 = vunpack.c.l.b16 %v4140
    %v4226 = vunpack.c.h.b16 %v4140
    %v4227 = vunpack.c.l.b16 %v4141
    %v4228 = vunpack.c.h.b16 %v4141
    %v4229 = vunpack.c.l.b16 %v4142
    %v4230 = vunpack.c.h.b16 %v4142
    %v4231 = vunpack.c.l.b16 %v4143
    %v4232 = vunpack.c.h.b16 %v4143
    %v4233 = vunpack.c.l.b16 %v4144
    %v4234 = vunpack.c.h.b16 %v4144
    %v4235 = vunpack.c.l.b16 %v4145
    %v4236 = vunpack.c.h.b16 %v4145
    %v4237 = vunpack.c.l.b16 %v4146
    %v4238 = vunpack.c.h.b16 %v4146
    %v4239 = vunpack.c.l.b16 %v4147
    %v4240 = vunpack.c.h.b16 %v4147
    %v4241 = vunpack.c.l.b16 %v4148
    %v4242 = vunpack.c.h.b16 %v4148
    %v4243 = vunpack.c.l.b16 %v4149
    %v4244 = vunpack.c.h.b16 %v4149
    %v4245 = vunpack.c.l.b16 %v4150
    %v4246 = vunpack.c.h.b16 %v4150
    %v4247 = vpack.c.b16 %v4185, %v4183
    %v4248 = vpack.c.b16 %v4186, %v4184
    %v4249 = vpack.c.b16 %v4189, %v4187
    %v4250 = vpack.c.b16 %v4190, %v4188
    %v4251 = vpack.c.b16 %v4193, %v4191
    %v4252 = vpack.c.b16 %v4194, %v4192
    %v4253 = vpack.c.b16 %v4197, %v4195
    %v4254 = vpack.c.b16 %v4198, %v4196
    %v4255 = vpack.c.b16 %v4201, %v4199
    %v4256 = vpack.c.b16 %v4202, %v4200
    %v4257 = vpack.c.b16 %v4205, %v4203
    %v4258 = vpack.c.b16 %v4206, %v4204
    %v4259 = vpack.c.b16 %v4209, %v4207
    %v4260 = vpack.c.b16 %v4210, %v4208
    %v4261 = vpack.c.b16 %v4213, %v4211
    %v4262 = vpack.c.b16 %v4214, %v4212
    %v4263 = vpack.c.b16 %v4217, %v4215
    %v4264 = vpack.c.b16 %v4218, %v4216
    %v4265 = vpack.c.b16 %v4221, %v4219
    %v4266 = vpack.c.b16 %v4222, %v4220
    %v4267 = vpack.c.b16 %v4225, %v4223
    %v4268 = vpack.c.b16 %v4226, %v4224
    %v4269 = vpack.c.b16 %v4229, %v4227
    %v4270 = vpack.c.b16 %v4230, %v4228
    %v4271 = vpack.c.b16 %v4233, %v4231
    %v4272 = vpack.c.b16 %v4234, %v4232
    %v4273 = vpack.c.b16 %v4237, %v4235
    %v4274 = vpack.c.b16 %v4238, %v4236
    %v4275 = vpack.c.b16 %v4241, %v4239
    %v4276 = vpack.c.b16 %v4242, %v4240
    %v4277 = vpack.c.b16 %v4245, %v4243
    %v4278 = vpack.c.b16 %v4246, %v4244
    %4311 = vmatprep.subr.bf16.mxu0 %v4262
    %4312 = vmatpush1.bf16.msra.mxu0 %v4261
    %4313 = vmatprep.subr.bf16.mxu0 %v4260
    %4314 = vmatpush1.bf16.msra.mxu0 %v4259
    %4315 = vmatprep.subr.bf16.mxu0 %v4258
    %4316 = vmatpush1.bf16.msra.mxu0 %v4257
    %4317 = vmatprep.subr.bf16.mxu0 %v4256
    %4318 = vmatpush1.bf16.msra.mxu0 %v4255
    %4319 = vmatprep.subr.bf16.mxu0 %v4254
    %4320 = vmatpush1.bf16.msra.mxu0 %v4253
    %4321 = vmatprep.subr.bf16.mxu0 %v4252
    %4322 = vmatpush1.bf16.msra.mxu0 %v4251
    %4323 = vmatprep.subr.bf16.mxu0 %v4250
    %4324 = vmatpush1.bf16.msra.mxu0 %v4249
    %4325 = vmatprep.subr.bf16.mxu0 %v4248
    %4326 = vmatpush1.bf16.msra.mxu0 %v4247
    %4327 = vmatprep.subr.bf16.mxu0 %v4278
    %4328 = vmatpush2.bf16.msra.mxu0 %v4277
    %4329 = vmatprep.subr.bf16.mxu0 %v4276
    %4330 = vmatpush2.bf16.msra.mxu0 %v4275
    %4331 = vmatprep.subr.bf16.mxu0 %v4274
    %4332 = vmatpush2.bf16.msra.mxu0 %v4273
    %4333 = vmatprep.subr.bf16.mxu0 %v4272
    %4334 = vmatpush2.bf16.msra.mxu0 %v4271
    %4335 = vmatprep.subr.bf16.mxu0 %v4270
    %4336 = vmatpush2.bf16.msra.mxu0 %v4269
    %4337 = vmatprep.subr.bf16.mxu0 %v4268
    %4338 = vmatpush2.bf16.msra.mxu0 %v4267
    %4339 = vmatprep.subr.bf16.mxu0 %v4266
    %4340 = vmatpush2.bf16.msra.mxu0 %v4265
    %4341 = vmatprep.subr.bf16.mxu0 %v4264
    %4342 = vmatpush2.bf16.msra.mxu0 %v4263
    %4343 = vmatprep.mubr.bf16.mxu0 %v3272
    %4344 = vmatmul.mubr.bf16.gmra.mxu0 %v3271
    %v4345 = vpop.f32.mrf.mxu0
    %v4346 = vadd.f32 0.0, %v4345
    %v4347 = vpop.f32.mrf.mxu0
    %v4348 = vadd.f32 0.0, %v4347
    %v4349 = vpop.f32.mrf.mxu0
    %v4350 = vadd.f32 0.0, %v4349
    %v4351 = vpop.f32.mrf.mxu0
    %v4352 = vadd.f32 0.0, %v4351
    %4353 = vmatprep.mubr.bf16.mxu0 %v3274
    %4354 = vmatmul.mubr.bf16.gmra.mxu0 %v3273
    %v4355 = vpop.f32.mrf.mxu0
    %v4356 = vadd.f32 0.0, %v4355
    %v4357 = vpop.f32.mrf.mxu0
    %v4358 = vadd.f32 0.0, %v4357
    %v4359 = vpop.f32.mrf.mxu0
    %v4360 = vadd.f32 0.0, %v4359
    %v4361 = vpop.f32.mrf.mxu0
    %v4362 = vadd.f32 0.0, %v4361
    %4363 = vdwg.mxu0
    %v4364 = vld [vmem:[%s7] sm:$0x3]
    %v4366 = vlaneseq
    %v4367 = vshrl.u32 %v4366, 7
    %v4368 = vsub.s32 0, %v4367
    %v4369 = vrot.slane %v4364, %v4368
    %v4370 = vlaneseq
    %v4371 = vshrl.u32 %v4370, 7
    %v4372 = vsub.s32 1, %v4371
    %v4373 = vrot.slane %v4364, %v4372
    %v4376 = vadd.f32 %v4111, %v4369
    %v4377 = vadd.f32 %v4112, %v4373
    %v4378 = vadd.f32 %v4113, %v4369
    %v4379 = vadd.f32 %v4114, %v4373
    %v4380 = vadd.f32 %v4115, %v4369
    %v4381 = vadd.f32 %v4116, %v4373
    %v4382 = vadd.f32 %v4117, %v4369
    %v4383 = vadd.f32 %v4118, %v4373
    %v4384 = vmax.f32 %v4376, 0.0
    %v4385 = vmax.f32 %v4377, 0.0
    %v4386 = vmax.f32 %v4378, 0.0
    %v4387 = vmax.f32 %v4379, 0.0
    %v4388 = vmax.f32 %v4380, 0.0
    %v4389 = vmax.f32 %v4381, 0.0
    %v4390 = vmax.f32 %v4382, 0.0
    %v4391 = vmax.f32 %v4383, 0.0
    %v4392 = vsel %vm3024, 1, 0
    %v4393 = vsel %vm3025, 1, 0
    %v4394 = vsel %vm3026, 1, 0
    %v4395 = vsel %vm3027, 1, 0
    %vm4396 = vcmp.eq.s32.totalorder %v4392, 1
    %vm4397 = vcmp.eq.s32.totalorder %v4393, 1
    %vm4398 = vcmp.eq.s32.totalorder %v4394, 1
    %vm4399 = vcmp.eq.s32.totalorder %v4395, 1
    %v4400 = vsel %vm4396, %v4384, 0.0
    %v4401 = vsel %vm4396, %v4385, 0.0
    %v4402 = vsel %vm4397, %v4386, 0.0
    %v4403 = vsel %vm4397, %v4387, 0.0
    %v4404 = vsel %vm4398, %v4388, 0.0
    %v4405 = vsel %vm4398, %v4389, 0.0
    %v4406 = vsel %vm4399, %v4390, 0.0
    %v4407 = vsel %vm4399, %v4391, 0.0
    %4408 = vst.msk [vmem:[#allocation4] ss:$8 sm:$0x3] %vm656, 0.0
    %4409 = vst.msk [vmem:[#allocation4] ss:$8 sm:$0x0] %vm656, 0.0
    %v4418 = vrot.slane %v4400, 7
    %v4419 = vrot.slane %v4401, 7
    %v4420 = vrot.slane %v4402, 7
    %v4421 = vsel %vm675, %v4418, %v4420
    %v4422 = vrot.slane %v4403, 7
    %v4423 = vsel %vm675, %v4419, %v4422
    %v4424 = vrot.slane %v4404, 7
    %v4425 = vsel %vm675, %v4420, %v4424
    %v4426 = vrot.slane %v4405, 7
    %v4427 = vsel %vm675, %v4422, %v4426
    %v4428 = vrot.slane %v4406, 7
    %v4429 = vsel %vm675, %v4424, %v4428
    %v4430 = vrot.slane %v4407, 7
    %v4431 = vsel %vm675, %v4426, %v4430
    %4440 = vst [vmem:[#allocation4] sm:$0xfe] %v4418
    %4441 = vst [vmem:[#allocation4 + $0x8] sm:$0xfe] %v4419
    %4442 = vst [vmem:[#allocation4 + $0x10] sm:$0xff] %v4421
    %4443 = vst [vmem:[#allocation4 + $0x18] sm:$0xff] %v4423
    %4444 = vst [vmem:[#allocation4 + $0x20] sm:$0xff] %v4425
    %4445 = vst [vmem:[#allocation4 + $0x28] sm:$0xff] %v4427
    %4446 = vst [vmem:[#allocation4 + $0x30] sm:$0x7f] %v4429
    %4447 = vst [vmem:[#allocation4 + $0x38] sm:$0x7f] %v4431
    %s4448 = scalar_lea.vmem [#allocation4], 55
    %4449 = vst.msk [vmem:[%s4448] ss:$8 sm:$0x3] %vm656, 0.0
    %4450 = vst.msk [vmem:[%s4448] ss:$8 sm:$0x0] %vm656, 0.0
    %v4451 = vld [vmem:[#allocation4] sm:$0xff]
    %v4452 = vld [vmem:[#allocation4 + $0x8] sm:$0xff]
    %v4453 = vld [vmem:[#allocation4 + $0x10] sm:$0xff]
    %v4454 = vld [vmem:[#allocation4 + $0x18] sm:$0xff]
    %v4455 = vld [vmem:[#allocation4 + $0x20] sm:$0xff]
    %v4456 = vld [vmem:[#allocation4 + $0x28] sm:$0xff]
    %v4457 = vld [vmem:[#allocation4 + $0x30] sm:$0x3f]
    %v4458 = vld [vmem:[#allocation4 + $0x38] sm:$0x3f]
    %v4459 = vpack.c.bf16 %v4453, %v4451
    %v4460 = vpack.c.bf16 %v4454, %v4452
    %v4461 = vpack.c.bf16 %v4457, %v4455
    %v4462 = vpack.c.bf16 %v4458, %v4456
    %v4463 = vld [vmem:[%s8] sm:$0xff]
    %v4464 = vld [vmem:[%s8 + $0x8] sm:$0xff]
    %v4465 = vld [vmem:[%s8 + $0x10] sm:$0xff]
    %v4466 = vld [vmem:[%s8 + $0x18] sm:$0xff]
    %v4467 = vld [vmem:[%s8 + $0x20] sm:$0xff]
    %v4468 = vld [vmem:[%s8 + $0x28] sm:$0xff]
    %v4469 = vld [vmem:[%s8 + $0x30] sm:$0xff]
    %v4470 = vld [vmem:[%s8 + $0x38] sm:$0xff]
    %v4471 = vld [vmem:[%s8 + $0x40] sm:$0xff]
    %v4472 = vld [vmem:[%s8 + $0x48] sm:$0xff]
    %v4473 = vld [vmem:[%s8 + $0x50] sm:$0xff]
    %v4474 = vld [vmem:[%s8 + $0x58] sm:$0xff]
    %v4475 = vld [vmem:[%s8 + $0x60] sm:$0xff]
    %v4476 = vld [vmem:[%s8 + $0x68] sm:$0xff]
    %v4477 = vld [vmem:[%s8 + $0x70] sm:$0xff]
    %v4478 = vld [vmem:[%s8 + $0x78] sm:$0xff]
    %v4479 = vld [vmem:[%s8 + $0x80] sm:$0xff]
    %v4480 = vld [vmem:[%s8 + $0x88] sm:$0xff]
    %v4481 = vld [vmem:[%s8 + $0x90] sm:$0xff]
    %v4482 = vld [vmem:[%s8 + $0x98] sm:$0xff]
    %v4483 = vld [vmem:[%s8 + $0xa0] sm:$0xff]
    %v4484 = vld [vmem:[%s8 + $0xa8] sm:$0xff]
    %v4485 = vld [vmem:[%s8 + $0xb0] sm:$0xff]
    %v4486 = vld [vmem:[%s8 + $0xb8] sm:$0xff]
    %v4487 = vld [vmem:[%s8 + $0xc0] sm:$0xff]
    %v4488 = vld [vmem:[%s8 + $0xc8] sm:$0xff]
    %v4489 = vld [vmem:[%s8 + $0xd0] sm:$0xff]
    %v4490 = vld [vmem:[%s8 + $0xd8] sm:$0xff]
    %v4491 = vld [vmem:[%s8 + $0xe0] sm:$0xff]
    %v4492 = vld [vmem:[%s8 + $0xe8] sm:$0xff]
    %v4493 = vld [vmem:[%s8 + $0xf0] sm:$0xff]
    %v4494 = vld [vmem:[%s8 + $0xf8] sm:$0xff]
    %v4495 = vld [vmem:[#allocation4] sm:$0xfe]
    %v4496 = vld [vmem:[#allocation4 + $0x8] sm:$0xfe]
    %v4497 = vld [vmem:[#allocation4 + $0x30] sm:$0x7f]
    %v4498 = vld [vmem:[#allocation4 + $0x38] sm:$0x7f]
    %v4499 = vpack.c.bf16 %v4453, %v4495
    %v4500 = vpack.c.bf16 %v4454, %v4496
    %v4501 = vpack.c.bf16 %v4497, %v4455
    %v4502 = vpack.c.bf16 %v4498, %v4456
    %s4503 = scalar_lea.vmem %s8, 256
    %v4504 = vld [vmem:[%s4503] sm:$0xff]
    %v4505 = vld [vmem:[%s4503 + $0x8] sm:$0xff]
    %v4506 = vld [vmem:[%s4503 + $0x10] sm:$0xff]
    %v4507 = vld [vmem:[%s4503 + $0x18] sm:$0xff]
    %v4508 = vld [vmem:[%s4503 + $0x20] sm:$0xff]
    %v4509 = vld [vmem:[%s4503 + $0x28] sm:$0xff]
    %v4510 = vld [vmem:[%s4503 + $0x30] sm:$0xff]
    %v4511 = vld [vmem:[%s4503 + $0x38] sm:$0xff]
    %v4512 = vld [vmem:[%s4503 + $0x40] sm:$0xff]
    %v4513 = vld [vmem:[%s4503 + $0x48] sm:$0xff]
    %v4514 = vld [vmem:[%s4503 + $0x50] sm:$0xff]
    %v4515 = vld [vmem:[%s4503 + $0x58] sm:$0xff]
    %v4516 = vld [vmem:[%s4503 + $0x60] sm:$0xff]
    %v4517 = vld [vmem:[%s4503 + $0x68] sm:$0xff]
    %v4518 = vld [vmem:[%s4503 + $0x70] sm:$0xff]
    %v4519 = vld [vmem:[%s4503 + $0x78] sm:$0xff]
    %v4520 = vld [vmem:[%s4503 + $0x80] sm:$0xff]
    %v4521 = vld [vmem:[%s4503 + $0x88] sm:$0xff]
    %v4522 = vld [vmem:[%s4503 + $0x90] sm:$0xff]
    %v4523 = vld [vmem:[%s4503 + $0x98] sm:$0xff]
    %v4524 = vld [vmem:[%s4503 + $0xa0] sm:$0xff]
    %v4525 = vld [vmem:[%s4503 + $0xa8] sm:$0xff]
    %v4526 = vld [vmem:[%s4503 + $0xb0] sm:$0xff]
    %v4527 = vld [vmem:[%s4503 + $0xb8] sm:$0xff]
    %v4528 = vld [vmem:[%s4503 + $0xc0] sm:$0xff]
    %v4529 = vld [vmem:[%s4503 + $0xc8] sm:$0xff]
    %v4530 = vld [vmem:[%s4503 + $0xd0] sm:$0xff]
    %v4531 = vld [vmem:[%s4503 + $0xd8] sm:$0xff]
    %v4532 = vld [vmem:[%s4503 + $0xe0] sm:$0xff]
    %v4533 = vld [vmem:[%s4503 + $0xe8] sm:$0xff]
    %v4534 = vld [vmem:[%s4503 + $0xf0] sm:$0xff]
    %v4535 = vld [vmem:[%s4503 + $0xf8] sm:$0xff]
    %v4537 = vshrl.u32 %v4499, 16
    %v4539 = vshll.u32 %v4499, 16
    %v4541 = vrot.slane %v4539, 1
    %v4542 = vor.u32 %v4537, %v4541
    %v4544 = vshll.u32 %v4501, 16
    %v4546 = vrot.slane %v4544, 1
    %v4547 = vsel %vm115, %v4542, %v4546
    %v4549 = vshrl.u32 %v4500, 16
    %v4551 = vshll.u32 %v4500, 16
    %v4553 = vrot.slane %v4551, 1
    %v4554 = vor.u32 %v4549, %v4553
    %v4556 = vshll.u32 %v4502, 16
    %v4558 = vrot.slane %v4556, 1
    %v4559 = vsel %vm115, %v4554, %v4558
    %v4560 = vshrl.u32 %v4501, 16
    %v4562 = vor.u32 %v4560, %v4546
    %v4563 = vshrl.u32 %v4502, 16
    %v4565 = vor.u32 %v4563, %v4558
    %v4602 = vunpack.c.l.b16 %v4504
    %v4603 = vunpack.c.h.b16 %v4504
    %v4604 = vunpack.c.l.b16 %v4505
    %v4605 = vunpack.c.h.b16 %v4505
    %v4606 = vunpack.c.l.b16 %v4506
    %v4607 = vunpack.c.h.b16 %v4506
    %v4608 = vunpack.c.l.b16 %v4507
    %v4609 = vunpack.c.h.b16 %v4507
    %v4610 = vunpack.c.l.b16 %v4508
    %v4611 = vunpack.c.h.b16 %v4508
    %v4612 = vunpack.c.l.b16 %v4509
    %v4613 = vunpack.c.h.b16 %v4509
    %v4614 = vunpack.c.l.b16 %v4510
    %v4615 = vunpack.c.h.b16 %v4510
    %v4616 = vunpack.c.l.b16 %v4511
    %v4617 = vunpack.c.h.b16 %v4511
    %v4618 = vunpack.c.l.b16 %v4512
    %v4619 = vunpack.c.h.b16 %v4512
    %v4620 = vunpack.c.l.b16 %v4513
    %v4621 = vunpack.c.h.b16 %v4513
    %v4622 = vunpack.c.l.b16 %v4514
    %v4623 = vunpack.c.h.b16 %v4514
    %v4624 = vunpack.c.l.b16 %v4515
    %v4625 = vunpack.c.h.b16 %v4515
    %v4626 = vunpack.c.l.b16 %v4516
    %v4627 = vunpack.c.h.b16 %v4516
    %v4628 = vunpack.c.l.b16 %v4517
    %v4629 = vunpack.c.h.b16 %v4517
    %v4630 = vunpack.c.l.b16 %v4518
    %v4631 = vunpack.c.h.b16 %v4518
    %v4632 = vunpack.c.l.b16 %v4519
    %v4633 = vunpack.c.h.b16 %v4519
    %v4634 = vunpack.c.l.b16 %v4520
    %v4635 = vunpack.c.h.b16 %v4520
    %v4636 = vunpack.c.l.b16 %v4521
    %v4637 = vunpack.c.h.b16 %v4521
    %v4638 = vunpack.c.l.b16 %v4522
    %v4639 = vunpack.c.h.b16 %v4522
    %v4640 = vunpack.c.l.b16 %v4523
    %v4641 = vunpack.c.h.b16 %v4523
    %v4642 = vunpack.c.l.b16 %v4524
    %v4643 = vunpack.c.h.b16 %v4524
    %v4644 = vunpack.c.l.b16 %v4525
    %v4645 = vunpack.c.h.b16 %v4525
    %v4646 = vunpack.c.l.b16 %v4526
    %v4647 = vunpack.c.h.b16 %v4526
    %v4648 = vunpack.c.l.b16 %v4527
    %v4649 = vunpack.c.h.b16 %v4527
    %v4650 = vunpack.c.l.b16 %v4528
    %v4651 = vunpack.c.h.b16 %v4528
    %v4652 = vunpack.c.l.b16 %v4529
    %v4653 = vunpack.c.h.b16 %v4529
    %v4654 = vunpack.c.l.b16 %v4530
    %v4655 = vunpack.c.h.b16 %v4530
    %v4656 = vunpack.c.l.b16 %v4531
    %v4657 = vunpack.c.h.b16 %v4531
    %v4658 = vunpack.c.l.b16 %v4532
    %v4659 = vunpack.c.h.b16 %v4532
    %v4660 = vunpack.c.l.b16 %v4533
    %v4661 = vunpack.c.h.b16 %v4533
    %v4662 = vunpack.c.l.b16 %v4534
    %v4663 = vunpack.c.h.b16 %v4534
    %v4664 = vunpack.c.l.b16 %v4535
    %v4665 = vunpack.c.h.b16 %v4535
    %v4666 = vpack.c.b16 %v4604, %v4602
    %v4667 = vpack.c.b16 %v4605, %v4603
    %v4668 = vpack.c.b16 %v4608, %v4606
    %v4669 = vpack.c.b16 %v4609, %v4607
    %v4670 = vpack.c.b16 %v4612, %v4610
    %v4671 = vpack.c.b16 %v4613, %v4611
    %v4672 = vpack.c.b16 %v4616, %v4614
    %v4673 = vpack.c.b16 %v4617, %v4615
    %v4674 = vpack.c.b16 %v4620, %v4618
    %v4675 = vpack.c.b16 %v4621, %v4619
    %v4676 = vpack.c.b16 %v4624, %v4622
    %v4677 = vpack.c.b16 %v4625, %v4623
    %v4678 = vpack.c.b16 %v4628, %v4626
    %v4679 = vpack.c.b16 %v4629, %v4627
    %v4680 = vpack.c.b16 %v4632, %v4630
    %v4681 = vpack.c.b16 %v4633, %v4631
    %v4682 = vpack.c.b16 %v4636, %v4634
    %v4683 = vpack.c.b16 %v4637, %v4635
    %v4684 = vpack.c.b16 %v4640, %v4638
    %v4685 = vpack.c.b16 %v4641, %v4639
    %v4686 = vpack.c.b16 %v4644, %v4642
    %v4687 = vpack.c.b16 %v4645, %v4643
    %v4688 = vpack.c.b16 %v4648, %v4646
    %v4689 = vpack.c.b16 %v4649, %v4647
    %v4690 = vpack.c.b16 %v4652, %v4650
    %v4691 = vpack.c.b16 %v4653, %v4651
    %v4692 = vpack.c.b16 %v4656, %v4654
    %v4693 = vpack.c.b16 %v4657, %v4655
    %v4694 = vpack.c.b16 %v4660, %v4658
    %v4695 = vpack.c.b16 %v4661, %v4659
    %v4696 = vpack.c.b16 %v4664, %v4662
    %v4697 = vpack.c.b16 %v4665, %v4663
    %4730 = vmatprep.subr.bf16.mxu0 %v4681
    %4731 = vmatpush1.bf16.msra.mxu0 %v4680
    %4732 = vmatprep.subr.bf16.mxu0 %v4679
    %4733 = vmatpush1.bf16.msra.mxu0 %v4678
    %4734 = vmatprep.subr.bf16.mxu0 %v4677
    %4735 = vmatpush1.bf16.msra.mxu0 %v4676
    %4736 = vmatprep.subr.bf16.mxu0 %v4675
    %4737 = vmatpush1.bf16.msra.mxu0 %v4674
    %4738 = vmatprep.subr.bf16.mxu0 %v4673
    %4739 = vmatpush1.bf16.msra.mxu0 %v4672
    %4740 = vmatprep.subr.bf16.mxu0 %v4671
    %4741 = vmatpush1.bf16.msra.mxu0 %v4670
    %4742 = vmatprep.subr.bf16.mxu0 %v4669
    %4743 = vmatpush1.bf16.msra.mxu0 %v4668
    %4744 = vmatprep.subr.bf16.mxu0 %v4667
    %4745 = vmatpush1.bf16.msra.mxu0 %v4666
    %4746 = vmatprep.subr.bf16.mxu0 %v4697
    %4747 = vmatpush2.bf16.msra.mxu0 %v4696
    %4748 = vmatprep.subr.bf16.mxu0 %v4695
    %4749 = vmatpush2.bf16.msra.mxu0 %v4694
    %4750 = vmatprep.subr.bf16.mxu0 %v4693
    %4751 = vmatpush2.bf16.msra.mxu0 %v4692
    %4752 = vmatprep.subr.bf16.mxu0 %v4691
    %4753 = vmatpush2.bf16.msra.mxu0 %v4690
    %4754 = vmatprep.subr.bf16.mxu0 %v4689
    %4755 = vmatpush2.bf16.msra.mxu0 %v4688
    %4756 = vmatprep.subr.bf16.mxu0 %v4687
    %4757 = vmatpush2.bf16.msra.mxu0 %v4686
    %4758 = vmatprep.subr.bf16.mxu0 %v4685
    %4759 = vmatpush2.bf16.msra.mxu0 %v4684
    %4760 = vmatprep.subr.bf16.mxu0 %v4683
    %4761 = vmatpush2.bf16.msra.mxu0 %v4682
    %4762 = vmatprep.mubr.bf16.mxu0 %v4559
    %4763 = vmatmul.mubr.bf16.gmra.mxu0 %v4547
    %v4764 = vpop.f32.mrf.mxu0
    %v4765 = vadd.f32 0.0, %v4764
    %v4766 = vpop.f32.mrf.mxu0
    %v4767 = vadd.f32 0.0, %v4766
    %v4768 = vpop.f32.mrf.mxu0
    %v4769 = vadd.f32 0.0, %v4768
    %v4770 = vpop.f32.mrf.mxu0
    %v4771 = vadd.f32 0.0, %v4770
    %4772 = vmatprep.mubr.bf16.mxu0 %v4565
    %4773 = vmatmul.mubr.bf16.gmra.mxu0 %v4562
    %v4774 = vpop.f32.mrf.mxu0
    %v4775 = vadd.f32 0.0, %v4774
    %v4776 = vpop.f32.mrf.mxu0
    %v4777 = vadd.f32 0.0, %v4776
    %v4778 = vpop.f32.mrf.mxu0
    %v4779 = vadd.f32 0.0, %v4778
    %v4780 = vpop.f32.mrf.mxu0
    %v4781 = vadd.f32 0.0, %v4780
    %4782 = vdwg.mxu0
    %v4815 = vunpack.c.l.b16 %v4463
    %v4816 = vunpack.c.h.b16 %v4463
    %v4817 = vunpack.c.l.b16 %v4464
    %v4818 = vunpack.c.h.b16 %v4464
    %v4819 = vunpack.c.l.b16 %v4465
    %v4820 = vunpack.c.h.b16 %v4465
    %v4821 = vunpack.c.l.b16 %v4466
    %v4822 = vunpack.c.h.b16 %v4466
    %v4823 = vunpack.c.l.b16 %v4467
    %v4824 = vunpack.c.h.b16 %v4467
    %v4825 = vunpack.c.l.b16 %v4468
    %v4826 = vunpack.c.h.b16 %v4468
    %v4827 = vunpack.c.l.b16 %v4469
    %v4828 = vunpack.c.h.b16 %v4469
    %v4829 = vunpack.c.l.b16 %v4470
    %v4830 = vunpack.c.h.b16 %v4470
    %v4831 = vunpack.c.l.b16 %v4471
    %v4832 = vunpack.c.h.b16 %v4471
    %v4833 = vunpack.c.l.b16 %v4472
    %v4834 = vunpack.c.h.b16 %v4472
    %v4835 = vunpack.c.l.b16 %v4473
    %v4836 = vunpack.c.h.b16 %v4473
    %v4837 = vunpack.c.l.b16 %v4474
    %v4838 = vunpack.c.h.b16 %v4474
    %v4839 = vunpack.c.l.b16 %v4475
    %v4840 = vunpack.c.h.b16 %v4475
    %v4841 = vunpack.c.l.b16 %v4476
    %v4842 = vunpack.c.h.b16 %v4476
    %v4843 = vunpack.c.l.b16 %v4477
    %v4844 = vunpack.c.h.b16 %v4477
    %v4845 = vunpack.c.l.b16 %v4478
    %v4846 = vunpack.c.h.b16 %v4478
    %v4847 = vunpack.c.l.b16 %v4479
    %v4848 = vunpack.c.h.b16 %v4479
    %v4849 = vunpack.c.l.b16 %v4480
    %v4850 = vunpack.c.h.b16 %v4480
    %v4851 = vunpack.c.l.b16 %v4481
    %v4852 = vunpack.c.h.b16 %v4481
    %v4853 = vunpack.c.l.b16 %v4482
    %v4854 = vunpack.c.h.b16 %v4482
    %v4855 = vunpack.c.l.b16 %v4483
    %v4856 = vunpack.c.h.b16 %v4483
    %v4857 = vunpack.c.l.b16 %v4484
    %v4858 = vunpack.c.h.b16 %v4484
    %v4859 = vunpack.c.l.b16 %v4485
    %v4860 = vunpack.c.h.b16 %v4485
    %v4861 = vunpack.c.l.b16 %v4486
    %v4862 = vunpack.c.h.b16 %v4486
    %v4863 = vunpack.c.l.b16 %v4487
    %v4864 = vunpack.c.h.b16 %v4487
    %v4865 = vunpack.c.l.b16 %v4488
    %v4866 = vunpack.c.h.b16 %v4488
    %v4867 = vunpack.c.l.b16 %v4489
    %v4868 = vunpack.c.h.b16 %v4489
    %v4869 = vunpack.c.l.b16 %v4490
    %v4870 = vunpack.c.h.b16 %v4490
    %v4871 = vunpack.c.l.b16 %v4491
    %v4872 = vunpack.c.h.b16 %v4491
    %v4873 = vunpack.c.l.b16 %v4492
    %v4874 = vunpack.c.h.b16 %v4492
    %v4875 = vunpack.c.l.b16 %v4493
    %v4876 = vunpack.c.h.b16 %v4493
    %v4877 = vunpack.c.l.b16 %v4494
    %v4878 = vunpack.c.h.b16 %v4494
    %v4879 = vpack.c.b16 %v4817, %v4815
    %v4880 = vpack.c.b16 %v4818, %v4816
    %v4881 = vpack.c.b16 %v4821, %v4819
    %v4882 = vpack.c.b16 %v4822, %v4820
    %v4883 = vpack.c.b16 %v4825, %v4823
    %v4884 = vpack.c.b16 %v4826, %v4824
    %v4885 = vpack.c.b16 %v4829, %v4827
    %v4886 = vpack.c.b16 %v4830, %v4828
    %v4887 = vpack.c.b16 %v4833, %v4831
    %v4888 = vpack.c.b16 %v4834, %v4832
    %v4889 = vpack.c.b16 %v4837, %v4835
    %v4890 = vpack.c.b16 %v4838, %v4836
    %v4891 = vpack.c.b16 %v4841, %v4839
    %v4892 = vpack.c.b16 %v4842, %v4840
    %v4893 = vpack.c.b16 %v4845, %v4843
    %v4894 = vpack.c.b16 %v4846, %v4844
    %v4895 = vpack.c.b16 %v4849, %v4847
    %v4896 = vpack.c.b16 %v4850, %v4848
    %v4897 = vpack.c.b16 %v4853, %v4851
    %v4898 = vpack.c.b16 %v4854, %v4852
    %v4899 = vpack.c.b16 %v4857, %v4855
    %v4900 = vpack.c.b16 %v4858, %v4856
    %v4901 = vpack.c.b16 %v4861, %v4859
    %v4902 = vpack.c.b16 %v4862, %v4860
    %v4903 = vpack.c.b16 %v4865, %v4863
    %v4904 = vpack.c.b16 %v4866, %v4864
    %v4905 = vpack.c.b16 %v4869, %v4867
    %v4906 = vpack.c.b16 %v4870, %v4868
    %v4907 = vpack.c.b16 %v4873, %v4871
    %v4908 = vpack.c.b16 %v4874, %v4872
    %v4909 = vpack.c.b16 %v4877, %v4875
    %v4910 = vpack.c.b16 %v4878, %v4876
    %4943 = vmatprep.subr.bf16.mxu0 %v4894
    %4944 = vmatpush1.bf16.msra.mxu0 %v4893
    %4945 = vmatprep.subr.bf16.mxu0 %v4892
    %4946 = vmatpush1.bf16.msra.mxu0 %v4891
    %4947 = vmatprep.subr.bf16.mxu0 %v4890
    %4948 = vmatpush1.bf16.msra.mxu0 %v4889
    %4949 = vmatprep.subr.bf16.mxu0 %v4888
    %4950 = vmatpush1.bf16.msra.mxu0 %v4887
    %4951 = vmatprep.subr.bf16.mxu0 %v4886
    %4952 = vmatpush1.bf16.msra.mxu0 %v4885
    %4953 = vmatprep.subr.bf16.mxu0 %v4884
    %4954 = vmatpush1.bf16.msra.mxu0 %v4883
    %4955 = vmatprep.subr.bf16.mxu0 %v4882
    %4956 = vmatpush1.bf16.msra.mxu0 %v4881
    %4957 = vmatprep.subr.bf16.mxu0 %v4880
    %4958 = vmatpush1.bf16.msra.mxu0 %v4879
    %4959 = vmatprep.subr.bf16.mxu0 %v4910
    %4960 = vmatpush2.bf16.msra.mxu0 %v4909
    %4961 = vmatprep.subr.bf16.mxu0 %v4908
    %4962 = vmatpush2.bf16.msra.mxu0 %v4907
    %4963 = vmatprep.subr.bf16.mxu0 %v4906
    %4964 = vmatpush2.bf16.msra.mxu0 %v4905
    %4965 = vmatprep.subr.bf16.mxu0 %v4904
    %4966 = vmatpush2.bf16.msra.mxu0 %v4903
    %4967 = vmatprep.subr.bf16.mxu0 %v4902
    %4968 = vmatpush2.bf16.msra.mxu0 %v4901
    %4969 = vmatprep.subr.bf16.mxu0 %v4900
    %4970 = vmatpush2.bf16.msra.mxu0 %v4899
    %4971 = vmatprep.subr.bf16.mxu0 %v4898
    %4972 = vmatpush2.bf16.msra.mxu0 %v4897
    %4973 = vmatprep.subr.bf16.mxu0 %v4896
    %4974 = vmatpush2.bf16.msra.mxu0 %v4895
    %4975 = vmatprep.mubr.bf16.mxu0 %v4460
    %4976 = vmatmul.mubr.bf16.gmra.mxu0 %v4459
    %v4977 = vpop.f32.mrf.mxu0
    %v4978 = vadd.f32 %v4765, %v4977
    %v4979 = vpop.f32.mrf.mxu0
    %v4980 = vadd.f32 %v4767, %v4979
    %v4981 = vpop.f32.mrf.mxu0
    %v4982 = vadd.f32 %v4769, %v4981
    %v4983 = vpop.f32.mrf.mxu0
    %v4984 = vadd.f32 %v4771, %v4983
    %4985 = vmatprep.mubr.bf16.mxu0 %v4462
    %4986 = vmatmul.mubr.bf16.gmra.mxu0 %v4461
    %v4987 = vpop.f32.mrf.mxu0
    %v4988 = vadd.f32 %v4775, %v4987
    %v4989 = vpop.f32.mrf.mxu0
    %v4990 = vadd.f32 %v4777, %v4989
    %v4991 = vpop.f32.mrf.mxu0
    %v4992 = vadd.f32 %v4779, %v4991
    %v4993 = vpop.f32.mrf.mxu0
    %v4994 = vadd.f32 %v4781, %v4993
    %4995 = vdwg.mxu0
    %v4996 = vld [vmem:[#allocation4] sm:$0xfc]
    %v4997 = vld [vmem:[#allocation4 + $0x8] sm:$0xfc]
    %v4998 = vld [vmem:[#allocation4 + $0x30] sm:$0xff]
    %v4999 = vld [vmem:[#allocation4 + $0x38] sm:$0xff]
    %v5000 = vpack.c.bf16 %v4453, %v4996
    %v5001 = vpack.c.bf16 %v4454, %v4997
    %v5002 = vpack.c.bf16 %v4998, %v4455
    %v5003 = vpack.c.bf16 %v4999, %v4456
    %s5004 = scalar_lea.vmem %s8, 512
    %v5005 = vld [vmem:[%s5004] sm:$0xff]
    %v5006 = vld [vmem:[%s5004 + $0x8] sm:$0xff]
    %v5007 = vld [vmem:[%s5004 + $0x10] sm:$0xff]
    %v5008 = vld [vmem:[%s5004 + $0x18] sm:$0xff]
    %v5009 = vld [vmem:[%s5004 + $0x20] sm:$0xff]
    %v5010 = vld [vmem:[%s5004 + $0x28] sm:$0xff]
    %v5011 = vld [vmem:[%s5004 + $0x30] sm:$0xff]
    %v5012 = vld [vmem:[%s5004 + $0x38] sm:$0xff]
    %v5013 = vld [vmem:[%s5004 + $0x40] sm:$0xff]
    %v5014 = vld [vmem:[%s5004 + $0x48] sm:$0xff]
    %v5015 = vld [vmem:[%s5004 + $0x50] sm:$0xff]
    %v5016 = vld [vmem:[%s5004 + $0x58] sm:$0xff]
    %v5017 = vld [vmem:[%s5004 + $0x60] sm:$0xff]
    %v5018 = vld [vmem:[%s5004 + $0x68] sm:$0xff]
    %v5019 = vld [vmem:[%s5004 + $0x70] sm:$0xff]
    %v5020 = vld [vmem:[%s5004 + $0x78] sm:$0xff]
    %v5021 = vld [vmem:[%s5004 + $0x80] sm:$0xff]
    %v5022 = vld [vmem:[%s5004 + $0x88] sm:$0xff]
    %v5023 = vld [vmem:[%s5004 + $0x90] sm:$0xff]
    %v5024 = vld [vmem:[%s5004 + $0x98] sm:$0xff]
    %v5025 = vld [vmem:[%s5004 + $0xa0] sm:$0xff]
    %v5026 = vld [vmem:[%s5004 + $0xa8] sm:$0xff]
    %v5027 = vld [vmem:[%s5004 + $0xb0] sm:$0xff]
    %v5028 = vld [vmem:[%s5004 + $0xb8] sm:$0xff]
    %v5029 = vld [vmem:[%s5004 + $0xc0] sm:$0xff]
    %v5030 = vld [vmem:[%s5004 + $0xc8] sm:$0xff]
    %v5031 = vld [vmem:[%s5004 + $0xd0] sm:$0xff]
    %v5032 = vld [vmem:[%s5004 + $0xd8] sm:$0xff]
    %v5033 = vld [vmem:[%s5004 + $0xe0] sm:$0xff]
    %v5034 = vld [vmem:[%s5004 + $0xe8] sm:$0xff]
    %v5035 = vld [vmem:[%s5004 + $0xf0] sm:$0xff]
    %v5036 = vld [vmem:[%s5004 + $0xf8] sm:$0xff]
    %v5041 = vrot.slane %v5000, 1
    %v5042 = vrot.slane %v5002, 1
    %v5043 = vsel %vm389, %v5041, %v5042
    %v5044 = vrot.slane %v5001, 1
    %v5045 = vrot.slane %v5003, 1
    %v5046 = vsel %vm389, %v5044, %v5045
    %v5083 = vunpack.c.l.b16 %v5005
    %v5084 = vunpack.c.h.b16 %v5005
    %v5085 = vunpack.c.l.b16 %v5006
    %v5086 = vunpack.c.h.b16 %v5006
    %v5087 = vunpack.c.l.b16 %v5007
    %v5088 = vunpack.c.h.b16 %v5007
    %v5089 = vunpack.c.l.b16 %v5008
    %v5090 = vunpack.c.h.b16 %v5008
    %v5091 = vunpack.c.l.b16 %v5009
    %v5092 = vunpack.c.h.b16 %v5009
    %v5093 = vunpack.c.l.b16 %v5010
    %v5094 = vunpack.c.h.b16 %v5010
    %v5095 = vunpack.c.l.b16 %v5011
    %v5096 = vunpack.c.h.b16 %v5011
    %v5097 = vunpack.c.l.b16 %v5012
    %v5098 = vunpack.c.h.b16 %v5012
    %v5099 = vunpack.c.l.b16 %v5013
    %v5100 = vunpack.c.h.b16 %v5013
    %v5101 = vunpack.c.l.b16 %v5014
    %v5102 = vunpack.c.h.b16 %v5014
    %v5103 = vunpack.c.l.b16 %v5015
    %v5104 = vunpack.c.h.b16 %v5015
    %v5105 = vunpack.c.l.b16 %v5016
    %v5106 = vunpack.c.h.b16 %v5016
    %v5107 = vunpack.c.l.b16 %v5017
    %v5108 = vunpack.c.h.b16 %v5017
    %v5109 = vunpack.c.l.b16 %v5018
    %v5110 = vunpack.c.h.b16 %v5018
    %v5111 = vunpack.c.l.b16 %v5019
    %v5112 = vunpack.c.h.b16 %v5019
    %v5113 = vunpack.c.l.b16 %v5020
    %v5114 = vunpack.c.h.b16 %v5020
    %v5115 = vunpack.c.l.b16 %v5021
    %v5116 = vunpack.c.h.b16 %v5021
    %v5117 = vunpack.c.l.b16 %v5022
    %v5118 = vunpack.c.h.b16 %v5022
    %v5119 = vunpack.c.l.b16 %v5023
    %v5120 = vunpack.c.h.b16 %v5023
    %v5121 = vunpack.c.l.b16 %v5024
    %v5122 = vunpack.c.h.b16 %v5024
    %v5123 = vunpack.c.l.b16 %v5025
    %v5124 = vunpack.c.h.b16 %v5025
    %v5125 = vunpack.c.l.b16 %v5026
    %v5126 = vunpack.c.h.b16 %v5026
    %v5127 = vunpack.c.l.b16 %v5027
    %v5128 = vunpack.c.h.b16 %v5027
    %v5129 = vunpack.c.l.b16 %v5028
    %v5130 = vunpack.c.h.b16 %v5028
    %v5131 = vunpack.c.l.b16 %v5029
    %v5132 = vunpack.c.h.b16 %v5029
    %v5133 = vunpack.c.l.b16 %v5030
    %v5134 = vunpack.c.h.b16 %v5030
    %v5135 = vunpack.c.l.b16 %v5031
    %v5136 = vunpack.c.h.b16 %v5031
    %v5137 = vunpack.c.l.b16 %v5032
    %v5138 = vunpack.c.h.b16 %v5032
    %v5139 = vunpack.c.l.b16 %v5033
    %v5140 = vunpack.c.h.b16 %v5033
    %v5141 = vunpack.c.l.b16 %v5034
    %v5142 = vunpack.c.h.b16 %v5034
    %v5143 = vunpack.c.l.b16 %v5035
    %v5144 = vunpack.c.h.b16 %v5035
    %v5145 = vunpack.c.l.b16 %v5036
    %v5146 = vunpack.c.h.b16 %v5036
    %v5147 = vpack.c.b16 %v5085, %v5083
    %v5148 = vpack.c.b16 %v5086, %v5084
    %v5149 = vpack.c.b16 %v5089, %v5087
    %v5150 = vpack.c.b16 %v5090, %v5088
    %v5151 = vpack.c.b16 %v5093, %v5091
    %v5152 = vpack.c.b16 %v5094, %v5092
    %v5153 = vpack.c.b16 %v5097, %v5095
    %v5154 = vpack.c.b16 %v5098, %v5096
    %v5155 = vpack.c.b16 %v5101, %v5099
    %v5156 = vpack.c.b16 %v5102, %v5100
    %v5157 = vpack.c.b16 %v5105, %v5103
    %v5158 = vpack.c.b16 %v5106, %v5104
    %v5159 = vpack.c.b16 %v5109, %v5107
    %v5160 = vpack.c.b16 %v5110, %v5108
    %v5161 = vpack.c.b16 %v5113, %v5111
    %v5162 = vpack.c.b16 %v5114, %v5112
    %v5163 = vpack.c.b16 %v5117, %v5115
    %v5164 = vpack.c.b16 %v5118, %v5116
    %v5165 = vpack.c.b16 %v5121, %v5119
    %v5166 = vpack.c.b16 %v5122, %v5120
    %v5167 = vpack.c.b16 %v5125, %v5123
    %v5168 = vpack.c.b16 %v5126, %v5124
    %v5169 = vpack.c.b16 %v5129, %v5127
    %v5170 = vpack.c.b16 %v5130, %v5128
    %v5171 = vpack.c.b16 %v5133, %v5131
    %v5172 = vpack.c.b16 %v5134, %v5132
    %v5173 = vpack.c.b16 %v5137, %v5135
    %v5174 = vpack.c.b16 %v5138, %v5136
    %v5175 = vpack.c.b16 %v5141, %v5139
    %v5176 = vpack.c.b16 %v5142, %v5140
    %v5177 = vpack.c.b16 %v5145, %v5143
    %v5178 = vpack.c.b16 %v5146, %v5144
    %5211 = vmatprep.subr.bf16.mxu0 %v5162
    %5212 = vmatpush1.bf16.msra.mxu0 %v5161
    %5213 = vmatprep.subr.bf16.mxu0 %v5160
    %5214 = vmatpush1.bf16.msra.mxu0 %v5159
    %5215 = vmatprep.subr.bf16.mxu0 %v5158
    %5216 = vmatpush1.bf16.msra.mxu0 %v5157
    %5217 = vmatprep.subr.bf16.mxu0 %v5156
    %5218 = vmatpush1.bf16.msra.mxu0 %v5155
    %5219 = vmatprep.subr.bf16.mxu0 %v5154
    %5220 = vmatpush1.bf16.msra.mxu0 %v5153
    %5221 = vmatprep.subr.bf16.mxu0 %v5152
    %5222 = vmatpush1.bf16.msra.mxu0 %v5151
    %5223 = vmatprep.subr.bf16.mxu0 %v5150
    %5224 = vmatpush1.bf16.msra.mxu0 %v5149
    %5225 = vmatprep.subr.bf16.mxu0 %v5148
    %5226 = vmatpush1.bf16.msra.mxu0 %v5147
    %5227 = vmatprep.subr.bf16.mxu0 %v5178
    %5228 = vmatpush2.bf16.msra.mxu0 %v5177
    %5229 = vmatprep.subr.bf16.mxu0 %v5176
    %5230 = vmatpush2.bf16.msra.mxu0 %v5175
    %5231 = vmatprep.subr.bf16.mxu0 %v5174
    %5232 = vmatpush2.bf16.msra.mxu0 %v5173
    %5233 = vmatprep.subr.bf16.mxu0 %v5172
    %5234 = vmatpush2.bf16.msra.mxu0 %v5171
    %5235 = vmatprep.subr.bf16.mxu0 %v5170
    %5236 = vmatpush2.bf16.msra.mxu0 %v5169
    %5237 = vmatprep.subr.bf16.mxu0 %v5168
    %5238 = vmatpush2.bf16.msra.mxu0 %v5167
    %5239 = vmatprep.subr.bf16.mxu0 %v5166
    %5240 = vmatpush2.bf16.msra.mxu0 %v5165
    %5241 = vmatprep.subr.bf16.mxu0 %v5164
    %5242 = vmatpush2.bf16.msra.mxu0 %v5163
    %5243 = vmatprep.mubr.bf16.mxu0 %v5046
    %5244 = vmatmul.mubr.bf16.gmra.mxu0 %v5043
    %v5245 = vpop.f32.mrf.mxu0
    %v5246 = vadd.f32 0.0, %v5245
    %v5247 = vpop.f32.mrf.mxu0
    %v5248 = vadd.f32 0.0, %v5247
    %v5249 = vpop.f32.mrf.mxu0
    %v5250 = vadd.f32 0.0, %v5249
    %v5251 = vpop.f32.mrf.mxu0
    %v5252 = vadd.f32 0.0, %v5251
    %5253 = vmatprep.mubr.bf16.mxu0 %v5045
    %5254 = vmatmul.mubr.bf16.gmra.mxu0 %v5042
    %v5255 = vpop.f32.mrf.mxu0
    %v5256 = vadd.f32 0.0, %v5255
    %v5257 = vpop.f32.mrf.mxu0
    %v5258 = vadd.f32 0.0, %v5257
    %v5259 = vpop.f32.mrf.mxu0
    %v5260 = vadd.f32 0.0, %v5259
    %v5261 = vpop.f32.mrf.mxu0
    %v5262 = vadd.f32 0.0, %v5261
    %5263 = vdwg.mxu0
    %v5264 = vadd.f32 %v4978, %v5246
    %v5265 = vadd.f32 %v4980, %v5248
    %v5266 = vadd.f32 %v4982, %v5250
    %v5267 = vadd.f32 %v4984, %v5252
    %v5268 = vadd.f32 %v4988, %v5256
    %v5269 = vadd.f32 %v4990, %v5258
    %v5270 = vadd.f32 %v4992, %v5260
    %v5271 = vadd.f32 %v4994, %v5262
    %v5272 = vld [vmem:[%s9] sm:$0x3]
    %v5274 = vlaneseq
    %v5275 = vshrl.u32 %v5274, 7
    %v5276 = vsub.s32 0, %v5275
    %v5277 = vrot.slane %v5272, %v5276
    %v5278 = vlaneseq
    %v5279 = vshrl.u32 %v5278, 7
    %v5280 = vsub.s32 1, %v5279
    %v5281 = vrot.slane %v5272, %v5280
    %v5284 = vadd.f32 %v5264, %v5277
    %v5285 = vadd.f32 %v5265, %v5281
    %v5286 = vadd.f32 %v5266, %v5277
    %v5287 = vadd.f32 %v5267, %v5281
    %v5288 = vadd.f32 %v5268, %v5277
    %v5289 = vadd.f32 %v5269, %v5281
    %v5290 = vadd.f32 %v5270, %v5277
    %v5291 = vadd.f32 %v5271, %v5281
    %v5292 = vadd.f32 %v5284, %v4346
    %v5293 = vadd.f32 %v5285, %v4348
    %v5294 = vadd.f32 %v5286, %v4350
    %v5295 = vadd.f32 %v5287, %v4352
    %v5296 = vadd.f32 %v5288, %v4356
    %v5297 = vadd.f32 %v5289, %v4358
    %v5298 = vadd.f32 %v5290, %v4360
    %v5299 = vadd.f32 %v5291, %v4362
    %v5300 = vmax.f32 %v5292, 0.0
    %v5301 = vmax.f32 %v5293, 0.0
    %v5302 = vmax.f32 %v5294, 0.0
    %v5303 = vmax.f32 %v5295, 0.0
    %v5304 = vmax.f32 %v5296, 0.0
    %v5305 = vmax.f32 %v5297, 0.0
    %v5306 = vmax.f32 %v5298, 0.0
    %v5307 = vmax.f32 %v5299, 0.0
    %v5308 = vsel %vm4396, %v5300, 0.0
    %v5309 = vsel %vm4396, %v5301, 0.0
    %v5310 = vsel %vm4397, %v5302, 0.0
    %v5311 = vsel %vm4397, %v5303, 0.0
    %v5312 = vsel %vm4398, %v5304, 0.0
    %v5313 = vsel %vm4398, %v5305, 0.0
    %v5314 = vsel %vm4399, %v5306, 0.0
    %v5315 = vsel %vm4399, %v5307, 0.0
    %5316 = vst.msk [vmem:[#allocation2] ss:$8 sm:$0x3] %vm656, 0.0
    %5317 = vst.msk [vmem:[#allocation2] ss:$8 sm:$0x0] %vm656, 0.0
    %v5326 = vrot.slane %v5308, 7
    %v5327 = vrot.slane %v5309, 7
    %v5328 = vrot.slane %v5310, 7
    %v5329 = vsel %vm675, %v5326, %v5328
    %v5330 = vrot.slane %v5311, 7
    %v5331 = vsel %vm675, %v5327, %v5330
    %v5332 = vrot.slane %v5312, 7
    %v5333 = vsel %vm675, %v5328, %v5332
    %v5334 = vrot.slane %v5313, 7
    %v5335 = vsel %vm675, %v5330, %v5334
    %v5336 = vrot.slane %v5314, 7
    %v5337 = vsel %vm675, %v5332, %v5336
    %v5338 = vrot.slane %v5315, 7
    %v5339 = vsel %vm675, %v5334, %v5338
    %5348 = vst [vmem:[#allocation2] sm:$0xfe] %v5326
    %5349 = vst [vmem:[#allocation2 + $0x8] sm:$0xfe] %v5327
    %5350 = vst [vmem:[#allocation2 + $0x10] sm:$0xff] %v5329
    %5351 = vst [vmem:[#allocation2 + $0x18] sm:$0xff] %v5331
    %5352 = vst [vmem:[#allocation2 + $0x20] sm:$0xff] %v5333
    %5353 = vst [vmem:[#allocation2 + $0x28] sm:$0xff] %v5335
    %5354 = vst [vmem:[#allocation2 + $0x30] sm:$0x7f] %v5337
    %5355 = vst [vmem:[#allocation2 + $0x38] sm:$0x7f] %v5339
    %s5356 = scalar_lea.vmem [#allocation2], 55
    %5357 = vst.msk [vmem:[%s5356] ss:$8 sm:$0x3] %vm656, 0.0
    %5358 = vst.msk [vmem:[%s5356] ss:$8 sm:$0x0] %vm656, 0.0
    %v5359 = vand.u32 %v581, 7
    %v5360 = vand.u32 %v582, 7
    %vm5361 = vcmp.ge.s32.totalorder %v5359, 1
    %vm5362 = vcmp.ge.s32.totalorder %v5360, 1
    %vm5363 = vcmp.le.s32.totalorder %v5359, 4
    %vm5364 = vcmp.le.s32.totalorder %v5360, 4
    %vm5365 = vmand %vm5361, %vm5363
    %vm5366 = vmand %vm5362, %vm5364
    %v5367 = vld [vmem:[%s17] sm:$0xf]
    %v5368 = vld [vmem:[%s17 + $0x4] sm:$0x7]
    %v5369 = vld [vmem:[#allocation2] sm:$0xff]
    %v5370 = vld [vmem:[#allocation2 + $0x8] sm:$0xff]
    %v5371 = vld [vmem:[#allocation2 + $0x10] sm:$0xff]
    %v5372 = vld [vmem:[#allocation2 + $0x18] sm:$0xff]
    %v5373 = vld [vmem:[#allocation2 + $0x20] sm:$0xff]
    %v5374 = vld [vmem:[#allocation2 + $0x28] sm:$0xff]
    %v5375 = vld [vmem:[#allocation2 + $0x30] sm:$0x3f]
    %v5376 = vld [vmem:[#allocation2 + $0x38] sm:$0x3f]
    %v5377 = vpack.c.bf16 %v5371, %v5369
    %v5378 = vpack.c.bf16 %v5372, %v5370
    %v5379 = vpack.c.bf16 %v5375, %v5373
    %v5380 = vpack.c.bf16 %v5376, %v5374
    %v5383 = vunpack.c.l.b16 %v5367
    %v5384 = vunpack.c.l.b16 %v5368
    %v5385 = vpack.c.b16 %v5384, %v5383
    %vm5386 = vcmask 244736
    %v5388 = vsel %vm5386, %v5385, 0
    %v5391 = vsel %vm2834, %v5379, 0
    %v5394 = vsel %vm2834, %v5380, 0
    %5396 = vmatprep.subr.bf16.mxu0 0
    %5397 = vmatpush1.bf16.msra.mxu0 0
    %5398 = vmatprep.subr.bf16.mxu0 0
    %5399 = vmatpush1.bf16.msra.mxu0 0
    %5400 = vmatprep.subr.bf16.mxu0 0
    %5401 = vmatpush1.bf16.msra.mxu0 0
    %5402 = vmatprep.subr.bf16.mxu0 0
    %5403 = vmatpush1.bf16.msra.mxu0 0
    %5404 = vmatprep.subr.bf16.mxu0 0
    %5405 = vmatpush1.bf16.msra.mxu0 0
    %5406 = vmatprep.subr.bf16.mxu0 0
    %5407 = vmatpush1.bf16.msra.mxu0 0
    %5408 = vmatprep.subr.bf16.mxu0 %v5394
    %5409 = vmatpush1.bf16.msra.mxu0 %v5391
    %5410 = vmatprep.subr.bf16.mxu0 %v5378
    %5411 = vmatpush1.bf16.msra.mxu0 %v5377
    %5412 = vmatprep.subr.bf16.mxu0 0
    %5413 = vmatpush2.bf16.msra.mxu0 0
    %5414 = vmatprep.subr.bf16.mxu0 0
    %5415 = vmatpush2.bf16.msra.mxu0 0
    %5416 = vmatprep.subr.bf16.mxu0 0
    %5417 = vmatpush2.bf16.msra.mxu0 0
    %5418 = vmatprep.subr.bf16.mxu0 0
    %5419 = vmatpush2.bf16.msra.mxu0 0
    %5420 = vmatprep.subr.bf16.mxu0 0
    %5421 = vmatpush2.bf16.msra.mxu0 0
    %5422 = vmatprep.subr.bf16.mxu0 0
    %5423 = vmatpush2.bf16.msra.mxu0 0
    %5424 = vmatprep.subr.bf16.mxu0 0
    %5425 = vmatpush2.bf16.msra.mxu0 0
    %5426 = vmatprep.subr.bf16.mxu0 0
    %5427 = vmatpush2.bf16.msra.mxu0 0
    %5428 = vmatprep.mubr.bf16.mxu0 0
    %5429 = vmatmul.mubr.bf16.gmra.mxu0 %v5388
    %v5430 = vpop.f32.mrf.mxu0
    %v5431 = vadd.f32 0.0, %v5430
    %v5432 = vpop.f32.mrf.mxu0
    %v5433 = vadd.f32 0.0, %v5432
    %v5434 = vpop.f32.mrf.mxu0
    %v5435 = vadd.f32 0.0, %v5434
    %v5436 = vpop.f32.mrf.mxu0
    %v5437 = vadd.f32 0.0, %v5436
    %5438 = vdwg.mxu0
    %v5439 = vpack.c.bf16 %v5435, %v5431
    %v5440 = vpack.c.bf16 %v5437, %v5433
    %v5441 = vld [vmem:[#allocation2] sm:$0xfe]
    %v5442 = vld [vmem:[#allocation2 + $0x8] sm:$0xfe]
    %v5443 = vld [vmem:[#allocation2 + $0x30] sm:$0x7f]
    %v5444 = vld [vmem:[#allocation2 + $0x38] sm:$0x7f]
    %v5445 = vpack.c.bf16 %v5371, %v5441
    %v5446 = vpack.c.bf16 %v5372, %v5442
    %v5447 = vpack.c.bf16 %v5443, %v5373
    %v5448 = vpack.c.bf16 %v5444, %v5374
    %v5450 = vshrl.u32 %v5445, 16
    %v5452 = vshll.u32 %v5445, 16
    %v5454 = vrot.slane %v5452, 1
    %v5455 = vor.u32 %v5450, %v5454
    %v5457 = vshll.u32 %v5447, 16
    %v5459 = vrot.slane %v5457, 1
    %v5460 = vsel %vm115, %v5455, %v5459
    %v5462 = vshrl.u32 %v5446, 16
    %v5464 = vshll.u32 %v5446, 16
    %v5466 = vrot.slane %v5464, 1
    %v5467 = vor.u32 %v5462, %v5466
    %v5469 = vshll.u32 %v5448, 16
    %v5471 = vrot.slane %v5469, 1
    %v5472 = vsel %vm115, %v5467, %v5471
    %v5473 = vshrl.u32 %v5447, 16
    %v5475 = vor.u32 %v5473, %v5459
    %v5476 = vshrl.u32 %v5448, 16
    %v5478 = vor.u32 %v5476, %v5471
    %v5482 = vsel %vm2834, %v5475, 0
    %v5485 = vsel %vm2834, %v5478, 0
    %5487 = vmatprep.subr.bf16.mxu0 0
    %5488 = vmatpush1.bf16.msra.mxu0 0
    %5489 = vmatprep.subr.bf16.mxu0 0
    %5490 = vmatpush1.bf16.msra.mxu0 0
    %5491 = vmatprep.subr.bf16.mxu0 0
    %5492 = vmatpush1.bf16.msra.mxu0 0
    %5493 = vmatprep.subr.bf16.mxu0 0
    %5494 = vmatpush1.bf16.msra.mxu0 0
    %5495 = vmatprep.subr.bf16.mxu0 0
    %5496 = vmatpush1.bf16.msra.mxu0 0
    %5497 = vmatprep.subr.bf16.mxu0 0
    %5498 = vmatpush1.bf16.msra.mxu0 0
    %5499 = vmatprep.subr.bf16.mxu0 %v5485
    %5500 = vmatpush1.bf16.msra.mxu0 %v5482
    %5501 = vmatprep.subr.bf16.mxu0 %v5472
    %5502 = vmatpush1.bf16.msra.mxu0 %v5460
    %5503 = vmatprep.subr.bf16.mxu0 0
    %5504 = vmatpush2.bf16.msra.mxu0 0
    %5505 = vmatprep.subr.bf16.mxu0 0
    %5506 = vmatpush2.bf16.msra.mxu0 0
    %5507 = vmatprep.subr.bf16.mxu0 0
    %5508 = vmatpush2.bf16.msra.mxu0 0
    %5509 = vmatprep.subr.bf16.mxu0 0
    %5510 = vmatpush2.bf16.msra.mxu0 0
    %5511 = vmatprep.subr.bf16.mxu0 0
    %5512 = vmatpush2.bf16.msra.mxu0 0
    %5513 = vmatprep.subr.bf16.mxu0 0
    %5514 = vmatpush2.bf16.msra.mxu0 0
    %5515 = vmatprep.subr.bf16.mxu0 0
    %5516 = vmatpush2.bf16.msra.mxu0 0
    %5517 = vmatprep.subr.bf16.mxu0 0
    %5518 = vmatpush2.bf16.msra.mxu0 0
    %5519 = vmatprep.mubr.bf16.mxu0 0
    %5520 = vmatmul.mubr.bf16.gmra.mxu0 %v5388
    %v5521 = vpop.f32.mrf.mxu0
    %v5522 = vadd.f32 0.0, %v5521
    %v5523 = vpop.f32.mrf.mxu0
    %v5524 = vadd.f32 0.0, %v5523
    %v5525 = vpop.f32.mrf.mxu0
    %v5526 = vadd.f32 0.0, %v5525
    %v5527 = vpop.f32.mrf.mxu0
    %v5528 = vadd.f32 0.0, %v5527
    %5529 = vdwg.mxu0
    %v5530 = vpack.c.bf16 %v5526, %v5522
    %v5531 = vpack.c.bf16 %v5528, %v5524
    %v5532 = vld [vmem:[#allocation2] sm:$0xfc]
    %v5533 = vld [vmem:[#allocation2 + $0x8] sm:$0xfc]
    %v5534 = vld [vmem:[#allocation2 + $0x30] sm:$0xff]
    %v5535 = vld [vmem:[#allocation2 + $0x38] sm:$0xff]
    %v5536 = vpack.c.bf16 %v5371, %v5532
    %v5537 = vpack.c.bf16 %v5372, %v5533
    %v5538 = vpack.c.bf16 %v5534, %v5373
    %v5539 = vpack.c.bf16 %v5535, %v5374
    %v5544 = vrot.slane %v5536, 1
    %v5545 = vrot.slane %v5538, 1
    %v5546 = vsel %vm389, %v5544, %v5545
    %v5547 = vrot.slane %v5537, 1
    %v5548 = vrot.slane %v5539, 1
    %v5549 = vsel %vm389, %v5547, %v5548
    %v5553 = vsel %vm2834, %v5545, 0
    %v5556 = vsel %vm2834, %v5548, 0
    %5558 = vmatprep.subr.bf16.mxu0 0
    %5559 = vmatpush1.bf16.msra.mxu0 0
    %5560 = vmatprep.subr.bf16.mxu0 0
    %5561 = vmatpush1.bf16.msra.mxu0 0
    %5562 = vmatprep.subr.bf16.mxu0 0
    %5563 = vmatpush1.bf16.msra.mxu0 0
    %5564 = vmatprep.subr.bf16.mxu0 0
    %5565 = vmatpush1.bf16.msra.mxu0 0
    %5566 = vmatprep.subr.bf16.mxu0 0
    %5567 = vmatpush1.bf16.msra.mxu0 0
    %5568 = vmatprep.subr.bf16.mxu0 0
    %5569 = vmatpush1.bf16.msra.mxu0 0
    %5570 = vmatprep.subr.bf16.mxu0 %v5556
    %5571 = vmatpush1.bf16.msra.mxu0 %v5553
    %5572 = vmatprep.subr.bf16.mxu0 %v5549
    %5573 = vmatpush1.bf16.msra.mxu0 %v5546
    %5574 = vmatprep.subr.bf16.mxu0 0
    %5575 = vmatpush2.bf16.msra.mxu0 0
    %5576 = vmatprep.subr.bf16.mxu0 0
    %5577 = vmatpush2.bf16.msra.mxu0 0
    %5578 = vmatprep.subr.bf16.mxu0 0
    %5579 = vmatpush2.bf16.msra.mxu0 0
    %5580 = vmatprep.subr.bf16.mxu0 0
    %5581 = vmatpush2.bf16.msra.mxu0 0
    %5582 = vmatprep.subr.bf16.mxu0 0
    %5583 = vmatpush2.bf16.msra.mxu0 0
    %5584 = vmatprep.subr.bf16.mxu0 0
    %5585 = vmatpush2.bf16.msra.mxu0 0
    %5586 = vmatprep.subr.bf16.mxu0 0
    %5587 = vmatpush2.bf16.msra.mxu0 0
    %5588 = vmatprep.subr.bf16.mxu0 0
    %5589 = vmatpush2.bf16.msra.mxu0 0
    %5590 = vmatprep.mubr.bf16.mxu0 0
    %5591 = vmatmul.mubr.bf16.gmra.mxu0 %v5388
    %v5592 = vpop.f32.mrf.mxu0
    %v5593 = vadd.f32 0.0, %v5592
    %v5594 = vpop.f32.mrf.mxu0
    %v5595 = vadd.f32 0.0, %v5594
    %v5596 = vpop.f32.mrf.mxu0
    %v5597 = vadd.f32 0.0, %v5596
    %v5598 = vpop.f32.mrf.mxu0
    %v5599 = vadd.f32 0.0, %v5598
    %5600 = vdwg.mxu0
    %v5601 = vpack.c.bf16 %v5597, %v5593
    %v5602 = vpack.c.bf16 %v5599, %v5595
    %v5603 = vld [vmem:[%s16] sm:$0xff]
    %v5604 = vld [vmem:[%s16 + $0x8] sm:$0xff]
    %v5605 = vld [vmem:[%s16 + $0x10] sm:$0xff]
    %v5606 = vld [vmem:[%s16 + $0x18] sm:$0xff]
    %v5607 = vld [vmem:[%s16 + $0x20] sm:$0xff]
    %v5608 = vld [vmem:[%s16 + $0x28] sm:$0xff]
    %v5609 = vld [vmem:[%s16 + $0x30] sm:$0xff]
    %v5610 = vld [vmem:[%s16 + $0x38] sm:$0xff]
    %v5611 = vld [vmem:[%s16 + $0x40] sm:$0xff]
    %v5612 = vld [vmem:[%s16 + $0x48] sm:$0xff]
    %v5613 = vld [vmem:[%s16 + $0x50] sm:$0xff]
    %v5614 = vld [vmem:[%s16 + $0x58] sm:$0xff]
    %v5615 = vld [vmem:[%s16 + $0x60] sm:$0xff]
    %v5616 = vld [vmem:[%s16 + $0x68] sm:$0xff]
    %v5617 = vld [vmem:[%s16 + $0x70] sm:$0xff]
    %v5618 = vld [vmem:[%s16 + $0x78] sm:$0xff]
    %v5619 = vld [vmem:[%s16 + $0x80] sm:$0xff]
    %v5620 = vld [vmem:[%s16 + $0x88] sm:$0xff]
    %v5621 = vld [vmem:[%s16 + $0x90] sm:$0xff]
    %v5622 = vld [vmem:[%s16 + $0x98] sm:$0xff]
    %v5623 = vld [vmem:[%s16 + $0xa0] sm:$0xff]
    %v5624 = vld [vmem:[%s16 + $0xa8] sm:$0xff]
    %v5625 = vld [vmem:[%s16 + $0xb0] sm:$0xff]
    %v5626 = vld [vmem:[%s16 + $0xb8] sm:$0xff]
    %v5627 = vld [vmem:[%s16 + $0xc0] sm:$0xff]
    %v5628 = vld [vmem:[%s16 + $0xc8] sm:$0xff]
    %v5629 = vld [vmem:[%s16 + $0xd0] sm:$0xff]
    %v5630 = vld [vmem:[%s16 + $0xd8] sm:$0xff]
    %v5631 = vld [vmem:[%s16 + $0xe0] sm:$0xff]
    %v5632 = vld [vmem:[%s16 + $0xe8] sm:$0xff]
    %v5633 = vld [vmem:[%s16 + $0xf0] sm:$0xff]
    %v5634 = vld [vmem:[%s16 + $0xf8] sm:$0xff]
    %s5635 = scalar_lea.vmem %s16, 256
    %v5636 = vld [vmem:[%s5635] sm:$0xff]
    %v5637 = vld [vmem:[%s5635 + $0x8] sm:$0xff]
    %v5638 = vld [vmem:[%s5635 + $0x10] sm:$0xff]
    %v5639 = vld [vmem:[%s5635 + $0x18] sm:$0xff]
    %v5640 = vld [vmem:[%s5635 + $0x20] sm:$0xff]
    %v5641 = vld [vmem:[%s5635 + $0x28] sm:$0xff]
    %v5642 = vld [vmem:[%s5635 + $0x30] sm:$0xff]
    %v5643 = vld [vmem:[%s5635 + $0x38] sm:$0xff]
    %v5644 = vld [vmem:[%s5635 + $0x40] sm:$0xff]
    %v5645 = vld [vmem:[%s5635 + $0x48] sm:$0xff]
    %v5646 = vld [vmem:[%s5635 + $0x50] sm:$0xff]
    %v5647 = vld [vmem:[%s5635 + $0x58] sm:$0xff]
    %v5648 = vld [vmem:[%s5635 + $0x60] sm:$0xff]
    %v5649 = vld [vmem:[%s5635 + $0x68] sm:$0xff]
    %v5650 = vld [vmem:[%s5635 + $0x70] sm:$0xff]
    %v5651 = vld [vmem:[%s5635 + $0x78] sm:$0xff]
    %v5652 = vld [vmem:[%s5635 + $0x80] sm:$0xff]
    %v5653 = vld [vmem:[%s5635 + $0x88] sm:$0xff]
    %v5654 = vld [vmem:[%s5635 + $0x90] sm:$0xff]
    %v5655 = vld [vmem:[%s5635 + $0x98] sm:$0xff]
    %v5656 = vld [vmem:[%s5635 + $0xa0] sm:$0xff]
    %v5657 = vld [vmem:[%s5635 + $0xa8] sm:$0xff]
    %v5658 = vld [vmem:[%s5635 + $0xb0] sm:$0xff]
    %v5659 = vld [vmem:[%s5635 + $0xb8] sm:$0xff]
    %v5660 = vld [vmem:[%s5635 + $0xc0] sm:$0xff]
    %v5661 = vld [vmem:[%s5635 + $0xc8] sm:$0xff]
    %v5662 = vld [vmem:[%s5635 + $0xd0] sm:$0xff]
    %v5663 = vld [vmem:[%s5635 + $0xd8] sm:$0xff]
    %v5664 = vld [vmem:[%s5635 + $0xe0] sm:$0xff]
    %v5665 = vld [vmem:[%s5635 + $0xe8] sm:$0xff]
    %v5666 = vld [vmem:[%s5635 + $0xf0] sm:$0xff]
    %v5667 = vld [vmem:[%s5635 + $0xf8] sm:$0xff]
    %v5700 = vunpack.c.l.b16 %v5636
    %v5701 = vunpack.c.h.b16 %v5636
    %v5702 = vunpack.c.l.b16 %v5637
    %v5703 = vunpack.c.h.b16 %v5637
    %v5704 = vunpack.c.l.b16 %v5638
    %v5705 = vunpack.c.h.b16 %v5638
    %v5706 = vunpack.c.l.b16 %v5639
    %v5707 = vunpack.c.h.b16 %v5639
    %v5708 = vunpack.c.l.b16 %v5640
    %v5709 = vunpack.c.h.b16 %v5640
    %v5710 = vunpack.c.l.b16 %v5641
    %v5711 = vunpack.c.h.b16 %v5641
    %v5712 = vunpack.c.l.b16 %v5642
    %v5713 = vunpack.c.h.b16 %v5642
    %v5714 = vunpack.c.l.b16 %v5643
    %v5715 = vunpack.c.h.b16 %v5643
    %v5716 = vunpack.c.l.b16 %v5644
    %v5717 = vunpack.c.h.b16 %v5644
    %v5718 = vunpack.c.l.b16 %v5645
    %v5719 = vunpack.c.h.b16 %v5645
    %v5720 = vunpack.c.l.b16 %v5646
    %v5721 = vunpack.c.h.b16 %v5646
    %v5722 = vunpack.c.l.b16 %v5647
    %v5723 = vunpack.c.h.b16 %v5647
    %v5724 = vunpack.c.l.b16 %v5648
    %v5725 = vunpack.c.h.b16 %v5648
    %v5726 = vunpack.c.l.b16 %v5649
    %v5727 = vunpack.c.h.b16 %v5649
    %v5728 = vunpack.c.l.b16 %v5650
    %v5729 = vunpack.c.h.b16 %v5650
    %v5730 = vunpack.c.l.b16 %v5651
    %v5731 = vunpack.c.h.b16 %v5651
    %v5732 = vunpack.c.l.b16 %v5652
    %v5733 = vunpack.c.h.b16 %v5652
    %v5734 = vunpack.c.l.b16 %v5653
    %v5735 = vunpack.c.h.b16 %v5653
    %v5736 = vunpack.c.l.b16 %v5654
    %v5737 = vunpack.c.h.b16 %v5654
    %v5738 = vunpack.c.l.b16 %v5655
    %v5739 = vunpack.c.h.b16 %v5655
    %v5740 = vunpack.c.l.b16 %v5656
    %v5741 = vunpack.c.h.b16 %v5656
    %v5742 = vunpack.c.l.b16 %v5657
    %v5743 = vunpack.c.h.b16 %v5657
    %v5744 = vunpack.c.l.b16 %v5658
    %v5745 = vunpack.c.h.b16 %v5658
    %v5746 = vunpack.c.l.b16 %v5659
    %v5747 = vunpack.c.h.b16 %v5659
    %v5748 = vunpack.c.l.b16 %v5660
    %v5749 = vunpack.c.h.b16 %v5660
    %v5750 = vunpack.c.l.b16 %v5661
    %v5751 = vunpack.c.h.b16 %v5661
    %v5752 = vunpack.c.l.b16 %v5662
    %v5753 = vunpack.c.h.b16 %v5662
    %v5754 = vunpack.c.l.b16 %v5663
    %v5755 = vunpack.c.h.b16 %v5663
    %v5756 = vunpack.c.l.b16 %v5664
    %v5757 = vunpack.c.h.b16 %v5664
    %v5758 = vunpack.c.l.b16 %v5665
    %v5759 = vunpack.c.h.b16 %v5665
    %v5760 = vunpack.c.l.b16 %v5666
    %v5761 = vunpack.c.h.b16 %v5666
    %v5762 = vunpack.c.l.b16 %v5667
    %v5763 = vunpack.c.h.b16 %v5667
    %v5764 = vpack.c.b16 %v5702, %v5700
    %v5765 = vpack.c.b16 %v5703, %v5701
    %v5766 = vpack.c.b16 %v5706, %v5704
    %v5767 = vpack.c.b16 %v5707, %v5705
    %v5768 = vpack.c.b16 %v5710, %v5708
    %v5769 = vpack.c.b16 %v5711, %v5709
    %v5770 = vpack.c.b16 %v5714, %v5712
    %v5771 = vpack.c.b16 %v5715, %v5713
    %v5772 = vpack.c.b16 %v5718, %v5716
    %v5773 = vpack.c.b16 %v5719, %v5717
    %v5774 = vpack.c.b16 %v5722, %v5720
    %v5775 = vpack.c.b16 %v5723, %v5721
    %v5776 = vpack.c.b16 %v5726, %v5724
    %v5777 = vpack.c.b16 %v5727, %v5725
    %v5778 = vpack.c.b16 %v5730, %v5728
    %v5779 = vpack.c.b16 %v5731, %v5729
    %v5780 = vpack.c.b16 %v5734, %v5732
    %v5781 = vpack.c.b16 %v5735, %v5733
    %v5782 = vpack.c.b16 %v5738, %v5736
    %v5783 = vpack.c.b16 %v5739, %v5737
    %v5784 = vpack.c.b16 %v5742, %v5740
    %v5785 = vpack.c.b16 %v5743, %v5741
    %v5786 = vpack.c.b16 %v5746, %v5744
    %v5787 = vpack.c.b16 %v5747, %v5745
    %v5788 = vpack.c.b16 %v5750, %v5748
    %v5789 = vpack.c.b16 %v5751, %v5749
    %v5790 = vpack.c.b16 %v5754, %v5752
    %v5791 = vpack.c.b16 %v5755, %v5753
    %v5792 = vpack.c.b16 %v5758, %v5756
    %v5793 = vpack.c.b16 %v5759, %v5757
    %v5794 = vpack.c.b16 %v5762, %v5760
    %v5795 = vpack.c.b16 %v5763, %v5761
    %5828 = vmatprep.subr.bf16.mxu0 %v5779
    %5829 = vmatpush1.bf16.msra.mxu0 %v5778
    %5830 = vmatprep.subr.bf16.mxu0 %v5777
    %5831 = vmatpush1.bf16.msra.mxu0 %v5776
    %5832 = vmatprep.subr.bf16.mxu0 %v5775
    %5833 = vmatpush1.bf16.msra.mxu0 %v5774
    %5834 = vmatprep.subr.bf16.mxu0 %v5773
    %5835 = vmatpush1.bf16.msra.mxu0 %v5772
    %5836 = vmatprep.subr.bf16.mxu0 %v5771
    %5837 = vmatpush1.bf16.msra.mxu0 %v5770
    %5838 = vmatprep.subr.bf16.mxu0 %v5769
    %5839 = vmatpush1.bf16.msra.mxu0 %v5768
    %5840 = vmatprep.subr.bf16.mxu0 %v5767
    %5841 = vmatpush1.bf16.msra.mxu0 %v5766
    %5842 = vmatprep.subr.bf16.mxu0 %v5765
    %5843 = vmatpush1.bf16.msra.mxu0 %v5764
    %5844 = vmatprep.subr.bf16.mxu0 %v5795
    %5845 = vmatpush2.bf16.msra.mxu0 %v5794
    %5846 = vmatprep.subr.bf16.mxu0 %v5793
    %5847 = vmatpush2.bf16.msra.mxu0 %v5792
    %5848 = vmatprep.subr.bf16.mxu0 %v5791
    %5849 = vmatpush2.bf16.msra.mxu0 %v5790
    %5850 = vmatprep.subr.bf16.mxu0 %v5789
    %5851 = vmatpush2.bf16.msra.mxu0 %v5788
    %5852 = vmatprep.subr.bf16.mxu0 %v5787
    %5853 = vmatpush2.bf16.msra.mxu0 %v5786
    %5854 = vmatprep.subr.bf16.mxu0 %v5785
    %5855 = vmatpush2.bf16.msra.mxu0 %v5784
    %5856 = vmatprep.subr.bf16.mxu0 %v5783
    %5857 = vmatpush2.bf16.msra.mxu0 %v5782
    %5858 = vmatprep.subr.bf16.mxu0 %v5781
    %5859 = vmatpush2.bf16.msra.mxu0 %v5780
    %5860 = vmatprep.mubr.bf16.mxu0 %v5531
    %5861 = vmatmul.mubr.bf16.gmra.mxu0 %v5530
    %v5862 = vpop.f32.mrf.mxu0
    %v5863 = vadd.f32 0.0, %v5862
    %v5864 = vpop.f32.mrf.mxu0
    %v5865 = vadd.f32 0.0, %v5864
    %v5866 = vpop.f32.mrf.mxu0
    %v5867 = vadd.f32 0.0, %v5866
    %v5868 = vpop.f32.mrf.mxu0
    %v5869 = vadd.f32 0.0, %v5868
    %5870 = vdwg.mxu0
    %v5903 = vunpack.c.l.b16 %v5603
    %v5904 = vunpack.c.h.b16 %v5603
    %v5905 = vunpack.c.l.b16 %v5604
    %v5906 = vunpack.c.h.b16 %v5604
    %v5907 = vunpack.c.l.b16 %v5605
    %v5908 = vunpack.c.h.b16 %v5605
    %v5909 = vunpack.c.l.b16 %v5606
    %v5910 = vunpack.c.h.b16 %v5606
    %v5911 = vunpack.c.l.b16 %v5607
    %v5912 = vunpack.c.h.b16 %v5607
    %v5913 = vunpack.c.l.b16 %v5608
    %v5914 = vunpack.c.h.b16 %v5608
    %v5915 = vunpack.c.l.b16 %v5609
    %v5916 = vunpack.c.h.b16 %v5609
    %v5917 = vunpack.c.l.b16 %v5610
    %v5918 = vunpack.c.h.b16 %v5610
    %v5919 = vunpack.c.l.b16 %v5611
    %v5920 = vunpack.c.h.b16 %v5611
    %v5921 = vunpack.c.l.b16 %v5612
    %v5922 = vunpack.c.h.b16 %v5612
    %v5923 = vunpack.c.l.b16 %v5613
    %v5924 = vunpack.c.h.b16 %v5613
    %v5925 = vunpack.c.l.b16 %v5614
    %v5926 = vunpack.c.h.b16 %v5614
    %v5927 = vunpack.c.l.b16 %v5615
    %v5928 = vunpack.c.h.b16 %v5615
    %v5929 = vunpack.c.l.b16 %v5616
    %v5930 = vunpack.c.h.b16 %v5616
    %v5931 = vunpack.c.l.b16 %v5617
    %v5932 = vunpack.c.h.b16 %v5617
    %v5933 = vunpack.c.l.b16 %v5618
    %v5934 = vunpack.c.h.b16 %v5618
    %v5935 = vunpack.c.l.b16 %v5619
    %v5936 = vunpack.c.h.b16 %v5619
    %v5937 = vunpack.c.l.b16 %v5620
    %v5938 = vunpack.c.h.b16 %v5620
    %v5939 = vunpack.c.l.b16 %v5621
    %v5940 = vunpack.c.h.b16 %v5621
    %v5941 = vunpack.c.l.b16 %v5622
    %v5942 = vunpack.c.h.b16 %v5622
    %v5943 = vunpack.c.l.b16 %v5623
    %v5944 = vunpack.c.h.b16 %v5623
    %v5945 = vunpack.c.l.b16 %v5624
    %v5946 = vunpack.c.h.b16 %v5624
    %v5947 = vunpack.c.l.b16 %v5625
    %v5948 = vunpack.c.h.b16 %v5625
    %v5949 = vunpack.c.l.b16 %v5626
    %v5950 = vunpack.c.h.b16 %v5626
    %v5951 = vunpack.c.l.b16 %v5627
    %v5952 = vunpack.c.h.b16 %v5627
    %v5953 = vunpack.c.l.b16 %v5628
    %v5954 = vunpack.c.h.b16 %v5628
    %v5955 = vunpack.c.l.b16 %v5629
    %v5956 = vunpack.c.h.b16 %v5629
    %v5957 = vunpack.c.l.b16 %v5630
    %v5958 = vunpack.c.h.b16 %v5630
    %v5959 = vunpack.c.l.b16 %v5631
    %v5960 = vunpack.c.h.b16 %v5631
    %v5961 = vunpack.c.l.b16 %v5632
    %v5962 = vunpack.c.h.b16 %v5632
    %v5963 = vunpack.c.l.b16 %v5633
    %v5964 = vunpack.c.h.b16 %v5633
    %v5965 = vunpack.c.l.b16 %v5634
    %v5966 = vunpack.c.h.b16 %v5634
    %v5967 = vpack.c.b16 %v5905, %v5903
    %v5968 = vpack.c.b16 %v5906, %v5904
    %v5969 = vpack.c.b16 %v5909, %v5907
    %v5970 = vpack.c.b16 %v5910, %v5908
    %v5971 = vpack.c.b16 %v5913, %v5911
    %v5972 = vpack.c.b16 %v5914, %v5912
    %v5973 = vpack.c.b16 %v5917, %v5915
    %v5974 = vpack.c.b16 %v5918, %v5916
    %v5975 = vpack.c.b16 %v5921, %v5919
    %v5976 = vpack.c.b16 %v5922, %v5920
    %v5977 = vpack.c.b16 %v5925, %v5923
    %v5978 = vpack.c.b16 %v5926, %v5924
    %v5979 = vpack.c.b16 %v5929, %v5927
    %v5980 = vpack.c.b16 %v5930, %v5928
    %v5981 = vpack.c.b16 %v5933, %v5931
    %v5982 = vpack.c.b16 %v5934, %v5932
    %v5983 = vpack.c.b16 %v5937, %v5935
    %v5984 = vpack.c.b16 %v5938, %v5936
    %v5985 = vpack.c.b16 %v5941, %v5939
    %v5986 = vpack.c.b16 %v5942, %v5940
    %v5987 = vpack.c.b16 %v5945, %v5943
    %v5988 = vpack.c.b16 %v5946, %v5944
    %v5989 = vpack.c.b16 %v5949, %v5947
    %v5990 = vpack.c.b16 %v5950, %v5948
    %v5991 = vpack.c.b16 %v5953, %v5951
    %v5992 = vpack.c.b16 %v5954, %v5952
    %v5993 = vpack.c.b16 %v5957, %v5955
    %v5994 = vpack.c.b16 %v5958, %v5956
    %v5995 = vpack.c.b16 %v5961, %v5959
    %v5996 = vpack.c.b16 %v5962, %v5960
    %v5997 = vpack.c.b16 %v5965, %v5963
    %v5998 = vpack.c.b16 %v5966, %v5964
    %6031 = vmatprep.subr.bf16.mxu0 %v5982
    %6032 = vmatpush1.bf16.msra.mxu0 %v5981
    %6033 = vmatprep.subr.bf16.mxu0 %v5980
    %6034 = vmatpush1.bf16.msra.mxu0 %v5979
    %6035 = vmatprep.subr.bf16.mxu0 %v5978
    %6036 = vmatpush1.bf16.msra.mxu0 %v5977
    %6037 = vmatprep.subr.bf16.mxu0 %v5976
    %6038 = vmatpush1.bf16.msra.mxu0 %v5975
    %6039 = vmatprep.subr.bf16.mxu0 %v5974
    %6040 = vmatpush1.bf16.msra.mxu0 %v5973
    %6041 = vmatprep.subr.bf16.mxu0 %v5972
    %6042 = vmatpush1.bf16.msra.mxu0 %v5971
    %6043 = vmatprep.subr.bf16.mxu0 %v5970
    %6044 = vmatpush1.bf16.msra.mxu0 %v5969
    %6045 = vmatprep.subr.bf16.mxu0 %v5968
    %6046 = vmatpush1.bf16.msra.mxu0 %v5967
    %6047 = vmatprep.subr.bf16.mxu0 %v5998
    %6048 = vmatpush2.bf16.msra.mxu0 %v5997
    %6049 = vmatprep.subr.bf16.mxu0 %v5996
    %6050 = vmatpush2.bf16.msra.mxu0 %v5995
    %6051 = vmatprep.subr.bf16.mxu0 %v5994
    %6052 = vmatpush2.bf16.msra.mxu0 %v5993
    %6053 = vmatprep.subr.bf16.mxu0 %v5992
    %6054 = vmatpush2.bf16.msra.mxu0 %v5991
    %6055 = vmatprep.subr.bf16.mxu0 %v5990
    %6056 = vmatpush2.bf16.msra.mxu0 %v5989
    %6057 = vmatprep.subr.bf16.mxu0 %v5988
    %6058 = vmatpush2.bf16.msra.mxu0 %v5987
    %6059 = vmatprep.subr.bf16.mxu0 %v5986
    %6060 = vmatpush2.bf16.msra.mxu0 %v5985
    %6061 = vmatprep.subr.bf16.mxu0 %v5984
    %6062 = vmatpush2.bf16.msra.mxu0 %v5983
    %6063 = vmatprep.mubr.bf16.mxu0 %v5440
    %6064 = vmatmul.mubr.bf16.gmra.mxu0 %v5439
    %v6065 = vpop.f32.mrf.mxu0
    %v6066 = vadd.f32 %v5863, %v6065
    %v6067 = vpop.f32.mrf.mxu0
    %v6068 = vadd.f32 %v5865, %v6067
    %v6069 = vpop.f32.mrf.mxu0
    %v6070 = vadd.f32 %v5867, %v6069
    %v6071 = vpop.f32.mrf.mxu0
    %v6072 = vadd.f32 %v5869, %v6071
    %6073 = vdwg.mxu0
    %s6074 = scalar_lea.vmem %s16, 512
    %v6075 = vld [vmem:[%s6074] sm:$0xff]
    %v6076 = vld [vmem:[%s6074 + $0x8] sm:$0xff]
    %v6077 = vld [vmem:[%s6074 + $0x10] sm:$0xff]
    %v6078 = vld [vmem:[%s6074 + $0x18] sm:$0xff]
    %v6079 = vld [vmem:[%s6074 + $0x20] sm:$0xff]
    %v6080 = vld [vmem:[%s6074 + $0x28] sm:$0xff]
    %v6081 = vld [vmem:[%s6074 + $0x30] sm:$0xff]
    %v6082 = vld [vmem:[%s6074 + $0x38] sm:$0xff]
    %v6083 = vld [vmem:[%s6074 + $0x40] sm:$0xff]
    %v6084 = vld [vmem:[%s6074 + $0x48] sm:$0xff]
    %v6085 = vld [vmem:[%s6074 + $0x50] sm:$0xff]
    %v6086 = vld [vmem:[%s6074 + $0x58] sm:$0xff]
    %v6087 = vld [vmem:[%s6074 + $0x60] sm:$0xff]
    %v6088 = vld [vmem:[%s6074 + $0x68] sm:$0xff]
    %v6089 = vld [vmem:[%s6074 + $0x70] sm:$0xff]
    %v6090 = vld [vmem:[%s6074 + $0x78] sm:$0xff]
    %v6091 = vld [vmem:[%s6074 + $0x80] sm:$0xff]
    %v6092 = vld [vmem:[%s6074 + $0x88] sm:$0xff]
    %v6093 = vld [vmem:[%s6074 + $0x90] sm:$0xff]
    %v6094 = vld [vmem:[%s6074 + $0x98] sm:$0xff]
    %v6095 = vld [vmem:[%s6074 + $0xa0] sm:$0xff]
    %v6096 = vld [vmem:[%s6074 + $0xa8] sm:$0xff]
    %v6097 = vld [vmem:[%s6074 + $0xb0] sm:$0xff]
    %v6098 = vld [vmem:[%s6074 + $0xb8] sm:$0xff]
    %v6099 = vld [vmem:[%s6074 + $0xc0] sm:$0xff]
    %v6100 = vld [vmem:[%s6074 + $0xc8] sm:$0xff]
    %v6101 = vld [vmem:[%s6074 + $0xd0] sm:$0xff]
    %v6102 = vld [vmem:[%s6074 + $0xd8] sm:$0xff]
    %v6103 = vld [vmem:[%s6074 + $0xe0] sm:$0xff]
    %v6104 = vld [vmem:[%s6074 + $0xe8] sm:$0xff]
    %v6105 = vld [vmem:[%s6074 + $0xf0] sm:$0xff]
    %v6106 = vld [vmem:[%s6074 + $0xf8] sm:$0xff]
    %v6139 = vunpack.c.l.b16 %v6075
    %v6140 = vunpack.c.h.b16 %v6075
    %v6141 = vunpack.c.l.b16 %v6076
    %v6142 = vunpack.c.h.b16 %v6076
    %v6143 = vunpack.c.l.b16 %v6077
    %v6144 = vunpack.c.h.b16 %v6077
    %v6145 = vunpack.c.l.b16 %v6078
    %v6146 = vunpack.c.h.b16 %v6078
    %v6147 = vunpack.c.l.b16 %v6079
    %v6148 = vunpack.c.h.b16 %v6079
    %v6149 = vunpack.c.l.b16 %v6080
    %v6150 = vunpack.c.h.b16 %v6080
    %v6151 = vunpack.c.l.b16 %v6081
    %v6152 = vunpack.c.h.b16 %v6081
    %v6153 = vunpack.c.l.b16 %v6082
    %v6154 = vunpack.c.h.b16 %v6082
    %v6155 = vunpack.c.l.b16 %v6083
    %v6156 = vunpack.c.h.b16 %v6083
    %v6157 = vunpack.c.l.b16 %v6084
    %v6158 = vunpack.c.h.b16 %v6084
    %v6159 = vunpack.c.l.b16 %v6085
    %v6160 = vunpack.c.h.b16 %v6085
    %v6161 = vunpack.c.l.b16 %v6086
    %v6162 = vunpack.c.h.b16 %v6086
    %v6163 = vunpack.c.l.b16 %v6087
    %v6164 = vunpack.c.h.b16 %v6087
    %v6165 = vunpack.c.l.b16 %v6088
    %v6166 = vunpack.c.h.b16 %v6088
    %v6167 = vunpack.c.l.b16 %v6089
    %v6168 = vunpack.c.h.b16 %v6089
    %v6169 = vunpack.c.l.b16 %v6090
    %v6170 = vunpack.c.h.b16 %v6090
    %v6171 = vunpack.c.l.b16 %v6091
    %v6172 = vunpack.c.h.b16 %v6091
    %v6173 = vunpack.c.l.b16 %v6092
    %v6174 = vunpack.c.h.b16 %v6092
    %v6175 = vunpack.c.l.b16 %v6093
    %v6176 = vunpack.c.h.b16 %v6093
    %v6177 = vunpack.c.l.b16 %v6094
    %v6178 = vunpack.c.h.b16 %v6094
    %v6179 = vunpack.c.l.b16 %v6095
    %v6180 = vunpack.c.h.b16 %v6095
    %v6181 = vunpack.c.l.b16 %v6096
    %v6182 = vunpack.c.h.b16 %v6096
    %v6183 = vunpack.c.l.b16 %v6097
    %v6184 = vunpack.c.h.b16 %v6097
    %v6185 = vunpack.c.l.b16 %v6098
    %v6186 = vunpack.c.h.b16 %v6098
    %v6187 = vunpack.c.l.b16 %v6099
    %v6188 = vunpack.c.h.b16 %v6099
    %v6189 = vunpack.c.l.b16 %v6100
    %v6190 = vunpack.c.h.b16 %v6100
    %v6191 = vunpack.c.l.b16 %v6101
    %v6192 = vunpack.c.h.b16 %v6101
    %v6193 = vunpack.c.l.b16 %v6102
    %v6194 = vunpack.c.h.b16 %v6102
    %v6195 = vunpack.c.l.b16 %v6103
    %v6196 = vunpack.c.h.b16 %v6103
    %v6197 = vunpack.c.l.b16 %v6104
    %v6198 = vunpack.c.h.b16 %v6104
    %v6199 = vunpack.c.l.b16 %v6105
    %v6200 = vunpack.c.h.b16 %v6105
    %v6201 = vunpack.c.l.b16 %v6106
    %v6202 = vunpack.c.h.b16 %v6106
    %v6203 = vpack.c.b16 %v6141, %v6139
    %v6204 = vpack.c.b16 %v6142, %v6140
    %v6205 = vpack.c.b16 %v6145, %v6143
    %v6206 = vpack.c.b16 %v6146, %v6144
    %v6207 = vpack.c.b16 %v6149, %v6147
    %v6208 = vpack.c.b16 %v6150, %v6148
    %v6209 = vpack.c.b16 %v6153, %v6151
    %v6210 = vpack.c.b16 %v6154, %v6152
    %v6211 = vpack.c.b16 %v6157, %v6155
    %v6212 = vpack.c.b16 %v6158, %v6156
    %v6213 = vpack.c.b16 %v6161, %v6159
    %v6214 = vpack.c.b16 %v6162, %v6160
    %v6215 = vpack.c.b16 %v6165, %v6163
    %v6216 = vpack.c.b16 %v6166, %v6164
    %v6217 = vpack.c.b16 %v6169, %v6167
    %v6218 = vpack.c.b16 %v6170, %v6168
    %v6219 = vpack.c.b16 %v6173, %v6171
    %v6220 = vpack.c.b16 %v6174, %v6172
    %v6221 = vpack.c.b16 %v6177, %v6175
    %v6222 = vpack.c.b16 %v6178, %v6176
    %v6223 = vpack.c.b16 %v6181, %v6179
    %v6224 = vpack.c.b16 %v6182, %v6180
    %v6225 = vpack.c.b16 %v6185, %v6183
    %v6226 = vpack.c.b16 %v6186, %v6184
    %v6227 = vpack.c.b16 %v6189, %v6187
    %v6228 = vpack.c.b16 %v6190, %v6188
    %v6229 = vpack.c.b16 %v6193, %v6191
    %v6230 = vpack.c.b16 %v6194, %v6192
    %v6231 = vpack.c.b16 %v6197, %v6195
    %v6232 = vpack.c.b16 %v6198, %v6196
    %v6233 = vpack.c.b16 %v6201, %v6199
    %v6234 = vpack.c.b16 %v6202, %v6200
    %6267 = vmatprep.subr.bf16.mxu0 %v6218
    %6268 = vmatpush1.bf16.msra.mxu0 %v6217
    %6269 = vmatprep.subr.bf16.mxu0 %v6216
    %6270 = vmatpush1.bf16.msra.mxu0 %v6215
    %6271 = vmatprep.subr.bf16.mxu0 %v6214
    %6272 = vmatpush1.bf16.msra.mxu0 %v6213
    %6273 = vmatprep.subr.bf16.mxu0 %v6212
    %6274 = vmatpush1.bf16.msra.mxu0 %v6211
    %6275 = vmatprep.subr.bf16.mxu0 %v6210
    %6276 = vmatpush1.bf16.msra.mxu0 %v6209
    %6277 = vmatprep.subr.bf16.mxu0 %v6208
    %6278 = vmatpush1.bf16.msra.mxu0 %v6207
    %6279 = vmatprep.subr.bf16.mxu0 %v6206
    %6280 = vmatpush1.bf16.msra.mxu0 %v6205
    %6281 = vmatprep.subr.bf16.mxu0 %v6204
    %6282 = vmatpush1.bf16.msra.mxu0 %v6203
    %6283 = vmatprep.subr.bf16.mxu0 %v6234
    %6284 = vmatpush2.bf16.msra.mxu0 %v6233
    %6285 = vmatprep.subr.bf16.mxu0 %v6232
    %6286 = vmatpush2.bf16.msra.mxu0 %v6231
    %6287 = vmatprep.subr.bf16.mxu0 %v6230
    %6288 = vmatpush2.bf16.msra.mxu0 %v6229
    %6289 = vmatprep.subr.bf16.mxu0 %v6228
    %6290 = vmatpush2.bf16.msra.mxu0 %v6227
    %6291 = vmatprep.subr.bf16.mxu0 %v6226
    %6292 = vmatpush2.bf16.msra.mxu0 %v6225
    %6293 = vmatprep.subr.bf16.mxu0 %v6224
    %6294 = vmatpush2.bf16.msra.mxu0 %v6223
    %6295 = vmatprep.subr.bf16.mxu0 %v6222
    %6296 = vmatpush2.bf16.msra.mxu0 %v6221
    %6297 = vmatprep.subr.bf16.mxu0 %v6220
    %6298 = vmatpush2.bf16.msra.mxu0 %v6219
    %6299 = vmatprep.mubr.bf16.mxu0 %v5602
    %6300 = vmatmul.mubr.bf16.gmra.mxu0 %v5601
    %v6301 = vpop.f32.mrf.mxu0
    %v6302 = vadd.f32 0.0, %v6301
    %v6303 = vpop.f32.mrf.mxu0
    %v6304 = vadd.f32 0.0, %v6303
    %v6305 = vpop.f32.mrf.mxu0
    %v6306 = vadd.f32 0.0, %v6305
    %v6307 = vpop.f32.mrf.mxu0
    %v6308 = vadd.f32 0.0, %v6307
    %6309 = vdwg.mxu0
    %v6310 = vadd.f32 %v6066, %v6302
    %v6311 = vadd.f32 %v6068, %v6304
    %v6312 = vadd.f32 %v6070, %v6306
    %v6313 = vadd.f32 %v6072, %v6308
    %v6314 = vld [vmem:[%s18] sm:$0xff]
    %v6315 = vld [vmem:[%s18 + $0x8] sm:$0xff]
    %v6316 = vld [vmem:[%s18 + $0x10] sm:$0xff]
    %v6317 = vld [vmem:[%s18 + $0x18] sm:$0xff]
    %v6318 = vld [vmem:[%s18 + $0x20] sm:$0xff]
    %v6319 = vld [vmem:[%s18 + $0x28] sm:$0xff]
    %v6320 = vld [vmem:[%s18 + $0x30] sm:$0xff]
    %v6321 = vld [vmem:[%s18 + $0x38] sm:$0xff]
    %v6322 = vld [vmem:[%s18 + $0x40] sm:$0xff]
    %v6323 = vld [vmem:[%s18 + $0x48] sm:$0xff]
    %v6324 = vld [vmem:[%s18 + $0x50] sm:$0xff]
    %v6325 = vld [vmem:[%s18 + $0x58] sm:$0xff]
    %v6326 = vld [vmem:[%s18 + $0x60] sm:$0xff]
    %v6327 = vld [vmem:[%s18 + $0x68] sm:$0xff]
    %v6328 = vld [vmem:[%s18 + $0x70] sm:$0xff]
    %v6329 = vld [vmem:[%s18 + $0x78] sm:$0xff]
    %v6330 = vld [vmem:[%s18 + $0x80] sm:$0xff]
    %v6331 = vld [vmem:[%s18 + $0x88] sm:$0xff]
    %v6332 = vld [vmem:[%s18 + $0x90] sm:$0xff]
    %v6333 = vld [vmem:[%s18 + $0x98] sm:$0xff]
    %v6334 = vld [vmem:[%s18 + $0xa0] sm:$0xff]
    %v6335 = vld [vmem:[%s18 + $0xa8] sm:$0xff]
    %v6336 = vld [vmem:[%s18 + $0xb0] sm:$0xff]
    %v6337 = vld [vmem:[%s18 + $0xb8] sm:$0xff]
    %v6338 = vld [vmem:[%s18 + $0xc0] sm:$0xff]
    %v6339 = vld [vmem:[%s18 + $0xc8] sm:$0xff]
    %v6340 = vld [vmem:[%s18 + $0xd0] sm:$0xff]
    %v6341 = vld [vmem:[%s18 + $0xd8] sm:$0xff]
    %v6342 = vld [vmem:[%s18 + $0xe0] sm:$0xff]
    %v6343 = vld [vmem:[%s18 + $0xe8] sm:$0xff]
    %v6344 = vld [vmem:[%s18 + $0xf0] sm:$0xff]
    %v6345 = vld [vmem:[%s18 + $0xf8] sm:$0xff]
    %v6378 = vunpack.c.l.b16 %v6314
    %v6379 = vunpack.c.h.b16 %v6314
    %v6380 = vunpack.c.l.b16 %v6315
    %v6381 = vunpack.c.h.b16 %v6315
    %v6382 = vunpack.c.l.b16 %v6316
    %v6383 = vunpack.c.h.b16 %v6316
    %v6384 = vunpack.c.l.b16 %v6317
    %v6385 = vunpack.c.h.b16 %v6317
    %v6386 = vunpack.c.l.b16 %v6318
    %v6387 = vunpack.c.h.b16 %v6318
    %v6388 = vunpack.c.l.b16 %v6319
    %v6389 = vunpack.c.h.b16 %v6319
    %v6390 = vunpack.c.l.b16 %v6320
    %v6391 = vunpack.c.h.b16 %v6320
    %v6392 = vunpack.c.l.b16 %v6321
    %v6393 = vunpack.c.h.b16 %v6321
    %v6394 = vunpack.c.l.b16 %v6322
    %v6395 = vunpack.c.h.b16 %v6322
    %v6396 = vunpack.c.l.b16 %v6323
    %v6397 = vunpack.c.h.b16 %v6323
    %v6398 = vunpack.c.l.b16 %v6324
    %v6399 = vunpack.c.h.b16 %v6324
    %v6400 = vunpack.c.l.b16 %v6325
    %v6401 = vunpack.c.h.b16 %v6325
    %v6402 = vunpack.c.l.b16 %v6326
    %v6403 = vunpack.c.h.b16 %v6326
    %v6404 = vunpack.c.l.b16 %v6327
    %v6405 = vunpack.c.h.b16 %v6327
    %v6406 = vunpack.c.l.b16 %v6328
    %v6407 = vunpack.c.h.b16 %v6328
    %v6408 = vunpack.c.l.b16 %v6329
    %v6409 = vunpack.c.h.b16 %v6329
    %v6410 = vunpack.c.l.b16 %v6330
    %v6411 = vunpack.c.h.b16 %v6330
    %v6412 = vunpack.c.l.b16 %v6331
    %v6413 = vunpack.c.h.b16 %v6331
    %v6414 = vunpack.c.l.b16 %v6332
    %v6415 = vunpack.c.h.b16 %v6332
    %v6416 = vunpack.c.l.b16 %v6333
    %v6417 = vunpack.c.h.b16 %v6333
    %v6418 = vunpack.c.l.b16 %v6334
    %v6419 = vunpack.c.h.b16 %v6334
    %v6420 = vunpack.c.l.b16 %v6335
    %v6421 = vunpack.c.h.b16 %v6335
    %v6422 = vunpack.c.l.b16 %v6336
    %v6423 = vunpack.c.h.b16 %v6336
    %v6424 = vunpack.c.l.b16 %v6337
    %v6425 = vunpack.c.h.b16 %v6337
    %v6426 = vunpack.c.l.b16 %v6338
    %v6427 = vunpack.c.h.b16 %v6338
    %v6428 = vunpack.c.l.b16 %v6339
    %v6429 = vunpack.c.h.b16 %v6339
    %v6430 = vunpack.c.l.b16 %v6340
    %v6431 = vunpack.c.h.b16 %v6340
    %v6432 = vunpack.c.l.b16 %v6341
    %v6433 = vunpack.c.h.b16 %v6341
    %v6434 = vunpack.c.l.b16 %v6342
    %v6435 = vunpack.c.h.b16 %v6342
    %v6436 = vunpack.c.l.b16 %v6343
    %v6437 = vunpack.c.h.b16 %v6343
    %v6438 = vunpack.c.l.b16 %v6344
    %v6439 = vunpack.c.h.b16 %v6344
    %v6440 = vunpack.c.l.b16 %v6345
    %v6441 = vunpack.c.h.b16 %v6345
    %v6442 = vpack.c.b16 %v6380, %v6378
    %v6443 = vpack.c.b16 %v6381, %v6379
    %v6444 = vpack.c.b16 %v6384, %v6382
    %v6445 = vpack.c.b16 %v6385, %v6383
    %v6446 = vpack.c.b16 %v6388, %v6386
    %v6447 = vpack.c.b16 %v6389, %v6387
    %v6448 = vpack.c.b16 %v6392, %v6390
    %v6449 = vpack.c.b16 %v6393, %v6391
    %v6450 = vpack.c.b16 %v6396, %v6394
    %v6451 = vpack.c.b16 %v6397, %v6395
    %v6452 = vpack.c.b16 %v6400, %v6398
    %v6453 = vpack.c.b16 %v6401, %v6399
    %v6454 = vpack.c.b16 %v6404, %v6402
    %v6455 = vpack.c.b16 %v6405, %v6403
    %v6456 = vpack.c.b16 %v6408, %v6406
    %v6457 = vpack.c.b16 %v6409, %v6407
    %v6458 = vpack.c.b16 %v6412, %v6410
    %v6459 = vpack.c.b16 %v6413, %v6411
    %v6460 = vpack.c.b16 %v6416, %v6414
    %v6461 = vpack.c.b16 %v6417, %v6415
    %v6462 = vpack.c.b16 %v6420, %v6418
    %v6463 = vpack.c.b16 %v6421, %v6419
    %v6464 = vpack.c.b16 %v6424, %v6422
    %v6465 = vpack.c.b16 %v6425, %v6423
    %v6466 = vpack.c.b16 %v6428, %v6426
    %v6467 = vpack.c.b16 %v6429, %v6427
    %v6468 = vpack.c.b16 %v6432, %v6430
    %v6469 = vpack.c.b16 %v6433, %v6431
    %v6470 = vpack.c.b16 %v6436, %v6434
    %v6471 = vpack.c.b16 %v6437, %v6435
    %v6472 = vpack.c.b16 %v6440, %v6438
    %v6473 = vpack.c.b16 %v6441, %v6439
    %6506 = vmatprep.subr.bf16.mxu0 %v6457
    %6507 = vmatpush1.bf16.msra.mxu0 %v6456
    %6508 = vmatprep.subr.bf16.mxu0 %v6455
    %6509 = vmatpush1.bf16.msra.mxu0 %v6454
    %6510 = vmatprep.subr.bf16.mxu0 %v6453
    %6511 = vmatpush1.bf16.msra.mxu0 %v6452
    %6512 = vmatprep.subr.bf16.mxu0 %v6451
    %6513 = vmatpush1.bf16.msra.mxu0 %v6450
    %6514 = vmatprep.subr.bf16.mxu0 %v6449
    %6515 = vmatpush1.bf16.msra.mxu0 %v6448
    %6516 = vmatprep.subr.bf16.mxu0 %v6447
    %6517 = vmatpush1.bf16.msra.mxu0 %v6446
    %6518 = vmatprep.subr.bf16.mxu0 %v6445
    %6519 = vmatpush1.bf16.msra.mxu0 %v6444
    %6520 = vmatprep.subr.bf16.mxu0 %v6443
    %6521 = vmatpush1.bf16.msra.mxu0 %v6442
    %6522 = vmatprep.subr.bf16.mxu0 %v6473
    %6523 = vmatpush2.bf16.msra.mxu0 %v6472
    %6524 = vmatprep.subr.bf16.mxu0 %v6471
    %6525 = vmatpush2.bf16.msra.mxu0 %v6470
    %6526 = vmatprep.subr.bf16.mxu0 %v6469
    %6527 = vmatpush2.bf16.msra.mxu0 %v6468
    %6528 = vmatprep.subr.bf16.mxu0 %v6467
    %6529 = vmatpush2.bf16.msra.mxu0 %v6466
    %6530 = vmatprep.subr.bf16.mxu0 %v6465
    %6531 = vmatpush2.bf16.msra.mxu0 %v6464
    %6532 = vmatprep.subr.bf16.mxu0 %v6463
    %6533 = vmatpush2.bf16.msra.mxu0 %v6462
    %6534 = vmatprep.subr.bf16.mxu0 %v6461
    %6535 = vmatpush2.bf16.msra.mxu0 %v6460
    %6536 = vmatprep.subr.bf16.mxu0 %v6459
    %6537 = vmatpush2.bf16.msra.mxu0 %v6458
    %6538 = vmatprep.mubr.bf16.mxu0 %v5531
    %6539 = vmatmul.mubr.bf16.gmra.mxu0 %v5530
    %v6540 = vpop.f32.mrf.mxu0
    %v6541 = vadd.f32 0.0, %v6540
    %v6542 = vpop.f32.mrf.mxu0
    %v6543 = vadd.f32 0.0, %v6542
    %v6544 = vpop.f32.mrf.mxu0
    %v6545 = vadd.f32 0.0, %v6544
    %v6546 = vpop.f32.mrf.mxu0
    %v6547 = vadd.f32 0.0, %v6546
    %6548 = vdwg.mxu0
    %v6549 = vld [vmem:[%s13] sm:$0x3]
    %v6551 = vlaneseq
    %v6552 = vshrl.u32 %v6551, 7
    %v6553 = vsub.s32 0, %v6552
    %v6554 = vrot.slane %v6549, %v6553
    %v6555 = vlaneseq
    %v6556 = vshrl.u32 %v6555, 7
    %v6557 = vsub.s32 1, %v6556
    %v6558 = vrot.slane %v6549, %v6557
    %v6561 = vadd.f32 %v6310, %v6554
    %v6562 = vadd.f32 %v6311, %v6558
    %v6563 = vadd.f32 %v6312, %v6554
    %v6564 = vadd.f32 %v6313, %v6558
    %v6565 = vmax.f32 %v6561, 0.0
    %v6566 = vmax.f32 %v6562, 0.0
    %v6567 = vmax.f32 %v6563, 0.0
    %v6568 = vmax.f32 %v6564, 0.0
    %v6569 = vsel %vm5365, 1, 0
    %v6570 = vsel %vm5366, 1, 0
    %vm6571 = vcmp.eq.s32.totalorder %v6569, 1
    %vm6572 = vcmp.eq.s32.totalorder %v6570, 1
    %v6573 = vsel %vm6571, %v6565, 0.0
    %v6574 = vsel %vm6571, %v6566, 0.0
    %v6575 = vsel %vm6572, %v6567, 0.0
    %v6576 = vsel %vm6572, %v6568, 0.0
    %6577 = vst.msk [vmem:[#allocation4] ss:$8 sm:$0x3] %vm656, 0.0
    %6578 = vst.msk [vmem:[#allocation4] ss:$8 sm:$0x0] %vm656, 0.0
    %v6583 = vrot.slane %v6573, 7
    %v6584 = vrot.slane %v6574, 7
    %v6585 = vrot.slane %v6575, 7
    %v6586 = vsel %vm675, %v6583, %v6585
    %v6587 = vrot.slane %v6576, 7
    %v6588 = vsel %vm675, %v6584, %v6587
    %6593 = vst [vmem:[#allocation4] sm:$0xfe] %v6583
    %6594 = vst [vmem:[#allocation4 + $0x8] sm:$0xfe] %v6584
    %6595 = vst [vmem:[#allocation4 + $0x10] sm:$0x7f] %v6586
    %6596 = vst [vmem:[#allocation4 + $0x18] sm:$0x7f] %v6588
    %s6597 = scalar_lea.vmem [#allocation4], 23
    %6598 = vst.msk [vmem:[%s6597] ss:$8 sm:$0x3] %vm656, 0.0
    %6599 = vst.msk [vmem:[%s6597] ss:$8 sm:$0x0] %vm656, 0.0
    %v6600 = vld [vmem:[#allocation4] sm:$0xff]
    %v6601 = vld [vmem:[#allocation4 + $0x8] sm:$0xff]
    %v6602 = vld [vmem:[#allocation4 + $0x10] sm:$0x3f]
    %v6603 = vld [vmem:[#allocation4 + $0x18] sm:$0x3f]
    %v6604 = vpack.c.bf16 %v6602, %v6600
    %v6605 = vpack.c.bf16 %v6603, %v6601
    %v6606 = vld [vmem:[%s14] sm:$0xff]
    %v6607 = vld [vmem:[%s14 + $0x8] sm:$0xff]
    %v6608 = vld [vmem:[%s14 + $0x10] sm:$0xff]
    %v6609 = vld [vmem:[%s14 + $0x18] sm:$0xff]
    %v6610 = vld [vmem:[%s14 + $0x20] sm:$0xff]
    %v6611 = vld [vmem:[%s14 + $0x28] sm:$0xff]
    %v6612 = vld [vmem:[%s14 + $0x30] sm:$0xff]
    %v6613 = vld [vmem:[%s14 + $0x38] sm:$0xff]
    %v6614 = vld [vmem:[%s14 + $0x40] sm:$0xff]
    %v6615 = vld [vmem:[%s14 + $0x48] sm:$0xff]
    %v6616 = vld [vmem:[%s14 + $0x50] sm:$0xff]
    %v6617 = vld [vmem:[%s14 + $0x58] sm:$0xff]
    %v6618 = vld [vmem:[%s14 + $0x60] sm:$0xff]
    %v6619 = vld [vmem:[%s14 + $0x68] sm:$0xff]
    %v6620 = vld [vmem:[%s14 + $0x70] sm:$0xff]
    %v6621 = vld [vmem:[%s14 + $0x78] sm:$0xff]
    %v6622 = vld [vmem:[%s14 + $0x80] sm:$0xff]
    %v6623 = vld [vmem:[%s14 + $0x88] sm:$0xff]
    %v6624 = vld [vmem:[%s14 + $0x90] sm:$0xff]
    %v6625 = vld [vmem:[%s14 + $0x98] sm:$0xff]
    %v6626 = vld [vmem:[%s14 + $0xa0] sm:$0xff]
    %v6627 = vld [vmem:[%s14 + $0xa8] sm:$0xff]
    %v6628 = vld [vmem:[%s14 + $0xb0] sm:$0xff]
    %v6629 = vld [vmem:[%s14 + $0xb8] sm:$0xff]
    %v6630 = vld [vmem:[%s14 + $0xc0] sm:$0xff]
    %v6631 = vld [vmem:[%s14 + $0xc8] sm:$0xff]
    %v6632 = vld [vmem:[%s14 + $0xd0] sm:$0xff]
    %v6633 = vld [vmem:[%s14 + $0xd8] sm:$0xff]
    %v6634 = vld [vmem:[%s14 + $0xe0] sm:$0xff]
    %v6635 = vld [vmem:[%s14 + $0xe8] sm:$0xff]
    %v6636 = vld [vmem:[%s14 + $0xf0] sm:$0xff]
    %v6637 = vld [vmem:[%s14 + $0xf8] sm:$0xff]
    %v6638 = vld [vmem:[#allocation4] sm:$0xfe]
    %v6639 = vld [vmem:[#allocation4 + $0x8] sm:$0xfe]
    %v6640 = vld [vmem:[#allocation4 + $0x10] sm:$0x7f]
    %v6641 = vld [vmem:[#allocation4 + $0x18] sm:$0x7f]
    %v6642 = vpack.c.bf16 %v6640, %v6638
    %v6643 = vpack.c.bf16 %v6641, %v6639
    %s6644 = scalar_lea.vmem %s14, 256
    %v6645 = vld [vmem:[%s6644] sm:$0xff]
    %v6646 = vld [vmem:[%s6644 + $0x8] sm:$0xff]
    %v6647 = vld [vmem:[%s6644 + $0x10] sm:$0xff]
    %v6648 = vld [vmem:[%s6644 + $0x18] sm:$0xff]
    %v6649 = vld [vmem:[%s6644 + $0x20] sm:$0xff]
    %v6650 = vld [vmem:[%s6644 + $0x28] sm:$0xff]
    %v6651 = vld [vmem:[%s6644 + $0x30] sm:$0xff]
    %v6652 = vld [vmem:[%s6644 + $0x38] sm:$0xff]
    %v6653 = vld [vmem:[%s6644 + $0x40] sm:$0xff]
    %v6654 = vld [vmem:[%s6644 + $0x48] sm:$0xff]
    %v6655 = vld [vmem:[%s6644 + $0x50] sm:$0xff]
    %v6656 = vld [vmem:[%s6644 + $0x58] sm:$0xff]
    %v6657 = vld [vmem:[%s6644 + $0x60] sm:$0xff]
    %v6658 = vld [vmem:[%s6644 + $0x68] sm:$0xff]
    %v6659 = vld [vmem:[%s6644 + $0x70] sm:$0xff]
    %v6660 = vld [vmem:[%s6644 + $0x78] sm:$0xff]
    %v6661 = vld [vmem:[%s6644 + $0x80] sm:$0xff]
    %v6662 = vld [vmem:[%s6644 + $0x88] sm:$0xff]
    %v6663 = vld [vmem:[%s6644 + $0x90] sm:$0xff]
    %v6664 = vld [vmem:[%s6644 + $0x98] sm:$0xff]
    %v6665 = vld [vmem:[%s6644 + $0xa0] sm:$0xff]
    %v6666 = vld [vmem:[%s6644 + $0xa8] sm:$0xff]
    %v6667 = vld [vmem:[%s6644 + $0xb0] sm:$0xff]
    %v6668 = vld [vmem:[%s6644 + $0xb8] sm:$0xff]
    %v6669 = vld [vmem:[%s6644 + $0xc0] sm:$0xff]
    %v6670 = vld [vmem:[%s6644 + $0xc8] sm:$0xff]
    %v6671 = vld [vmem:[%s6644 + $0xd0] sm:$0xff]
    %v6672 = vld [vmem:[%s6644 + $0xd8] sm:$0xff]
    %v6673 = vld [vmem:[%s6644 + $0xe0] sm:$0xff]
    %v6674 = vld [vmem:[%s6644 + $0xe8] sm:$0xff]
    %v6675 = vld [vmem:[%s6644 + $0xf0] sm:$0xff]
    %v6676 = vld [vmem:[%s6644 + $0xf8] sm:$0xff]
    %v6678 = vshrl.u32 %v6642, 16
    %v6680 = vshll.u32 %v6642, 16
    %v6682 = vrot.slane %v6680, 1
    %v6683 = vor.u32 %v6678, %v6682
    %v6685 = vshrl.u32 %v6643, 16
    %v6687 = vshll.u32 %v6643, 16
    %v6689 = vrot.slane %v6687, 1
    %v6690 = vor.u32 %v6685, %v6689
    %v6725 = vunpack.c.l.b16 %v6645
    %v6726 = vunpack.c.h.b16 %v6645
    %v6727 = vunpack.c.l.b16 %v6646
    %v6728 = vunpack.c.h.b16 %v6646
    %v6729 = vunpack.c.l.b16 %v6647
    %v6730 = vunpack.c.h.b16 %v6647
    %v6731 = vunpack.c.l.b16 %v6648
    %v6732 = vunpack.c.h.b16 %v6648
    %v6733 = vunpack.c.l.b16 %v6649
    %v6734 = vunpack.c.h.b16 %v6649
    %v6735 = vunpack.c.l.b16 %v6650
    %v6736 = vunpack.c.h.b16 %v6650
    %v6737 = vunpack.c.l.b16 %v6651
    %v6738 = vunpack.c.h.b16 %v6651
    %v6739 = vunpack.c.l.b16 %v6652
    %v6740 = vunpack.c.h.b16 %v6652
    %v6741 = vunpack.c.l.b16 %v6653
    %v6742 = vunpack.c.h.b16 %v6653
    %v6743 = vunpack.c.l.b16 %v6654
    %v6744 = vunpack.c.h.b16 %v6654
    %v6745 = vunpack.c.l.b16 %v6655
    %v6746 = vunpack.c.h.b16 %v6655
    %v6747 = vunpack.c.l.b16 %v6656
    %v6748 = vunpack.c.h.b16 %v6656
    %v6749 = vunpack.c.l.b16 %v6657
    %v6750 = vunpack.c.h.b16 %v6657
    %v6751 = vunpack.c.l.b16 %v6658
    %v6752 = vunpack.c.h.b16 %v6658
    %v6753 = vunpack.c.l.b16 %v6659
    %v6754 = vunpack.c.h.b16 %v6659
    %v6755 = vunpack.c.l.b16 %v6660
    %v6756 = vunpack.c.h.b16 %v6660
    %v6757 = vunpack.c.l.b16 %v6661
    %v6758 = vunpack.c.h.b16 %v6661
    %v6759 = vunpack.c.l.b16 %v6662
    %v6760 = vunpack.c.h.b16 %v6662
    %v6761 = vunpack.c.l.b16 %v6663
    %v6762 = vunpack.c.h.b16 %v6663
    %v6763 = vunpack.c.l.b16 %v6664
    %v6764 = vunpack.c.h.b16 %v6664
    %v6765 = vunpack.c.l.b16 %v6665
    %v6766 = vunpack.c.h.b16 %v6665
    %v6767 = vunpack.c.l.b16 %v6666
    %v6768 = vunpack.c.h.b16 %v6666
    %v6769 = vunpack.c.l.b16 %v6667
    %v6770 = vunpack.c.h.b16 %v6667
    %v6771 = vunpack.c.l.b16 %v6668
    %v6772 = vunpack.c.h.b16 %v6668
    %v6773 = vunpack.c.l.b16 %v6669
    %v6774 = vunpack.c.h.b16 %v6669
    %v6775 = vunpack.c.l.b16 %v6670
    %v6776 = vunpack.c.h.b16 %v6670
    %v6777 = vunpack.c.l.b16 %v6671
    %v6778 = vunpack.c.h.b16 %v6671
    %v6779 = vunpack.c.l.b16 %v6672
    %v6780 = vunpack.c.h.b16 %v6672
    %v6781 = vunpack.c.l.b16 %v6673
    %v6782 = vunpack.c.h.b16 %v6673
    %v6783 = vunpack.c.l.b16 %v6674
    %v6784 = vunpack.c.h.b16 %v6674
    %v6785 = vunpack.c.l.b16 %v6675
    %v6786 = vunpack.c.h.b16 %v6675
    %v6787 = vunpack.c.l.b16 %v6676
    %v6788 = vunpack.c.h.b16 %v6676
    %v6789 = vpack.c.b16 %v6727, %v6725
    %v6790 = vpack.c.b16 %v6728, %v6726
    %v6791 = vpack.c.b16 %v6731, %v6729
    %v6792 = vpack.c.b16 %v6732, %v6730
    %v6793 = vpack.c.b16 %v6735, %v6733
    %v6794 = vpack.c.b16 %v6736, %v6734
    %v6795 = vpack.c.b16 %v6739, %v6737
    %v6796 = vpack.c.b16 %v6740, %v6738
    %v6797 = vpack.c.b16 %v6743, %v6741
    %v6798 = vpack.c.b16 %v6744, %v6742
    %v6799 = vpack.c.b16 %v6747, %v6745
    %v6800 = vpack.c.b16 %v6748, %v6746
    %v6801 = vpack.c.b16 %v6751, %v6749
    %v6802 = vpack.c.b16 %v6752, %v6750
    %v6803 = vpack.c.b16 %v6755, %v6753
    %v6804 = vpack.c.b16 %v6756, %v6754
    %v6805 = vpack.c.b16 %v6759, %v6757
    %v6806 = vpack.c.b16 %v6760, %v6758
    %v6807 = vpack.c.b16 %v6763, %v6761
    %v6808 = vpack.c.b16 %v6764, %v6762
    %v6809 = vpack.c.b16 %v6767, %v6765
    %v6810 = vpack.c.b16 %v6768, %v6766
    %v6811 = vpack.c.b16 %v6771, %v6769
    %v6812 = vpack.c.b16 %v6772, %v6770
    %v6813 = vpack.c.b16 %v6775, %v6773
    %v6814 = vpack.c.b16 %v6776, %v6774
    %v6815 = vpack.c.b16 %v6779, %v6777
    %v6816 = vpack.c.b16 %v6780, %v6778
    %v6817 = vpack.c.b16 %v6783, %v6781
    %v6818 = vpack.c.b16 %v6784, %v6782
    %v6819 = vpack.c.b16 %v6787, %v6785
    %v6820 = vpack.c.b16 %v6788, %v6786
    %6853 = vmatprep.subr.bf16.mxu0 %v6804
    %6854 = vmatpush1.bf16.msra.mxu0 %v6803
    %6855 = vmatprep.subr.bf16.mxu0 %v6802
    %6856 = vmatpush1.bf16.msra.mxu0 %v6801
    %6857 = vmatprep.subr.bf16.mxu0 %v6800
    %6858 = vmatpush1.bf16.msra.mxu0 %v6799
    %6859 = vmatprep.subr.bf16.mxu0 %v6798
    %6860 = vmatpush1.bf16.msra.mxu0 %v6797
    %6861 = vmatprep.subr.bf16.mxu0 %v6796
    %6862 = vmatpush1.bf16.msra.mxu0 %v6795
    %6863 = vmatprep.subr.bf16.mxu0 %v6794
    %6864 = vmatpush1.bf16.msra.mxu0 %v6793
    %6865 = vmatprep.subr.bf16.mxu0 %v6792
    %6866 = vmatpush1.bf16.msra.mxu0 %v6791
    %6867 = vmatprep.subr.bf16.mxu0 %v6790
    %6868 = vmatpush1.bf16.msra.mxu0 %v6789
    %6869 = vmatprep.subr.bf16.mxu0 %v6820
    %6870 = vmatpush2.bf16.msra.mxu0 %v6819
    %6871 = vmatprep.subr.bf16.mxu0 %v6818
    %6872 = vmatpush2.bf16.msra.mxu0 %v6817
    %6873 = vmatprep.subr.bf16.mxu0 %v6816
    %6874 = vmatpush2.bf16.msra.mxu0 %v6815
    %6875 = vmatprep.subr.bf16.mxu0 %v6814
    %6876 = vmatpush2.bf16.msra.mxu0 %v6813
    %6877 = vmatprep.subr.bf16.mxu0 %v6812
    %6878 = vmatpush2.bf16.msra.mxu0 %v6811
    %6879 = vmatprep.subr.bf16.mxu0 %v6810
    %6880 = vmatpush2.bf16.msra.mxu0 %v6809
    %6881 = vmatprep.subr.bf16.mxu0 %v6808
    %6882 = vmatpush2.bf16.msra.mxu0 %v6807
    %6883 = vmatprep.subr.bf16.mxu0 %v6806
    %6884 = vmatpush2.bf16.msra.mxu0 %v6805
    %6885 = vmatprep.mubr.bf16.mxu0 %v6690
    %6886 = vmatmul.mubr.bf16.gmra.mxu0 %v6683
    %v6887 = vpop.f32.mrf.mxu0
    %v6888 = vadd.f32 0.0, %v6887
    %v6889 = vpop.f32.mrf.mxu0
    %v6890 = vadd.f32 0.0, %v6889
    %v6891 = vpop.f32.mrf.mxu0
    %v6892 = vadd.f32 0.0, %v6891
    %v6893 = vpop.f32.mrf.mxu0
    %v6894 = vadd.f32 0.0, %v6893
    %6895 = vdwg.mxu0
    %v6928 = vunpack.c.l.b16 %v6606
    %v6929 = vunpack.c.h.b16 %v6606
    %v6930 = vunpack.c.l.b16 %v6607
    %v6931 = vunpack.c.h.b16 %v6607
    %v6932 = vunpack.c.l.b16 %v6608
    %v6933 = vunpack.c.h.b16 %v6608
    %v6934 = vunpack.c.l.b16 %v6609
    %v6935 = vunpack.c.h.b16 %v6609
    %v6936 = vunpack.c.l.b16 %v6610
    %v6937 = vunpack.c.h.b16 %v6610
    %v6938 = vunpack.c.l.b16 %v6611
    %v6939 = vunpack.c.h.b16 %v6611
    %v6940 = vunpack.c.l.b16 %v6612
    %v6941 = vunpack.c.h.b16 %v6612
    %v6942 = vunpack.c.l.b16 %v6613
    %v6943 = vunpack.c.h.b16 %v6613
    %v6944 = vunpack.c.l.b16 %v6614
    %v6945 = vunpack.c.h.b16 %v6614
    %v6946 = vunpack.c.l.b16 %v6615
    %v6947 = vunpack.c.h.b16 %v6615
    %v6948 = vunpack.c.l.b16 %v6616
    %v6949 = vunpack.c.h.b16 %v6616
    %v6950 = vunpack.c.l.b16 %v6617
    %v6951 = vunpack.c.h.b16 %v6617
    %v6952 = vunpack.c.l.b16 %v6618
    %v6953 = vunpack.c.h.b16 %v6618
    %v6954 = vunpack.c.l.b16 %v6619
    %v6955 = vunpack.c.h.b16 %v6619
    %v6956 = vunpack.c.l.b16 %v6620
    %v6957 = vunpack.c.h.b16 %v6620
    %v6958 = vunpack.c.l.b16 %v6621
    %v6959 = vunpack.c.h.b16 %v6621
    %v6960 = vunpack.c.l.b16 %v6622
    %v6961 = vunpack.c.h.b16 %v6622
    %v6962 = vunpack.c.l.b16 %v6623
    %v6963 = vunpack.c.h.b16 %v6623
    %v6964 = vunpack.c.l.b16 %v6624
    %v6965 = vunpack.c.h.b16 %v6624
    %v6966 = vunpack.c.l.b16 %v6625
    %v6967 = vunpack.c.h.b16 %v6625
    %v6968 = vunpack.c.l.b16 %v6626
    %v6969 = vunpack.c.h.b16 %v6626
    %v6970 = vunpack.c.l.b16 %v6627
    %v6971 = vunpack.c.h.b16 %v6627
    %v6972 = vunpack.c.l.b16 %v6628
    %v6973 = vunpack.c.h.b16 %v6628
    %v6974 = vunpack.c.l.b16 %v6629
    %v6975 = vunpack.c.h.b16 %v6629
    %v6976 = vunpack.c.l.b16 %v6630
    %v6977 = vunpack.c.h.b16 %v6630
    %v6978 = vunpack.c.l.b16 %v6631
    %v6979 = vunpack.c.h.b16 %v6631
    %v6980 = vunpack.c.l.b16 %v6632
    %v6981 = vunpack.c.h.b16 %v6632
    %v6982 = vunpack.c.l.b16 %v6633
    %v6983 = vunpack.c.h.b16 %v6633
    %v6984 = vunpack.c.l.b16 %v6634
    %v6985 = vunpack.c.h.b16 %v6634
    %v6986 = vunpack.c.l.b16 %v6635
    %v6987 = vunpack.c.h.b16 %v6635
    %v6988 = vunpack.c.l.b16 %v6636
    %v6989 = vunpack.c.h.b16 %v6636
    %v6990 = vunpack.c.l.b16 %v6637
    %v6991 = vunpack.c.h.b16 %v6637
    %v6992 = vpack.c.b16 %v6930, %v6928
    %v6993 = vpack.c.b16 %v6931, %v6929
    %v6994 = vpack.c.b16 %v6934, %v6932
    %v6995 = vpack.c.b16 %v6935, %v6933
    %v6996 = vpack.c.b16 %v6938, %v6936
    %v6997 = vpack.c.b16 %v6939, %v6937
    %v6998 = vpack.c.b16 %v6942, %v6940
    %v6999 = vpack.c.b16 %v6943, %v6941
    %v7000 = vpack.c.b16 %v6946, %v6944
    %v7001 = vpack.c.b16 %v6947, %v6945
    %v7002 = vpack.c.b16 %v6950, %v6948
    %v7003 = vpack.c.b16 %v6951, %v6949
    %v7004 = vpack.c.b16 %v6954, %v6952
    %v7005 = vpack.c.b16 %v6955, %v6953
    %v7006 = vpack.c.b16 %v6958, %v6956
    %v7007 = vpack.c.b16 %v6959, %v6957
    %v7008 = vpack.c.b16 %v6962, %v6960
    %v7009 = vpack.c.b16 %v6963, %v6961
    %v7010 = vpack.c.b16 %v6966, %v6964
    %v7011 = vpack.c.b16 %v6967, %v6965
    %v7012 = vpack.c.b16 %v6970, %v6968
    %v7013 = vpack.c.b16 %v6971, %v6969
    %v7014 = vpack.c.b16 %v6974, %v6972
    %v7015 = vpack.c.b16 %v6975, %v6973
    %v7016 = vpack.c.b16 %v6978, %v6976
    %v7017 = vpack.c.b16 %v6979, %v6977
    %v7018 = vpack.c.b16 %v6982, %v6980
    %v7019 = vpack.c.b16 %v6983, %v6981
    %v7020 = vpack.c.b16 %v6986, %v6984
    %v7021 = vpack.c.b16 %v6987, %v6985
    %v7022 = vpack.c.b16 %v6990, %v6988
    %v7023 = vpack.c.b16 %v6991, %v6989
    %7056 = vmatprep.subr.bf16.mxu0 %v7007
    %7057 = vmatpush1.bf16.msra.mxu0 %v7006
    %7058 = vmatprep.subr.bf16.mxu0 %v7005
    %7059 = vmatpush1.bf16.msra.mxu0 %v7004
    %7060 = vmatprep.subr.bf16.mxu0 %v7003
    %7061 = vmatpush1.bf16.msra.mxu0 %v7002
    %7062 = vmatprep.subr.bf16.mxu0 %v7001
    %7063 = vmatpush1.bf16.msra.mxu0 %v7000
    %7064 = vmatprep.subr.bf16.mxu0 %v6999
    %7065 = vmatpush1.bf16.msra.mxu0 %v6998
    %7066 = vmatprep.subr.bf16.mxu0 %v6997
    %7067 = vmatpush1.bf16.msra.mxu0 %v6996
    %7068 = vmatprep.subr.bf16.mxu0 %v6995
    %7069 = vmatpush1.bf16.msra.mxu0 %v6994
    %7070 = vmatprep.subr.bf16.mxu0 %v6993
    %7071 = vmatpush1.bf16.msra.mxu0 %v6992
    %7072 = vmatprep.subr.bf16.mxu0 %v7023
    %7073 = vmatpush2.bf16.msra.mxu0 %v7022
    %7074 = vmatprep.subr.bf16.mxu0 %v7021
    %7075 = vmatpush2.bf16.msra.mxu0 %v7020
    %7076 = vmatprep.subr.bf16.mxu0 %v7019
    %7077 = vmatpush2.bf16.msra.mxu0 %v7018
    %7078 = vmatprep.subr.bf16.mxu0 %v7017
    %7079 = vmatpush2.bf16.msra.mxu0 %v7016
    %7080 = vmatprep.subr.bf16.mxu0 %v7015
    %7081 = vmatpush2.bf16.msra.mxu0 %v7014
    %7082 = vmatprep.subr.bf16.mxu0 %v7013
    %7083 = vmatpush2.bf16.msra.mxu0 %v7012
    %7084 = vmatprep.subr.bf16.mxu0 %v7011
    %7085 = vmatpush2.bf16.msra.mxu0 %v7010
    %7086 = vmatprep.subr.bf16.mxu0 %v7009
    %7087 = vmatpush2.bf16.msra.mxu0 %v7008
    %7088 = vmatprep.mubr.bf16.mxu0 %v6605
    %7089 = vmatmul.mubr.bf16.gmra.mxu0 %v6604
    %v7090 = vpop.f32.mrf.mxu0
    %v7091 = vadd.f32 %v6888, %v7090
    %v7092 = vpop.f32.mrf.mxu0
    %v7093 = vadd.f32 %v6890, %v7092
    %v7094 = vpop.f32.mrf.mxu0
    %v7095 = vadd.f32 %v6892, %v7094
    %v7096 = vpop.f32.mrf.mxu0
    %v7097 = vadd.f32 %v6894, %v7096
    %7098 = vdwg.mxu0
    %v7099 = vld [vmem:[#allocation4] sm:$0xfc]
    %v7100 = vld [vmem:[#allocation4 + $0x8] sm:$0xfc]
    %v7101 = vld [vmem:[#allocation4 + $0x10] sm:$0xff]
    %v7102 = vld [vmem:[#allocation4 + $0x18] sm:$0xff]
    %v7103 = vpack.c.bf16 %v7101, %v7099
    %v7104 = vpack.c.bf16 %v7102, %v7100
    %s7105 = scalar_lea.vmem %s14, 512
    %v7106 = vld [vmem:[%s7105] sm:$0xff]
    %v7107 = vld [vmem:[%s7105 + $0x8] sm:$0xff]
    %v7108 = vld [vmem:[%s7105 + $0x10] sm:$0xff]
    %v7109 = vld [vmem:[%s7105 + $0x18] sm:$0xff]
    %v7110 = vld [vmem:[%s7105 + $0x20] sm:$0xff]
    %v7111 = vld [vmem:[%s7105 + $0x28] sm:$0xff]
    %v7112 = vld [vmem:[%s7105 + $0x30] sm:$0xff]
    %v7113 = vld [vmem:[%s7105 + $0x38] sm:$0xff]
    %v7114 = vld [vmem:[%s7105 + $0x40] sm:$0xff]
    %v7115 = vld [vmem:[%s7105 + $0x48] sm:$0xff]
    %v7116 = vld [vmem:[%s7105 + $0x50] sm:$0xff]
    %v7117 = vld [vmem:[%s7105 + $0x58] sm:$0xff]
    %v7118 = vld [vmem:[%s7105 + $0x60] sm:$0xff]
    %v7119 = vld [vmem:[%s7105 + $0x68] sm:$0xff]
    %v7120 = vld [vmem:[%s7105 + $0x70] sm:$0xff]
    %v7121 = vld [vmem:[%s7105 + $0x78] sm:$0xff]
    %v7122 = vld [vmem:[%s7105 + $0x80] sm:$0xff]
    %v7123 = vld [vmem:[%s7105 + $0x88] sm:$0xff]
    %v7124 = vld [vmem:[%s7105 + $0x90] sm:$0xff]
    %v7125 = vld [vmem:[%s7105 + $0x98] sm:$0xff]
    %v7126 = vld [vmem:[%s7105 + $0xa0] sm:$0xff]
    %v7127 = vld [vmem:[%s7105 + $0xa8] sm:$0xff]
    %v7128 = vld [vmem:[%s7105 + $0xb0] sm:$0xff]
    %v7129 = vld [vmem:[%s7105 + $0xb8] sm:$0xff]
    %v7130 = vld [vmem:[%s7105 + $0xc0] sm:$0xff]
    %v7131 = vld [vmem:[%s7105 + $0xc8] sm:$0xff]
    %v7132 = vld [vmem:[%s7105 + $0xd0] sm:$0xff]
    %v7133 = vld [vmem:[%s7105 + $0xd8] sm:$0xff]
    %v7134 = vld [vmem:[%s7105 + $0xe0] sm:$0xff]
    %v7135 = vld [vmem:[%s7105 + $0xe8] sm:$0xff]
    %v7136 = vld [vmem:[%s7105 + $0xf0] sm:$0xff]
    %v7137 = vld [vmem:[%s7105 + $0xf8] sm:$0xff]
    %v7140 = vrot.slane %v7103, 1
    %v7141 = vrot.slane %v7104, 1
    %v7176 = vunpack.c.l.b16 %v7106
    %v7177 = vunpack.c.h.b16 %v7106
    %v7178 = vunpack.c.l.b16 %v7107
    %v7179 = vunpack.c.h.b16 %v7107
    %v7180 = vunpack.c.l.b16 %v7108
    %v7181 = vunpack.c.h.b16 %v7108
    %v7182 = vunpack.c.l.b16 %v7109
    %v7183 = vunpack.c.h.b16 %v7109
    %v7184 = vunpack.c.l.b16 %v7110
    %v7185 = vunpack.c.h.b16 %v7110
    %v7186 = vunpack.c.l.b16 %v7111
    %v7187 = vunpack.c.h.b16 %v7111
    %v7188 = vunpack.c.l.b16 %v7112
    %v7189 = vunpack.c.h.b16 %v7112
    %v7190 = vunpack.c.l.b16 %v7113
    %v7191 = vunpack.c.h.b16 %v7113
    %v7192 = vunpack.c.l.b16 %v7114
    %v7193 = vunpack.c.h.b16 %v7114
    %v7194 = vunpack.c.l.b16 %v7115
    %v7195 = vunpack.c.h.b16 %v7115
    %v7196 = vunpack.c.l.b16 %v7116
    %v7197 = vunpack.c.h.b16 %v7116
    %v7198 = vunpack.c.l.b16 %v7117
    %v7199 = vunpack.c.h.b16 %v7117
    %v7200 = vunpack.c.l.b16 %v7118
    %v7201 = vunpack.c.h.b16 %v7118
    %v7202 = vunpack.c.l.b16 %v7119
    %v7203 = vunpack.c.h.b16 %v7119
    %v7204 = vunpack.c.l.b16 %v7120
    %v7205 = vunpack.c.h.b16 %v7120
    %v7206 = vunpack.c.l.b16 %v7121
    %v7207 = vunpack.c.h.b16 %v7121
    %v7208 = vunpack.c.l.b16 %v7122
    %v7209 = vunpack.c.h.b16 %v7122
    %v7210 = vunpack.c.l.b16 %v7123
    %v7211 = vunpack.c.h.b16 %v7123
    %v7212 = vunpack.c.l.b16 %v7124
    %v7213 = vunpack.c.h.b16 %v7124
    %v7214 = vunpack.c.l.b16 %v7125
    %v7215 = vunpack.c.h.b16 %v7125
    %v7216 = vunpack.c.l.b16 %v7126
    %v7217 = vunpack.c.h.b16 %v7126
    %v7218 = vunpack.c.l.b16 %v7127
    %v7219 = vunpack.c.h.b16 %v7127
    %v7220 = vunpack.c.l.b16 %v7128
    %v7221 = vunpack.c.h.b16 %v7128
    %v7222 = vunpack.c.l.b16 %v7129
    %v7223 = vunpack.c.h.b16 %v7129
    %v7224 = vunpack.c.l.b16 %v7130
    %v7225 = vunpack.c.h.b16 %v7130
    %v7226 = vunpack.c.l.b16 %v7131
    %v7227 = vunpack.c.h.b16 %v7131
    %v7228 = vunpack.c.l.b16 %v7132
    %v7229 = vunpack.c.h.b16 %v7132
    %v7230 = vunpack.c.l.b16 %v7133
    %v7231 = vunpack.c.h.b16 %v7133
    %v7232 = vunpack.c.l.b16 %v7134
    %v7233 = vunpack.c.h.b16 %v7134
    %v7234 = vunpack.c.l.b16 %v7135
    %v7235 = vunpack.c.h.b16 %v7135
    %v7236 = vunpack.c.l.b16 %v7136
    %v7237 = vunpack.c.h.b16 %v7136
    %v7238 = vunpack.c.l.b16 %v7137
    %v7239 = vunpack.c.h.b16 %v7137
    %v7240 = vpack.c.b16 %v7178, %v7176
    %v7241 = vpack.c.b16 %v7179, %v7177
    %v7242 = vpack.c.b16 %v7182, %v7180
    %v7243 = vpack.c.b16 %v7183, %v7181
    %v7244 = vpack.c.b16 %v7186, %v7184
    %v7245 = vpack.c.b16 %v7187, %v7185
    %v7246 = vpack.c.b16 %v7190, %v7188
    %v7247 = vpack.c.b16 %v7191, %v7189
    %v7248 = vpack.c.b16 %v7194, %v7192
    %v7249 = vpack.c.b16 %v7195, %v7193
    %v7250 = vpack.c.b16 %v7198, %v7196
    %v7251 = vpack.c.b16 %v7199, %v7197
    %v7252 = vpack.c.b16 %v7202, %v7200
    %v7253 = vpack.c.b16 %v7203, %v7201
    %v7254 = vpack.c.b16 %v7206, %v7204
    %v7255 = vpack.c.b16 %v7207, %v7205
    %v7256 = vpack.c.b16 %v7210, %v7208
    %v7257 = vpack.c.b16 %v7211, %v7209
    %v7258 = vpack.c.b16 %v7214, %v7212
    %v7259 = vpack.c.b16 %v7215, %v7213
    %v7260 = vpack.c.b16 %v7218, %v7216
    %v7261 = vpack.c.b16 %v7219, %v7217
    %v7262 = vpack.c.b16 %v7222, %v7220
    %v7263 = vpack.c.b16 %v7223, %v7221
    %v7264 = vpack.c.b16 %v7226, %v7224
    %v7265 = vpack.c.b16 %v7227, %v7225
    %v7266 = vpack.c.b16 %v7230, %v7228
    %v7267 = vpack.c.b16 %v7231, %v7229
    %v7268 = vpack.c.b16 %v7234, %v7232
    %v7269 = vpack.c.b16 %v7235, %v7233
    %v7270 = vpack.c.b16 %v7238, %v7236
    %v7271 = vpack.c.b16 %v7239, %v7237
    %7304 = vmatprep.subr.bf16.mxu0 %v7255
    %7305 = vmatpush1.bf16.msra.mxu0 %v7254
    %7306 = vmatprep.subr.bf16.mxu0 %v7253
    %7307 = vmatpush1.bf16.msra.mxu0 %v7252
    %7308 = vmatprep.subr.bf16.mxu0 %v7251
    %7309 = vmatpush1.bf16.msra.mxu0 %v7250
    %7310 = vmatprep.subr.bf16.mxu0 %v7249
    %7311 = vmatpush1.bf16.msra.mxu0 %v7248
    %7312 = vmatprep.subr.bf16.mxu0 %v7247
    %7313 = vmatpush1.bf16.msra.mxu0 %v7246
    %7314 = vmatprep.subr.bf16.mxu0 %v7245
    %7315 = vmatpush1.bf16.msra.mxu0 %v7244
    %7316 = vmatprep.subr.bf16.mxu0 %v7243
    %7317 = vmatpush1.bf16.msra.mxu0 %v7242
    %7318 = vmatprep.subr.bf16.mxu0 %v7241
    %7319 = vmatpush1.bf16.msra.mxu0 %v7240
    %7320 = vmatprep.subr.bf16.mxu0 %v7271
    %7321 = vmatpush2.bf16.msra.mxu0 %v7270
    %7322 = vmatprep.subr.bf16.mxu0 %v7269
    %7323 = vmatpush2.bf16.msra.mxu0 %v7268
    %7324 = vmatprep.subr.bf16.mxu0 %v7267
    %7325 = vmatpush2.bf16.msra.mxu0 %v7266
    %7326 = vmatprep.subr.bf16.mxu0 %v7265
    %7327 = vmatpush2.bf16.msra.mxu0 %v7264
    %7328 = vmatprep.subr.bf16.mxu0 %v7263
    %7329 = vmatpush2.bf16.msra.mxu0 %v7262
    %7330 = vmatprep.subr.bf16.mxu0 %v7261
    %7331 = vmatpush2.bf16.msra.mxu0 %v7260
    %7332 = vmatprep.subr.bf16.mxu0 %v7259
    %7333 = vmatpush2.bf16.msra.mxu0 %v7258
    %7334 = vmatprep.subr.bf16.mxu0 %v7257
    %7335 = vmatpush2.bf16.msra.mxu0 %v7256
    %7336 = vmatprep.mubr.bf16.mxu0 %v7141
    %7337 = vmatmul.mubr.bf16.gmra.mxu0 %v7140
    %v7338 = vpop.f32.mrf.mxu0
    %v7339 = vadd.f32 0.0, %v7338
    %v7340 = vpop.f32.mrf.mxu0
    %v7341 = vadd.f32 0.0, %v7340
    %v7342 = vpop.f32.mrf.mxu0
    %v7343 = vadd.f32 0.0, %v7342
    %v7344 = vpop.f32.mrf.mxu0
    %v7345 = vadd.f32 0.0, %v7344
    %7346 = vdwg.mxu0
    %v7347 = vadd.f32 %v7091, %v7339
    %v7348 = vadd.f32 %v7093, %v7341
    %v7349 = vadd.f32 %v7095, %v7343
    %v7350 = vadd.f32 %v7097, %v7345
    %v7351 = vld [vmem:[%s15] sm:$0x3]
    %v7353 = vlaneseq
    %v7354 = vshrl.u32 %v7353, 7
    %v7355 = vsub.s32 0, %v7354
    %v7356 = vrot.slane %v7351, %v7355
    %v7357 = vlaneseq
    %v7358 = vshrl.u32 %v7357, 7
    %v7359 = vsub.s32 1, %v7358
    %v7360 = vrot.slane %v7351, %v7359
    %v7363 = vadd.f32 %v7347, %v7356
    %v7364 = vadd.f32 %v7348, %v7360
    %v7365 = vadd.f32 %v7349, %v7356
    %v7366 = vadd.f32 %v7350, %v7360
    %v7367 = vadd.f32 %v7363, %v6541
    %v7368 = vadd.f32 %v7364, %v6543
    %v7369 = vadd.f32 %v7365, %v6545
    %v7370 = vadd.f32 %v7366, %v6547
    %v7371 = vmax.f32 %v7367, 0.0
    %v7372 = vmax.f32 %v7368, 0.0
    %v7373 = vmax.f32 %v7369, 0.0
    %v7374 = vmax.f32 %v7370, 0.0
    %v7375 = vsel %vm6571, %v7371, 0.0
    %v7376 = vsel %vm6571, %v7372, 0.0
    %v7377 = vsel %vm6572, %v7373, 0.0
    %v7378 = vsel %vm6572, %v7374, 0.0
    %7379 = vst.msk [vmem:[#allocation3] ss:$8 sm:$0x3] %vm656, 0.0
    %7380 = vst.msk [vmem:[#allocation3] ss:$8 sm:$0x0] %vm656, 0.0
    %v7385 = vrot.slane %v7375, 7
    %v7386 = vrot.slane %v7376, 7
    %v7387 = vrot.slane %v7377, 7
    %v7388 = vsel %vm675, %v7385, %v7387
    %v7389 = vrot.slane %v7378, 7
    %v7390 = vsel %vm675, %v7386, %v7389
    %7395 = vst [vmem:[#allocation3] sm:$0xfe] %v7385
    %7396 = vst [vmem:[#allocation3 + $0x8] sm:$0xfe] %v7386
    %7397 = vst [vmem:[#allocation3 + $0x10] sm:$0x7f] %v7388
    %7398 = vst [vmem:[#allocation3 + $0x18] sm:$0x7f] %v7390
    %s7399 = scalar_lea.vmem [#allocation3], 23
    %7400 = vst.msk [vmem:[%s7399] ss:$8 sm:$0x3] %vm656, 0.0
    %7401 = vst.msk [vmem:[%s7399] ss:$8 sm:$0x0] %vm656, 0.0
    %v7402 = vld [vmem:[%s19] sm:$0x3]
    %v7403 = vld [vmem:[#allocation3] sm:$0xfe]
    %v7404 = vld [vmem:[#allocation3 + $0x8] sm:$0xfe]
    %v7405 = vld [vmem:[#allocation3 + $0x10] sm:$0x7f]
    %v7406 = vld [vmem:[#allocation3 + $0x18] sm:$0x7f]
    %v7411 = vrot.slane %v7403, 1
    %v7412 = vrot.slane %v7405, 1
    %v7413 = vsel %vm2834, %v7411, %v7412
    %v7414 = vrot.slane %v7404, 1
    %v7415 = vrot.slane %v7406, 1
    %v7416 = vsel %vm2834, %v7414, %v7415
    %vm7419 = vcmask 113664
    %v7421 = vsel %vm7419, %v7402, 0
    %vm7423 = vcmask 1045504
    %v7424 = vsel %vm7423, %v7412, 0
    %v7426 = vsel %vm7423, %v7415, 0
    %7428 = vmatprep.subr.mxu0 0.0
    %7429 = vmatpush1.msra.mxu0 0.0
    %7430 = vmatprep.subr.mxu0 0.0
    %7431 = vmatpush1.msra.mxu0 0.0
    %7432 = vmatprep.subr.mxu0 0.0
    %7433 = vmatpush1.msra.mxu0 0.0
    %7434 = vmatprep.subr.mxu0 0.0
    %7435 = vmatpush1.msra.mxu0 0.0
    %7436 = vmatprep.subr.mxu0 0.0
    %7437 = vmatpush1.msra.mxu0 0.0
    %7438 = vmatprep.subr.mxu0 0.0
    %7439 = vmatpush1.msra.mxu0 0.0
    %7440 = vmatprep.subr.mxu0 0.0
    %7441 = vmatpush1.msra.mxu0 0.0
    %7442 = vmatprep.subr.mxu0 0.0
    %7443 = vmatpush1.msra.mxu0 0.0
    %7444 = vmatprep.subr.mxu0 0.0
    %7445 = vmatpush1.msra.mxu0 0.0
    %7446 = vmatprep.subr.mxu0 0.0
    %7447 = vmatpush1.msra.mxu0 0.0
    %7448 = vmatprep.subr.mxu0 0.0
    %7449 = vmatpush1.msra.mxu0 0.0
    %7450 = vmatprep.subr.mxu0 0.0
    %7451 = vmatpush1.msra.mxu0 0.0
    %7452 = vmatprep.subr.mxu0 0.0
    %7453 = vmatpush1.msra.mxu0 0.0
    %7454 = vmatprep.subr.mxu0 0.0
    %7455 = vmatpush1.msra.mxu0 0.0
    %7456 = vmatprep.subr.mxu0 %v7426
    %7457 = vmatpush1.msra.mxu0 %v7424
    %7458 = vmatprep.subr.mxu0 %v7416
    %7459 = vmatpush1.msra.mxu0 %v7413
    %7460 = vmatprep.subr.mxu0 0.0
    %7461 = vmatpush2.msra.mxu0 0.0
    %7462 = vmatprep.subr.mxu0 0.0
    %7463 = vmatpush2.msra.mxu0 0.0
    %7464 = vmatprep.subr.mxu0 0.0
    %7465 = vmatpush2.msra.mxu0 0.0
    %7466 = vmatprep.subr.mxu0 0.0
    %7467 = vmatpush2.msra.mxu0 0.0
    %7468 = vmatprep.subr.mxu0 0.0
    %7469 = vmatpush2.msra.mxu0 0.0
    %7470 = vmatprep.subr.mxu0 0.0
    %7471 = vmatpush2.msra.mxu0 0.0
    %7472 = vmatprep.subr.mxu0 0.0
    %7473 = vmatpush2.msra.mxu0 0.0
    %7474 = vmatprep.subr.mxu0 0.0
    %7475 = vmatpush2.msra.mxu0 0.0
    %7476 = vmatprep.subr.mxu0 0.0
    %7477 = vmatpush2.msra.mxu0 0.0
    %7478 = vmatprep.subr.mxu0 0.0
    %7479 = vmatpush2.msra.mxu0 0.0
    %7480 = vmatprep.subr.mxu0 0.0
    %7481 = vmatpush2.msra.mxu0 0.0
    %7482 = vmatprep.subr.mxu0 0.0
    %7483 = vmatpush2.msra.mxu0 0.0
    %7484 = vmatprep.subr.mxu0 0.0
    %7485 = vmatpush2.msra.mxu0 0.0
    %7486 = vmatprep.subr.mxu0 0.0
    %7487 = vmatpush2.msra.mxu0 0.0
    %7488 = vmatprep.subr.mxu0 0.0
    %7489 = vmatpush2.msra.mxu0 0.0
    %7490 = vmatprep.subr.mxu0 0.0
    %7491 = vmatpush2.msra.mxu0 0.0
    %7492 = vmatprep.mubr.f32.mxu0 0.0
    %7493 = vmatmul.mubr.f32.gmra.mxu0 %v7421
    %v7494 = vpop.f32.mrf.mxu0
    %v7495 = vadd.f32 0.0, %v7494
    %v7496 = vpop.f32.mrf.mxu0
    %v7497 = vadd.f32 0.0, %v7496
    %7498 = vdwg.mxu0
    %v7499 = vld [vmem:[%s20] sm:$0xff]
    %v7500 = vld [vmem:[%s20 + $0x8] sm:$0xff]
    %v7501 = vld [vmem:[%s20 + $0x10] sm:$0xff]
    %v7502 = vld [vmem:[%s20 + $0x18] sm:$0xff]
    %v7503 = vld [vmem:[%s20 + $0x20] sm:$0xff]
    %v7504 = vld [vmem:[%s20 + $0x28] sm:$0xff]
    %v7505 = vld [vmem:[%s20 + $0x30] sm:$0xff]
    %v7506 = vld [vmem:[%s20 + $0x38] sm:$0xff]
    %v7507 = vld [vmem:[%s20 + $0x40] sm:$0xff]
    %v7508 = vld [vmem:[%s20 + $0x48] sm:$0xff]
    %v7509 = vld [vmem:[%s20 + $0x50] sm:$0xff]
    %v7510 = vld [vmem:[%s20 + $0x58] sm:$0xff]
    %v7511 = vld [vmem:[%s20 + $0x60] sm:$0xff]
    %v7512 = vld [vmem:[%s20 + $0x68] sm:$0xff]
    %v7513 = vld [vmem:[%s20 + $0x70] sm:$0xff]
    %v7514 = vld [vmem:[%s20 + $0x78] sm:$0xff]
    %v7515 = vld [vmem:[%s20 + $0x80] sm:$0xff]
    %v7516 = vld [vmem:[%s20 + $0x88] sm:$0xff]
    %v7517 = vld [vmem:[%s20 + $0x90] sm:$0xff]
    %v7518 = vld [vmem:[%s20 + $0x98] sm:$0xff]
    %v7519 = vld [vmem:[%s20 + $0xa0] sm:$0xff]
    %v7520 = vld [vmem:[%s20 + $0xa8] sm:$0xff]
    %v7521 = vld [vmem:[%s20 + $0xb0] sm:$0xff]
    %v7522 = vld [vmem:[%s20 + $0xb8] sm:$0xff]
    %v7523 = vld [vmem:[%s20 + $0xc0] sm:$0xff]
    %v7524 = vld [vmem:[%s20 + $0xc8] sm:$0xff]
    %v7525 = vld [vmem:[%s20 + $0xd0] sm:$0xff]
    %v7526 = vld [vmem:[%s20 + $0xd8] sm:$0xff]
    %v7527 = vld [vmem:[%s20 + $0xe0] sm:$0xff]
    %v7528 = vld [vmem:[%s20 + $0xe8] sm:$0xff]
    %v7529 = vld [vmem:[%s20 + $0xf0] sm:$0xff]
    %v7530 = vld [vmem:[%s20 + $0xf8] sm:$0xff]
    %v7531 = vld [vmem:[%s21] sm:$0x1]
    %v7533 = vlaneseq
    %v7534 = vshrl.u32 %v7533, 7
    %v7535 = vsub.s32 0, %v7534
    %v7536 = vrot.slane %v7531, %v7535
    %7538 = vmatprep.subr.mxu0 0.0
    %7539 = vmatpush1.msra.mxu0 %v7514
    %7540 = vmatprep.subr.mxu0 0.0
    %7541 = vmatpush1.msra.mxu0 %v7513
    %7542 = vmatprep.subr.mxu0 0.0
    %7543 = vmatpush1.msra.mxu0 %v7512
    %7544 = vmatprep.subr.mxu0 0.0
    %7545 = vmatpush1.msra.mxu0 %v7511
    %7546 = vmatprep.subr.mxu0 0.0
    %7547 = vmatpush1.msra.mxu0 %v7510
    %7548 = vmatprep.subr.mxu0 0.0
    %7549 = vmatpush1.msra.mxu0 %v7509
    %7550 = vmatprep.subr.mxu0 0.0
    %7551 = vmatpush1.msra.mxu0 %v7508
    %7552 = vmatprep.subr.mxu0 0.0
    %7553 = vmatpush1.msra.mxu0 %v7507
    %7554 = vmatprep.subr.mxu0 0.0
    %7555 = vmatpush1.msra.mxu0 %v7506
    %7556 = vmatprep.subr.mxu0 0.0
    %7557 = vmatpush1.msra.mxu0 %v7505
    %7558 = vmatprep.subr.mxu0 0.0
    %7559 = vmatpush1.msra.mxu0 %v7504
    %7560 = vmatprep.subr.mxu0 0.0
    %7561 = vmatpush1.msra.mxu0 %v7503
    %7562 = vmatprep.subr.mxu0 0.0
    %7563 = vmatpush1.msra.mxu0 %v7502
    %7564 = vmatprep.subr.mxu0 0.0
    %7565 = vmatpush1.msra.mxu0 %v7501
    %7566 = vmatprep.subr.mxu0 0.0
    %7567 = vmatpush1.msra.mxu0 %v7500
    %7568 = vmatprep.subr.mxu0 0.0
    %7569 = vmatpush1.msra.mxu0 %v7499
    %7570 = vmatprep.subr.mxu0 0.0
    %7571 = vmatpush2.msra.mxu0 %v7530
    %7572 = vmatprep.subr.mxu0 0.0
    %7573 = vmatpush2.msra.mxu0 %v7529
    %7574 = vmatprep.subr.mxu0 0.0
    %7575 = vmatpush2.msra.mxu0 %v7528
    %7576 = vmatprep.subr.mxu0 0.0
    %7577 = vmatpush2.msra.mxu0 %v7527
    %7578 = vmatprep.subr.mxu0 0.0
    %7579 = vmatpush2.msra.mxu0 %v7526
    %7580 = vmatprep.subr.mxu0 0.0
    %7581 = vmatpush2.msra.mxu0 %v7525
    %7582 = vmatprep.subr.mxu0 0.0
    %7583 = vmatpush2.msra.mxu0 %v7524
    %7584 = vmatprep.subr.mxu0 0.0
    %7585 = vmatpush2.msra.mxu0 %v7523
    %7586 = vmatprep.subr.mxu0 0.0
    %7587 = vmatpush2.msra.mxu0 %v7522
    %7588 = vmatprep.subr.mxu0 0.0
    %7589 = vmatpush2.msra.mxu0 %v7521
    %7590 = vmatprep.subr.mxu0 0.0
    %7591 = vmatpush2.msra.mxu0 %v7520
    %7592 = vmatprep.subr.mxu0 0.0
    %7593 = vmatpush2.msra.mxu0 %v7519
    %7594 = vmatprep.subr.mxu0 0.0
    %7595 = vmatpush2.msra.mxu0 %v7518
    %7596 = vmatprep.subr.mxu0 0.0
    %7597 = vmatpush2.msra.mxu0 %v7517
    %7598 = vmatprep.subr.mxu0 0.0
    %7599 = vmatpush2.msra.mxu0 %v7516
    %7600 = vmatprep.subr.mxu0 0.0
    %7601 = vmatpush2.msra.mxu0 %v7515
    %7602 = vmatprep.mubr.f32.mxu0 %v7497
    %7603 = vmatmul.mubr.f32.gmra.mxu0 %v7495
    %v7604 = vpop.f32.mrf.mxu0
    %v7605 = vadd.f32 %v7536, %v7604
    %v7606 = vpop.f32.mrf.mxu0
    %7607 = vdwg.mxu0
    %vm7608 = vcmask 74752
    %7609 = vst.msk [vmem:[#allocation5] sm:$0x3] %vm7608, %v7605
    // Predicated region
    $region90: #{resnet_forward.1} parent=1 // pred_check
      _
    $region91: #{resnet_forward.1} parent=1 // pred_check_branch
      %7611 = sbr.rel (0) target = $region93
    $region92: #{resnet_forward.1} parent=1 // pred_region
      %s7613 = ssub.s32 32, 32
      %7614 = vsyncadd [#allocation6], %s7613
      %s7616 = sshll.u32 [#allocation5], 4
      %s7617 = int_to_ptr.vmem [resolvable:$true] %s7616
      %7619 = dma.vmem_to_hbm [thread:$0]  %s7617, 32, %s22, [#allocation6]
    $region93: #{resnet_forward.1} parent=1 // pred_fallthru
      _
    // Predicated region
    $region94: #{resnet_forward.1} parent=1 // pred_check
      _
    $region95: #{resnet_forward.1} parent=1 // pred_check_branch
      %7621 = sbr.rel (0) target = $region97
    $region96: #{resnet_forward.1} parent=1 // pred_region
      %7622 = dma.done [#allocation6], 32
    $region97: #{resnet_forward.1} parent=1 // pred_fallthru
      _
    %7623 = vsyncpa [#allocation6], 1

</llo_original>
